<compile_context>
chip_gen: v5e
topology: v5e:2x2
jax: 0.10.0
libtpu: 0.0.40
codegen_flags: <defaults>
</compile_context>

<pallas_src>
import functools

import jax
import jax.numpy as jnp
from jax.experimental import pallas as pl
from jax.experimental.pallas import tpu as pltpu

FEAT_C = 2048        # Xception feature channels
VAP_DIM = 512        # linear1.in_features
HID = 1024           # linear1.out_features / ln1 normalized shape
NUM_CLASS = 2
LN_EPS = 1e-5
BN_EPS = 1e-5

K1_PAD = 32          # conv1 GEMM K padded 27 -> 32
C1_PAD = 128         # conv1 output channels padded 32 -> 128 (kept for conv2)


def _full_spec(shape):
    nd = len(shape)
    return pl.BlockSpec(shape, lambda i, _n=nd: (0,) * _n)


def _largest_tile(dim, cap):
    """Largest multiple of 128 that divides `dim` and is <= cap (else full dim)."""
    if dim <= cap:
        return dim
    t = (cap // 128) * 128
    while t >= 128:
        if dim % t == 0:
            return t
        t -= 128
    return dim


def im2col_nhwc(x, k, stride):
    """x: (N, H, W, C) -> (N, OH*OW, k*k*C) with (kh, kw) major, C minor."""
    n, h, w, c = x.shape
    oh = (h - k) // stride + 1
    ow = (w - k) // stride + 1
    cols = []
    for i in range(k):
        for j in range(k):
            cols.append(x[:, i:i + stride * oh:stride, j:j + stride * ow:stride, :])
    p = jnp.stack(cols, axis=3)                          # (N, OH, OW, k*k, C)
    return p.reshape(n, oh * ow, k * k * c), oh, ow


# ---------------------------------------------------------------------------
# Kernel 1: tiled (im2col-matmul) conv + folded BatchNorm + ReLU
#   grid = (M/tm, N/tn, K/tk), f32 accumulator in VMEM, epilogue at k == last.
# ---------------------------------------------------------------------------
def _matmul_bn_act_kernel(x_ref, w_ref, s_ref, b_ref, o_ref, acc_ref, *, relu):
    k = pl.program_id(2)

    @pl.when(k == 0)
    def _init():
        acc_ref[...] = jnp.zeros_like(acc_ref)

    acc_ref[...] += jnp.dot(x_ref[...], w_ref[...],
                            preferred_element_type=jnp.float32)

    @pl.when(k == pl.num_programs(2) - 1)
    def _finalize():
        y = acc_ref[...] * s_ref[...] + b_ref[...]
        if relu:
            y = jnp.maximum(y, 0.0)
        o_ref[...] = y.astype(o_ref.dtype)


def matmul_bn_act(x, w, scale, bias, *, relu=True, out_dtype=jnp.bfloat16,
                  tm=256, tn=512, tk=512):
    M, K = x.shape
    _, N = w.shape
    tn = _largest_tile(N, tn)
    tk = _largest_tile(K, tk)
    mp = pl.cdiv(M, tm) * tm
    if mp != M:
        x = jnp.pad(x, ((0, mp - M), (0, 0)))
    grid = (mp // tm, N // tn, K // tk)

    out = pl.pallas_call(
        functools.partial(_matmul_bn_act_kernel, relu=relu),
        out_shape=jax.ShapeDtypeStruct((mp, N), out_dtype),
        grid=grid,
        in_specs=[pl.BlockSpec((tm, tk), lambda i, j, k: (i, k)),
                  pl.BlockSpec((tk, tn), lambda i, j, k: (k, j)),
                  pl.BlockSpec((1, tn), lambda i, j, k: (0, j)),
                  pl.BlockSpec((1, tn), lambda i, j, k: (0, j))],
        out_specs=pl.BlockSpec((tm, tn), lambda i, j, k: (i, j)),
        scratch_shapes=[pltpu.VMEM((tm, tn), jnp.float32)],
        compiler_params=pltpu.CompilerParams(
            dimension_semantics=("parallel", "parallel", "arbitrary")),
    )(x, w, scale.reshape(1, N).astype(jnp.float32),
      bias.reshape(1, N).astype(jnp.float32))
    return out[:M] if mp != M else out


# ---------------------------------------------------------------------------
# Kernel 2: conv2 GEMM + BN + ReLU with the AdaptiveAvgPool2d(1) fused into the
#   epilogue: per image we accumulate the (rows, tn) tile over K, then emit the
#   pooled (1, tn) mean directly. The full feature map never hits HBM.
#   grid = (image, N/tn, K/tk)
# ---------------------------------------------------------------------------
def _conv_gap_kernel(p_ref, w_ref, s_ref, b_ref, o_ref, acc_ref, *, inv_rows):
    k = pl.program_id(2)

    @pl.when(k == 0)
    def _init():
        acc_ref[...] = jnp.zeros_like(acc_ref)

    acc_ref[...] += jnp.dot(p_ref[...], w_ref[...],
                            preferred_element_type=jnp.float32)

    @pl.when(k == pl.num_programs(2) - 1)
    def _finalize():
        y = jnp.maximum(acc_ref[...] * s_ref[...] + b_ref[...], 0.0)
        o_ref[...] = (jnp.sum(y, axis=0, keepdims=True) * inv_rows
                      ).astype(o_ref.dtype)


def conv_bn_relu_gap(patches, w, scale, bias, *, tn=512, tk=512):
    n_img, r, K = patches.shape
    _, N = w.shape
    tn = _largest_tile(N, tn)
    tk = _largest_tile(K, tk)
    grid = (n_img, N // tn, K // tk)

    out = pl.pallas_call(
        functools.partial(_conv_gap_kernel, inv_rows=1.0 / r),
        out_shape=jax.ShapeDtypeStruct((n_img, 1, N), jnp.float32),
        grid=grid,
        in_specs=[pl.BlockSpec((None, r, tk), lambda n, j, k: (n, 0, k)),
                  pl.BlockSpec((tk, tn), lambda n, j, k: (k, j)),
                  pl.BlockSpec((1, tn), lambda n, j, k: (0, j)),
                  pl.BlockSpec((1, tn), lambda n, j, k: (0, j))],
        out_specs=pl.BlockSpec((None, 1, tn), lambda n, j, k: (n, 0, j)),
        scratch_shapes=[pltpu.VMEM((r, tn), jnp.float32)],
        compiler_params=pltpu.CompilerParams(
            dimension_semantics=("parallel", "parallel", "arbitrary")),
    )(patches, w, scale.reshape(1, N).astype(jnp.float32),
      bias.reshape(1, N).astype(jnp.float32))
    return out.reshape(n_img, N)


# ---------------------------------------------------------------------------
# Kernel 3: VAP (segment attention pooling + 2048->512 proj) + linear1 +
#           LayerNorm(1024) + LeakyReLU + fc(1024->2, no bias).
#           Dropout(0.2) is eval-mode identity. (Tiny, latency-bound.)
# ---------------------------------------------------------------------------
def _head_kernel(feat_ref, watt_ref, wvap_ref, bvap_ref, w1_ref, b1_ref,
                 g_ref, be_ref, wfc_ref, o_ref):
    feat = feat_ref[...]                                   # (B, S, C) f32
    watt = watt_ref[...]                                   # (1, C)

    # VAP: softmax attention over segments, then pooled projection to 512.
    logits = jnp.sum(feat * watt[None, :, :], axis=-1)     # (B, S)
    m = jnp.max(logits, axis=-1, keepdims=True)
    e = jnp.exp(logits - m)
    att = e * pl.reciprocal(jnp.sum(e, axis=-1, keepdims=True), approx=True)
    pooled = jnp.sum(feat * att[:, :, None], axis=1)       # (B, C)
    vap = jnp.dot(pooled.astype(jnp.bfloat16), wvap_ref[...],
                  preferred_element_type=jnp.float32) + bvap_ref[...]      # (B, 512)

    # linear1
    h = jnp.dot(vap.astype(jnp.bfloat16), w1_ref[...],
                preferred_element_type=jnp.float32) + b1_ref[...]          # (B, 1024)

    # LayerNorm(1024)
    mu = jnp.mean(h, axis=-1, keepdims=True)
    var = jnp.mean(jnp.square(h - mu), axis=-1, keepdims=True)
    hn = (h - mu) * jax.lax.rsqrt(var + LN_EPS)
    hn = hn * g_ref[...] + be_ref[...]

    # LeakyReLU (default negative_slope = 0.01)
    hl = jnp.where(hn >= 0.0, hn, 0.01 * hn)

    # fc (no bias); Dropout is identity in eval mode.
    o_ref[...] = jnp.dot(hl, wfc_ref[...], preferred_element_type=jnp.float32)


def head(feat, p):
    b = feat.shape[0]
    args = (feat, p["w_att"], p["w_vap"], p["b_vap"], p["w1"], p["b1"],
            p["ln1_gamma"], p["ln1_beta"], p["w_fc"])
    return pl.pallas_call(
        _head_kernel,
        out_shape=jax.ShapeDtypeStruct((b, NUM_CLASS), jnp.float32),
        grid=(1,),
        in_specs=[_full_spec(a.shape) for a in args],
        out_specs=_full_spec((b, NUM_CLASS)),
    )(*args)


# ---------------------------------------------------------------------------
# Full forward
# ---------------------------------------------------------------------------
def two_stream_net_forward(x, p):
    b, s, cin, h, w = x.shape
    # x.view((-1, 3) + size[-2:]); converted once to NHWC so channels stay on lanes.
    xf = x.reshape(b * s, cin, h, w).transpose(0, 2, 3, 1)

    # Stand-in Xception backbone (see TODO at top):
    #   conv(3x3, s2) + BN + ReLU   -> (N, OH1, OW1, 128)  [32 real + 96 zero-pad chans]
    #   conv(3x3, s1) + BN + ReLU + AdaptiveAvgPool2d(1)  -> (N, 2048)
    p1, oh1, ow1 = im2col_nhwc(xf, 3, 2)                     # (N, OH1*OW1, 27)
    p1 = p1.reshape(b * s * oh1 * ow1, -1)
    p1 = jnp.pad(p1, ((0, 0), (0, K1_PAD - p1.shape[1]))).astype(jnp.bfloat16)
    y1 = matmul_bn_act(p1, p["w_conv1"], p["bn1_scale"], p["bn1_bias"],
                       relu=True, out_dtype=jnp.bfloat16)
    y1 = y1.reshape(b * s, oh1, ow1, C1_PAD)                 # NHWC, lane-dense

    p2, _, _ = im2col_nhwc(y1, 3, 1)                         # (N, OH2*OW2, 9*128) bf16
    pooled = conv_bn_relu_gap(p2, p["w_conv2"], p["bn2_scale"], p["bn2_bias"])

    feat = pooled.reshape(b, s, FEAT_C)                      # (B, segments, 2048)
    return head(feat, p)                                     # (B, num_class)


# ---------------------------------------------------------------------------
# Deterministic parameter init (kaiming-ish for convs, PyTorch-default-ish else)
# ---------------------------------------------------------------------------
def init_params(key):
    ks = jax.random.split(key, 8)

    def kaiming(k, shape, fan_in):
        return jax.random.normal(k, shape, jnp.float32) * (1.0 / fan_in) ** 0.5

    bn_scale = 1.0 / (1.0 + BN_EPS) ** 0.5           # eval-mode BN fold (gamma=1, beta=0)

    # conv1: real shape (27, 32), zero-padded to (32, 128) for MXU alignment.
    w1 = kaiming(ks[0], (27, 32), 27)
    w1 = jnp.pad(w1, ((0, K1_PAD - 27), (0, C1_PAD - 32)))

    p = {
        "w_conv1": w1.astype(jnp.bfloat16),
        "bn1_scale": jnp.full((C1_PAD,), bn_scale, jnp.float32),
        "bn1_bias": jnp.zeros((C1_PAD,), jnp.float32),
        # conv2: K = 9 * 128 padded channels (padded rows hit zero activations).
        "w_conv2": kaiming(ks[1], (9 * C1_PAD, FEAT_C), 288).astype(jnp.bfloat16),
        "bn2_scale": jnp.full((FEAT_C,), bn_scale, jnp.float32),
        "bn2_bias": jnp.zeros((FEAT_C,), jnp.float32),
        "w_att": kaiming(ks[2], (1, FEAT_C), FEAT_C),
        "w_vap": kaiming(ks[3], (FEAT_C, VAP_DIM), FEAT_C).astype(jnp.bfloat16),
        "b_vap": jnp.zeros((1, VAP_DIM), jnp.float32),
        "w1": (jax.random.uniform(ks[4], (VAP_DIM, HID), jnp.float32, -1.0, 1.0)
               * (1.0 / VAP_DIM ** 0.5)).astype(jnp.bfloat16),
        "b1": jax.random.uniform(ks[5], (1, HID), jnp.float32, -1.0, 1.0)
              * (1.0 / VAP_DIM ** 0.5),
        "ln1_gamma": jnp.ones((1, HID), jnp.float32),
        "ln1_beta": jnp.zeros((1, HID), jnp.float32),
        "w_fc": jax.random.uniform(ks[6], (HID, NUM_CLASS), jnp.float32, -1.0, 1.0)
                * (1.0 / HID ** 0.5),
    }
    return p


if __name__ == "__main__":
    B, S, H, W = 2, 8, 16, 16                        # segments=8 (module default)
    key = jax.random.PRNGKey(0)
    kx, kp = jax.random.split(key)
    x = jax.random.normal(kx, (B, S, 3, H, W), jnp.float32)
    params = init_params(kp)

    fwd = jax.jit(two_stream_net_forward)
    out = fwd(x, params)
    out = jax.block_until_ready(out)

    assert out.shape == (B, NUM_CLASS), out.shape
    assert jnp.all(jnp.isfinite(out))
    print("KERNEL_OK")
</pallas_src>

<mosaic_0001>
module attributes {stable_mosaic.version = 11 : i64} {
  func.func @_matmul_bn_act_kernel(%arg0: i32, %arg1: i32, %arg2: i32, %arg3: memref<256x32xbf16, #tpu.memory_space<vmem>>, %arg4: memref<32x128xbf16, #tpu.memory_space<vmem>>, %arg5: memref<1x128xf32, #tpu.memory_space<vmem>>, %arg6: memref<1x128xf32, #tpu.memory_space<vmem>>, %arg7: memref<256x128xbf16, #tpu.memory_space<vmem>>, %arg8: memref<256x128xf32, #tpu.memory_space<vmem>>) attributes {dimension_semantics = [#tpu.dimension_semantics<parallel>, #tpu.dimension_semantics<parallel>, #tpu.dimension_semantics<arbitrary>], iteration_bounds = array<i64: 4, 1, 1>, scalar_prefetch = 0 : i64, scratch_operands = 1 : i64, tpu.core_type = #tpu.core_type<tc>, window_params = [{transform_indices = @transform_0, window_bounds = array<i64: 256, 32>}, {transform_indices = @transform_1, window_bounds = array<i64: 32, 128>}, {transform_indices = @transform_2, window_bounds = array<i64: 1, 128>}, {transform_indices = @transform_3, window_bounds = array<i64: 1, 128>}, {transform_indices = @transform_4, window_bounds = array<i64: 256, 128>}]} {
    %c0_i32 = arith.constant 0 : i32
    %0 = arith.cmpi eq, %arg2, %c0_i32 : i32
    %1 = arith.extui %0 : i1 to i32
    %c0_i32_0 = arith.constant 0 : i32
    %2 = arith.cmpi ne, %1, %c0_i32_0 : i32
    scf.if %2 {
      %cst_10 = arith.constant 0.000000e+00 : f32
      %12 = vector.broadcast %cst_10 : f32 to vector<256x128xf32>
      %c0_11 = arith.constant 0 : index
      %c0_12 = arith.constant 0 : index
      %13 = vector.load %arg8[%c0_11, %c0_12] : memref<256x128xf32, #tpu.memory_space<vmem>>, vector<256x128xf32>
      tpu.vector_store %arg8[%c0_11, %c0_12], %12 {strides = array<i32>} : memref<256x128xf32, #tpu.memory_space<vmem>>, vector<256x128xf32>,
    } else {
    }
    %c0 = arith.constant 0 : index
    %c0_1 = arith.constant 0 : index
    %3 = vector.load %arg8[%c0, %c0_1] : memref<256x128xf32, #tpu.memory_space<vmem>>, vector<256x128xf32>
    %c0_2 = arith.constant 0 : index
    %c0_3 = arith.constant 0 : index
    %4 = vector.load %arg3[%c0_2, %c0_3] : memref<256x32xbf16, #tpu.memory_space<vmem>>, vector<256x32xbf16>
    %c0_4 = arith.constant 0 : index
    %c0_5 = arith.constant 0 : index
    %5 = vector.load %arg4[%c0_4, %c0_5] : memref<32x128xbf16, #tpu.memory_space<vmem>>, vector<32x128xbf16>
    %cst = arith.constant dense<0.000000e+00> : vector<256x128xf32>
    %6 = tpu.matmul %4, %5, %cst {dimension_numbers = #tpu.dot_dimension_numbers<[1], [0], [0], [1], [0, 0, 1, 1], [], []>} : vector<256x32xbf16>, vector<32x128xbf16>, vector<256x128xf32> -> vector<256x128xf32>
    %7 = arith.addf %3, %6 : vector<256x128xf32>
    %c0_6 = arith.constant 0 : index
    %c0_7 = arith.constant 0 : index
    %8 = vector.load %arg8[%c0_6, %c0_7] : memref<256x128xf32, #tpu.memory_space<vmem>>, vector<256x128xf32>
    tpu.vector_store %arg8[%c0_6, %c0_7], %7 {strides = array<i32>} : memref<256x128xf32, #tpu.memory_space<vmem>>, vector<256x128xf32>,
    %c0_i32_8 = arith.constant 0 : i32
    %9 = arith.cmpi eq, %arg2, %c0_i32_8 : i32
    %10 = arith.extui %9 : i1 to i32
    %c0_i32_9 = arith.constant 0 : i32
    %11 = arith.cmpi ne, %10, %c0_i32_9 : i32
    scf.if %11 {
      %c0_10 = arith.constant 0 : index
      %c0_11 = arith.constant 0 : index
      %12 = vector.load %arg8[%c0_10, %c0_11] : memref<256x128xf32, #tpu.memory_space<vmem>>, vector<256x128xf32>
      %c0_12 = arith.constant 0 : index
      %c0_13 = arith.constant 0 : index
      %13 = vector.load %arg5[%c0_12, %c0_13] : memref<1x128xf32, #tpu.memory_space<vmem>>, vector<1x128xf32>
      %14 = vector.broadcast %13 : vector<1x128xf32> to vector<256x128xf32>
      %15 = arith.mulf %12, %14 : vector<256x128xf32>
      %c0_14 = arith.constant 0 : index
      %c0_15 = arith.constant 0 : index
      %16 = vector.load %arg6[%c0_14, %c0_15] : memref<1x128xf32, #tpu.memory_space<vmem>>, vector<1x128xf32>
      %17 = vector.broadcast %16 : vector<1x128xf32> to vector<256x128xf32>
      %18 = arith.addf %15, %17 : vector<256x128xf32>
      %cst_16 = arith.constant 0.000000e+00 : f32
      %19 = vector.broadcast %cst_16 : f32 to vector<256x128xf32>
      %20 = arith.maximumf %18, %19 : vector<256x128xf32>
      %21 = arith.truncf %20 : vector<256x128xf32> to vector<256x128xbf16>
      %c0_17 = arith.constant 0 : index
      %c0_18 = arith.constant 0 : index
      %22 = vector.load %arg7[%c0_17, %c0_18] : memref<256x128xbf16, #tpu.memory_space<vmem>>, vector<256x128xbf16>
      tpu.vector_store %arg7[%c0_17, %c0_18], %21 {strides = array<i32>} : memref<256x128xbf16, #tpu.memory_space<vmem>>, vector<256x128xbf16>,
    } else {
    }
    return
  }
  func.func @transform_0(%arg0: i32, %arg1: i32, %arg2: i32) -> (i32, i32) {
    %c0_i32 = arith.constant 0 : i32
    return %arg0, %arg2 : i32, i32
  }
  func.func @transform_1(%arg0: i32, %arg1: i32, %arg2: i32) -> (i32, i32) {
    %c0_i32 = arith.constant 0 : i32
    return %arg2, %arg1 : i32, i32
  }
  func.func @transform_2(%arg0: i32, %arg1: i32, %arg2: i32) -> (i32, i32) {
    %c0_i32 = arith.constant 0 : i32
    %c0_i32_0 = arith.constant 0 : i32
    return %c0_i32, %arg1 : i32, i32
  }
  func.func @transform_3(%arg0: i32, %arg1: i32, %arg2: i32) -> (i32, i32) {
    %c0_i32 = arith.constant 0 : i32
    %c0_i32_0 = arith.constant 0 : i32
    return %c0_i32, %arg1 : i32, i32
  }
  func.func @transform_4(%arg0: i32, %arg1: i32, %arg2: i32) -> (i32, i32) {
    %c0_i32 = arith.constant 0 : i32
    return %arg0, %arg1 : i32, i32
  }
}

module attributes {stable_mosaic.version = 11 : i64} {
  func.func @_conv_gap_kernel(%arg0: i32, %arg1: i32, %arg2: i32, %arg3: memref<1x25x384xbf16, #tpu.memory_space<vmem>>, %arg4: memref<384x512xbf16, #tpu.memory_space<vmem>>, %arg5: memref<1x512xf32, #tpu.memory_space<vmem>>, %arg6: memref<1x512xf32, #tpu.memory_space<vmem>>, %arg7: memref<1x1x512xf32, #tpu.memory_space<vmem>>, %arg8: memref<25x512xf32, #tpu.memory_space<vmem>>) attributes {dimension_semantics = [#tpu.dimension_semantics<parallel>, #tpu.dimension_semantics<parallel>, #tpu.dimension_semantics<arbitrary>], iteration_bounds = array<i64: 16, 4, 3>, scalar_prefetch = 0 : i64, scratch_operands = 1 : i64, tpu.core_type = #tpu.core_type<tc>, window_params = [{transform_indices = @transform_0, window_bounds = array<i64: 1, 25, 384>}, {transform_indices = @transform_1, window_bounds = array<i64: 384, 512>}, {transform_indices = @transform_2, window_bounds = array<i64: 1, 512>}, {transform_indices = @transform_3, window_bounds = array<i64: 1, 512>}, {transform_indices = @transform_4, window_bounds = array<i64: 1, 1, 512>}]} {
    %c0_i32 = arith.constant 0 : i32
    %0 = arith.cmpi eq, %arg2, %c0_i32 : i32
    %1 = arith.extui %0 : i1 to i32
    %c0_i32_0 = arith.constant 0 : i32
    %2 = arith.cmpi ne, %1, %c0_i32_0 : i32
    scf.if %2 {
      %cst_10 = arith.constant 0.000000e+00 : f32
      %13 = vector.broadcast %cst_10 : f32 to vector<25x512xf32>
      %c0_11 = arith.constant 0 : index
      %c0_12 = arith.constant 0 : index
      %14 = vector.load %arg8[%c0_11, %c0_12] : memref<25x512xf32, #tpu.memory_space<vmem>>, vector<25x512xf32>
      tpu.vector_store %arg8[%c0_11, %c0_12], %13 {strides = array<i32>} : memref<25x512xf32, #tpu.memory_space<vmem>>, vector<25x512xf32>,
    } else {
    }
    %c0 = arith.constant 0 : index
    %c0_1 = arith.constant 0 : index
    %3 = vector.load %arg8[%c0, %c0_1] : memref<25x512xf32, #tpu.memory_space<vmem>>, vector<25x512xf32>
    %c0_2 = arith.constant 0 : index
    %c0_3 = arith.constant 0 : index
    %c0_4 = arith.constant 0 : index
    %4 = vector.load %arg3[%c0_2, %c0_3, %c0_4] : memref<1x25x384xbf16, #tpu.memory_space<vmem>>, vector<1x25x384xbf16>
    %5 = vector.shape_cast %4 : vector<1x25x384xbf16> to vector<25x384xbf16>
    %c0_5 = arith.constant 0 : index
    %c0_6 = arith.constant 0 : index
    %6 = vector.load %arg4[%c0_5, %c0_6] : memref<384x512xbf16, #tpu.memory_space<vmem>>, vector<384x512xbf16>
    %cst = arith.constant dense<0.000000e+00> : vector<25x512xf32>
    %7 = tpu.matmul %5, %6, %cst {dimension_numbers = #tpu.dot_dimension_numbers<[1], [0], [0], [1], [0, 0, 1, 1], [], []>} : vector<25x384xbf16>, vector<384x512xbf16>, vector<25x512xf32> -> vector<25x512xf32>
    %8 = arith.addf %3, %7 : vector<25x512xf32>
    %c0_7 = arith.constant 0 : index
    %c0_8 = arith.constant 0 : index
    %9 = vector.load %arg8[%c0_7, %c0_8] : memref<25x512xf32, #tpu.memory_space<vmem>>, vector<25x512xf32>
    tpu.vector_store %arg8[%c0_7, %c0_8], %8 {strides = array<i32>} : memref<25x512xf32, #tpu.memory_space<vmem>>, vector<25x512xf32>,
    %c2_i32 = arith.constant 2 : i32
    %10 = arith.cmpi eq, %arg2, %c2_i32 : i32
    %11 = arith.extui %10 : i1 to i32
    %c0_i32_9 = arith.constant 0 : i32
    %12 = arith.cmpi ne, %11, %c0_i32_9 : i32
    scf.if %12 {
      %c0_10 = arith.constant 0 : index
      %c0_11 = arith.constant 0 : index
      %13 = vector.load %arg8[%c0_10, %c0_11] : memref<25x512xf32, #tpu.memory_space<vmem>>, vector<25x512xf32>
      %c0_12 = arith.constant 0 : index
      %c0_13 = arith.constant 0 : index
      %14 = vector.load %arg5[%c0_12, %c0_13] : memref<1x512xf32, #tpu.memory_space<vmem>>, vector<1x512xf32>
      %15 = vector.broadcast %14 : vector<1x512xf32> to vector<25x512xf32>
      %16 = arith.mulf %13, %15 : vector<25x512xf32>
      %c0_14 = arith.constant 0 : index
      %c0_15 = arith.constant 0 : index
      %17 = vector.load %arg6[%c0_14, %c0_15] : memref<1x512xf32, #tpu.memory_space<vmem>>, vector<1x512xf32>
      %18 = vector.broadcast %17 : vector<1x512xf32> to vector<25x512xf32>
      %19 = arith.addf %16, %18 : vector<25x512xf32>
      %cst_16 = arith.constant 0.000000e+00 : f32
      %20 = vector.broadcast %cst_16 : f32 to vector<25x512xf32>
      %21 = arith.maximumf %19, %20 : vector<25x512xf32>
      %cst_17 = arith.constant dense<0.000000e+00> : vector<512xf32>
      %22 = vector.multi_reduction <add>, %21, %cst_17 [0] : vector<25x512xf32> to vector<512xf32>
      %23 = vector.shape_cast %22 : vector<512xf32> to vector<1x512xf32>
      %cst_18 = arith.constant 4.000000e-02 : f32
      %24 = vector.broadcast %cst_18 : f32 to vector<1x512xf32>
      %25 = arith.mulf %23, %24 : vector<1x512xf32>
      %c0_19 = arith.constant 0 : index
      %c0_20 = arith.constant 0 : index
      %c0_21 = arith.constant 0 : index
      %26 = vector.load %arg7[%c0_19, %c0_20, %c0_21] : memref<1x1x512xf32, #tpu.memory_space<vmem>>, vector<1x1x512xf32>
      %27 = vector.shape_cast %26 : vector<1x1x512xf32> to vector<1x512xf32>
      %28 = vector.shape_cast %25 : vector<1x512xf32> to vector<1x1x512xf32>
      tpu.vector_store %arg7[%c0_19, %c0_20, %c0_21], %28 {strides = array<i32>} : memref<1x1x512xf32, #tpu.memory_space<vmem>>, vector<1x1x512xf32>,
    } else {
    }
    return
  }
  func.func @transform_0(%arg0: i32, %arg1: i32, %arg2: i32) -> (i32, i32, i32) {
    %c0_i32 = arith.constant 0 : i32
    %c0_i32_0 = arith.constant 0 : i32
    return %arg0, %c0_i32, %arg2 : i32, i32, i32
  }
  func.func @transform_1(%arg0: i32, %arg1: i32, %arg2: i32) -> (i32, i32) {
    %c0_i32 = arith.constant 0 : i32
    return %arg2, %arg1 : i32, i32
  }
  func.func @transform_2(%arg0: i32, %arg1: i32, %arg2: i32) -> (i32, i32) {
    %c0_i32 = arith.constant 0 : i32
    %c0_i32_0 = arith.constant 0 : i32
    return %c0_i32, %arg1 : i32, i32
  }
  func.func @transform_3(%arg0: i32, %arg1: i32, %arg2: i32) -> (i32, i32) {
    %c0_i32 = arith.constant 0 : i32
    %c0_i32_0 = arith.constant 0 : i32
    return %c0_i32, %arg1 : i32, i32
  }
  func.func @transform_4(%arg0: i32, %arg1: i32, %arg2: i32) -> (i32, i32, i32) {
    %c0_i32 = arith.constant 0 : i32
    %c0_i32_0 = arith.constant 0 : i32
    return %arg0, %c0_i32, %arg1 : i32, i32, i32
  }
}

module attributes {stable_mosaic.version = 11 : i64} {
  func.func @_head_kernel(%arg0: i32, %arg1: memref<2x8x2048xf32, #tpu.memory_space<vmem>>, %arg2: memref<1x2048xf32, #tpu.memory_space<vmem>>, %arg3: memref<2048x512xbf16, #tpu.memory_space<vmem>>, %arg4: memref<1x512xf32, #tpu.memory_space<vmem>>, %arg5: memref<512x1024xbf16, #tpu.memory_space<vmem>>, %arg6: memref<1x1024xf32, #tpu.memory_space<vmem>>, %arg7: memref<1x1024xf32, #tpu.memory_space<vmem>>, %arg8: memref<1x1024xf32, #tpu.memory_space<vmem>>, %arg9: memref<1024x2xf32, #tpu.memory_space<vmem>>, %arg10: memref<2x2xf32, #tpu.memory_space<vmem>>) attributes {dimension_semantics = [#tpu.dimension_semantics<arbitrary>], iteration_bounds = array<i64: 1>, scalar_prefetch = 0 : i64, scratch_operands = 0 : i64, tpu.core_type = #tpu.core_type<tc>, window_params = [{pipeline_mode = #tpu.pipeline_mode<synchronous>, transform_indices = @transform_0, window_bounds = array<i64: 2, 8, 2048>}, {pipeline_mode = #tpu.pipeline_mode<synchronous>, transform_indices = @transform_1, window_bounds = array<i64: 1, 2048>}, {pipeline_mode = #tpu.pipeline_mode<synchronous>, transform_indices = @transform_2, window_bounds = array<i64: 2048, 512>}, {pipeline_mode = #tpu.pipeline_mode<synchronous>, transform_indices = @transform_3, window_bounds = array<i64: 1, 512>}, {pipeline_mode = #tpu.pipeline_mode<synchronous>, transform_indices = @transform_4, window_bounds = array<i64: 512, 1024>}, {pipeline_mode = #tpu.pipeline_mode<synchronous>, transform_indices = @transform_5, window_bounds = array<i64: 1, 1024>}, {pipeline_mode = #tpu.pipeline_mode<synchronous>, transform_indices = @transform_6, window_bounds = array<i64: 1, 1024>}, {pipeline_mode = #tpu.pipeline_mode<synchronous>, transform_indices = @transform_7, window_bounds = array<i64: 1, 1024>}, {pipeline_mode = #tpu.pipeline_mode<synchronous>, transform_indices = @transform_8, window_bounds = array<i64: 1024, 2>}, {pipeline_mode = #tpu.pipeline_mode<synchronous>, transform_indices = @transform_9, window_bounds = array<i64: 2, 2>}]} {
    %c0 = arith.constant 0 : index
    %c0_0 = arith.constant 0 : index
    %c0_1 = arith.constant 0 : index
    %0 = vector.load %arg1[%c0, %c0_0, %c0_1] : memref<2x8x2048xf32, #tpu.memory_space<vmem>>, vector<2x8x2048xf32>
    %c0_2 = arith.constant 0 : index
    %c0_3 = arith.constant 0 : index
    %1 = vector.load %arg2[%c0_2, %c0_3] : memref<1x2048xf32, #tpu.memory_space<vmem>>, vector<1x2048xf32>
    %2 = vector.shape_cast %1 : vector<1x2048xf32> to vector<1x1x2048xf32>
    %3 = vector.broadcast %2 : vector<1x1x2048xf32> to vector<2x8x2048xf32>
    %4 = arith.mulf %0, %3 : vector<2x8x2048xf32>
    %cst = arith.constant dense<0.000000e+00> : vector<2x8xf32>
    %5 = vector.multi_reduction <add>, %4, %cst [2] : vector<2x8x2048xf32> to vector<2x8xf32>
    %cst_4 = arith.constant dense<0xFF800000> : vector<2xf32>
    %6 = vector.multi_reduction <maximumf>, %5, %cst_4 [1] : vector<2x8xf32> to vector<2xf32>
    %7 = vector.shape_cast %6 : vector<2xf32> to vector<2x1xf32>
    %8 = vector.broadcast %7 : vector<2x1xf32> to vector<2x8xf32>
    %9 = arith.subf %5, %8 : vector<2x8xf32>
    %10 = math.exp %9 : vector<2x8xf32>
    %cst_5 = arith.constant dense<0.000000e+00> : vector<2xf32>
    %11 = vector.multi_reduction <add>, %10, %cst_5 [1] : vector<2x8xf32> to vector<2xf32>
    %12 = vector.shape_cast %11 : vector<2xf32> to vector<2x1xf32>
    %13 = tpu.reciprocal %12 {approx = true} : vector<2x1xf32> -> vector<2x1xf32>
    %14 = vector.broadcast %13 : vector<2x1xf32> to vector<2x8xf32>
    %15 = arith.mulf %10, %14 : vector<2x8xf32>
    %16 = vector.shape_cast %15 : vector<2x8xf32> to vector<2x8x1xf32>
    %17 = vector.broadcast %16 : vector<2x8x1xf32> to vector<2x8x2048xf32>
    %18 = arith.mulf %0, %17 : vector<2x8x2048xf32>
    %cst_6 = arith.constant dense<0.000000e+00> : vector<2x2048xf32>
    %19 = vector.multi_reduction <add>, %18, %cst_6 [1] : vector<2x8x2048xf32> to vector<2x2048xf32>
    %20 = arith.truncf %19 : vector<2x2048xf32> to vector<2x2048xbf16>
    %c0_7 = arith.constant 0 : index
    %c0_8 = arith.constant 0 : index
    %21 = vector.load %arg3[%c0_7, %c0_8] : memref<2048x512xbf16, #tpu.memory_space<vmem>>, vector<2048x512xbf16>
    %cst_9 = arith.constant dense<0.000000e+00> : vector<2x512xf32>
    %22 = tpu.matmul %20, %21, %cst_9 {dimension_numbers = #tpu.dot_dimension_numbers<[1], [0], [0], [1], [0, 0, 1, 1], [], []>} : vector<2x2048xbf16>, vector<2048x512xbf16>, vector<2x512xf32> -> vector<2x512xf32>
    %c0_10 = arith.constant 0 : index
    %c0_11 = arith.constant 0 : index
    %23 = vector.load %arg4[%c0_10, %c0_11] : memref<1x512xf32, #tpu.memory_space<vmem>>, vector<1x512xf32>
    %24 = vector.broadcast %23 : vector<1x512xf32> to vector<2x512xf32>
    %25 = arith.addf %22, %24 : vector<2x512xf32>
    %26 = arith.truncf %25 : vector<2x512xf32> to vector<2x512xbf16>
    %c0_12 = arith.constant 0 : index
    %c0_13 = arith.constant 0 : index
    %27 = vector.load %arg5[%c0_12, %c0_13] : memref<512x1024xbf16, #tpu.memory_space<vmem>>, vector<512x1024xbf16>
    %cst_14 = arith.constant dense<0.000000e+00> : vector<2x1024xf32>
    %28 = tpu.matmul %26, %27, %cst_14 {dimension_numbers = #tpu.dot_dimension_numbers<[1], [0], [0], [1], [0, 0, 1, 1], [], []>} : vector<2x512xbf16>, vector<512x1024xbf16>, vector<2x1024xf32> -> vector<2x1024xf32>
    %c0_15 = arith.constant 0 : index
    %c0_16 = arith.constant 0 : index
    %29 = vector.load %arg6[%c0_15, %c0_16] : memref<1x1024xf32, #tpu.memory_space<vmem>>, vector<1x1024xf32>
    %30 = vector.broadcast %29 : vector<1x1024xf32> to vector<2x1024xf32>
    %31 = arith.addf %28, %30 : vector<2x1024xf32>
    %cst_17 = arith.constant dense<0.000000e+00> : vector<2xf32>
    %32 = vector.multi_reduction <add>, %31, %cst_17 [1] : vector<2x1024xf32> to vector<2xf32>
    %33 = vector.shape_cast %32 : vector<2xf32> to vector<2x1xf32>
    %cst_18 = arith.constant 1.024000e+03 : f32
    %34 = vector.broadcast %cst_18 : f32 to vector<2x1xf32>
    %35 = arith.divf %33, %34 : vector<2x1xf32>
    %36 = vector.broadcast %35 : vector<2x1xf32> to vector<2x1024xf32>
    %37 = arith.subf %31, %36 : vector<2x1024xf32>
    %38 = arith.mulf %37, %37 : vector<2x1024xf32>
    %cst_19 = arith.constant dense<0.000000e+00> : vector<2xf32>
    %39 = vector.multi_reduction <add>, %38, %cst_19 [1] : vector<2x1024xf32> to vector<2xf32>
    %40 = vector.shape_cast %39 : vector<2xf32> to vector<2x1xf32>
    %cst_20 = arith.constant 1.024000e+03 : f32
    %41 = vector.broadcast %cst_20 : f32 to vector<2x1xf32>
    %42 = arith.divf %40, %41 : vector<2x1xf32>
    %43 = vector.broadcast %35 : vector<2x1xf32> to vector<2x1024xf32>
    %44 = arith.subf %31, %43 : vector<2x1024xf32>
    %cst_21 = arith.constant 9.99999974E-6 : f32
    %45 = vector.broadcast %cst_21 : f32 to vector<2x1xf32>
    %46 = arith.addf %42, %45 : vector<2x1xf32>
    %47 = math.rsqrt %46 : vector<2x1xf32>
    %48 = vector.broadcast %47 : vector<2x1xf32> to vector<2x1024xf32>
    %49 = arith.mulf %44, %48 : vector<2x1024xf32>
    %c0_22 = arith.constant 0 : index
    %c0_23 = arith.constant 0 : index
    %50 = vector.load %arg7[%c0_22, %c0_23] : memref<1x1024xf32, #tpu.memory_space<vmem>>, vector<1x1024xf32>
    %51 = vector.broadcast %50 : vector<1x1024xf32> to vector<2x1024xf32>
    %52 = arith.mulf %49, %51 : vector<2x1024xf32>
    %c0_24 = arith.constant 0 : index
    %c0_25 = arith.constant 0 : index
    %53 = vector.load %arg8[%c0_24, %c0_25] : memref<1x1024xf32, #tpu.memory_space<vmem>>, vector<1x1024xf32>
    %54 = vector.broadcast %53 : vector<1x1024xf32> to vector<2x1024xf32>
    %55 = arith.addf %52, %54 : vector<2x1024xf32>
    %cst_26 = arith.constant 0.000000e+00 : f32
    %56 = vector.broadcast %cst_26 : f32 to vector<2x1024xf32>
    %57 = arith.cmpf oge, %55, %56 : vector<2x1024xf32>
    %cst_27 = arith.constant 0.00999999977 : f32
    %58 = vector.broadcast %cst_27 : f32 to vector<2x1024xf32>
    %59 = arith.mulf %58, %55 : vector<2x1024xf32>
    %60 = arith.select %57, %55, %59 : vector<2x1024xi1>, vector<2x1024xf32>
    %c0_28 = arith.constant 0 : index
    %c0_29 = arith.constant 0 : index
    %61 = vector.load %arg9[%c0_28, %c0_29] : memref<1024x2xf32, #tpu.memory_space<vmem>>, vector<1024x2xf32>
    %cst_30 = arith.constant dense<0.000000e+00> : vector<2x2xf32>
    %62 = tpu.matmul %60, %61, %cst_30 {dimension_numbers = #tpu.dot_dimension_numbers<[1], [0], [0], [1], [0, 0, 1, 1], [], []>} : vector<2x1024xf32>, vector<1024x2xf32>, vector<2x2xf32> -> vector<2x2xf32>
    %c0_31 = arith.constant 0 : index
    %c0_32 = arith.constant 0 : index
    %63 = vector.load %arg10[%c0_31, %c0_32] : memref<2x2xf32, #tpu.memory_space<vmem>>, vector<2x2xf32>
    tpu.vector_store %arg10[%c0_31, %c0_32], %62 {strides = array<i32>} : memref<2x2xf32, #tpu.memory_space<vmem>>, vector<2x2xf32>,
    return
  }
  func.func @transform_0(%arg0: i32) -> (i32, i32, i32) {
    %c0_i32 = arith.constant 0 : i32
    %c0_i32_0 = arith.constant 0 : i32
    %c0_i32_1 = arith.constant 0 : i32
    %c0_i32_2 = arith.constant 0 : i32
    return %c0_i32, %c0_i32_0, %c0_i32_1 : i32, i32, i32
  }
  func.func @transform_1(%arg0: i32) -> (i32, i32) {
    %c0_i32 = arith.constant 0 : i32
    %c0_i32_0 = arith.constant 0 : i32
    %c0_i32_1 = arith.constant 0 : i32
    return %c0_i32, %c0_i32_0 : i32, i32
  }
  func.func @transform_2(%arg0: i32) -> (i32, i32) {
    %c0_i32 = arith.constant 0 : i32
    %c0_i32_0 = arith.constant 0 : i32
    %c0_i32_1 = arith.constant 0 : i32
    return %c0_i32, %c0_i32_0 : i32, i32
  }
  func.func @transform_3(%arg0: i32) -> (i32, i32) {
    %c0_i32 = arith.constant 0 : i32
    %c0_i32_0 = arith.constant 0 : i32
    %c0_i32_1 = arith.constant 0 : i32
    return %c0_i32, %c0_i32_0 : i32, i32
  }
  func.func @transform_4(%arg0: i32) -> (i32, i32) {
    %c0_i32 = arith.constant 0 : i32
    %c0_i32_0 = arith.constant 0 : i32
    %c0_i32_1 = arith.constant 0 : i32
    return %c0_i32, %c0_i32_0 : i32, i32
  }
  func.func @transform_5(%arg0: i32) -> (i32, i32) {
    %c0_i32 = arith.constant 0 : i32
    %c0_i32_0 = arith.constant 0 : i32
    %c0_i32_1 = arith.constant 0 : i32
    return %c0_i32, %c0_i32_0 : i32, i32
  }
  func.func @transform_6(%arg0: i32) -> (i32, i32) {
    %c0_i32 = arith.constant 0 : i32
    %c0_i32_0 = arith.constant 0 : i32
    %c0_i32_1 = arith.constant 0 : i32
    return %c0_i32, %c0_i32_0 : i32, i32
  }
  func.func @transform_7(%arg0: i32) -> (i32, i32) {
    %c0_i32 = arith.constant 0 : i32
    %c0_i32_0 = arith.constant 0 : i32
    %c0_i32_1 = arith.constant 0 : i32
    return %c0_i32, %c0_i32_0 : i32, i32
  }
  func.func @transform_8(%arg0: i32) -> (i32, i32) {
    %c0_i32 = arith.constant 0 : i32
    %c0_i32_0 = arith.constant 0 : i32
    %c0_i32_1 = arith.constant 0 : i32
    return %c0_i32, %c0_i32_0 : i32, i32
  }
  func.func @transform_9(%arg0: i32) -> (i32, i32) {
    %c0_i32 = arith.constant 0 : i32
    %c0_i32_0 = arith.constant 0 : i32
    %c0_i32_1 = arith.constant 0 : i32
    return %c0_i32, %c0_i32_0 : i32, i32
  }
}

</mosaic_0001>

<llo_original>
// kernel: two_stream_net_forward.3
$region0: #{two_stream_net_forward.3}
  #allocation0 [shape = 'u32[]', space=smem, size = 0x4, offset = 0x4, fixed_abs, tag = 'smem constant byte address 0x4 - core index']
  #allocation1 [shape = 'u32[72,128]{1,0:T(1,128)}', space=vmem, size = 0x9000, scoped, tag = 'internal scratch']
  #allocation2 [shape = 'f32[256,128]{1,0:T(8,128)}', space=vmem, size = 0x20000, scoped, tag = 'scratch operand']
  %s0 = inlined_call_operand.vmem [shape: bf16[1024,32], index: 0, kind: input, shape index: {}]
  %s1 = inlined_call_operand.vmem [shape: bf16[32,128], index: 1, kind: input, shape index: {}]
  %s2 = inlined_call_operand.vmem [shape: f32[1,128], index: 2, kind: input, shape index: {}]
  %s3 = inlined_call_operand.vmem [shape: f32[1,128], index: 3, kind: input, shape index: {}]
  %s4 = inlined_call_operand.vmem [shape: bf16[1024,128], index: 4, kind: output, shape index: {}]
  %s5 = sld [smem:[#allocation0]]
  $region57: #{two_stream_net_forward.3} parent=0
    _
  %s7 = ssub.s32 1, %s5
  %s8 = scalar_select 0, %s7, %s5
  loop: start=0, step=1, limit=6
  $region2: #{two_stream_net_forward.3} parent=0 // loop_pre_header
    _
  $region3: #{two_stream_net_forward.3} parent=0 // loop_header
    %s10 = sphi 0, %s14
    %p11 = scmp.ge.s32.totalorder %s10, 6
    %s17 = sphi 0, %s36
    %s18 = sphi 0, %s32
    %s19 = sphi 0, %s28
    %s20 = sphi 0, %s17
    %s21 = sphi 0, %s18
    %s22 = sphi 0, %s19
    %s23 = sphi 0, %s20
    %s24 = sphi 0, %s21
    %s25 = sphi 0, %s22
    %s41 = sphi 0, %s43
    %s44 = sphi 0, %s41
    %s45 = sphi 0, %s44
    %s61 = sphi 0, %s45
    %s69 = sphi 0, %s71
    %s72 = sphi 0, %s69
    %s73 = sphi 0, %s72
    %s89 = sphi 0, %s73
    %s95 = sphi 0, %s97
    %s98 = sphi 0, %s95
    %s99 = sphi 0, %s98
    %s115 = sphi 0, %s99
    %s121 = sphi 0, %s123
    %s124 = sphi 0, %s121
    %s125 = sphi 0, %s124
    %s141 = sphi 0, %s125
    %s149 = sphi 0, %s151
    %s152 = sphi 0, %s149
    %s153 = sphi 0, %s152
    %s169 = sphi 0, %s153
  $region4: #{two_stream_net_forward.3} parent=0 // loop_header_branch
    %13 = sbr.rel (%p11) target = $region8
  $region5: #{two_stream_net_forward.3} parent=0 // loop_body
    %s15 = ssub.s32 %s10, 1
    %s16 = ssub.s32 %s10, 2
    %s26 = sadd.s32 1, %s19
    %p27 = scmp.ge.s32.totalorder %s26, 1
    %s28 = scalar_select %p27, 0, %s26
    %s29 = sadd.s32 1, %s18
    %s30 = scalar_select %p27, %s29, %s18
    %p31 = scmp.ge.s32.totalorder %s30, 1
    %s32 = scalar_select %p31, 0, %s30
    %s33 = sadd.s32 1, %s17
    %s34 = scalar_select %p31, %s33, %s17
    %p35 = scmp.ge.s32.totalorder %s34, 4
    %s36 = scalar_select %p35, 0, %s34
    %s37 = ssub.s32 %s17, %s36
    %s38 = ssub.s32 %s19, %s28
    %s39 = sor.u32 %s37, %s38
    %p40 = scmp.eq.s32.totalorder %s39, 0
    %s42 = sadd.s32 %s41, 1
    %s43 = scalar_select %p40, %s41, %s42
    %p46 = pneg %p40
    %p47 = scmp.eq.s32.totalorder %s10, 3
    %p48 = por %p46, %p47
    %p49 = scmp.ne.s32.totalorder %s41, %s44
    %p50 = scmp.eq.s32.totalorder %s10, 0
    %p51 = por %p49, %p50
    %p52 = scmp.ne.s32.totalorder %s41, %s44
    %p53 = scmp.eq.s32.totalorder %s15, 3
    %p54 = por %p52, %p53
    %p55 = scmp.ne.s32.totalorder %s44, %s45
    %p56 = scmp.eq.s32.totalorder %s15, 0
    %p57 = por %p55, %p56
    %p58 = scmp.ne.s32.totalorder %s44, %s45
    %p59 = scmp.eq.s32.totalorder %s16, 3
    %p60 = por %p58, %p59
    %p62 = scmp.ne.s32.totalorder %s45, %s61
    %p63 = scmp.eq.s32.totalorder %s16, 0
    %p64 = por %p62, %p63
    %s65 = ssub.s32 %s19, %s28
    %s66 = ssub.s32 %s18, %s32
    %s67 = sor.u32 %s65, %s66
    %p68 = scmp.eq.s32.totalorder %s67, 0
    %s70 = sadd.s32 %s69, 1
    %s71 = scalar_select %p68, %s69, %s70
    %p74 = pneg %p68
    %p75 = scmp.eq.s32.totalorder %s10, 3
    %p76 = por %p74, %p75
    %p77 = scmp.ne.s32.totalorder %s69, %s72
    %p78 = scmp.eq.s32.totalorder %s10, 0
    %p79 = por %p77, %p78
    %p80 = scmp.ne.s32.totalorder %s69, %s72
    %p81 = scmp.eq.s32.totalorder %s15, 3
    %p82 = por %p80, %p81
    %p83 = scmp.ne.s32.totalorder %s72, %s73
    %p84 = scmp.eq.s32.totalorder %s15, 0
    %p85 = por %p83, %p84
    %p86 = scmp.ne.s32.totalorder %s72, %s73
    %p87 = scmp.eq.s32.totalorder %s16, 3
    %p88 = por %p86, %p87
    %p90 = scmp.ne.s32.totalorder %s73, %s89
    %p91 = scmp.eq.s32.totalorder %s16, 0
    %p92 = por %p90, %p91
    %s93 = ssub.s32 %s18, %s32
    %p94 = scmp.eq.s32.totalorder %s93, 0
    %s96 = sadd.s32 %s95, 1
    %s97 = scalar_select %p94, %s95, %s96
    %p100 = pneg %p94
    %p101 = scmp.eq.s32.totalorder %s10, 3
    %p102 = por %p100, %p101
    %p103 = scmp.ne.s32.totalorder %s95, %s98
    %p104 = scmp.eq.s32.totalorder %s10, 0
    %p105 = por %p103, %p104
    %p106 = scmp.ne.s32.totalorder %s95, %s98
    %p107 = scmp.eq.s32.totalorder %s15, 3
    %p108 = por %p106, %p107
    %p109 = scmp.ne.s32.totalorder %s98, %s99
    %p110 = scmp.eq.s32.totalorder %s15, 0
    %p111 = por %p109, %p110
    %p112 = scmp.ne.s32.totalorder %s98, %s99
    %p113 = scmp.eq.s32.totalorder %s16, 3
    %p114 = por %p112, %p113
    %p116 = scmp.ne.s32.totalorder %s99, %s115
    %p117 = scmp.eq.s32.totalorder %s16, 0
    %p118 = por %p116, %p117
    %s119 = ssub.s32 %s18, %s32
    %p120 = scmp.eq.s32.totalorder %s119, 0
    %s122 = sadd.s32 %s121, 1
    %s123 = scalar_select %p120, %s121, %s122
    %p126 = pneg %p120
    %p127 = scmp.eq.s32.totalorder %s10, 3
    %p128 = por %p126, %p127
    %p129 = scmp.ne.s32.totalorder %s121, %s124
    %p130 = scmp.eq.s32.totalorder %s10, 0
    %p131 = por %p129, %p130
    %p132 = scmp.ne.s32.totalorder %s121, %s124
    %p133 = scmp.eq.s32.totalorder %s15, 3
    %p134 = por %p132, %p133
    %p135 = scmp.ne.s32.totalorder %s124, %s125
    %p136 = scmp.eq.s32.totalorder %s15, 0
    %p137 = por %p135, %p136
    %p138 = scmp.ne.s32.totalorder %s124, %s125
    %p139 = scmp.eq.s32.totalorder %s16, 3
    %p140 = por %p138, %p139
    %p142 = scmp.ne.s32.totalorder %s125, %s141
    %p143 = scmp.eq.s32.totalorder %s16, 0
    %p144 = por %p142, %p143
    %s145 = ssub.s32 %s17, %s36
    %s146 = ssub.s32 %s18, %s32
    %s147 = sor.u32 %s145, %s146
    %p148 = scmp.eq.s32.totalorder %s147, 0
    %s150 = sadd.s32 %s149, 1
    %s151 = scalar_select %p148, %s149, %s150
    %p154 = pneg %p148
    %p155 = scmp.eq.s32.totalorder %s10, 3
    %p156 = por %p154, %p155
    %p157 = scmp.ne.s32.totalorder %s149, %s152
    %p158 = scmp.eq.s32.totalorder %s10, 0
    %p159 = por %p157, %p158
    %p160 = scmp.ne.s32.totalorder %s149, %s152
    %p161 = scmp.eq.s32.totalorder %s15, 3
    %p162 = por %p160, %p161
    %p163 = scmp.ne.s32.totalorder %s152, %s153
    %p164 = scmp.eq.s32.totalorder %s15, 0
    %p165 = por %p163, %p164
    %p166 = scmp.ne.s32.totalorder %s152, %s153
    %p167 = scmp.eq.s32.totalorder %s16, 3
    %p168 = por %p166, %p167
    %p170 = scmp.ne.s32.totalorder %s153, %s169
    %p171 = scmp.eq.s32.totalorder %s16, 0
    %p172 = por %p170, %p171
    %p173 = scmp.le.s32.totalorder 1, %s10
    %p174 = scmp.lt.s32.totalorder %s10, 5
    %p175 = pnand %p173, %p174
    %p176 = pneg %p175
    // Predicated region
    $region9: #{two_stream_net_forward.3} parent=5 // pred_check
      _
    $region10: #{two_stream_net_forward.3} parent=5 // pred_check_branch
      %178 = sbr.rel (%p175) target = $region12
    $region11: #{two_stream_net_forward.3} parent=5 // pred_region
      %s179 = ssub.s32 %s10, 1
      // Predicated region
      $region13: #{two_stream_net_forward.3} parent=11 // pred_check
        %p180 = pneg %p85
      $region14: #{two_stream_net_forward.3} parent=11 // pred_check_branch
        %182 = sbr.rel (%p180) target = $region16
      $region15: #{two_stream_net_forward.3} parent=11 // pred_region
        %s183 = smul.u32 4, %s22
        %p184 = scmp.lt.s32.totalorder %s183, 3
        %s185 = scalar_select %p184, %s183, 3
        %p186 = scmp.lt.s32.totalorder %s21, 0
        %s187 = scalar_select %p186, %s21, 0
        %s188 = sadd.s32 %s187, %s185
        %s189 = smul.addr %s188, 4
        %s190 = scalar_lea.vmem %s1, %s189
        %s191 = smul.u32 4, %s22
      $region16: #{two_stream_net_forward.3} parent=11 // pred_fallthru
        _
      // Predicated region
      $region17: #{two_stream_net_forward.3} parent=11 // pred_check
        %p192 = pneg %p111
      $region18: #{two_stream_net_forward.3} parent=11 // pred_check_branch
        %194 = sbr.rel (%p192) target = $region20
      $region19: #{two_stream_net_forward.3} parent=11 // pred_region
        %p195 = scmp.lt.s32.totalorder %s21, 0
        %s196 = scalar_select %p195, %s21, 0
        %s197 = scalar_lea.vmem %s2, %s196
      $region20: #{two_stream_net_forward.3} parent=11 // pred_fallthru
        _
      // Predicated region
      $region21: #{two_stream_net_forward.3} parent=11 // pred_check
        %p198 = pneg %p137
      $region22: #{two_stream_net_forward.3} parent=11 // pred_check_branch
        %200 = sbr.rel (%p198) target = $region24
      $region23: #{two_stream_net_forward.3} parent=11 // pred_region
        %p201 = scmp.lt.s32.totalorder %s21, 0
        %s202 = scalar_select %p201, %s21, 0
        %s203 = scalar_lea.vmem %s3, %s202
      $region24: #{two_stream_net_forward.3} parent=11 // pred_fallthru
        _
    $region12: #{two_stream_net_forward.3} parent=5 // pred_fallthru
      _
    %p204 = scmp.lt.s32.totalorder %s10, 4
    // Predicated region
    $region25: #{two_stream_net_forward.3} parent=5 // pred_check
      %p205 = pneg %p204
    $region26: #{two_stream_net_forward.3} parent=5 // pred_check_branch
      %207 = sbr.rel (%p205) target = $region28
    $region27: #{two_stream_net_forward.3} parent=5 // pred_region
      // Predicated region
      $region29: #{two_stream_net_forward.3} parent=27 // pred_check
        %p208 = pneg %p51
      $region30: #{two_stream_net_forward.3} parent=27 // pred_check_branch
        %210 = sbr.rel (%p208) target = $region32
      $region31: #{two_stream_net_forward.3} parent=27 // pred_region
        %s211 = smul.u32 32, %s17
        %p212 = scmp.lt.s32.totalorder %s211, 127
        %s213 = scalar_select %p212, %s211, 127
        %p214 = scmp.lt.s32.totalorder %s19, 0
        %s215 = scalar_select %p214, %s19, 0
        %s216 = sadd.s32 %s215, %s213
        %s217 = smul.addr %s216, 4
        %s218 = scalar_lea.vmem %s0, %s217
        %s219 = smul.u32 32, %s17
      $region32: #{two_stream_net_forward.3} parent=27 // pred_fallthru
        _
    $region28: #{two_stream_net_forward.3} parent=5 // pred_fallthru
      _
    %p220 = scmp.le.s32.totalorder 1, %s10
    %p221 = scmp.lt.s32.totalorder %s10, 5
    %p222 = pnand %p220, %p221
    %p223 = pneg %p222
    // Predicated region
    $region33: #{two_stream_net_forward.3} parent=5 // pred_check
      _
    $region34: #{two_stream_net_forward.3} parent=5 // pred_check_branch
      %225 = sbr.rel (%p222) target = $region36
    $region35: #{two_stream_net_forward.3} parent=5 // pred_region
      %s226 = ssub.s32 %s10, 1
      %s227 = smul.u32 32, %s20
      %p228 = scmp.lt.s32.totalorder %s227, 127
      %s229 = scalar_select %p228, %s227, 127
      %p230 = scmp.lt.s32.totalorder %s22, 0
      %s231 = scalar_select %p230, %s22, 0
      %s232 = sadd.s32 %s231, %s229
      %s233 = smul.addr %s232, 4
      %s234 = scalar_lea.vmem %s0, %s233
      %p235 = pneg %p57
      %p236 = pneg %p54
      %s237 = smul.u32 4, %s22
      %p238 = scmp.lt.s32.totalorder %s237, 3
      %s239 = scalar_select %p238, %s237, 3
      %p240 = scmp.lt.s32.totalorder %s21, 0
      %s241 = scalar_select %p240, %s21, 0
      %s242 = sadd.s32 %s241, %s239
      %s243 = smul.addr %s242, 4
      %s244 = scalar_lea.vmem %s1, %s243
      %p245 = pneg %p85
      %p246 = pneg %p82
      %p247 = scmp.lt.s32.totalorder %s21, 0
      %s248 = scalar_select %p247, %s21, 0
      %s249 = scalar_lea.vmem %s2, %s248
      %p250 = pneg %p111
      %p251 = pneg %p108
      %p252 = scmp.lt.s32.totalorder %s21, 0
      %s253 = scalar_select %p252, %s21, 0
      %s254 = scalar_lea.vmem %s3, %s253
      %p255 = pneg %p137
      %p256 = pneg %p134
      %p257 = pneg %p165
      %p258 = pneg %p162
      %s259 = smul.u32 32, %s20
      %p260 = scmp.lt.s32.totalorder %s259, 127
      %s261 = scalar_select %p260, %s259, 127
      %p262 = scmp.lt.s32.totalorder %s21, 0
      %s263 = scalar_select %p262, %s21, 0
      %s264 = sadd.s32 %s263, %s261
      %s265 = smul.addr %s264, 4
      %s266 = scalar_lea.vmem %s4, %s265
      %s267 = smul.u32 32, %s20
      %p268 = scmp.lt.s32.totalorder %s267, 127
      %s269 = scalar_select %p268, %s267, 127
      %p270 = scmp.lt.s32.totalorder %s22, 0
      %s271 = scalar_select %p270, %s22, 0
      %s272 = sadd.s32 %s271, %s269
      %s273 = smul.addr %s272, 4
      %s274 = scalar_lea.vmem %s0, %s273
      %s275 = smul.u32 32, %s20
      %s276 = smul.u32 4, %s22
      %p277 = scmp.lt.s32.totalorder %s276, 3
      %s278 = scalar_select %p277, %s276, 3
      %p279 = scmp.lt.s32.totalorder %s21, 0
      %s280 = scalar_select %p279, %s21, 0
      %s281 = sadd.s32 %s280, %s278
      %s282 = smul.addr %s281, 4
      %s283 = scalar_lea.vmem %s1, %s282
      %s284 = smul.u32 4, %s22
      %p285 = scmp.lt.s32.totalorder %s21, 0
      %s286 = scalar_select %p285, %s21, 0
      %s287 = scalar_lea.vmem %s2, %s286
      %p288 = scmp.lt.s32.totalorder %s21, 0
      %s289 = scalar_select %p288, %s21, 0
      %s290 = scalar_lea.vmem %s3, %s289
      %s291 = smul.u32 32, %s20
      %p292 = scmp.lt.s32.totalorder %s291, 127
      %s293 = scalar_select %p292, %s291, 127
      %p294 = scmp.lt.s32.totalorder %s21, 0
      %s295 = scalar_select %p294, %s21, 0
      %s296 = sadd.s32 %s295, %s293
      %s297 = smul.addr %s296, 4
      %s298 = scalar_lea.vmem %s4, %s297
      %s299 = smul.u32 32, %s20
      %p301 = scmp.eq.s32.totalorder %s22, 0
      // Predicated region
      $region37: #{two_stream_net_forward.3} parent=35 // pred_check
        %p302 = pneg %p301
      $region38: #{two_stream_net_forward.3} parent=35 // pred_check_branch
        %304 = sbr.rel (%p302) target = $region40
      $region39: #{two_stream_net_forward.3} parent=35 // pred_region
        %305 = vst [vmem:[#allocation2] sm:$0xff] 0.0
        %306 = vst [vmem:[#allocation2 + $0x8] sm:$0xff] 0.0
        %307 = vst [vmem:[#allocation2 + $0x10] sm:$0xff] 0.0
        %308 = vst [vmem:[#allocation2 + $0x18] sm:$0xff] 0.0
        %309 = vst [vmem:[#allocation2 + $0x20] sm:$0xff] 0.0
        %310 = vst [vmem:[#allocation2 + $0x28] sm:$0xff] 0.0
        %311 = vst [vmem:[#allocation2 + $0x30] sm:$0xff] 0.0
        %312 = vst [vmem:[#allocation2 + $0x38] sm:$0xff] 0.0
        %313 = vst [vmem:[#allocation2 + $0x40] sm:$0xff] 0.0
        %314 = vst [vmem:[#allocation2 + $0x48] sm:$0xff] 0.0
        %315 = vst [vmem:[#allocation2 + $0x50] sm:$0xff] 0.0
        %316 = vst [vmem:[#allocation2 + $0x58] sm:$0xff] 0.0
        %317 = vst [vmem:[#allocation2 + $0x60] sm:$0xff] 0.0
        %318 = vst [vmem:[#allocation2 + $0x68] sm:$0xff] 0.0
        %319 = vst [vmem:[#allocation2 + $0x70] sm:$0xff] 0.0
        %320 = vst [vmem:[#allocation2 + $0x78] sm:$0xff] 0.0
        %321 = vst [vmem:[#allocation2 + $0x80] sm:$0xff] 0.0
        %322 = vst [vmem:[#allocation2 + $0x88] sm:$0xff] 0.0
        %323 = vst [vmem:[#allocation2 + $0x90] sm:$0xff] 0.0
        %324 = vst [vmem:[#allocation2 + $0x98] sm:$0xff] 0.0
        %325 = vst [vmem:[#allocation2 + $0xa0] sm:$0xff] 0.0
        %326 = vst [vmem:[#allocation2 + $0xa8] sm:$0xff] 0.0
        %327 = vst [vmem:[#allocation2 + $0xb0] sm:$0xff] 0.0
        %328 = vst [vmem:[#allocation2 + $0xb8] sm:$0xff] 0.0
        %329 = vst [vmem:[#allocation2 + $0xc0] sm:$0xff] 0.0
        %330 = vst [vmem:[#allocation2 + $0xc8] sm:$0xff] 0.0
        %331 = vst [vmem:[#allocation2 + $0xd0] sm:$0xff] 0.0
        %332 = vst [vmem:[#allocation2 + $0xd8] sm:$0xff] 0.0
        %333 = vst [vmem:[#allocation2 + $0xe0] sm:$0xff] 0.0
        %334 = vst [vmem:[#allocation2 + $0xe8] sm:$0xff] 0.0
        %335 = vst [vmem:[#allocation2 + $0xf0] sm:$0xff] 0.0
        %336 = vst [vmem:[#allocation2 + $0xf8] sm:$0xff] 0.0
      $region40: #{two_stream_net_forward.3} parent=35 // pred_fallthru
        _
      %v337 = vld [vmem:[#allocation2] sm:$0xff]
      %v338 = vld [vmem:[#allocation2 + $0x8] sm:$0xff]
      %v339 = vld [vmem:[#allocation2 + $0x10] sm:$0xff]
      %v340 = vld [vmem:[#allocation2 + $0x18] sm:$0xff]
      %v341 = vld [vmem:[#allocation2 + $0x20] sm:$0xff]
      %v342 = vld [vmem:[#allocation2 + $0x28] sm:$0xff]
      %v343 = vld [vmem:[#allocation2 + $0x30] sm:$0xff]
      %v344 = vld [vmem:[#allocation2 + $0x38] sm:$0xff]
      %v345 = vld [vmem:[#allocation2 + $0x40] sm:$0xff]
      %v346 = vld [vmem:[#allocation2 + $0x48] sm:$0xff]
      %v347 = vld [vmem:[#allocation2 + $0x50] sm:$0xff]
      %v348 = vld [vmem:[#allocation2 + $0x58] sm:$0xff]
      %v349 = vld [vmem:[#allocation2 + $0x60] sm:$0xff]
      %v350 = vld [vmem:[#allocation2 + $0x68] sm:$0xff]
      %v351 = vld [vmem:[#allocation2 + $0x70] sm:$0xff]
      %v352 = vld [vmem:[#allocation2 + $0x78] sm:$0xff]
      %v353 = vld [vmem:[#allocation2 + $0x80] sm:$0xff]
      %v354 = vld [vmem:[#allocation2 + $0x88] sm:$0xff]
      %v355 = vld [vmem:[#allocation2 + $0x90] sm:$0xff]
      %v356 = vld [vmem:[#allocation2 + $0x98] sm:$0xff]
      %v357 = vld [vmem:[#allocation2 + $0xa0] sm:$0xff]
      %v358 = vld [vmem:[#allocation2 + $0xa8] sm:$0xff]
      %v359 = vld [vmem:[#allocation2 + $0xb0] sm:$0xff]
      %v360 = vld [vmem:[#allocation2 + $0xb8] sm:$0xff]
      %v361 = vld [vmem:[#allocation2 + $0xc0] sm:$0xff]
      %v362 = vld [vmem:[#allocation2 + $0xc8] sm:$0xff]
      %v363 = vld [vmem:[#allocation2 + $0xd0] sm:$0xff]
      %v364 = vld [vmem:[#allocation2 + $0xd8] sm:$0xff]
      %v365 = vld [vmem:[#allocation2 + $0xe0] sm:$0xff]
      %v366 = vld [vmem:[#allocation2 + $0xe8] sm:$0xff]
      %v367 = vld [vmem:[#allocation2 + $0xf0] sm:$0xff]
      %v368 = vld [vmem:[#allocation2 + $0xf8] sm:$0xff]
      %v369 = vld [vmem:[%s274] sm:$0xf]
      %v370 = vld [vmem:[%s274 + $0x4] sm:$0xf]
      %v371 = vld [vmem:[%s274 + $0x8] sm:$0xf]
      %v372 = vld [vmem:[%s274 + $0xc] sm:$0xf]
      %v373 = vld [vmem:[%s274 + $0x10] sm:$0xf]
      %v374 = vld [vmem:[%s274 + $0x14] sm:$0xf]
      %v375 = vld [vmem:[%s274 + $0x18] sm:$0xf]
      %v376 = vld [vmem:[%s274 + $0x1c] sm:$0xf]
      %v377 = vld [vmem:[%s274 + $0x20] sm:$0xf]
      %v378 = vld [vmem:[%s274 + $0x24] sm:$0xf]
      %v379 = vld [vmem:[%s274 + $0x28] sm:$0xf]
      %v380 = vld [vmem:[%s274 + $0x2c] sm:$0xf]
      %v381 = vld [vmem:[%s274 + $0x30] sm:$0xf]
      %v382 = vld [vmem:[%s274 + $0x34] sm:$0xf]
      %v383 = vld [vmem:[%s274 + $0x38] sm:$0xf]
      %v384 = vld [vmem:[%s274 + $0x3c] sm:$0xf]
      %v385 = vld [vmem:[%s274 + $0x40] sm:$0xf]
      %v386 = vld [vmem:[%s274 + $0x44] sm:$0xf]
      %v387 = vld [vmem:[%s274 + $0x48] sm:$0xf]
      %v388 = vld [vmem:[%s274 + $0x4c] sm:$0xf]
      %v389 = vld [vmem:[%s274 + $0x50] sm:$0xf]
      %v390 = vld [vmem:[%s274 + $0x54] sm:$0xf]
      %v391 = vld [vmem:[%s274 + $0x58] sm:$0xf]
      %v392 = vld [vmem:[%s274 + $0x5c] sm:$0xf]
      %v393 = vld [vmem:[%s274 + $0x60] sm:$0xf]
      %v394 = vld [vmem:[%s274 + $0x64] sm:$0xf]
      %v395 = vld [vmem:[%s274 + $0x68] sm:$0xf]
      %v396 = vld [vmem:[%s274 + $0x6c] sm:$0xf]
      %v397 = vld [vmem:[%s274 + $0x70] sm:$0xf]
      %v398 = vld [vmem:[%s274 + $0x74] sm:$0xf]
      %v399 = vld [vmem:[%s274 + $0x78] sm:$0xf]
      %v400 = vld [vmem:[%s274 + $0x7c] sm:$0xf]
      %v401 = vld [vmem:[%s283] sm:$0xf]
      %v402 = vld [vmem:[%s283 + $0x4] sm:$0xf]
      %v403 = vld [vmem:[%s283 + $0x8] sm:$0xf]
      %v404 = vld [vmem:[%s283 + $0xc] sm:$0xf]
      %v437 = vunpack.c.l.b16 %v369
      %v438 = vunpack.c.l.b16 %v370
      %v439 = vunpack.c.l.b16 %v371
      %v440 = vunpack.c.l.b16 %v372
      %v441 = vunpack.c.l.b16 %v373
      %v442 = vunpack.c.l.b16 %v374
      %v443 = vunpack.c.l.b16 %v375
      %v444 = vunpack.c.l.b16 %v376
      %v445 = vunpack.c.l.b16 %v377
      %v446 = vunpack.c.l.b16 %v378
      %v447 = vunpack.c.l.b16 %v379
      %v448 = vunpack.c.l.b16 %v380
      %v449 = vunpack.c.l.b16 %v381
      %v450 = vunpack.c.l.b16 %v382
      %v451 = vunpack.c.l.b16 %v383
      %v452 = vunpack.c.l.b16 %v384
      %v453 = vunpack.c.l.b16 %v385
      %v454 = vunpack.c.l.b16 %v386
      %v455 = vunpack.c.l.b16 %v387
      %v456 = vunpack.c.l.b16 %v388
      %v457 = vunpack.c.l.b16 %v389
      %v458 = vunpack.c.l.b16 %v390
      %v459 = vunpack.c.l.b16 %v391
      %v460 = vunpack.c.l.b16 %v392
      %v461 = vunpack.c.l.b16 %v393
      %v462 = vunpack.c.l.b16 %v394
      %v463 = vunpack.c.l.b16 %v395
      %v464 = vunpack.c.l.b16 %v396
      %v465 = vunpack.c.l.b16 %v397
      %v466 = vunpack.c.l.b16 %v398
      %v467 = vunpack.c.l.b16 %v399
      %v468 = vunpack.c.l.b16 %v400
      %v469 = vpack.c.b16 %v438, %v437
      %v470 = vpack.c.b16 %v440, %v439
      %v471 = vpack.c.b16 %v442, %v441
      %v472 = vpack.c.b16 %v444, %v443
      %v473 = vpack.c.b16 %v446, %v445
      %v474 = vpack.c.b16 %v448, %v447
      %v475 = vpack.c.b16 %v450, %v449
      %v476 = vpack.c.b16 %v452, %v451
      %v477 = vpack.c.b16 %v454, %v453
      %v478 = vpack.c.b16 %v456, %v455
      %v479 = vpack.c.b16 %v458, %v457
      %v480 = vpack.c.b16 %v460, %v459
      %v481 = vpack.c.b16 %v462, %v461
      %v482 = vpack.c.b16 %v464, %v463
      %v483 = vpack.c.b16 %v466, %v465
      %v484 = vpack.c.b16 %v468, %v467
      %v489 = vunpack.c.l.b16 %v401
      %v490 = vunpack.c.l.b16 %v402
      %v491 = vunpack.c.l.b16 %v403
      %v492 = vunpack.c.l.b16 %v404
      %v493 = vpack.c.b16 %v490, %v489
      %v494 = vpack.c.b16 %v492, %v491
      %vm497 = vcmask 261120
      %v499 = vsel %vm497, %v469, 0
      %v502 = vsel %vm497, %v470, 0
      %v505 = vsel %vm497, %v471, 0
      %v508 = vsel %vm497, %v472, 0
      %v511 = vsel %vm497, %v473, 0
      %v514 = vsel %vm497, %v474, 0
      %v517 = vsel %vm497, %v475, 0
      %v520 = vsel %vm497, %v476, 0
      %v523 = vsel %vm497, %v477, 0
      %v526 = vsel %vm497, %v478, 0
      %v529 = vsel %vm497, %v479, 0
      %v532 = vsel %vm497, %v480, 0
      %v535 = vsel %vm497, %v481, 0
      %v538 = vsel %vm497, %v482, 0
      %v541 = vsel %vm497, %v483, 0
      %v544 = vsel %vm497, %v484, 0
      %546 = vmatpush.bf16.msra.mxu0 0
      %547 = vmatpush.bf16.msra.mxu0 0
      %548 = vmatpush.bf16.msra.mxu0 0
      %549 = vmatpush.bf16.msra.mxu0 0
      %550 = vmatpush.bf16.msra.mxu0 0
      %551 = vmatpush.bf16.msra.mxu0 0
      %552 = vmatpush.bf16.msra.mxu0 %v494
      %553 = vmatpush.bf16.msra.mxu0 %v493
      %554 = vmatmul.bf16.gmra.mxu0 %v499
      %v555 = vpop.f32.mrf.mxu0
      %v556 = vadd.f32 0.0, %v555
      %v557 = vpop.f32.mrf.mxu0
      %v558 = vadd.f32 0.0, %v557
      %559 = vmatmul.bf16.gmra.mxu0 %v502
      %v560 = vpop.f32.mrf.mxu0
      %v561 = vadd.f32 0.0, %v560
      %v562 = vpop.f32.mrf.mxu0
      %v563 = vadd.f32 0.0, %v562
      %564 = vmatmul.bf16.gmra.mxu0 %v505
      %v565 = vpop.f32.mrf.mxu0
      %v566 = vadd.f32 0.0, %v565
      %v567 = vpop.f32.mrf.mxu0
      %v568 = vadd.f32 0.0, %v567
      %569 = vmatmul.bf16.gmra.mxu0 %v508
      %v570 = vpop.f32.mrf.mxu0
      %v571 = vadd.f32 0.0, %v570
      %v572 = vpop.f32.mrf.mxu0
      %v573 = vadd.f32 0.0, %v572
      %574 = vmatmul.bf16.gmra.mxu0 %v511
      %v575 = vpop.f32.mrf.mxu0
      %v576 = vadd.f32 0.0, %v575
      %v577 = vpop.f32.mrf.mxu0
      %v578 = vadd.f32 0.0, %v577
      %579 = vmatmul.bf16.gmra.mxu0 %v514
      %v580 = vpop.f32.mrf.mxu0
      %v581 = vadd.f32 0.0, %v580
      %v582 = vpop.f32.mrf.mxu0
      %v583 = vadd.f32 0.0, %v582
      %584 = vmatmul.bf16.gmra.mxu0 %v517
      %v585 = vpop.f32.mrf.mxu0
      %v586 = vadd.f32 0.0, %v585
      %v587 = vpop.f32.mrf.mxu0
      %v588 = vadd.f32 0.0, %v587
      %589 = vmatmul.bf16.gmra.mxu0 %v520
      %v590 = vpop.f32.mrf.mxu0
      %v591 = vadd.f32 0.0, %v590
      %v592 = vpop.f32.mrf.mxu0
      %v593 = vadd.f32 0.0, %v592
      %594 = vmatmul.bf16.gmra.mxu0 %v523
      %v595 = vpop.f32.mrf.mxu0
      %v596 = vadd.f32 0.0, %v595
      %v597 = vpop.f32.mrf.mxu0
      %v598 = vadd.f32 0.0, %v597
      %599 = vmatmul.bf16.gmra.mxu0 %v526
      %v600 = vpop.f32.mrf.mxu0
      %v601 = vadd.f32 0.0, %v600
      %v602 = vpop.f32.mrf.mxu0
      %v603 = vadd.f32 0.0, %v602
      %604 = vmatmul.bf16.gmra.mxu0 %v529
      %v605 = vpop.f32.mrf.mxu0
      %v606 = vadd.f32 0.0, %v605
      %v607 = vpop.f32.mrf.mxu0
      %v608 = vadd.f32 0.0, %v607
      %609 = vmatmul.bf16.gmra.mxu0 %v532
      %v610 = vpop.f32.mrf.mxu0
      %v611 = vadd.f32 0.0, %v610
      %v612 = vpop.f32.mrf.mxu0
      %v613 = vadd.f32 0.0, %v612
      %614 = vmatmul.bf16.gmra.mxu0 %v535
      %v615 = vpop.f32.mrf.mxu0
      %v616 = vadd.f32 0.0, %v615
      %v617 = vpop.f32.mrf.mxu0
      %v618 = vadd.f32 0.0, %v617
      %619 = vmatmul.bf16.gmra.mxu0 %v538
      %v620 = vpop.f32.mrf.mxu0
      %v621 = vadd.f32 0.0, %v620
      %v622 = vpop.f32.mrf.mxu0
      %v623 = vadd.f32 0.0, %v622
      %624 = vmatmul.bf16.gmra.mxu0 %v541
      %v625 = vpop.f32.mrf.mxu0
      %v626 = vadd.f32 0.0, %v625
      %v627 = vpop.f32.mrf.mxu0
      %v628 = vadd.f32 0.0, %v627
      %629 = vmatmul.bf16.gmra.mxu0 %v544
      %v630 = vpop.f32.mrf.mxu0
      %v631 = vadd.f32 0.0, %v630
      %v632 = vpop.f32.mrf.mxu0
      %v633 = vadd.f32 0.0, %v632
      %634 = vdwg.mxu0
      %v635 = vadd.f32 %v337, %v556
      %v636 = vadd.f32 %v338, %v558
      %v637 = vadd.f32 %v339, %v561
      %v638 = vadd.f32 %v340, %v563
      %v639 = vadd.f32 %v341, %v566
      %v640 = vadd.f32 %v342, %v568
      %v641 = vadd.f32 %v343, %v571
      %v642 = vadd.f32 %v344, %v573
      %v643 = vadd.f32 %v345, %v576
      %v644 = vadd.f32 %v346, %v578
      %v645 = vadd.f32 %v347, %v581
      %v646 = vadd.f32 %v348, %v583
      %v647 = vadd.f32 %v349, %v586
      %v648 = vadd.f32 %v350, %v588
      %v649 = vadd.f32 %v351, %v591
      %v650 = vadd.f32 %v352, %v593
      %v651 = vadd.f32 %v353, %v596
      %v652 = vadd.f32 %v354, %v598
      %v653 = vadd.f32 %v355, %v601
      %v654 = vadd.f32 %v356, %v603
      %v655 = vadd.f32 %v357, %v606
      %v656 = vadd.f32 %v358, %v608
      %v657 = vadd.f32 %v359, %v611
      %v658 = vadd.f32 %v360, %v613
      %v659 = vadd.f32 %v361, %v616
      %v660 = vadd.f32 %v362, %v618
      %v661 = vadd.f32 %v363, %v621
      %v662 = vadd.f32 %v364, %v623
      %v663 = vadd.f32 %v365, %v626
      %v664 = vadd.f32 %v366, %v628
      %v665 = vadd.f32 %v367, %v631
      %v666 = vadd.f32 %v368, %v633
      %667 = vst [vmem:[#allocation2] sm:$0xff] %v635
      %668 = vst [vmem:[#allocation2 + $0x8] sm:$0xff] %v636
      %669 = vst [vmem:[#allocation2 + $0x10] sm:$0xff] %v637
      %670 = vst [vmem:[#allocation2 + $0x18] sm:$0xff] %v638
      %671 = vst [vmem:[#allocation2 + $0x20] sm:$0xff] %v639
      %672 = vst [vmem:[#allocation2 + $0x28] sm:$0xff] %v640
      %673 = vst [vmem:[#allocation2 + $0x30] sm:$0xff] %v641
      %674 = vst [vmem:[#allocation2 + $0x38] sm:$0xff] %v642
      %675 = vst [vmem:[#allocation2 + $0x40] sm:$0xff] %v643
      %676 = vst [vmem:[#allocation2 + $0x48] sm:$0xff] %v644
      %677 = vst [vmem:[#allocation2 + $0x50] sm:$0xff] %v645
      %678 = vst [vmem:[#allocation2 + $0x58] sm:$0xff] %v646
      %679 = vst [vmem:[#allocation2 + $0x60] sm:$0xff] %v647
      %680 = vst [vmem:[#allocation2 + $0x68] sm:$0xff] %v648
      %681 = vst [vmem:[#allocation2 + $0x70] sm:$0xff] %v649
      %682 = vst [vmem:[#allocation2 + $0x78] sm:$0xff] %v650
      %683 = vst [vmem:[#allocation2 + $0x80] sm:$0xff] %v651
      %684 = vst [vmem:[#allocation2 + $0x88] sm:$0xff] %v652
      %685 = vst [vmem:[#allocation2 + $0x90] sm:$0xff] %v653
      %686 = vst [vmem:[#allocation2 + $0x98] sm:$0xff] %v654
      %687 = vst [vmem:[#allocation2 + $0xa0] sm:$0xff] %v655
      %688 = vst [vmem:[#allocation2 + $0xa8] sm:$0xff] %v656
      %689 = vst [vmem:[#allocation2 + $0xb0] sm:$0xff] %v657
      %690 = vst [vmem:[#allocation2 + $0xb8] sm:$0xff] %v658
      %691 = vst [vmem:[#allocation2 + $0xc0] sm:$0xff] %v659
      %692 = vst [vmem:[#allocation2 + $0xc8] sm:$0xff] %v660
      %693 = vst [vmem:[#allocation2 + $0xd0] sm:$0xff] %v661
      %694 = vst [vmem:[#allocation2 + $0xd8] sm:$0xff] %v662
      %695 = vst [vmem:[#allocation2 + $0xe0] sm:$0xff] %v663
      %696 = vst [vmem:[#allocation2 + $0xe8] sm:$0xff] %v664
      %697 = vst [vmem:[#allocation2 + $0xf0] sm:$0xff] %v665
      %698 = vst [vmem:[#allocation2 + $0xf8] sm:$0xff] %v666
      // Predicated region
      $region41: #{two_stream_net_forward.3} parent=35 // pred_check
        %p699 = pneg %p301
      $region42: #{two_stream_net_forward.3} parent=35 // pred_check_branch
        %701 = sbr.rel (%p699) target = $region44
      $region43: #{two_stream_net_forward.3} parent=35 // pred_region
        %v702 = vld [vmem:[#allocation2] sm:$0xff]
        %v703 = vld [vmem:[#allocation2 + $0x8] sm:$0xff]
        %v704 = vld [vmem:[#allocation2 + $0x10] sm:$0xff]
        %v705 = vld [vmem:[#allocation2 + $0x18] sm:$0xff]
        %v706 = vld [vmem:[#allocation2 + $0x20] sm:$0xff]
        %v707 = vld [vmem:[#allocation2 + $0x28] sm:$0xff]
        %v708 = vld [vmem:[#allocation2 + $0x30] sm:$0xff]
        %v709 = vld [vmem:[#allocation2 + $0x38] sm:$0xff]
        %v710 = vld [vmem:[#allocation2 + $0x40] sm:$0xff]
        %v711 = vld [vmem:[#allocation2 + $0x48] sm:$0xff]
        %v712 = vld [vmem:[#allocation2 + $0x50] sm:$0xff]
        %v713 = vld [vmem:[#allocation2 + $0x58] sm:$0xff]
        %v714 = vld [vmem:[#allocation2 + $0x60] sm:$0xff]
        %v715 = vld [vmem:[#allocation2 + $0x68] sm:$0xff]
        %v716 = vld [vmem:[#allocation2 + $0x70] sm:$0xff]
        %v717 = vld [vmem:[#allocation2 + $0x78] sm:$0xff]
        %v718 = vld [vmem:[#allocation2 + $0x80] sm:$0xff]
        %v719 = vld [vmem:[#allocation2 + $0x88] sm:$0xff]
        %v720 = vld [vmem:[#allocation2 + $0x90] sm:$0xff]
        %v721 = vld [vmem:[#allocation2 + $0x98] sm:$0xff]
        %v722 = vld [vmem:[#allocation2 + $0xa0] sm:$0xff]
        %v723 = vld [vmem:[#allocation2 + $0xa8] sm:$0xff]
        %v724 = vld [vmem:[#allocation2 + $0xb0] sm:$0xff]
        %v725 = vld [vmem:[#allocation2 + $0xb8] sm:$0xff]
        %v726 = vld [vmem:[#allocation2 + $0xc0] sm:$0xff]
        %v727 = vld [vmem:[#allocation2 + $0xc8] sm:$0xff]
        %v728 = vld [vmem:[#allocation2 + $0xd0] sm:$0xff]
        %v729 = vld [vmem:[#allocation2 + $0xd8] sm:$0xff]
        %v730 = vld [vmem:[#allocation2 + $0xe0] sm:$0xff]
        %v731 = vld [vmem:[#allocation2 + $0xe8] sm:$0xff]
        %v732 = vld [vmem:[#allocation2 + $0xf0] sm:$0xff]
        %v733 = vld [vmem:[#allocation2 + $0xf8] sm:$0xff]
        %v734 = vld [vmem:[%s287] sm:$0x1]
        %v736 = vperm.slane %v734, 0
        %v738 = vmul.f32 %v702, %v736
        %v739 = vmul.f32 %v703, %v736
        %v740 = vmul.f32 %v704, %v736
        %v741 = vmul.f32 %v705, %v736
        %v742 = vmul.f32 %v706, %v736
        %v743 = vmul.f32 %v707, %v736
        %v744 = vmul.f32 %v708, %v736
        %v745 = vmul.f32 %v709, %v736
        %v746 = vmul.f32 %v710, %v736
        %v747 = vmul.f32 %v711, %v736
        %v748 = vmul.f32 %v712, %v736
        %v749 = vmul.f32 %v713, %v736
        %v750 = vmul.f32 %v714, %v736
        %v751 = vmul.f32 %v715, %v736
        %v752 = vmul.f32 %v716, %v736
        %v753 = vmul.f32 %v717, %v736
        %v754 = vmul.f32 %v718, %v736
        %v755 = vmul.f32 %v719, %v736
        %v756 = vmul.f32 %v720, %v736
        %v757 = vmul.f32 %v721, %v736
        %v758 = vmul.f32 %v722, %v736
        %v759 = vmul.f32 %v723, %v736
        %v760 = vmul.f32 %v724, %v736
        %v761 = vmul.f32 %v725, %v736
        %v762 = vmul.f32 %v726, %v736
        %v763 = vmul.f32 %v727, %v736
        %v764 = vmul.f32 %v728, %v736
        %v765 = vmul.f32 %v729, %v736
        %v766 = vmul.f32 %v730, %v736
        %v767 = vmul.f32 %v731, %v736
        %v768 = vmul.f32 %v732, %v736
        %v769 = vmul.f32 %v733, %v736
        %v770 = vld [vmem:[%s290] sm:$0x1]
        %v772 = vperm.slane %v770, 0
        %v774 = vadd.f32 %v738, %v772
        %v775 = vadd.f32 %v739, %v772
        %v776 = vadd.f32 %v740, %v772
        %v777 = vadd.f32 %v741, %v772
        %v778 = vadd.f32 %v742, %v772
        %v779 = vadd.f32 %v743, %v772
        %v780 = vadd.f32 %v744, %v772
        %v781 = vadd.f32 %v745, %v772
        %v782 = vadd.f32 %v746, %v772
        %v783 = vadd.f32 %v747, %v772
        %v784 = vadd.f32 %v748, %v772
        %v785 = vadd.f32 %v749, %v772
        %v786 = vadd.f32 %v750, %v772
        %v787 = vadd.f32 %v751, %v772
        %v788 = vadd.f32 %v752, %v772
        %v789 = vadd.f32 %v753, %v772
        %v790 = vadd.f32 %v754, %v772
        %v791 = vadd.f32 %v755, %v772
        %v792 = vadd.f32 %v756, %v772
        %v793 = vadd.f32 %v757, %v772
        %v794 = vadd.f32 %v758, %v772
        %v795 = vadd.f32 %v759, %v772
        %v796 = vadd.f32 %v760, %v772
        %v797 = vadd.f32 %v761, %v772
        %v798 = vadd.f32 %v762, %v772
        %v799 = vadd.f32 %v763, %v772
        %v800 = vadd.f32 %v764, %v772
        %v801 = vadd.f32 %v765, %v772
        %v802 = vadd.f32 %v766, %v772
        %v803 = vadd.f32 %v767, %v772
        %v804 = vadd.f32 %v768, %v772
        %v805 = vadd.f32 %v769, %v772
        %v806 = vmax.f32 %v774, 0.0
        %v807 = vmax.f32 %v775, 0.0
        %v808 = vmax.f32 %v776, 0.0
        %v809 = vmax.f32 %v777, 0.0
        %v810 = vmax.f32 %v778, 0.0
        %v811 = vmax.f32 %v779, 0.0
        %v812 = vmax.f32 %v780, 0.0
        %v813 = vmax.f32 %v781, 0.0
        %v814 = vmax.f32 %v782, 0.0
        %v815 = vmax.f32 %v783, 0.0
        %v816 = vmax.f32 %v784, 0.0
        %v817 = vmax.f32 %v785, 0.0
        %v818 = vmax.f32 %v786, 0.0
        %v819 = vmax.f32 %v787, 0.0
        %v820 = vmax.f32 %v788, 0.0
        %v821 = vmax.f32 %v789, 0.0
        %v822 = vmax.f32 %v790, 0.0
        %v823 = vmax.f32 %v791, 0.0
        %v824 = vmax.f32 %v792, 0.0
        %v825 = vmax.f32 %v793, 0.0
        %v826 = vmax.f32 %v794, 0.0
        %v827 = vmax.f32 %v795, 0.0
        %v828 = vmax.f32 %v796, 0.0
        %v829 = vmax.f32 %v797, 0.0
        %v830 = vmax.f32 %v798, 0.0
        %v831 = vmax.f32 %v799, 0.0
        %v832 = vmax.f32 %v800, 0.0
        %v833 = vmax.f32 %v801, 0.0
        %v834 = vmax.f32 %v802, 0.0
        %v835 = vmax.f32 %v803, 0.0
        %v836 = vmax.f32 %v804, 0.0
        %v837 = vmax.f32 %v805, 0.0
        %v838 = vpack.c.bf16 %v806, %v806
        %v839 = vpack.c.bf16 %v807, %v807
        %v840 = vpack.c.bf16 %v808, %v808
        %v841 = vpack.c.bf16 %v809, %v809
        %v842 = vpack.c.bf16 %v810, %v810
        %v843 = vpack.c.bf16 %v811, %v811
        %v844 = vpack.c.bf16 %v812, %v812
        %v845 = vpack.c.bf16 %v813, %v813
        %v846 = vpack.c.bf16 %v814, %v814
        %v847 = vpack.c.bf16 %v815, %v815
        %v848 = vpack.c.bf16 %v816, %v816
        %v849 = vpack.c.bf16 %v817, %v817
        %v850 = vpack.c.bf16 %v818, %v818
        %v851 = vpack.c.bf16 %v819, %v819
        %v852 = vpack.c.bf16 %v820, %v820
        %v853 = vpack.c.bf16 %v821, %v821
        %v854 = vpack.c.bf16 %v822, %v822
        %v855 = vpack.c.bf16 %v823, %v823
        %v856 = vpack.c.bf16 %v824, %v824
        %v857 = vpack.c.bf16 %v825, %v825
        %v858 = vpack.c.bf16 %v826, %v826
        %v859 = vpack.c.bf16 %v827, %v827
        %v860 = vpack.c.bf16 %v828, %v828
        %v861 = vpack.c.bf16 %v829, %v829
        %v862 = vpack.c.bf16 %v830, %v830
        %v863 = vpack.c.bf16 %v831, %v831
        %v864 = vpack.c.bf16 %v832, %v832
        %v865 = vpack.c.bf16 %v833, %v833
        %v866 = vpack.c.bf16 %v834, %v834
        %v867 = vpack.c.bf16 %v835, %v835
        %v868 = vpack.c.bf16 %v836, %v836
        %v869 = vpack.c.bf16 %v837, %v837
        %870 = vst [vmem:[%s298] sm:$0xf] %v838
        %871 = vst [vmem:[%s298 + $0x4] sm:$0xf] %v839
        %872 = vst [vmem:[%s298 + $0x8] sm:$0xf] %v840
        %873 = vst [vmem:[%s298 + $0xc] sm:$0xf] %v841
        %874 = vst [vmem:[%s298 + $0x10] sm:$0xf] %v842
        %875 = vst [vmem:[%s298 + $0x14] sm:$0xf] %v843
        %876 = vst [vmem:[%s298 + $0x18] sm:$0xf] %v844
        %877 = vst [vmem:[%s298 + $0x1c] sm:$0xf] %v845
        %878 = vst [vmem:[%s298 + $0x20] sm:$0xf] %v846
        %879 = vst [vmem:[%s298 + $0x24] sm:$0xf] %v847
        %880 = vst [vmem:[%s298 + $0x28] sm:$0xf] %v848
        %881 = vst [vmem:[%s298 + $0x2c] sm:$0xf] %v849
        %882 = vst [vmem:[%s298 + $0x30] sm:$0xf] %v850
        %883 = vst [vmem:[%s298 + $0x34] sm:$0xf] %v851
        %884 = vst [vmem:[%s298 + $0x38] sm:$0xf] %v852
        %885 = vst [vmem:[%s298 + $0x3c] sm:$0xf] %v853
        %886 = vst [vmem:[%s298 + $0x40] sm:$0xf] %v854
        %887 = vst [vmem:[%s298 + $0x44] sm:$0xf] %v855
        %888 = vst [vmem:[%s298 + $0x48] sm:$0xf] %v856
        %889 = vst [vmem:[%s298 + $0x4c] sm:$0xf] %v857
        %890 = vst [vmem:[%s298 + $0x50] sm:$0xf] %v858
        %891 = vst [vmem:[%s298 + $0x54] sm:$0xf] %v859
        %892 = vst [vmem:[%s298 + $0x58] sm:$0xf] %v860
        %893 = vst [vmem:[%s298 + $0x5c] sm:$0xf] %v861
        %894 = vst [vmem:[%s298 + $0x60] sm:$0xf] %v862
        %895 = vst [vmem:[%s298 + $0x64] sm:$0xf] %v863
        %896 = vst [vmem:[%s298 + $0x68] sm:$0xf] %v864
        %897 = vst [vmem:[%s298 + $0x6c] sm:$0xf] %v865
        %898 = vst [vmem:[%s298 + $0x70] sm:$0xf] %v866
        %899 = vst [vmem:[%s298 + $0x74] sm:$0xf] %v867
        %900 = vst [vmem:[%s298 + $0x78] sm:$0xf] %v868
        %901 = vst [vmem:[%s298 + $0x7c] sm:$0xf] %v869
      $region44: #{two_stream_net_forward.3} parent=35 // pred_fallthru
        _
      %s902 = smul.u32 32, %s20
      %p903 = scmp.lt.s32.totalorder %s902, 127
      %s904 = scalar_select %p903, %s902, 127
      %p905 = scmp.lt.s32.totalorder %s21, 0
      %s906 = scalar_select %p905, %s21, 0
      %s907 = sadd.s32 %s906, %s904
      %s908 = smul.addr %s907, 4
      %s909 = scalar_lea.vmem %s4, %s908
      // Predicated region
      $region45: #{two_stream_net_forward.3} parent=35 // pred_check
        %p910 = pneg %p162
      $region46: #{two_stream_net_forward.3} parent=35 // pred_check_branch
        %912 = sbr.rel (%p910) target = $region48
      $region47: #{two_stream_net_forward.3} parent=35 // pred_region
        %s913 = smul.u32 32, %s20
      $region48: #{two_stream_net_forward.3} parent=35 // pred_fallthru
        _
    $region36: #{two_stream_net_forward.3} parent=5 // pred_fallthru
      _
    %p914 = scmp.le.s32.totalorder 2, %s10
    // Predicated region
    $region49: #{two_stream_net_forward.3} parent=5 // pred_check
      %p915 = pneg %p914
    $region50: #{two_stream_net_forward.3} parent=5 // pred_check_branch
      %917 = sbr.rel (%p915) target = $region52
    $region51: #{two_stream_net_forward.3} parent=5 // pred_region
      %s918 = ssub.s32 %s10, 2
      // Predicated region
      $region53: #{two_stream_net_forward.3} parent=51 // pred_check
        %p919 = pneg %p168
      $region54: #{two_stream_net_forward.3} parent=51 // pred_check_branch
        %921 = sbr.rel (%p919) target = $region56
      $region55: #{two_stream_net_forward.3} parent=51 // pred_region
        %s922 = smul.u32 32, %s23
        %p923 = scmp.lt.s32.totalorder %s922, 127
        %s924 = scalar_select %p923, %s922, 127
        %p925 = scmp.lt.s32.totalorder %s24, 0
        %s926 = scalar_select %p925, %s24, 0
        %s927 = sadd.s32 %s926, %s924
        %s928 = smul.addr %s927, 4
        %s929 = scalar_lea.vmem %s4, %s928
      $region56: #{two_stream_net_forward.3} parent=51 // pred_fallthru
        _
    $region52: #{two_stream_net_forward.3} parent=5 // pred_fallthru
      _
  $region6: #{two_stream_net_forward.3} parent=0 // loop_footer
    %s14 = sadd.s32 1, %s10
  $region7: #{two_stream_net_forward.3} parent=0 // loop_footer_branch
    %9 = sbr.rel target = $region3
  $region8: #{two_stream_net_forward.3} parent=0 // loop_exit
    _

// kernel: two_stream_net_forward.4
$region0: #{two_stream_net_forward.4}
  #allocation0 [shape = 'u32[]', space=smem, size = 0x4, offset = 0x4, fixed_abs, tag = 'smem constant byte address 0x4 - core index']
  #allocation1 [shape = 'u32[72,128]{1,0:T(1,128)}', space=vmem, size = 0x9000, scoped, tag = 'internal scratch']
  #allocation2 [shape = 'f32[25,512]{1,0:T(8,128)}', space=vmem, size = 0x10000, scoped, tag = 'scratch operand']
  %s0 = inlined_call_operand.vmem [shape: bf16[16,25,1152], index: 0, kind: input, shape index: {}]
  %s1 = inlined_call_operand.vmem [shape: bf16[1152,2048], index: 1, kind: input, shape index: {}]
  %s2 = inlined_call_operand.vmem [shape: f32[1,2048], index: 2, kind: input, shape index: {}]
  %s3 = inlined_call_operand.vmem [shape: f32[1,2048], index: 3, kind: input, shape index: {}]
  %s4 = inlined_call_operand.vmem [shape: f32[16,1,2048], index: 4, kind: output, shape index: {}]
  %s5 = sld [smem:[#allocation0]]
  $region106: #{two_stream_net_forward.4} parent=0
    _
  %s7 = ssub.s32 1, %s5
  %s8 = scalar_select 0, %s7, %s5
  $region1: #{two_stream_net_forward.4} parent=0
    #allocation3 [shape = 'u8[49152]{0}', space=vmem, size = 0xc000, scoped, tag = 'input window, operand 0']
    #allocation4 [shape = 'u8[786432]{0}', space=vmem, size = 0xc0000, scoped, tag = 'input window, operand 1']
    loop: start=0, step=1, limit=194
    $region2: #{two_stream_net_forward.4} parent=1 // loop_pre_header
      _
    $region3: #{two_stream_net_forward.4} parent=1 // loop_header
      %s10 = sphi 0, %s14
      %p11 = scmp.ge.s32.totalorder %s10, 194
      %s17 = sphi 0, %s36
      %s18 = sphi 0, %s32
      %s19 = sphi 0, %s28
      %s20 = sphi 0, %s17
      %s21 = sphi 0, %s18
      %s22 = sphi 0, %s19
      %s23 = sphi 0, %s20
      %s24 = sphi 0, %s21
      %s25 = sphi 0, %s22
      %s41 = sphi 0, %s43
      %s44 = sphi 0, %s41
      %s45 = sphi 0, %s44
      %s61 = sphi 0, %s45
      %s69 = sphi 0, %s71
      %s72 = sphi 0, %s69
      %s73 = sphi 0, %s72
      %s89 = sphi 0, %s73
      %s95 = sphi 0, %s97
      %s98 = sphi 0, %s95
      %s99 = sphi 0, %s98
      %s115 = sphi 0, %s99
      %s121 = sphi 0, %s123
      %s124 = sphi 0, %s121
      %s125 = sphi 0, %s124
      %s141 = sphi 0, %s125
      %s149 = sphi 0, %s151
      %s152 = sphi 0, %s149
      %s153 = sphi 0, %s152
      %s169 = sphi 0, %s153
    $region4: #{two_stream_net_forward.4} parent=1 // loop_header_branch
      %13 = sbr.rel (%p11) target = $region8
    $region5: #{two_stream_net_forward.4} parent=1 // loop_body
      %s15 = ssub.s32 %s10, 1
      %s16 = ssub.s32 %s10, 2
      %s26 = sadd.s32 1, %s19
      %p27 = scmp.ge.s32.totalorder %s26, 3
      %s28 = scalar_select %p27, 0, %s26
      %s29 = sadd.s32 1, %s18
      %s30 = scalar_select %p27, %s29, %s18
      %p31 = scmp.ge.s32.totalorder %s30, 4
      %s32 = scalar_select %p31, 0, %s30
      %s33 = sadd.s32 1, %s17
      %s34 = scalar_select %p31, %s33, %s17
      %p35 = scmp.ge.s32.totalorder %s34, 16
      %s36 = scalar_select %p35, 0, %s34
      %s37 = ssub.s32 %s17, %s36
      %s38 = ssub.s32 %s19, %s28
      %s39 = sor.u32 %s37, %s38
      %p40 = scmp.eq.s32.totalorder %s39, 0
      %s42 = sadd.s32 %s41, 1
      %s43 = scalar_select %p40, %s41, %s42
      %p46 = pneg %p40
      %p47 = scmp.eq.s32.totalorder %s10, 191
      %p48 = por %p46, %p47
      %p49 = scmp.ne.s32.totalorder %s41, %s44
      %p50 = scmp.eq.s32.totalorder %s10, 0
      %p51 = por %p49, %p50
      %p52 = scmp.ne.s32.totalorder %s41, %s44
      %p53 = scmp.eq.s32.totalorder %s15, 191
      %p54 = por %p52, %p53
      %p55 = scmp.ne.s32.totalorder %s44, %s45
      %p56 = scmp.eq.s32.totalorder %s15, 0
      %p57 = por %p55, %p56
      %p58 = scmp.ne.s32.totalorder %s44, %s45
      %p59 = scmp.eq.s32.totalorder %s16, 191
      %p60 = por %p58, %p59
      %p62 = scmp.ne.s32.totalorder %s45, %s61
      %p63 = scmp.eq.s32.totalorder %s16, 0
      %p64 = por %p62, %p63
      %s65 = ssub.s32 %s19, %s28
      %s66 = ssub.s32 %s18, %s32
      %s67 = sor.u32 %s65, %s66
      %p68 = scmp.eq.s32.totalorder %s67, 0
      %s70 = sadd.s32 %s69, 1
      %s71 = scalar_select %p68, %s69, %s70
      %p74 = pneg %p68
      %p75 = scmp.eq.s32.totalorder %s10, 191
      %p76 = por %p74, %p75
      %p77 = scmp.ne.s32.totalorder %s69, %s72
      %p78 = scmp.eq.s32.totalorder %s10, 0
      %p79 = por %p77, %p78
      %p80 = scmp.ne.s32.totalorder %s69, %s72
      %p81 = scmp.eq.s32.totalorder %s15, 191
      %p82 = por %p80, %p81
      %p83 = scmp.ne.s32.totalorder %s72, %s73
      %p84 = scmp.eq.s32.totalorder %s15, 0
      %p85 = por %p83, %p84
      %p86 = scmp.ne.s32.totalorder %s72, %s73
      %p87 = scmp.eq.s32.totalorder %s16, 191
      %p88 = por %p86, %p87
      %p90 = scmp.ne.s32.totalorder %s73, %s89
      %p91 = scmp.eq.s32.totalorder %s16, 0
      %p92 = por %p90, %p91
      %s93 = ssub.s32 %s18, %s32
      %p94 = scmp.eq.s32.totalorder %s93, 0
      %s96 = sadd.s32 %s95, 1
      %s97 = scalar_select %p94, %s95, %s96
      %p100 = pneg %p94
      %p101 = scmp.eq.s32.totalorder %s10, 191
      %p102 = por %p100, %p101
      %p103 = scmp.ne.s32.totalorder %s95, %s98
      %p104 = scmp.eq.s32.totalorder %s10, 0
      %p105 = por %p103, %p104
      %p106 = scmp.ne.s32.totalorder %s95, %s98
      %p107 = scmp.eq.s32.totalorder %s15, 191
      %p108 = por %p106, %p107
      %p109 = scmp.ne.s32.totalorder %s98, %s99
      %p110 = scmp.eq.s32.totalorder %s15, 0
      %p111 = por %p109, %p110
      %p112 = scmp.ne.s32.totalorder %s98, %s99
      %p113 = scmp.eq.s32.totalorder %s16, 191
      %p114 = por %p112, %p113
      %p116 = scmp.ne.s32.totalorder %s99, %s115
      %p117 = scmp.eq.s32.totalorder %s16, 0
      %p118 = por %p116, %p117
      %s119 = ssub.s32 %s18, %s32
      %p120 = scmp.eq.s32.totalorder %s119, 0
      %s122 = sadd.s32 %s121, 1
      %s123 = scalar_select %p120, %s121, %s122
      %p126 = pneg %p120
      %p127 = scmp.eq.s32.totalorder %s10, 191
      %p128 = por %p126, %p127
      %p129 = scmp.ne.s32.totalorder %s121, %s124
      %p130 = scmp.eq.s32.totalorder %s10, 0
      %p131 = por %p129, %p130
      %p132 = scmp.ne.s32.totalorder %s121, %s124
      %p133 = scmp.eq.s32.totalorder %s15, 191
      %p134 = por %p132, %p133
      %p135 = scmp.ne.s32.totalorder %s124, %s125
      %p136 = scmp.eq.s32.totalorder %s15, 0
      %p137 = por %p135, %p136
      %p138 = scmp.ne.s32.totalorder %s124, %s125
      %p139 = scmp.eq.s32.totalorder %s16, 191
      %p140 = por %p138, %p139
      %p142 = scmp.ne.s32.totalorder %s125, %s141
      %p143 = scmp.eq.s32.totalorder %s16, 0
      %p144 = por %p142, %p143
      %s145 = ssub.s32 %s17, %s36
      %s146 = ssub.s32 %s18, %s32
      %s147 = sor.u32 %s145, %s146
      %p148 = scmp.eq.s32.totalorder %s147, 0
      %s150 = sadd.s32 %s149, 1
      %s151 = scalar_select %p148, %s149, %s150
      %p154 = pneg %p148
      %p155 = scmp.eq.s32.totalorder %s10, 191
      %p156 = por %p154, %p155
      %p157 = scmp.ne.s32.totalorder %s149, %s152
      %p158 = scmp.eq.s32.totalorder %s10, 0
      %p159 = por %p157, %p158
      %p160 = scmp.ne.s32.totalorder %s149, %s152
      %p161 = scmp.eq.s32.totalorder %s15, 191
      %p162 = por %p160, %p161
      %p163 = scmp.ne.s32.totalorder %s152, %s153
      %p164 = scmp.eq.s32.totalorder %s15, 0
      %p165 = por %p163, %p164
      %p166 = scmp.ne.s32.totalorder %s152, %s153
      %p167 = scmp.eq.s32.totalorder %s16, 191
      %p168 = por %p166, %p167
      %p170 = scmp.ne.s32.totalorder %s153, %s169
      %p171 = scmp.eq.s32.totalorder %s16, 0
      %p172 = por %p170, %p171
      %p173 = scmp.le.s32.totalorder 1, %s10
      %p174 = scmp.lt.s32.totalorder %s10, 193
      %p175 = pnand %p173, %p174
      %p176 = pneg %p175
      // Predicated region
      $region9: #{two_stream_net_forward.4} parent=5 // pred_check
        _
      $region10: #{two_stream_net_forward.4} parent=5 // pred_check_branch
        %178 = sbr.rel (%p175) target = $region12
      $region11: #{two_stream_net_forward.4} parent=5 // pred_region
        %s179 = ssub.s32 %s10, 1
      $region12: #{two_stream_net_forward.4} parent=5 // pred_fallthru
        _
      %p180 = scmp.lt.s32.totalorder %s10, 192
      // Predicated region
      $region13: #{two_stream_net_forward.4} parent=5 // pred_check
        %p181 = pneg %p180
      $region14: #{two_stream_net_forward.4} parent=5 // pred_check_branch
        %183 = sbr.rel (%p181) target = $region16
      $region15: #{two_stream_net_forward.4} parent=5 // pred_region
        // Predicated region
        $region17: #{two_stream_net_forward.4} parent=15 // pred_check
          %p184 = pneg %p51
        $region18: #{two_stream_net_forward.4} parent=15 // pred_check_branch
          %186 = sbr.rel (%p184) target = $region20
        $region19: #{two_stream_net_forward.4} parent=15 // pred_region
          %s187 = sand.u32 %s41, 1
          %s188 = sand.u32 %s41, 1
          %s189 = smul.addr %s188, 48
          %s190 = scalar_lea.vmem [#allocation3], %s189
          %s191 = smul.u32 3, %s19
          %s192 = smul.addr %s17, 36
          %s193 = sadd.s32 %s191, %s192
          %s194 = smul.addr %s193, 4
          %s195 = scalar_lea.vmem %s0, %s194
          // Predicated region
          $region21: #{two_stream_net_forward.4} parent=19 // pred_check
            _
          $region22: #{two_stream_net_forward.4} parent=19 // pred_check_branch
            %197 = sbr.rel (0) target = $region24
          $region23: #{two_stream_net_forward.4} parent=19 // pred_region
            // Predicated region
            $region25: #{two_stream_net_forward.4} parent=23 // pred_check
              _
            $region26: #{two_stream_net_forward.4} parent=23 // pred_check_branch
              %199 = sbr.rel (0) target = $region28
            $region27: #{two_stream_net_forward.4} parent=23 // pred_region
              %s200 = scalar_lea.vmem %s195, 8
              %s201 = scalar_lea.vmem %s190, 8 [#allocation3]
              loop: start=0, step=1, limit=1
              $region29: #{two_stream_net_forward.4} parent=27 // loop_pre_header
                _
              $region30: #{two_stream_net_forward.4} parent=27 // loop_header
                %s203 = sphi 0, %s207
                %p204 = scmp.ge.s32.totalorder %s203, 1
                %s208 = sphi %s195, %s195
                %s209 = sphi %s190, %s190
              $region31: #{two_stream_net_forward.4} parent=27 // loop_header_branch
                %206 = sbr.rel (%p204) target = $region35
              $region32: #{two_stream_net_forward.4} parent=27 // loop_body
                %v210 = vld [vmem:[%s208] sm:$0xff]
                %211 = vst [vmem:[%s209] sm:$0xff] %v210
                %v212 = vld [vmem:[%s208 + $0x24] sm:$0xff]
                %213 = vst [vmem:[%s209 + $0xc] sm:$0xff] %v212
                %v214 = vld [vmem:[%s208 + $0x48] sm:$0xff]
                %215 = vst [vmem:[%s209 + $0x18] sm:$0xff] %v214
                %v216 = vld [vmem:[%s208 + $0x6c] sm:$0xff]
                %217 = vst [vmem:[%s209 + $0x24] sm:$0xff] %v216
              $region33: #{two_stream_net_forward.4} parent=27 // loop_footer
                %s207 = sadd.s32 1, %s203
              $region34: #{two_stream_net_forward.4} parent=27 // loop_footer_branch
                %202 = sbr.rel target = $region30
              $region35: #{two_stream_net_forward.4} parent=27 // loop_exit
                _
              %s219 = ssub.s32 16, 1
              loop: start=0, step=1, limit=1
              $region36: #{two_stream_net_forward.4} parent=27 // loop_pre_header
                _
              $region37: #{two_stream_net_forward.4} parent=27 // loop_header
                %s221 = sphi 0, %s225
                %p222 = scmp.ge.s32.totalorder %s221, 1
                %s226 = sphi %s200, %s200
                %s227 = sphi %s201, %s201
              $region38: #{two_stream_net_forward.4} parent=27 // loop_header_branch
                %224 = sbr.rel (%p222) target = $region42
              $region39: #{two_stream_net_forward.4} parent=27 // loop_body
                %v228 = vld [vmem:[%s226] sm:%s219]
                %229 = vst [vmem:[%s227] sm:%s219] %v228
                %v230 = vld [vmem:[%s226 + $0x24] sm:%s219]
                %231 = vst [vmem:[%s227 + $0xc] sm:%s219] %v230
                %v232 = vld [vmem:[%s226 + $0x48] sm:%s219]
                %233 = vst [vmem:[%s227 + $0x18] sm:%s219] %v232
                %v234 = vld [vmem:[%s226 + $0x6c] sm:%s219]
                %235 = vst [vmem:[%s227 + $0x24] sm:%s219] %v234
              $region40: #{two_stream_net_forward.4} parent=27 // loop_footer
                %s225 = sadd.s32 1, %s221
              $region41: #{two_stream_net_forward.4} parent=27 // loop_footer_branch
                %220 = sbr.rel target = $region37
              $region42: #{two_stream_net_forward.4} parent=27 // loop_exit
                _
            $region28: #{two_stream_net_forward.4} parent=23 // pred_fallthru
              _
          $region24: #{two_stream_net_forward.4} parent=19 // pred_fallthru
            _
          %236 = vnop
        $region20: #{two_stream_net_forward.4} parent=15 // pred_fallthru
          _
        // Predicated region
        $region43: #{two_stream_net_forward.4} parent=15 // pred_check
          %p237 = pneg %p79
        $region44: #{two_stream_net_forward.4} parent=15 // pred_check_branch
          %239 = sbr.rel (%p237) target = $region46
        $region45: #{two_stream_net_forward.4} parent=15 // pred_region
          %s240 = sand.u32 %s69, 1
          %s241 = sand.u32 %s69, 1
          %s242 = smul.addr %s241, 768
          %s243 = scalar_lea.vmem [#allocation4], %s242
          %s244 = smul.u32 48, %s19
          %s245 = smul.u32 4, %s18
          %s246 = smul.addr %s244, 16
          %s247 = sadd.s32 %s245, %s246
          %s248 = smul.addr %s247, 4
          %s249 = scalar_lea.vmem %s1, %s248
          // Predicated region
          $region47: #{two_stream_net_forward.4} parent=45 // pred_check
            _
          $region48: #{two_stream_net_forward.4} parent=45 // pred_check_branch
            %251 = sbr.rel (0) target = $region50
          $region49: #{two_stream_net_forward.4} parent=45 // pred_region
            // Predicated region
            $region51: #{two_stream_net_forward.4} parent=49 // pred_check
              _
            $region52: #{two_stream_net_forward.4} parent=49 // pred_check_branch
              %253 = sbr.rel (0) target = $region54
            $region53: #{two_stream_net_forward.4} parent=49 // pred_region
              loop: start=0, step=1, limit=1
              $region55: #{two_stream_net_forward.4} parent=53 // loop_pre_header
                _
              $region56: #{two_stream_net_forward.4} parent=53 // loop_header
                %s255 = sphi 0, %s259
                %p256 = scmp.ge.s32.totalorder %s255, 1
                %s260 = sphi %s249, %s249
                %s261 = sphi %s243, %s243
              $region57: #{two_stream_net_forward.4} parent=53 // loop_header_branch
                %258 = sbr.rel (%p256) target = $region61
              $region58: #{two_stream_net_forward.4} parent=53 // loop_body
                %v262 = vld [vmem:[%s260] sm:$0xff]
                %263 = vst [vmem:[%s261] sm:$0xff] %v262
                %v264 = vld [vmem:[%s260 + $0x8] sm:$0xff]
                %265 = vst [vmem:[%s261 + $0x8] sm:$0xff] %v264
                %v266 = vld [vmem:[%s260 + $0x40] sm:$0xff]
                %267 = vst [vmem:[%s261 + $0x10] sm:$0xff] %v266
                %v268 = vld [vmem:[%s260 + $0x48] sm:$0xff]
                %269 = vst [vmem:[%s261 + $0x18] sm:$0xff] %v268
                %v270 = vld [vmem:[%s260 + $0x80] sm:$0xff]
                %271 = vst [vmem:[%s261 + $0x20] sm:$0xff] %v270
                %v272 = vld [vmem:[%s260 + $0x88] sm:$0xff]
                %273 = vst [vmem:[%s261 + $0x28] sm:$0xff] %v272
                %v274 = vld [vmem:[%s260 + $0xc0] sm:$0xff]
                %275 = vst [vmem:[%s261 + $0x30] sm:$0xff] %v274
                %v276 = vld [vmem:[%s260 + $0xc8] sm:$0xff]
                %277 = vst [vmem:[%s261 + $0x38] sm:$0xff] %v276
                %v278 = vld [vmem:[%s260 + $0x100] sm:$0xff]
                %279 = vst [vmem:[%s261 + $0x40] sm:$0xff] %v278
                %v280 = vld [vmem:[%s260 + $0x108] sm:$0xff]
                %281 = vst [vmem:[%s261 + $0x48] sm:$0xff] %v280
                %v282 = vld [vmem:[%s260 + $0x140] sm:$0xff]
                %283 = vst [vmem:[%s261 + $0x50] sm:$0xff] %v282
                %v284 = vld [vmem:[%s260 + $0x148] sm:$0xff]
                %285 = vst [vmem:[%s261 + $0x58] sm:$0xff] %v284
                %v286 = vld [vmem:[%s260 + $0x180] sm:$0xff]
                %287 = vst [vmem:[%s261 + $0x60] sm:$0xff] %v286
                %v288 = vld [vmem:[%s260 + $0x188] sm:$0xff]
                %289 = vst [vmem:[%s261 + $0x68] sm:$0xff] %v288
                %v290 = vld [vmem:[%s260 + $0x1c0] sm:$0xff]
                %291 = vst [vmem:[%s261 + $0x70] sm:$0xff] %v290
                %v292 = vld [vmem:[%s260 + $0x1c8] sm:$0xff]
                %293 = vst [vmem:[%s261 + $0x78] sm:$0xff] %v292
                %v294 = vld [vmem:[%s260 + $0x200] sm:$0xff]
                %295 = vst [vmem:[%s261 + $0x80] sm:$0xff] %v294
                %v296 = vld [vmem:[%s260 + $0x208] sm:$0xff]
                %297 = vst [vmem:[%s261 + $0x88] sm:$0xff] %v296
                %v298 = vld [vmem:[%s260 + $0x240] sm:$0xff]
                %299 = vst [vmem:[%s261 + $0x90] sm:$0xff] %v298
                %v300 = vld [vmem:[%s260 + $0x248] sm:$0xff]
                %301 = vst [vmem:[%s261 + $0x98] sm:$0xff] %v300
                %v302 = vld [vmem:[%s260 + $0x280] sm:$0xff]
                %303 = vst [vmem:[%s261 + $0xa0] sm:$0xff] %v302
                %v304 = vld [vmem:[%s260 + $0x288] sm:$0xff]
                %305 = vst [vmem:[%s261 + $0xa8] sm:$0xff] %v304
                %v306 = vld [vmem:[%s260 + $0x2c0] sm:$0xff]
                %307 = vst [vmem:[%s261 + $0xb0] sm:$0xff] %v306
                %v308 = vld [vmem:[%s260 + $0x2c8] sm:$0xff]
                %309 = vst [vmem:[%s261 + $0xb8] sm:$0xff] %v308
                %v310 = vld [vmem:[%s260 + $0x300] sm:$0xff]
                %311 = vst [vmem:[%s261 + $0xc0] sm:$0xff] %v310
                %v312 = vld [vmem:[%s260 + $0x308] sm:$0xff]
                %313 = vst [vmem:[%s261 + $0xc8] sm:$0xff] %v312
                %v314 = vld [vmem:[%s260 + $0x340] sm:$0xff]
                %315 = vst [vmem:[%s261 + $0xd0] sm:$0xff] %v314
                %v316 = vld [vmem:[%s260 + $0x348] sm:$0xff]
                %317 = vst [vmem:[%s261 + $0xd8] sm:$0xff] %v316
                %v318 = vld [vmem:[%s260 + $0x380] sm:$0xff]
                %319 = vst [vmem:[%s261 + $0xe0] sm:$0xff] %v318
                %v320 = vld [vmem:[%s260 + $0x388] sm:$0xff]
                %321 = vst [vmem:[%s261 + $0xe8] sm:$0xff] %v320
                %v322 = vld [vmem:[%s260 + $0x3c0] sm:$0xff]
                %323 = vst [vmem:[%s261 + $0xf0] sm:$0xff] %v322
                %v324 = vld [vmem:[%s260 + $0x3c8] sm:$0xff]
                %325 = vst [vmem:[%s261 + $0xf8] sm:$0xff] %v324
                %v326 = vld [vmem:[%s260 + $0x400] sm:$0xff]
                %327 = vst [vmem:[%s261 + $0x100] sm:$0xff] %v326
                %v328 = vld [vmem:[%s260 + $0x408] sm:$0xff]
                %329 = vst [vmem:[%s261 + $0x108] sm:$0xff] %v328
                %v330 = vld [vmem:[%s260 + $0x440] sm:$0xff]
                %331 = vst [vmem:[%s261 + $0x110] sm:$0xff] %v330
                %v332 = vld [vmem:[%s260 + $0x448] sm:$0xff]
                %333 = vst [vmem:[%s261 + $0x118] sm:$0xff] %v332
                %v334 = vld [vmem:[%s260 + $0x480] sm:$0xff]
                %335 = vst [vmem:[%s261 + $0x120] sm:$0xff] %v334
                %v336 = vld [vmem:[%s260 + $0x488] sm:$0xff]
                %337 = vst [vmem:[%s261 + $0x128] sm:$0xff] %v336
                %v338 = vld [vmem:[%s260 + $0x4c0] sm:$0xff]
                %339 = vst [vmem:[%s261 + $0x130] sm:$0xff] %v338
                %v340 = vld [vmem:[%s260 + $0x4c8] sm:$0xff]
                %341 = vst [vmem:[%s261 + $0x138] sm:$0xff] %v340
                %v342 = vld [vmem:[%s260 + $0x500] sm:$0xff]
                %343 = vst [vmem:[%s261 + $0x140] sm:$0xff] %v342
                %v344 = vld [vmem:[%s260 + $0x508] sm:$0xff]
                %345 = vst [vmem:[%s261 + $0x148] sm:$0xff] %v344
                %v346 = vld [vmem:[%s260 + $0x540] sm:$0xff]
                %347 = vst [vmem:[%s261 + $0x150] sm:$0xff] %v346
                %v348 = vld [vmem:[%s260 + $0x548] sm:$0xff]
                %349 = vst [vmem:[%s261 + $0x158] sm:$0xff] %v348
                %v350 = vld [vmem:[%s260 + $0x580] sm:$0xff]
                %351 = vst [vmem:[%s261 + $0x160] sm:$0xff] %v350
                %v352 = vld [vmem:[%s260 + $0x588] sm:$0xff]
                %353 = vst [vmem:[%s261 + $0x168] sm:$0xff] %v352
                %v354 = vld [vmem:[%s260 + $0x5c0] sm:$0xff]
                %355 = vst [vmem:[%s261 + $0x170] sm:$0xff] %v354
                %v356 = vld [vmem:[%s260 + $0x5c8] sm:$0xff]
                %357 = vst [vmem:[%s261 + $0x178] sm:$0xff] %v356
                %v358 = vld [vmem:[%s260 + $0x600] sm:$0xff]
                %359 = vst [vmem:[%s261 + $0x180] sm:$0xff] %v358
                %v360 = vld [vmem:[%s260 + $0x608] sm:$0xff]
                %361 = vst [vmem:[%s261 + $0x188] sm:$0xff] %v360
                %v362 = vld [vmem:[%s260 + $0x640] sm:$0xff]
                %363 = vst [vmem:[%s261 + $0x190] sm:$0xff] %v362
                %v364 = vld [vmem:[%s260 + $0x648] sm:$0xff]
                %365 = vst [vmem:[%s261 + $0x198] sm:$0xff] %v364
                %v366 = vld [vmem:[%s260 + $0x680] sm:$0xff]
                %367 = vst [vmem:[%s261 + $0x1a0] sm:$0xff] %v366
                %v368 = vld [vmem:[%s260 + $0x688] sm:$0xff]
                %369 = vst [vmem:[%s261 + $0x1a8] sm:$0xff] %v368
                %v370 = vld [vmem:[%s260 + $0x6c0] sm:$0xff]
                %371 = vst [vmem:[%s261 + $0x1b0] sm:$0xff] %v370
                %v372 = vld [vmem:[%s260 + $0x6c8] sm:$0xff]
                %373 = vst [vmem:[%s261 + $0x1b8] sm:$0xff] %v372
                %v374 = vld [vmem:[%s260 + $0x700] sm:$0xff]
                %375 = vst [vmem:[%s261 + $0x1c0] sm:$0xff] %v374
                %v376 = vld [vmem:[%s260 + $0x708] sm:$0xff]
                %377 = vst [vmem:[%s261 + $0x1c8] sm:$0xff] %v376
                %v378 = vld [vmem:[%s260 + $0x740] sm:$0xff]
                %379 = vst [vmem:[%s261 + $0x1d0] sm:$0xff] %v378
                %v380 = vld [vmem:[%s260 + $0x748] sm:$0xff]
                %381 = vst [vmem:[%s261 + $0x1d8] sm:$0xff] %v380
                %v382 = vld [vmem:[%s260 + $0x780] sm:$0xff]
                %383 = vst [vmem:[%s261 + $0x1e0] sm:$0xff] %v382
                %v384 = vld [vmem:[%s260 + $0x788] sm:$0xff]
                %385 = vst [vmem:[%s261 + $0x1e8] sm:$0xff] %v384
                %v386 = vld [vmem:[%s260 + $0x7c0] sm:$0xff]
                %387 = vst [vmem:[%s261 + $0x1f0] sm:$0xff] %v386
                %v388 = vld [vmem:[%s260 + $0x7c8] sm:$0xff]
                %389 = vst [vmem:[%s261 + $0x1f8] sm:$0xff] %v388
                %v390 = vld [vmem:[%s260 + $0x800] sm:$0xff]
                %391 = vst [vmem:[%s261 + $0x200] sm:$0xff] %v390
                %v392 = vld [vmem:[%s260 + $0x808] sm:$0xff]
                %393 = vst [vmem:[%s261 + $0x208] sm:$0xff] %v392
                %v394 = vld [vmem:[%s260 + $0x840] sm:$0xff]
                %395 = vst [vmem:[%s261 + $0x210] sm:$0xff] %v394
                %v396 = vld [vmem:[%s260 + $0x848] sm:$0xff]
                %397 = vst [vmem:[%s261 + $0x218] sm:$0xff] %v396
                %v398 = vld [vmem:[%s260 + $0x880] sm:$0xff]
                %399 = vst [vmem:[%s261 + $0x220] sm:$0xff] %v398
                %v400 = vld [vmem:[%s260 + $0x888] sm:$0xff]
                %401 = vst [vmem:[%s261 + $0x228] sm:$0xff] %v400
                %v402 = vld [vmem:[%s260 + $0x8c0] sm:$0xff]
                %403 = vst [vmem:[%s261 + $0x230] sm:$0xff] %v402
                %v404 = vld [vmem:[%s260 + $0x8c8] sm:$0xff]
                %405 = vst [vmem:[%s261 + $0x238] sm:$0xff] %v404
                %v406 = vld [vmem:[%s260 + $0x900] sm:$0xff]
                %407 = vst [vmem:[%s261 + $0x240] sm:$0xff] %v406
                %v408 = vld [vmem:[%s260 + $0x908] sm:$0xff]
                %409 = vst [vmem:[%s261 + $0x248] sm:$0xff] %v408
                %v410 = vld [vmem:[%s260 + $0x940] sm:$0xff]
                %411 = vst [vmem:[%s261 + $0x250] sm:$0xff] %v410
                %v412 = vld [vmem:[%s260 + $0x948] sm:$0xff]
                %413 = vst [vmem:[%s261 + $0x258] sm:$0xff] %v412
                %v414 = vld [vmem:[%s260 + $0x980] sm:$0xff]
                %415 = vst [vmem:[%s261 + $0x260] sm:$0xff] %v414
                %v416 = vld [vmem:[%s260 + $0x988] sm:$0xff]
                %417 = vst [vmem:[%s261 + $0x268] sm:$0xff] %v416
                %v418 = vld [vmem:[%s260 + $0x9c0] sm:$0xff]
                %419 = vst [vmem:[%s261 + $0x270] sm:$0xff] %v418
                %v420 = vld [vmem:[%s260 + $0x9c8] sm:$0xff]
                %421 = vst [vmem:[%s261 + $0x278] sm:$0xff] %v420
                %v422 = vld [vmem:[%s260 + $0xa00] sm:$0xff]
                %423 = vst [vmem:[%s261 + $0x280] sm:$0xff] %v422
                %v424 = vld [vmem:[%s260 + $0xa08] sm:$0xff]
                %425 = vst [vmem:[%s261 + $0x288] sm:$0xff] %v424
                %v426 = vld [vmem:[%s260 + $0xa40] sm:$0xff]
                %427 = vst [vmem:[%s261 + $0x290] sm:$0xff] %v426
                %v428 = vld [vmem:[%s260 + $0xa48] sm:$0xff]
                %429 = vst [vmem:[%s261 + $0x298] sm:$0xff] %v428
                %v430 = vld [vmem:[%s260 + $0xa80] sm:$0xff]
                %431 = vst [vmem:[%s261 + $0x2a0] sm:$0xff] %v430
                %v432 = vld [vmem:[%s260 + $0xa88] sm:$0xff]
                %433 = vst [vmem:[%s261 + $0x2a8] sm:$0xff] %v432
                %v434 = vld [vmem:[%s260 + $0xac0] sm:$0xff]
                %435 = vst [vmem:[%s261 + $0x2b0] sm:$0xff] %v434
                %v436 = vld [vmem:[%s260 + $0xac8] sm:$0xff]
                %437 = vst [vmem:[%s261 + $0x2b8] sm:$0xff] %v436
                %v438 = vld [vmem:[%s260 + $0xb00] sm:$0xff]
                %439 = vst [vmem:[%s261 + $0x2c0] sm:$0xff] %v438
                %v440 = vld [vmem:[%s260 + $0xb08] sm:$0xff]
                %441 = vst [vmem:[%s261 + $0x2c8] sm:$0xff] %v440
                %v442 = vld [vmem:[%s260 + $0xb40] sm:$0xff]
                %443 = vst [vmem:[%s261 + $0x2d0] sm:$0xff] %v442
                %v444 = vld [vmem:[%s260 + $0xb48] sm:$0xff]
                %445 = vst [vmem:[%s261 + $0x2d8] sm:$0xff] %v444
                %v446 = vld [vmem:[%s260 + $0xb80] sm:$0xff]
                %447 = vst [vmem:[%s261 + $0x2e0] sm:$0xff] %v446
                %v448 = vld [vmem:[%s260 + $0xb88] sm:$0xff]
                %449 = vst [vmem:[%s261 + $0x2e8] sm:$0xff] %v448
                %v450 = vld [vmem:[%s260 + $0xbc0] sm:$0xff]
                %451 = vst [vmem:[%s261 + $0x2f0] sm:$0xff] %v450
                %v452 = vld [vmem:[%s260 + $0xbc8] sm:$0xff]
                %453 = vst [vmem:[%s261 + $0x2f8] sm:$0xff] %v452
              $region59: #{two_stream_net_forward.4} parent=53 // loop_footer
                %s259 = sadd.s32 1, %s255
              $region60: #{two_stream_net_forward.4} parent=53 // loop_footer_branch
                %254 = sbr.rel target = $region56
              $region61: #{two_stream_net_forward.4} parent=53 // loop_exit
                _
            $region54: #{two_stream_net_forward.4} parent=49 // pred_fallthru
              _
            // Predicated region
            $region62: #{two_stream_net_forward.4} parent=49 // pred_check
              _
            $region63: #{two_stream_net_forward.4} parent=49 // pred_check_branch
              %455 = sbr.rel target = $region65
            $region64: #{two_stream_net_forward.4} parent=49 // pred_region
              _
            $region65: #{two_stream_net_forward.4} parent=49 // pred_fallthru
              _
          $region50: #{two_stream_net_forward.4} parent=45 // pred_fallthru
            _
          %456 = vnop
        $region46: #{two_stream_net_forward.4} parent=15 // pred_fallthru
          _
        // Predicated region
        $region66: #{two_stream_net_forward.4} parent=15 // pred_check
          %p457 = pneg %p105
        $region67: #{two_stream_net_forward.4} parent=15 // pred_check_branch
          %459 = sbr.rel (%p457) target = $region69
        $region68: #{two_stream_net_forward.4} parent=15 // pred_region
          %s460 = smul.u32 4, %s18
          %p461 = scmp.lt.s32.totalorder %s460, 15
          %s462 = scalar_select %p461, %s460, 15
          %s463 = scalar_lea.vmem %s2, %s462
          %s464 = smul.u32 4, %s18
        $region69: #{two_stream_net_forward.4} parent=15 // pred_fallthru
          _
        // Predicated region
        $region70: #{two_stream_net_forward.4} parent=15 // pred_check
          %p465 = pneg %p131
        $region71: #{two_stream_net_forward.4} parent=15 // pred_check_branch
          %467 = sbr.rel (%p465) target = $region73
        $region72: #{two_stream_net_forward.4} parent=15 // pred_region
          %s468 = smul.u32 4, %s18
          %p469 = scmp.lt.s32.totalorder %s468, 15
          %s470 = scalar_select %p469, %s468, 15
          %s471 = scalar_lea.vmem %s3, %s470
          %s472 = smul.u32 4, %s18
        $region73: #{two_stream_net_forward.4} parent=15 // pred_fallthru
          _
      $region16: #{two_stream_net_forward.4} parent=5 // pred_fallthru
        _
      %p473 = scmp.le.s32.totalorder 1, %s10
      %p474 = scmp.lt.s32.totalorder %s10, 193
      %p475 = pnand %p473, %p474
      %p476 = pneg %p475
      // Predicated region
      $region74: #{two_stream_net_forward.4} parent=5 // pred_check
        _
      $region75: #{two_stream_net_forward.4} parent=5 // pred_check_branch
        %478 = sbr.rel (%p475) target = $region77
      $region76: #{two_stream_net_forward.4} parent=5 // pred_region
        %s479 = ssub.s32 %s10, 1
        %s480 = sand.u32 %s44, 1
        %s481 = sand.u32 %s44, 1
        %s482 = smul.addr %s481, 48
        %s483 = scalar_lea.vmem [#allocation3], %s482
        // Predicated region
        $region78: #{two_stream_net_forward.4} parent=76 // pred_check
          %p484 = pneg %p57
        $region79: #{two_stream_net_forward.4} parent=76 // pred_check_branch
          %486 = sbr.rel (%p484) target = $region81
        $region80: #{two_stream_net_forward.4} parent=76 // pred_region
          _
        $region81: #{two_stream_net_forward.4} parent=76 // pred_fallthru
          _
        %s487 = sand.u32 %s72, 1
        %s488 = sand.u32 %s72, 1
        %s489 = smul.addr %s488, 768
        %s490 = scalar_lea.vmem [#allocation4], %s489
        // Predicated region
        $region82: #{two_stream_net_forward.4} parent=76 // pred_check
          %p491 = pneg %p85
        $region83: #{two_stream_net_forward.4} parent=76 // pred_check_branch
          %493 = sbr.rel (%p491) target = $region85
        $region84: #{two_stream_net_forward.4} parent=76 // pred_region
          _
        $region85: #{two_stream_net_forward.4} parent=76 // pred_fallthru
          _
        %s494 = sand.u32 %s44, 1
        %s495 = sand.u32 %s44, 1
        %s496 = smul.addr %s495, 48
        %s497 = scalar_lea.vmem [#allocation3], %s496
        %p498 = pneg %p57
        %p499 = pneg %p54
        %s500 = sand.u32 %s72, 1
        %s501 = sand.u32 %s72, 1
        %s502 = smul.addr %s501, 768
        %s503 = scalar_lea.vmem [#allocation4], %s502
        %p504 = pneg %p85
        %p505 = pneg %p82
        %s506 = smul.u32 4, %s21
        %p507 = scmp.lt.s32.totalorder %s506, 15
        %s508 = scalar_select %p507, %s506, 15
        %s509 = scalar_lea.vmem %s2, %s508
        %p510 = pneg %p111
        %p511 = pneg %p108
        %s512 = smul.u32 4, %s21
        %p513 = scmp.lt.s32.totalorder %s512, 15
        %s514 = scalar_select %p513, %s512, 15
        %s515 = scalar_lea.vmem %s3, %s514
        %p516 = pneg %p137
        %p517 = pneg %p134
        %p518 = pneg %p165
        %p519 = pneg %p162
        %s520 = smul.u32 4, %s21
        %p521 = scmp.lt.s32.totalorder %s20, 15
        %s522 = scalar_select %p521, %s20, 15
        %p523 = scmp.lt.s32.totalorder %s520, 15
        %s524 = scalar_select %p523, %s520, 15
        %s525 = smul.addr %s522, 16
        %s526 = sadd.s32 %s524, %s525
        %s527 = scalar_lea.vmem %s4, %s526
        %s528 = smul.u32 3, %s22
        %s529 = smul.u32 48, %s22
        %s530 = smul.u32 4, %s21
        %s531 = smul.u32 4, %s21
        %p532 = scmp.lt.s32.totalorder %s531, 15
        %s533 = scalar_select %p532, %s531, 15
        %s534 = scalar_lea.vmem %s2, %s533
        %s535 = smul.u32 4, %s21
        %s536 = smul.u32 4, %s21
        %p537 = scmp.lt.s32.totalorder %s536, 15
        %s538 = scalar_select %p537, %s536, 15
        %s539 = scalar_lea.vmem %s3, %s538
        %s540 = smul.u32 4, %s21
        %s541 = smul.u32 4, %s21
        %p542 = scmp.lt.s32.totalorder %s20, 15
        %s543 = scalar_select %p542, %s20, 15
        %p544 = scmp.lt.s32.totalorder %s541, 15
        %s545 = scalar_select %p544, %s541, 15
        %s546 = smul.addr %s543, 16
        %s547 = sadd.s32 %s545, %s546
        %s548 = scalar_lea.vmem %s4, %s547
        %s549 = smul.u32 4, %s21
        %p550 = scmp.eq.s32.totalorder %s22, 0
        // Predicated region
        $region86: #{two_stream_net_forward.4} parent=76 // pred_check
          %p551 = pneg %p550
        $region87: #{two_stream_net_forward.4} parent=76 // pred_check_branch
          %553 = sbr.rel (%p551) target = $region89
        $region88: #{two_stream_net_forward.4} parent=76 // pred_region
          %554 = vst [vmem:[#allocation2] sm:$0xff] 0.0
          %555 = vst [vmem:[#allocation2 + $0x8] sm:$0xff] 0.0
          %556 = vst [vmem:[#allocation2 + $0x10] sm:$0xff] 0.0
          %557 = vst [vmem:[#allocation2 + $0x18] sm:$0xff] 0.0
          %558 = vst [vmem:[#allocation2 + $0x20] sm:$0xff] 0.0
          %559 = vst [vmem:[#allocation2 + $0x28] sm:$0xff] 0.0
          %560 = vst [vmem:[#allocation2 + $0x30] sm:$0xff] 0.0
          %561 = vst [vmem:[#allocation2 + $0x38] sm:$0xff] 0.0
          %562 = vst [vmem:[#allocation2 + $0x40] sm:$0xff] 0.0
          %563 = vst [vmem:[#allocation2 + $0x48] sm:$0xff] 0.0
          %564 = vst [vmem:[#allocation2 + $0x50] sm:$0xff] 0.0
          %565 = vst [vmem:[#allocation2 + $0x58] sm:$0xff] 0.0
          %566 = vst [vmem:[#allocation2 + $0x60] sm:$0x1] 0.0
          %567 = vst [vmem:[#allocation2 + $0x68] sm:$0x1] 0.0
          %568 = vst [vmem:[#allocation2 + $0x70] sm:$0x1] 0.0
          %569 = vst [vmem:[#allocation2 + $0x78] sm:$0x1] 0.0
        $region89: #{two_stream_net_forward.4} parent=76 // pred_fallthru
          _
        %v570 = vld [vmem:[#allocation2] sm:$0xff]
        %v571 = vld [vmem:[#allocation2 + $0x8] sm:$0xff]
        %v572 = vld [vmem:[#allocation2 + $0x10] sm:$0xff]
        %v573 = vld [vmem:[#allocation2 + $0x18] sm:$0xff]
        %v574 = vld [vmem:[#allocation2 + $0x20] sm:$0xff]
        %v575 = vld [vmem:[#allocation2 + $0x28] sm:$0xff]
        %v576 = vld [vmem:[#allocation2 + $0x30] sm:$0xff]
        %v577 = vld [vmem:[#allocation2 + $0x38] sm:$0xff]
        %v578 = vld [vmem:[#allocation2 + $0x40] sm:$0xff]
        %v579 = vld [vmem:[#allocation2 + $0x48] sm:$0xff]
        %v580 = vld [vmem:[#allocation2 + $0x50] sm:$0xff]
        %v581 = vld [vmem:[#allocation2 + $0x58] sm:$0xff]
        %v582 = vld [vmem:[#allocation2 + $0x60] sm:$0x1]
        %v583 = vld [vmem:[#allocation2 + $0x68] sm:$0x1]
        %v584 = vld [vmem:[#allocation2 + $0x70] sm:$0x1]
        %v585 = vld [vmem:[#allocation2 + $0x78] sm:$0x1]
        %v586 = vld [vmem:[%s483] sm:$0xff]
        %v587 = vld [vmem:[%s483 + $0x8] sm:$0xf]
        %v588 = vld [vmem:[%s483 + $0xc] sm:$0xff]
        %v589 = vld [vmem:[%s483 + $0x14] sm:$0xf]
        %v590 = vld [vmem:[%s483 + $0x18] sm:$0xff]
        %v591 = vld [vmem:[%s483 + $0x20] sm:$0xf]
        %v592 = vld [vmem:[%s483 + $0x24] sm:$0x11]
        %v593 = vld [vmem:[%s483 + $0x2c] sm:$0x1]
        %v594 = vld [vmem:[%s490] sm:$0xff]
        %v595 = vld [vmem:[%s490 + $0x8] sm:$0xff]
        %v596 = vld [vmem:[%s490 + $0x10] sm:$0xff]
        %v597 = vld [vmem:[%s490 + $0x18] sm:$0xff]
        %v598 = vld [vmem:[%s490 + $0x20] sm:$0xff]
        %v599 = vld [vmem:[%s490 + $0x28] sm:$0xff]
        %v600 = vld [vmem:[%s490 + $0x30] sm:$0xff]
        %v601 = vld [vmem:[%s490 + $0x38] sm:$0xff]
        %v602 = vld [vmem:[%s490 + $0x40] sm:$0xff]
        %v603 = vld [vmem:[%s490 + $0x48] sm:$0xff]
        %v604 = vld [vmem:[%s490 + $0x50] sm:$0xff]
        %v605 = vld [vmem:[%s490 + $0x58] sm:$0xff]
        %v606 = vld [vmem:[%s490 + $0x60] sm:$0xff]
        %v607 = vld [vmem:[%s490 + $0x68] sm:$0xff]
        %v608 = vld [vmem:[%s490 + $0x70] sm:$0xff]
        %v609 = vld [vmem:[%s490 + $0x78] sm:$0xff]
        %v610 = vld [vmem:[%s490 + $0x80] sm:$0xff]
        %v611 = vld [vmem:[%s490 + $0x88] sm:$0xff]
        %v612 = vld [vmem:[%s490 + $0x90] sm:$0xff]
        %v613 = vld [vmem:[%s490 + $0x98] sm:$0xff]
        %v614 = vld [vmem:[%s490 + $0xa0] sm:$0xff]
        %v615 = vld [vmem:[%s490 + $0xa8] sm:$0xff]
        %v616 = vld [vmem:[%s490 + $0xb0] sm:$0xff]
        %v617 = vld [vmem:[%s490 + $0xb8] sm:$0xff]
        %v618 = vld [vmem:[%s490 + $0xc0] sm:$0xff]
        %v619 = vld [vmem:[%s490 + $0xc8] sm:$0xff]
        %v620 = vld [vmem:[%s490 + $0xd0] sm:$0xff]
        %v621 = vld [vmem:[%s490 + $0xd8] sm:$0xff]
        %v622 = vld [vmem:[%s490 + $0xe0] sm:$0xff]
        %v623 = vld [vmem:[%s490 + $0xe8] sm:$0xff]
        %v624 = vld [vmem:[%s490 + $0xf0] sm:$0xff]
        %v625 = vld [vmem:[%s490 + $0xf8] sm:$0xff]
        %v626 = vld [vmem:[%s490 + $0x100] sm:$0xff]
        %v627 = vld [vmem:[%s490 + $0x108] sm:$0xff]
        %v628 = vld [vmem:[%s490 + $0x110] sm:$0xff]
        %v629 = vld [vmem:[%s490 + $0x118] sm:$0xff]
        %v630 = vld [vmem:[%s490 + $0x120] sm:$0xff]
        %v631 = vld [vmem:[%s490 + $0x128] sm:$0xff]
        %v632 = vld [vmem:[%s490 + $0x130] sm:$0xff]
        %v633 = vld [vmem:[%s490 + $0x138] sm:$0xff]
        %v634 = vld [vmem:[%s490 + $0x140] sm:$0xff]
        %v635 = vld [vmem:[%s490 + $0x148] sm:$0xff]
        %v636 = vld [vmem:[%s490 + $0x150] sm:$0xff]
        %v637 = vld [vmem:[%s490 + $0x158] sm:$0xff]
        %v638 = vld [vmem:[%s490 + $0x160] sm:$0xff]
        %v639 = vld [vmem:[%s490 + $0x168] sm:$0xff]
        %v640 = vld [vmem:[%s490 + $0x170] sm:$0xff]
        %v641 = vld [vmem:[%s490 + $0x178] sm:$0xff]
        %v642 = vld [vmem:[%s490 + $0x180] sm:$0xff]
        %v643 = vld [vmem:[%s490 + $0x188] sm:$0xff]
        %v644 = vld [vmem:[%s490 + $0x190] sm:$0xff]
        %v645 = vld [vmem:[%s490 + $0x198] sm:$0xff]
        %v646 = vld [vmem:[%s490 + $0x1a0] sm:$0xff]
        %v647 = vld [vmem:[%s490 + $0x1a8] sm:$0xff]
        %v648 = vld [vmem:[%s490 + $0x1b0] sm:$0xff]
        %v649 = vld [vmem:[%s490 + $0x1b8] sm:$0xff]
        %v650 = vld [vmem:[%s490 + $0x1c0] sm:$0xff]
        %v651 = vld [vmem:[%s490 + $0x1c8] sm:$0xff]
        %v652 = vld [vmem:[%s490 + $0x1d0] sm:$0xff]
        %v653 = vld [vmem:[%s490 + $0x1d8] sm:$0xff]
        %v654 = vld [vmem:[%s490 + $0x1e0] sm:$0xff]
        %v655 = vld [vmem:[%s490 + $0x1e8] sm:$0xff]
        %v656 = vld [vmem:[%s490 + $0x1f0] sm:$0xff]
        %v657 = vld [vmem:[%s490 + $0x1f8] sm:$0xff]
        %v658 = vld [vmem:[%s490 + $0x200] sm:$0xff]
        %v659 = vld [vmem:[%s490 + $0x208] sm:$0xff]
        %v660 = vld [vmem:[%s490 + $0x210] sm:$0xff]
        %v661 = vld [vmem:[%s490 + $0x218] sm:$0xff]
        %v662 = vld [vmem:[%s490 + $0x220] sm:$0xff]
        %v663 = vld [vmem:[%s490 + $0x228] sm:$0xff]
        %v664 = vld [vmem:[%s490 + $0x230] sm:$0xff]
        %v665 = vld [vmem:[%s490 + $0x238] sm:$0xff]
        %v666 = vld [vmem:[%s490 + $0x240] sm:$0xff]
        %v667 = vld [vmem:[%s490 + $0x248] sm:$0xff]
        %v668 = vld [vmem:[%s490 + $0x250] sm:$0xff]
        %v669 = vld [vmem:[%s490 + $0x258] sm:$0xff]
        %v670 = vld [vmem:[%s490 + $0x260] sm:$0xff]
        %v671 = vld [vmem:[%s490 + $0x268] sm:$0xff]
        %v672 = vld [vmem:[%s490 + $0x270] sm:$0xff]
        %v673 = vld [vmem:[%s490 + $0x278] sm:$0xff]
        %v674 = vld [vmem:[%s490 + $0x280] sm:$0xff]
        %v675 = vld [vmem:[%s490 + $0x288] sm:$0xff]
        %v676 = vld [vmem:[%s490 + $0x290] sm:$0xff]
        %v677 = vld [vmem:[%s490 + $0x298] sm:$0xff]
        %v678 = vld [vmem:[%s490 + $0x2a0] sm:$0xff]
        %v679 = vld [vmem:[%s490 + $0x2a8] sm:$0xff]
        %v680 = vld [vmem:[%s490 + $0x2b0] sm:$0xff]
        %v681 = vld [vmem:[%s490 + $0x2b8] sm:$0xff]
        %v682 = vld [vmem:[%s490 + $0x2c0] sm:$0xff]
        %v683 = vld [vmem:[%s490 + $0x2c8] sm:$0xff]
        %v684 = vld [vmem:[%s490 + $0x2d0] sm:$0xff]
        %v685 = vld [vmem:[%s490 + $0x2d8] sm:$0xff]
        %v686 = vld [vmem:[%s490 + $0x2e0] sm:$0xff]
        %v687 = vld [vmem:[%s490 + $0x2e8] sm:$0xff]
        %v688 = vld [vmem:[%s490 + $0x2f0] sm:$0xff]
        %v689 = vld [vmem:[%s490 + $0x2f8] sm:$0xff]
        %v698 = vunpack.c.l.b16 %v586
        %v699 = vunpack.c.h.b16 %v586
        %v700 = vunpack.c.l.b16 %v587
        %v701 = vunpack.c.l.b16 %v588
        %v702 = vunpack.c.h.b16 %v588
        %v703 = vunpack.c.l.b16 %v589
        %v704 = vunpack.c.l.b16 %v590
        %v705 = vunpack.c.h.b16 %v590
        %v706 = vunpack.c.l.b16 %v591
        %v707 = vunpack.c.l.b16 %v592
        %v708 = vunpack.c.h.b16 %v592
        %v709 = vunpack.c.l.b16 %v593
        %v710 = vpack.c.b16 %v701, %v698
        %v711 = vpack.c.b16 %v702, %v699
        %v712 = vpack.c.b16 %v703, %v700
        %v713 = vpack.c.b16 %v707, %v704
        %v714 = vpack.c.b16 %v708, %v705
        %v715 = vpack.c.b16 %v709, %v706
        %v818 = vunpack.c.l.b16 %v594
        %v819 = vunpack.c.h.b16 %v594
        %v820 = vunpack.c.l.b16 %v595
        %v821 = vunpack.c.h.b16 %v595
        %v822 = vunpack.c.l.b16 %v596
        %v823 = vunpack.c.h.b16 %v596
        %v824 = vunpack.c.l.b16 %v597
        %v825 = vunpack.c.h.b16 %v597
        %v826 = vunpack.c.l.b16 %v598
        %v827 = vunpack.c.h.b16 %v598
        %v828 = vunpack.c.l.b16 %v599
        %v829 = vunpack.c.h.b16 %v599
        %v830 = vunpack.c.l.b16 %v600
        %v831 = vunpack.c.h.b16 %v600
        %v832 = vunpack.c.l.b16 %v601
        %v833 = vunpack.c.h.b16 %v601
        %v834 = vunpack.c.l.b16 %v602
        %v835 = vunpack.c.h.b16 %v602
        %v836 = vunpack.c.l.b16 %v603
        %v837 = vunpack.c.h.b16 %v603
        %v838 = vunpack.c.l.b16 %v604
        %v839 = vunpack.c.h.b16 %v604
        %v840 = vunpack.c.l.b16 %v605
        %v841 = vunpack.c.h.b16 %v605
        %v842 = vunpack.c.l.b16 %v606
        %v843 = vunpack.c.h.b16 %v606
        %v844 = vunpack.c.l.b16 %v607
        %v845 = vunpack.c.h.b16 %v607
        %v846 = vunpack.c.l.b16 %v608
        %v847 = vunpack.c.h.b16 %v608
        %v848 = vunpack.c.l.b16 %v609
        %v849 = vunpack.c.h.b16 %v609
        %v850 = vunpack.c.l.b16 %v610
        %v851 = vunpack.c.h.b16 %v610
        %v852 = vunpack.c.l.b16 %v611
        %v853 = vunpack.c.h.b16 %v611
        %v854 = vunpack.c.l.b16 %v612
        %v855 = vunpack.c.h.b16 %v612
        %v856 = vunpack.c.l.b16 %v613
        %v857 = vunpack.c.h.b16 %v613
        %v858 = vunpack.c.l.b16 %v614
        %v859 = vunpack.c.h.b16 %v614
        %v860 = vunpack.c.l.b16 %v615
        %v861 = vunpack.c.h.b16 %v615
        %v862 = vunpack.c.l.b16 %v616
        %v863 = vunpack.c.h.b16 %v616
        %v864 = vunpack.c.l.b16 %v617
        %v865 = vunpack.c.h.b16 %v617
        %v866 = vunpack.c.l.b16 %v618
        %v867 = vunpack.c.h.b16 %v618
        %v868 = vunpack.c.l.b16 %v619
        %v869 = vunpack.c.h.b16 %v619
        %v870 = vunpack.c.l.b16 %v620
        %v871 = vunpack.c.h.b16 %v620
        %v872 = vunpack.c.l.b16 %v621
        %v873 = vunpack.c.h.b16 %v621
        %v874 = vunpack.c.l.b16 %v622
        %v875 = vunpack.c.h.b16 %v622
        %v876 = vunpack.c.l.b16 %v623
        %v877 = vunpack.c.h.b16 %v623
        %v878 = vunpack.c.l.b16 %v624
        %v879 = vunpack.c.h.b16 %v624
        %v880 = vunpack.c.l.b16 %v625
        %v881 = vunpack.c.h.b16 %v625
        %v882 = vunpack.c.l.b16 %v626
        %v883 = vunpack.c.h.b16 %v626
        %v884 = vunpack.c.l.b16 %v627
        %v885 = vunpack.c.h.b16 %v627
        %v886 = vunpack.c.l.b16 %v628
        %v887 = vunpack.c.h.b16 %v628
        %v888 = vunpack.c.l.b16 %v629
        %v889 = vunpack.c.h.b16 %v629
        %v890 = vunpack.c.l.b16 %v630
        %v891 = vunpack.c.h.b16 %v630
        %v892 = vunpack.c.l.b16 %v631
        %v893 = vunpack.c.h.b16 %v631
        %v894 = vunpack.c.l.b16 %v632
        %v895 = vunpack.c.h.b16 %v632
        %v896 = vunpack.c.l.b16 %v633
        %v897 = vunpack.c.h.b16 %v633
        %v898 = vunpack.c.l.b16 %v634
        %v899 = vunpack.c.h.b16 %v634
        %v900 = vunpack.c.l.b16 %v635
        %v901 = vunpack.c.h.b16 %v635
        %v902 = vunpack.c.l.b16 %v636
        %v903 = vunpack.c.h.b16 %v636
        %v904 = vunpack.c.l.b16 %v637
        %v905 = vunpack.c.h.b16 %v637
        %v906 = vunpack.c.l.b16 %v638
        %v907 = vunpack.c.h.b16 %v638
        %v908 = vunpack.c.l.b16 %v639
        %v909 = vunpack.c.h.b16 %v639
        %v910 = vunpack.c.l.b16 %v640
        %v911 = vunpack.c.h.b16 %v640
        %v912 = vunpack.c.l.b16 %v641
        %v913 = vunpack.c.h.b16 %v641
        %v914 = vunpack.c.l.b16 %v642
        %v915 = vunpack.c.h.b16 %v642
        %v916 = vunpack.c.l.b16 %v643
        %v917 = vunpack.c.h.b16 %v643
        %v918 = vunpack.c.l.b16 %v644
        %v919 = vunpack.c.h.b16 %v644
        %v920 = vunpack.c.l.b16 %v645
        %v921 = vunpack.c.h.b16 %v645
        %v922 = vunpack.c.l.b16 %v646
        %v923 = vunpack.c.h.b16 %v646
        %v924 = vunpack.c.l.b16 %v647
        %v925 = vunpack.c.h.b16 %v647
        %v926 = vunpack.c.l.b16 %v648
        %v927 = vunpack.c.h.b16 %v648
        %v928 = vunpack.c.l.b16 %v649
        %v929 = vunpack.c.h.b16 %v649
        %v930 = vunpack.c.l.b16 %v650
        %v931 = vunpack.c.h.b16 %v650
        %v932 = vunpack.c.l.b16 %v651
        %v933 = vunpack.c.h.b16 %v651
        %v934 = vunpack.c.l.b16 %v652
        %v935 = vunpack.c.h.b16 %v652
        %v936 = vunpack.c.l.b16 %v653
        %v937 = vunpack.c.h.b16 %v653
        %v938 = vunpack.c.l.b16 %v654
        %v939 = vunpack.c.h.b16 %v654
        %v940 = vunpack.c.l.b16 %v655
        %v941 = vunpack.c.h.b16 %v655
        %v942 = vunpack.c.l.b16 %v656
        %v943 = vunpack.c.h.b16 %v656
        %v944 = vunpack.c.l.b16 %v657
        %v945 = vunpack.c.h.b16 %v657
        %v946 = vunpack.c.l.b16 %v658
        %v947 = vunpack.c.h.b16 %v658
        %v948 = vunpack.c.l.b16 %v659
        %v949 = vunpack.c.h.b16 %v659
        %v950 = vunpack.c.l.b16 %v660
        %v951 = vunpack.c.h.b16 %v660
        %v952 = vunpack.c.l.b16 %v661
        %v953 = vunpack.c.h.b16 %v661
        %v954 = vunpack.c.l.b16 %v662
        %v955 = vunpack.c.h.b16 %v662
        %v956 = vunpack.c.l.b16 %v663
        %v957 = vunpack.c.h.b16 %v663
        %v958 = vunpack.c.l.b16 %v664
        %v959 = vunpack.c.h.b16 %v664
        %v960 = vunpack.c.l.b16 %v665
        %v961 = vunpack.c.h.b16 %v665
        %v962 = vunpack.c.l.b16 %v666
        %v963 = vunpack.c.h.b16 %v666
        %v964 = vunpack.c.l.b16 %v667
        %v965 = vunpack.c.h.b16 %v667
        %v966 = vunpack.c.l.b16 %v668
        %v967 = vunpack.c.h.b16 %v668
        %v968 = vunpack.c.l.b16 %v669
        %v969 = vunpack.c.h.b16 %v669
        %v970 = vunpack.c.l.b16 %v670
        %v971 = vunpack.c.h.b16 %v670
        %v972 = vunpack.c.l.b16 %v671
        %v973 = vunpack.c.h.b16 %v671
        %v974 = vunpack.c.l.b16 %v672
        %v975 = vunpack.c.h.b16 %v672
        %v976 = vunpack.c.l.b16 %v673
        %v977 = vunpack.c.h.b16 %v673
        %v978 = vunpack.c.l.b16 %v674
        %v979 = vunpack.c.h.b16 %v674
        %v980 = vunpack.c.l.b16 %v675
        %v981 = vunpack.c.h.b16 %v675
        %v982 = vunpack.c.l.b16 %v676
        %v983 = vunpack.c.h.b16 %v676
        %v984 = vunpack.c.l.b16 %v677
        %v985 = vunpack.c.h.b16 %v677
        %v986 = vunpack.c.l.b16 %v678
        %v987 = vunpack.c.h.b16 %v678
        %v988 = vunpack.c.l.b16 %v679
        %v989 = vunpack.c.h.b16 %v679
        %v990 = vunpack.c.l.b16 %v680
        %v991 = vunpack.c.h.b16 %v680
        %v992 = vunpack.c.l.b16 %v681
        %v993 = vunpack.c.h.b16 %v681
        %v994 = vunpack.c.l.b16 %v682
        %v995 = vunpack.c.h.b16 %v682
        %v996 = vunpack.c.l.b16 %v683
        %v997 = vunpack.c.h.b16 %v683
        %v998 = vunpack.c.l.b16 %v684
        %v999 = vunpack.c.h.b16 %v684
        %v1000 = vunpack.c.l.b16 %v685
        %v1001 = vunpack.c.h.b16 %v685
        %v1002 = vunpack.c.l.b16 %v686
        %v1003 = vunpack.c.h.b16 %v686
        %v1004 = vunpack.c.l.b16 %v687
        %v1005 = vunpack.c.h.b16 %v687
        %v1006 = vunpack.c.l.b16 %v688
        %v1007 = vunpack.c.h.b16 %v688
        %v1008 = vunpack.c.l.b16 %v689
        %v1009 = vunpack.c.h.b16 %v689
        %v1010 = vpack.c.b16 %v822, %v818
        %v1011 = vpack.c.b16 %v823, %v819
        %v1012 = vpack.c.b16 %v824, %v820
        %v1013 = vpack.c.b16 %v825, %v821
        %v1014 = vpack.c.b16 %v830, %v826
        %v1015 = vpack.c.b16 %v831, %v827
        %v1016 = vpack.c.b16 %v832, %v828
        %v1017 = vpack.c.b16 %v833, %v829
        %v1018 = vpack.c.b16 %v838, %v834
        %v1019 = vpack.c.b16 %v839, %v835
        %v1020 = vpack.c.b16 %v840, %v836
        %v1021 = vpack.c.b16 %v841, %v837
        %v1022 = vpack.c.b16 %v846, %v842
        %v1023 = vpack.c.b16 %v847, %v843
        %v1024 = vpack.c.b16 %v848, %v844
        %v1025 = vpack.c.b16 %v849, %v845
        %v1026 = vpack.c.b16 %v854, %v850
        %v1027 = vpack.c.b16 %v855, %v851
        %v1028 = vpack.c.b16 %v856, %v852
        %v1029 = vpack.c.b16 %v857, %v853
        %v1030 = vpack.c.b16 %v862, %v858
        %v1031 = vpack.c.b16 %v863, %v859
        %v1032 = vpack.c.b16 %v864, %v860
        %v1033 = vpack.c.b16 %v865, %v861
        %v1034 = vpack.c.b16 %v870, %v866
        %v1035 = vpack.c.b16 %v871, %v867
        %v1036 = vpack.c.b16 %v872, %v868
        %v1037 = vpack.c.b16 %v873, %v869
        %v1038 = vpack.c.b16 %v878, %v874
        %v1039 = vpack.c.b16 %v879, %v875
        %v1040 = vpack.c.b16 %v880, %v876
        %v1041 = vpack.c.b16 %v881, %v877
        %v1042 = vpack.c.b16 %v886, %v882
        %v1043 = vpack.c.b16 %v887, %v883
        %v1044 = vpack.c.b16 %v888, %v884
        %v1045 = vpack.c.b16 %v889, %v885
        %v1046 = vpack.c.b16 %v894, %v890
        %v1047 = vpack.c.b16 %v895, %v891
        %v1048 = vpack.c.b16 %v896, %v892
        %v1049 = vpack.c.b16 %v897, %v893
        %v1050 = vpack.c.b16 %v902, %v898
        %v1051 = vpack.c.b16 %v903, %v899
        %v1052 = vpack.c.b16 %v904, %v900
        %v1053 = vpack.c.b16 %v905, %v901
        %v1054 = vpack.c.b16 %v910, %v906
        %v1055 = vpack.c.b16 %v911, %v907
        %v1056 = vpack.c.b16 %v912, %v908
        %v1057 = vpack.c.b16 %v913, %v909
        %v1058 = vpack.c.b16 %v918, %v914
        %v1059 = vpack.c.b16 %v919, %v915
        %v1060 = vpack.c.b16 %v920, %v916
        %v1061 = vpack.c.b16 %v921, %v917
        %v1062 = vpack.c.b16 %v926, %v922
        %v1063 = vpack.c.b16 %v927, %v923
        %v1064 = vpack.c.b16 %v928, %v924
        %v1065 = vpack.c.b16 %v929, %v925
        %v1066 = vpack.c.b16 %v934, %v930
        %v1067 = vpack.c.b16 %v935, %v931
        %v1068 = vpack.c.b16 %v936, %v932
        %v1069 = vpack.c.b16 %v937, %v933
        %v1070 = vpack.c.b16 %v942, %v938
        %v1071 = vpack.c.b16 %v943, %v939
        %v1072 = vpack.c.b16 %v944, %v940
        %v1073 = vpack.c.b16 %v945, %v941
        %v1074 = vpack.c.b16 %v950, %v946
        %v1075 = vpack.c.b16 %v951, %v947
        %v1076 = vpack.c.b16 %v952, %v948
        %v1077 = vpack.c.b16 %v953, %v949
        %v1078 = vpack.c.b16 %v958, %v954
        %v1079 = vpack.c.b16 %v959, %v955
        %v1080 = vpack.c.b16 %v960, %v956
        %v1081 = vpack.c.b16 %v961, %v957
        %v1082 = vpack.c.b16 %v966, %v962
        %v1083 = vpack.c.b16 %v967, %v963
        %v1084 = vpack.c.b16 %v968, %v964
        %v1085 = vpack.c.b16 %v969, %v965
        %v1086 = vpack.c.b16 %v974, %v970
        %v1087 = vpack.c.b16 %v975, %v971
        %v1088 = vpack.c.b16 %v976, %v972
        %v1089 = vpack.c.b16 %v977, %v973
        %v1090 = vpack.c.b16 %v982, %v978
        %v1091 = vpack.c.b16 %v983, %v979
        %v1092 = vpack.c.b16 %v984, %v980
        %v1093 = vpack.c.b16 %v985, %v981
        %v1094 = vpack.c.b16 %v990, %v986
        %v1095 = vpack.c.b16 %v991, %v987
        %v1096 = vpack.c.b16 %v992, %v988
        %v1097 = vpack.c.b16 %v993, %v989
        %v1098 = vpack.c.b16 %v998, %v994
        %v1099 = vpack.c.b16 %v999, %v995
        %v1100 = vpack.c.b16 %v1000, %v996
        %v1101 = vpack.c.b16 %v1001, %v997
        %v1102 = vpack.c.b16 %v1006, %v1002
        %v1103 = vpack.c.b16 %v1007, %v1003
        %v1104 = vpack.c.b16 %v1008, %v1004
        %v1105 = vpack.c.b16 %v1009, %v1005
        %1202 = vmatpush.bf16.msra.mxu0 %v1038
        %1203 = vmatpush.bf16.msra.mxu0 %v1034
        %1204 = vmatpush.bf16.msra.mxu0 %v1030
        %1205 = vmatpush.bf16.msra.mxu0 %v1026
        %1206 = vmatpush.bf16.msra.mxu0 %v1022
        %1207 = vmatpush.bf16.msra.mxu0 %v1018
        %1208 = vmatpush.bf16.msra.mxu0 %v1014
        %1209 = vmatpush.bf16.msra.mxu0 %v1010
        %1210 = vmatmul.bf16.gmra.mxu0 %v710
        %v1211 = vpop.f32.mrf.mxu0
        %v1212 = vadd.f32 0.0, %v1211
        %v1213 = vpop.f32.mrf.mxu0
        %v1214 = vadd.f32 0.0, %v1213
        %1215 = vmatmul.bf16.gmra.mxu0 %v713
        %v1216 = vpop.f32.mrf.mxu0
        %v1217 = vadd.f32 0.0, %v1216
        %v1218 = vpop.f32.mrf.mxu0
        %v1219 = vadd.f32 0.0, %v1218
        %1220 = vdwg.mxu0
        %1221 = vmatpush.bf16.msra.mxu0 %v1070
        %1222 = vmatpush.bf16.msra.mxu0 %v1066
        %1223 = vmatpush.bf16.msra.mxu0 %v1062
        %1224 = vmatpush.bf16.msra.mxu0 %v1058
        %1225 = vmatpush.bf16.msra.mxu0 %v1054
        %1226 = vmatpush.bf16.msra.mxu0 %v1050
        %1227 = vmatpush.bf16.msra.mxu0 %v1046
        %1228 = vmatpush.bf16.msra.mxu0 %v1042
        %1229 = vmatmul.bf16.gmra.mxu0 %v711
        %v1230 = vpop.f32.mrf.mxu0
        %v1231 = vadd.f32 %v1212, %v1230
        %v1232 = vpop.f32.mrf.mxu0
        %v1233 = vadd.f32 %v1214, %v1232
        %1234 = vmatmul.bf16.gmra.mxu0 %v714
        %v1235 = vpop.f32.mrf.mxu0
        %v1236 = vadd.f32 %v1217, %v1235
        %v1237 = vpop.f32.mrf.mxu0
        %v1238 = vadd.f32 %v1219, %v1237
        %1239 = vdwg.mxu0
        %1240 = vmatpush.bf16.msra.mxu0 %v1102
        %1241 = vmatpush.bf16.msra.mxu0 %v1098
        %1242 = vmatpush.bf16.msra.mxu0 %v1094
        %1243 = vmatpush.bf16.msra.mxu0 %v1090
        %1244 = vmatpush.bf16.msra.mxu0 %v1086
        %1245 = vmatpush.bf16.msra.mxu0 %v1082
        %1246 = vmatpush.bf16.msra.mxu0 %v1078
        %1247 = vmatpush.bf16.msra.mxu0 %v1074
        %1248 = vmatmul.bf16.gmra.mxu0 %v712
        %v1249 = vpop.f32.mrf.mxu0
        %v1250 = vadd.f32 %v1231, %v1249
        %v1251 = vpop.f32.mrf.mxu0
        %v1252 = vadd.f32 %v1233, %v1251
        %1253 = vmatmul.bf16.gmra.mxu0 %v715
        %v1254 = vpop.f32.mrf.mxu0
        %v1255 = vadd.f32 %v1236, %v1254
        %v1256 = vpop.f32.mrf.mxu0
        %v1257 = vadd.f32 %v1238, %v1256
        %1258 = vdwg.mxu0
        %1259 = vmatpush.bf16.msra.mxu0 %v1039
        %1260 = vmatpush.bf16.msra.mxu0 %v1035
        %1261 = vmatpush.bf16.msra.mxu0 %v1031
        %1262 = vmatpush.bf16.msra.mxu0 %v1027
        %1263 = vmatpush.bf16.msra.mxu0 %v1023
        %1264 = vmatpush.bf16.msra.mxu0 %v1019
        %1265 = vmatpush.bf16.msra.mxu0 %v1015
        %1266 = vmatpush.bf16.msra.mxu0 %v1011
        %1267 = vmatmul.bf16.gmra.mxu0 %v710
        %v1268 = vpop.f32.mrf.mxu0
        %v1269 = vadd.f32 0.0, %v1268
        %v1270 = vpop.f32.mrf.mxu0
        %v1271 = vadd.f32 0.0, %v1270
        %1272 = vmatmul.bf16.gmra.mxu0 %v713
        %v1273 = vpop.f32.mrf.mxu0
        %v1274 = vadd.f32 0.0, %v1273
        %v1275 = vpop.f32.mrf.mxu0
        %v1276 = vadd.f32 0.0, %v1275
        %1277 = vdwg.mxu0
        %1278 = vmatpush.bf16.msra.mxu0 %v1071
        %1279 = vmatpush.bf16.msra.mxu0 %v1067
        %1280 = vmatpush.bf16.msra.mxu0 %v1063
        %1281 = vmatpush.bf16.msra.mxu0 %v1059
        %1282 = vmatpush.bf16.msra.mxu0 %v1055
        %1283 = vmatpush.bf16.msra.mxu0 %v1051
        %1284 = vmatpush.bf16.msra.mxu0 %v1047
        %1285 = vmatpush.bf16.msra.mxu0 %v1043
        %1286 = vmatmul.bf16.gmra.mxu0 %v711
        %v1287 = vpop.f32.mrf.mxu0
        %v1288 = vadd.f32 %v1269, %v1287
        %v1289 = vpop.f32.mrf.mxu0
        %v1290 = vadd.f32 %v1271, %v1289
        %1291 = vmatmul.bf16.gmra.mxu0 %v714
        %v1292 = vpop.f32.mrf.mxu0
        %v1293 = vadd.f32 %v1274, %v1292
        %v1294 = vpop.f32.mrf.mxu0
        %v1295 = vadd.f32 %v1276, %v1294
        %1296 = vdwg.mxu0
        %1297 = vmatpush.bf16.msra.mxu0 %v1103
        %1298 = vmatpush.bf16.msra.mxu0 %v1099
        %1299 = vmatpush.bf16.msra.mxu0 %v1095
        %1300 = vmatpush.bf16.msra.mxu0 %v1091
        %1301 = vmatpush.bf16.msra.mxu0 %v1087
        %1302 = vmatpush.bf16.msra.mxu0 %v1083
        %1303 = vmatpush.bf16.msra.mxu0 %v1079
        %1304 = vmatpush.bf16.msra.mxu0 %v1075
        %1305 = vmatmul.bf16.gmra.mxu0 %v712
        %v1306 = vpop.f32.mrf.mxu0
        %v1307 = vadd.f32 %v1288, %v1306
        %v1308 = vpop.f32.mrf.mxu0
        %v1309 = vadd.f32 %v1290, %v1308
        %1310 = vmatmul.bf16.gmra.mxu0 %v715
        %v1311 = vpop.f32.mrf.mxu0
        %v1312 = vadd.f32 %v1293, %v1311
        %v1313 = vpop.f32.mrf.mxu0
        %v1314 = vadd.f32 %v1295, %v1313
        %1315 = vdwg.mxu0
        %1316 = vmatpush.bf16.msra.mxu0 %v1040
        %1317 = vmatpush.bf16.msra.mxu0 %v1036
        %1318 = vmatpush.bf16.msra.mxu0 %v1032
        %1319 = vmatpush.bf16.msra.mxu0 %v1028
        %1320 = vmatpush.bf16.msra.mxu0 %v1024
        %1321 = vmatpush.bf16.msra.mxu0 %v1020
        %1322 = vmatpush.bf16.msra.mxu0 %v1016
        %1323 = vmatpush.bf16.msra.mxu0 %v1012
        %1324 = vmatmul.bf16.gmra.mxu0 %v710
        %v1325 = vpop.f32.mrf.mxu0
        %v1326 = vadd.f32 0.0, %v1325
        %v1327 = vpop.f32.mrf.mxu0
        %v1328 = vadd.f32 0.0, %v1327
        %1329 = vmatmul.bf16.gmra.mxu0 %v713
        %v1330 = vpop.f32.mrf.mxu0
        %v1331 = vadd.f32 0.0, %v1330
        %v1332 = vpop.f32.mrf.mxu0
        %v1333 = vadd.f32 0.0, %v1332
        %1334 = vdwg.mxu0
        %1335 = vmatpush.bf16.msra.mxu0 %v1072
        %1336 = vmatpush.bf16.msra.mxu0 %v1068
        %1337 = vmatpush.bf16.msra.mxu0 %v1064
        %1338 = vmatpush.bf16.msra.mxu0 %v1060
        %1339 = vmatpush.bf16.msra.mxu0 %v1056
        %1340 = vmatpush.bf16.msra.mxu0 %v1052
        %1341 = vmatpush.bf16.msra.mxu0 %v1048
        %1342 = vmatpush.bf16.msra.mxu0 %v1044
        %1343 = vmatmul.bf16.gmra.mxu0 %v711
        %v1344 = vpop.f32.mrf.mxu0
        %v1345 = vadd.f32 %v1326, %v1344
        %v1346 = vpop.f32.mrf.mxu0
        %v1347 = vadd.f32 %v1328, %v1346
        %1348 = vmatmul.bf16.gmra.mxu0 %v714
        %v1349 = vpop.f32.mrf.mxu0
        %v1350 = vadd.f32 %v1331, %v1349
        %v1351 = vpop.f32.mrf.mxu0
        %v1352 = vadd.f32 %v1333, %v1351
        %1353 = vdwg.mxu0
        %1354 = vmatpush.bf16.msra.mxu0 %v1104
        %1355 = vmatpush.bf16.msra.mxu0 %v1100
        %1356 = vmatpush.bf16.msra.mxu0 %v1096
        %1357 = vmatpush.bf16.msra.mxu0 %v1092
        %1358 = vmatpush.bf16.msra.mxu0 %v1088
        %1359 = vmatpush.bf16.msra.mxu0 %v1084
        %1360 = vmatpush.bf16.msra.mxu0 %v1080
        %1361 = vmatpush.bf16.msra.mxu0 %v1076
        %1362 = vmatmul.bf16.gmra.mxu0 %v712
        %v1363 = vpop.f32.mrf.mxu0
        %v1364 = vadd.f32 %v1345, %v1363
        %v1365 = vpop.f32.mrf.mxu0
        %v1366 = vadd.f32 %v1347, %v1365
        %1367 = vmatmul.bf16.gmra.mxu0 %v715
        %v1368 = vpop.f32.mrf.mxu0
        %v1369 = vadd.f32 %v1350, %v1368
        %v1370 = vpop.f32.mrf.mxu0
        %v1371 = vadd.f32 %v1352, %v1370
        %1372 = vdwg.mxu0
        %1373 = vmatpush.bf16.msra.mxu0 %v1041
        %1374 = vmatpush.bf16.msra.mxu0 %v1037
        %1375 = vmatpush.bf16.msra.mxu0 %v1033
        %1376 = vmatpush.bf16.msra.mxu0 %v1029
        %1377 = vmatpush.bf16.msra.mxu0 %v1025
        %1378 = vmatpush.bf16.msra.mxu0 %v1021
        %1379 = vmatpush.bf16.msra.mxu0 %v1017
        %1380 = vmatpush.bf16.msra.mxu0 %v1013
        %1381 = vmatmul.bf16.gmra.mxu0 %v710
        %v1382 = vpop.f32.mrf.mxu0
        %v1383 = vadd.f32 0.0, %v1382
        %v1384 = vpop.f32.mrf.mxu0
        %v1385 = vadd.f32 0.0, %v1384
        %1386 = vmatmul.bf16.gmra.mxu0 %v713
        %v1387 = vpop.f32.mrf.mxu0
        %v1388 = vadd.f32 0.0, %v1387
        %v1389 = vpop.f32.mrf.mxu0
        %v1390 = vadd.f32 0.0, %v1389
        %1391 = vdwg.mxu0
        %1392 = vmatpush.bf16.msra.mxu0 %v1073
        %1393 = vmatpush.bf16.msra.mxu0 %v1069
        %1394 = vmatpush.bf16.msra.mxu0 %v1065
        %1395 = vmatpush.bf16.msra.mxu0 %v1061
        %1396 = vmatpush.bf16.msra.mxu0 %v1057
        %1397 = vmatpush.bf16.msra.mxu0 %v1053
        %1398 = vmatpush.bf16.msra.mxu0 %v1049
        %1399 = vmatpush.bf16.msra.mxu0 %v1045
        %1400 = vmatmul.bf16.gmra.mxu0 %v711
        %v1401 = vpop.f32.mrf.mxu0
        %v1402 = vadd.f32 %v1383, %v1401
        %v1403 = vpop.f32.mrf.mxu0
        %v1404 = vadd.f32 %v1385, %v1403
        %1405 = vmatmul.bf16.gmra.mxu0 %v714
        %v1406 = vpop.f32.mrf.mxu0
        %v1407 = vadd.f32 %v1388, %v1406
        %v1408 = vpop.f32.mrf.mxu0
        %v1409 = vadd.f32 %v1390, %v1408
        %1410 = vdwg.mxu0
        %1411 = vmatpush.bf16.msra.mxu0 %v1105
        %1412 = vmatpush.bf16.msra.mxu0 %v1101
        %1413 = vmatpush.bf16.msra.mxu0 %v1097
        %1414 = vmatpush.bf16.msra.mxu0 %v1093
        %1415 = vmatpush.bf16.msra.mxu0 %v1089
        %1416 = vmatpush.bf16.msra.mxu0 %v1085
        %1417 = vmatpush.bf16.msra.mxu0 %v1081
        %1418 = vmatpush.bf16.msra.mxu0 %v1077
        %1419 = vmatmul.bf16.gmra.mxu0 %v712
        %v1420 = vpop.f32.mrf.mxu0
        %v1421 = vadd.f32 %v1402, %v1420
        %v1422 = vpop.f32.mrf.mxu0
        %v1423 = vadd.f32 %v1404, %v1422
        %1424 = vmatmul.bf16.gmra.mxu0 %v715
        %v1425 = vpop.f32.mrf.mxu0
        %v1426 = vadd.f32 %v1407, %v1425
        %v1427 = vpop.f32.mrf.mxu0
        %v1428 = vadd.f32 %v1409, %v1427
        %1429 = vdwg.mxu0
        %v1430 = vadd.f32 %v570, %v1250
        %v1431 = vadd.f32 %v571, %v1307
        %v1432 = vadd.f32 %v572, %v1364
        %v1433 = vadd.f32 %v573, %v1421
        %v1434 = vadd.f32 %v574, %v1252
        %v1435 = vadd.f32 %v575, %v1309
        %v1436 = vadd.f32 %v576, %v1366
        %v1437 = vadd.f32 %v577, %v1423
        %v1438 = vadd.f32 %v578, %v1255
        %v1439 = vadd.f32 %v579, %v1312
        %v1440 = vadd.f32 %v580, %v1369
        %v1441 = vadd.f32 %v581, %v1426
        %v1442 = vadd.f32 %v582, %v1257
        %v1443 = vadd.f32 %v583, %v1314
        %v1444 = vadd.f32 %v584, %v1371
        %v1445 = vadd.f32 %v585, %v1428
        %1446 = vst [vmem:[#allocation2] sm:$0xff] %v1430
        %1447 = vst [vmem:[#allocation2 + $0x8] sm:$0xff] %v1431
        %1448 = vst [vmem:[#allocation2 + $0x10] sm:$0xff] %v1432
        %1449 = vst [vmem:[#allocation2 + $0x18] sm:$0xff] %v1433
        %1450 = vst [vmem:[#allocation2 + $0x20] sm:$0xff] %v1434
        %1451 = vst [vmem:[#allocation2 + $0x28] sm:$0xff] %v1435
        %1452 = vst [vmem:[#allocation2 + $0x30] sm:$0xff] %v1436
        %1453 = vst [vmem:[#allocation2 + $0x38] sm:$0xff] %v1437
        %1454 = vst [vmem:[#allocation2 + $0x40] sm:$0xff] %v1438
        %1455 = vst [vmem:[#allocation2 + $0x48] sm:$0xff] %v1439
        %1456 = vst [vmem:[#allocation2 + $0x50] sm:$0xff] %v1440
        %1457 = vst [vmem:[#allocation2 + $0x58] sm:$0xff] %v1441
        %1458 = vst [vmem:[#allocation2 + $0x60] sm:$0x1] %v1442
        %1459 = vst [vmem:[#allocation2 + $0x68] sm:$0x1] %v1443
        %1460 = vst [vmem:[#allocation2 + $0x70] sm:$0x1] %v1444
        %1461 = vst [vmem:[#allocation2 + $0x78] sm:$0x1] %v1445
        %p1462 = scmp.eq.s32.totalorder %s22, 2
        // Predicated region
        $region90: #{two_stream_net_forward.4} parent=76 // pred_check
          %p1463 = pneg %p1462
        $region91: #{two_stream_net_forward.4} parent=76 // pred_check_branch
          %1465 = sbr.rel (%p1463) target = $region93
        $region92: #{two_stream_net_forward.4} parent=76 // pred_region
          %v1466 = vld [vmem:[#allocation2] sm:$0xff]
          %v1467 = vld [vmem:[#allocation2 + $0x8] sm:$0xff]
          %v1468 = vld [vmem:[#allocation2 + $0x10] sm:$0xff]
          %v1469 = vld [vmem:[#allocation2 + $0x18] sm:$0xff]
          %v1470 = vld [vmem:[#allocation2 + $0x20] sm:$0xff]
          %v1471 = vld [vmem:[#allocation2 + $0x28] sm:$0xff]
          %v1472 = vld [vmem:[#allocation2 + $0x30] sm:$0xff]
          %v1473 = vld [vmem:[#allocation2 + $0x38] sm:$0xff]
          %v1474 = vld [vmem:[#allocation2 + $0x40] sm:$0xff]
          %v1475 = vld [vmem:[#allocation2 + $0x48] sm:$0xff]
          %v1476 = vld [vmem:[#allocation2 + $0x50] sm:$0xff]
          %v1477 = vld [vmem:[#allocation2 + $0x58] sm:$0xff]
          %v1478 = vld [vmem:[#allocation2 + $0x60] sm:$0x1]
          %v1479 = vld [vmem:[#allocation2 + $0x68] sm:$0x1]
          %v1480 = vld [vmem:[#allocation2 + $0x70] sm:$0x1]
          %v1481 = vld [vmem:[#allocation2 + $0x78] sm:$0x1]
          %v1482 = vld [vmem:[%s534] sm:$0xf]
          %v1484 = vperm.slane %v1482, 0
          %v1485 = vperm.slane %v1482, 1
          %v1486 = vperm.slane %v1482, 2
          %v1487 = vperm.slane %v1482, 3
          %v1492 = vmul.f32 %v1466, %v1484
          %v1493 = vmul.f32 %v1467, %v1485
          %v1494 = vmul.f32 %v1468, %v1486
          %v1495 = vmul.f32 %v1469, %v1487
          %v1496 = vmul.f32 %v1470, %v1484
          %v1497 = vmul.f32 %v1471, %v1485
          %v1498 = vmul.f32 %v1472, %v1486
          %v1499 = vmul.f32 %v1473, %v1487
          %v1500 = vmul.f32 %v1474, %v1484
          %v1501 = vmul.f32 %v1475, %v1485
          %v1502 = vmul.f32 %v1476, %v1486
          %v1503 = vmul.f32 %v1477, %v1487
          %v1504 = vmul.f32 %v1478, %v1484
          %v1505 = vmul.f32 %v1479, %v1485
          %v1506 = vmul.f32 %v1480, %v1486
          %v1507 = vmul.f32 %v1481, %v1487
          %v1508 = vld [vmem:[%s539] sm:$0xf]
          %v1510 = vperm.slane %v1508, 0
          %v1511 = vperm.slane %v1508, 1
          %v1512 = vperm.slane %v1508, 2
          %v1513 = vperm.slane %v1508, 3
          %v1518 = vadd.f32 %v1492, %v1510
          %v1519 = vadd.f32 %v1493, %v1511
          %v1520 = vadd.f32 %v1494, %v1512
          %v1521 = vadd.f32 %v1495, %v1513
          %v1522 = vadd.f32 %v1496, %v1510
          %v1523 = vadd.f32 %v1497, %v1511
          %v1524 = vadd.f32 %v1498, %v1512
          %v1525 = vadd.f32 %v1499, %v1513
          %v1526 = vadd.f32 %v1500, %v1510
          %v1527 = vadd.f32 %v1501, %v1511
          %v1528 = vadd.f32 %v1502, %v1512
          %v1529 = vadd.f32 %v1503, %v1513
          %v1530 = vadd.f32 %v1504, %v1510
          %v1531 = vadd.f32 %v1505, %v1511
          %v1532 = vadd.f32 %v1506, %v1512
          %v1533 = vadd.f32 %v1507, %v1513
          %v1534 = vmax.f32 %v1518, 0.0
          %v1535 = vmax.f32 %v1519, 0.0
          %v1536 = vmax.f32 %v1520, 0.0
          %v1537 = vmax.f32 %v1521, 0.0
          %v1538 = vmax.f32 %v1522, 0.0
          %v1539 = vmax.f32 %v1523, 0.0
          %v1540 = vmax.f32 %v1524, 0.0
          %v1541 = vmax.f32 %v1525, 0.0
          %v1542 = vmax.f32 %v1526, 0.0
          %v1543 = vmax.f32 %v1527, 0.0
          %v1544 = vmax.f32 %v1528, 0.0
          %v1545 = vmax.f32 %v1529, 0.0
          %v1546 = vmax.f32 %v1530, 0.0
          %v1547 = vmax.f32 %v1531, 0.0
          %v1548 = vmax.f32 %v1532, 0.0
          %v1549 = vmax.f32 %v1533, 0.0
          %v1550 = vadd.f32 %v1534, %v1538
          %v1551 = vadd.f32 %v1550, %v1542
          %vm1552 = vcmask 1040384
          %v1553 = vsel %vm1552, %v1546, 0.0
          %v1554 = vadd.f32 %v1551, %v1553
          %v1555 = vrot.slane %v1554, 4
          %v1556 = vadd.f32 %v1554, %v1555
          %v1557 = vrot.slane %v1556, 2
          %v1558 = vadd.f32 %v1556, %v1557
          %v1559 = vrot.slane %v1558, 1
          %v1560 = vadd.f32 %v1558, %v1559
          %v1561 = vadd.f32 %v1535, %v1539
          %v1562 = vadd.f32 %v1561, %v1543
          %v1563 = vsel %vm1552, %v1547, 0.0
          %v1564 = vadd.f32 %v1562, %v1563
          %v1565 = vrot.slane %v1564, 4
          %v1566 = vadd.f32 %v1564, %v1565
          %v1567 = vrot.slane %v1566, 2
          %v1568 = vadd.f32 %v1566, %v1567
          %v1569 = vrot.slane %v1568, 1
          %v1570 = vadd.f32 %v1568, %v1569
          %v1571 = vadd.f32 %v1536, %v1540
          %v1572 = vadd.f32 %v1571, %v1544
          %v1573 = vsel %vm1552, %v1548, 0.0
          %v1574 = vadd.f32 %v1572, %v1573
          %v1575 = vrot.slane %v1574, 4
          %v1576 = vadd.f32 %v1574, %v1575
          %v1577 = vrot.slane %v1576, 2
          %v1578 = vadd.f32 %v1576, %v1577
          %v1579 = vrot.slane %v1578, 1
          %v1580 = vadd.f32 %v1578, %v1579
          %v1581 = vadd.f32 %v1537, %v1541
          %v1582 = vadd.f32 %v1581, %v1545
          %v1583 = vsel %vm1552, %v1549, 0.0
          %v1584 = vadd.f32 %v1582, %v1583
          %v1585 = vrot.slane %v1584, 4
          %v1586 = vadd.f32 %v1584, %v1585
          %v1587 = vrot.slane %v1586, 2
          %v1588 = vadd.f32 %v1586, %v1587
          %v1589 = vrot.slane %v1588, 1
          %v1590 = vadd.f32 %v1588, %v1589
          %v1591 = vmul.f32 %v1560, 0.04
          %v1592 = vmul.f32 %v1570, 0.04
          %v1593 = vmul.f32 %v1580, 0.04
          %v1594 = vmul.f32 %v1590, 0.04
          %v1599 = vrot.slane %v1592, 7
          %v1600 = vrot.slane %v1593, 6
          %v1601 = vrot.slane %v1594, 5
          %v1602 = vsel %vm1552, %v1591, %v1599
          %vm1603 = vcmask 1042434
          %v1604 = vsel %vm1603, %v1600, %v1601
          %vm1605 = vcmask 1041408
          %v1606 = vsel %vm1605, %v1602, %v1604
          %v1608 = vlaneseq
          %vm1609 = vcmp.ge.s32.totalorder %v1608, 0
          %vm1610 = vcmp.lt.s32.totalorder %v1608, 512
          %vm1611 = vmand %vm1609, %vm1610
          %1612 = vst.msk [vmem:[%s548] sm:$0xf] %vm1611, %v1606
        $region93: #{two_stream_net_forward.4} parent=76 // pred_fallthru
          _
        %s1613 = smul.u32 4, %s21
        %p1614 = scmp.lt.s32.totalorder %s20, 15
        %s1615 = scalar_select %p1614, %s20, 15
        %p1616 = scmp.lt.s32.totalorder %s1613, 15
        %s1617 = scalar_select %p1616, %s1613, 15
        %s1618 = smul.addr %s1615, 16
        %s1619 = sadd.s32 %s1617, %s1618
        %s1620 = scalar_lea.vmem %s4, %s1619
        // Predicated region
        $region94: #{two_stream_net_forward.4} parent=76 // pred_check
          %p1621 = pneg %p162
        $region95: #{two_stream_net_forward.4} parent=76 // pred_check_branch
          %1623 = sbr.rel (%p1621) target = $region97
        $region96: #{two_stream_net_forward.4} parent=76 // pred_region
          %s1624 = smul.u32 4, %s21
        $region97: #{two_stream_net_forward.4} parent=76 // pred_fallthru
          _
      $region77: #{two_stream_net_forward.4} parent=5 // pred_fallthru
        _
      %p1625 = scmp.le.s32.totalorder 2, %s10
      // Predicated region
      $region98: #{two_stream_net_forward.4} parent=5 // pred_check
        %p1626 = pneg %p1625
      $region99: #{two_stream_net_forward.4} parent=5 // pred_check_branch
        %1628 = sbr.rel (%p1626) target = $region101
      $region100: #{two_stream_net_forward.4} parent=5 // pred_region
        %s1629 = ssub.s32 %s10, 2
        // Predicated region
        $region102: #{two_stream_net_forward.4} parent=100 // pred_check
          %p1630 = pneg %p168
        $region103: #{two_stream_net_forward.4} parent=100 // pred_check_branch
          %1632 = sbr.rel (%p1630) target = $region105
        $region104: #{two_stream_net_forward.4} parent=100 // pred_region
          %s1633 = smul.u32 4, %s24
          %p1634 = scmp.lt.s32.totalorder %s23, 15
          %s1635 = scalar_select %p1634, %s23, 15
          %p1636 = scmp.lt.s32.totalorder %s1633, 15
          %s1637 = scalar_select %p1636, %s1633, 15
          %s1638 = smul.addr %s1635, 16
          %s1639 = sadd.s32 %s1637, %s1638
          %s1640 = scalar_lea.vmem %s4, %s1639
        $region105: #{two_stream_net_forward.4} parent=100 // pred_fallthru
          _
      $region101: #{two_stream_net_forward.4} parent=5 // pred_fallthru
        _
    $region6: #{two_stream_net_forward.4} parent=1 // loop_footer
      %s14 = sadd.s32 1, %s10
    $region7: #{two_stream_net_forward.4} parent=1 // loop_footer_branch
      %9 = sbr.rel target = $region3
    $region8: #{two_stream_net_forward.4} parent=1 // loop_exit
      _

// kernel: two_stream_net_forward.5
$region0: #{two_stream_net_forward.5}
  #allocation0 [shape = 'u32[]', space=smem, size = 0x4, offset = 0x4, fixed_abs, tag = 'smem constant byte address 0x4 - core index']
  #allocation1 [shape = 'u32[72,128]{1,0:T(1,128)}', space=vmem, size = 0x9000, scoped, tag = 'internal scratch']
  %s0 = inlined_call_operand.vmem [shape: f32[2,8,2048], index: 0, kind: input, shape index: {}]
  %s1 = inlined_call_operand.vmem [shape: f32[1,2048], index: 1, kind: input, shape index: {}]
  %s2 = inlined_call_operand.vmem [shape: bf16[2048,512], index: 2, kind: input, shape index: {}]
  %s3 = inlined_call_operand.vmem [shape: f32[1,512], index: 3, kind: input, shape index: {}]
  %s4 = inlined_call_operand.vmem [shape: bf16[512,1024], index: 4, kind: input, shape index: {}]
  %s5 = inlined_call_operand.vmem [shape: f32[1,1024], index: 5, kind: input, shape index: {}]
  %s6 = inlined_call_operand.vmem [shape: f32[1,1024], index: 6, kind: input, shape index: {}]
  %s7 = inlined_call_operand.vmem [shape: f32[1,1024], index: 7, kind: input, shape index: {}]
  %s8 = inlined_call_operand.vmem [shape: f32[1024,2], index: 8, kind: input, shape index: {}]
  %s9 = inlined_call_operand.hbm [shape: f32[2,2], index: 9, kind: output, shape index: {}]
  %s10 = sld [smem:[#allocation0]]
  $region46: #{two_stream_net_forward.5} parent=0
    _
  %s12 = ssub.s32 1, %s10
  %s13 = scalar_select 0, %s12, %s10
  $region1: #{two_stream_net_forward.5} parent=0
    #allocation2 [shape = 'u8[1024]{0}', space=vmem, size = 0x400, scoped, tag = 'output window, operand 0, single buffered']
    #allocation3 [shape = 's32[1]{0}', space=sflag, size = 0x4, scoped, tag = 'scoped memory for two_stream_net_forward.5']
    %14 = vsyncpa [#allocation3], 0
    // Predicated region
    $region2: #{two_stream_net_forward.5} parent=1 // pred_check
      _
    $region3: #{two_stream_net_forward.5} parent=1 // pred_check_branch
      %16 = sbr.rel (0) target = $region5
    $region4: #{two_stream_net_forward.5} parent=1 // pred_region
      _
    $region5: #{two_stream_net_forward.5} parent=1 // pred_fallthru
      _
    // Predicated region
    $region6: #{two_stream_net_forward.5} parent=1 // pred_check
      _
    $region7: #{two_stream_net_forward.5} parent=1 // pred_check_branch
      %18 = sbr.rel (0) target = $region9
    $region8: #{two_stream_net_forward.5} parent=1 // pred_region
      _
    $region9: #{two_stream_net_forward.5} parent=1 // pred_fallthru
      _
    // Predicated region
    $region10: #{two_stream_net_forward.5} parent=1 // pred_check
      _
    $region11: #{two_stream_net_forward.5} parent=1 // pred_check_branch
      %20 = sbr.rel (0) target = $region13
    $region12: #{two_stream_net_forward.5} parent=1 // pred_region
      _
    $region13: #{two_stream_net_forward.5} parent=1 // pred_fallthru
      _
    // Predicated region
    $region14: #{two_stream_net_forward.5} parent=1 // pred_check
      _
    $region15: #{two_stream_net_forward.5} parent=1 // pred_check_branch
      %22 = sbr.rel (0) target = $region17
    $region16: #{two_stream_net_forward.5} parent=1 // pred_region
      _
    $region17: #{two_stream_net_forward.5} parent=1 // pred_fallthru
      _
    // Predicated region
    $region18: #{two_stream_net_forward.5} parent=1 // pred_check
      _
    $region19: #{two_stream_net_forward.5} parent=1 // pred_check_branch
      %24 = sbr.rel (0) target = $region21
    $region20: #{two_stream_net_forward.5} parent=1 // pred_region
      _
    $region21: #{two_stream_net_forward.5} parent=1 // pred_fallthru
      _
    // Predicated region
    $region22: #{two_stream_net_forward.5} parent=1 // pred_check
      _
    $region23: #{two_stream_net_forward.5} parent=1 // pred_check_branch
      %26 = sbr.rel (0) target = $region25
    $region24: #{two_stream_net_forward.5} parent=1 // pred_region
      _
    $region25: #{two_stream_net_forward.5} parent=1 // pred_fallthru
      _
    // Predicated region
    $region26: #{two_stream_net_forward.5} parent=1 // pred_check
      _
    $region27: #{two_stream_net_forward.5} parent=1 // pred_check_branch
      %28 = sbr.rel (0) target = $region29
    $region28: #{two_stream_net_forward.5} parent=1 // pred_region
      _
    $region29: #{two_stream_net_forward.5} parent=1 // pred_fallthru
      _
    // Predicated region
    $region30: #{two_stream_net_forward.5} parent=1 // pred_check
      _
    $region31: #{two_stream_net_forward.5} parent=1 // pred_check_branch
      %30 = sbr.rel (0) target = $region33
    $region32: #{two_stream_net_forward.5} parent=1 // pred_region
      _
    $region33: #{two_stream_net_forward.5} parent=1 // pred_fallthru
      _
    // Predicated region
    $region34: #{two_stream_net_forward.5} parent=1 // pred_check
      _
    $region35: #{two_stream_net_forward.5} parent=1 // pred_check_branch
      %32 = sbr.rel (0) target = $region37
    $region36: #{two_stream_net_forward.5} parent=1 // pred_region
      _
    $region37: #{two_stream_net_forward.5} parent=1 // pred_fallthru
      _
    %v33 = vld [vmem:[%s0] sm:$0xff]
    %v34 = vld [vmem:[%s0 + $0x8] sm:$0xff]
    %v35 = vld [vmem:[%s0 + $0x10] sm:$0xff]
    %v36 = vld [vmem:[%s0 + $0x18] sm:$0xff]
    %v37 = vld [vmem:[%s0 + $0x20] sm:$0xff]
    %v38 = vld [vmem:[%s0 + $0x28] sm:$0xff]
    %v39 = vld [vmem:[%s0 + $0x30] sm:$0xff]
    %v40 = vld [vmem:[%s0 + $0x38] sm:$0xff]
    %v41 = vld [vmem:[%s0 + $0x40] sm:$0xff]
    %v42 = vld [vmem:[%s0 + $0x48] sm:$0xff]
    %v43 = vld [vmem:[%s0 + $0x50] sm:$0xff]
    %v44 = vld [vmem:[%s0 + $0x58] sm:$0xff]
    %v45 = vld [vmem:[%s0 + $0x60] sm:$0xff]
    %v46 = vld [vmem:[%s0 + $0x68] sm:$0xff]
    %v47 = vld [vmem:[%s0 + $0x70] sm:$0xff]
    %v48 = vld [vmem:[%s0 + $0x78] sm:$0xff]
    %v49 = vld [vmem:[%s0 + $0x80] sm:$0xff]
    %v50 = vld [vmem:[%s0 + $0x88] sm:$0xff]
    %v51 = vld [vmem:[%s0 + $0x90] sm:$0xff]
    %v52 = vld [vmem:[%s0 + $0x98] sm:$0xff]
    %v53 = vld [vmem:[%s0 + $0xa0] sm:$0xff]
    %v54 = vld [vmem:[%s0 + $0xa8] sm:$0xff]
    %v55 = vld [vmem:[%s0 + $0xb0] sm:$0xff]
    %v56 = vld [vmem:[%s0 + $0xb8] sm:$0xff]
    %v57 = vld [vmem:[%s0 + $0xc0] sm:$0xff]
    %v58 = vld [vmem:[%s0 + $0xc8] sm:$0xff]
    %v59 = vld [vmem:[%s0 + $0xd0] sm:$0xff]
    %v60 = vld [vmem:[%s0 + $0xd8] sm:$0xff]
    %v61 = vld [vmem:[%s0 + $0xe0] sm:$0xff]
    %v62 = vld [vmem:[%s0 + $0xe8] sm:$0xff]
    %v63 = vld [vmem:[%s0 + $0xf0] sm:$0xff]
    %v64 = vld [vmem:[%s0 + $0xf8] sm:$0xff]
    %v65 = vld [vmem:[%s1] sm:$0xff]
    %v66 = vld [vmem:[%s1 + $0x8] sm:$0xff]
    %v69 = vperm.slane %v65, 0
    %v70 = vperm.slane %v65, 1
    %v71 = vperm.slane %v65, 2
    %v72 = vperm.slane %v65, 3
    %v73 = vperm.slane %v65, 4
    %v74 = vperm.slane %v65, 5
    %v75 = vperm.slane %v65, 6
    %v76 = vperm.slane %v65, 7
    %v77 = vperm.slane %v66, 0
    %v78 = vperm.slane %v66, 1
    %v79 = vperm.slane %v66, 2
    %v80 = vperm.slane %v66, 3
    %v81 = vperm.slane %v66, 4
    %v82 = vperm.slane %v66, 5
    %v83 = vperm.slane %v66, 6
    %v84 = vperm.slane %v66, 7
    %v101 = vmul.f32 %v33, %v69
    %v102 = vmul.f32 %v34, %v70
    %v103 = vmul.f32 %v35, %v71
    %v104 = vmul.f32 %v36, %v72
    %v105 = vmul.f32 %v37, %v73
    %v106 = vmul.f32 %v38, %v74
    %v107 = vmul.f32 %v39, %v75
    %v108 = vmul.f32 %v40, %v76
    %v109 = vmul.f32 %v41, %v77
    %v110 = vmul.f32 %v42, %v78
    %v111 = vmul.f32 %v43, %v79
    %v112 = vmul.f32 %v44, %v80
    %v113 = vmul.f32 %v45, %v81
    %v114 = vmul.f32 %v46, %v82
    %v115 = vmul.f32 %v47, %v83
    %v116 = vmul.f32 %v48, %v84
    %v117 = vmul.f32 %v49, %v69
    %v118 = vmul.f32 %v50, %v70
    %v119 = vmul.f32 %v51, %v71
    %v120 = vmul.f32 %v52, %v72
    %v121 = vmul.f32 %v53, %v73
    %v122 = vmul.f32 %v54, %v74
    %v123 = vmul.f32 %v55, %v75
    %v124 = vmul.f32 %v56, %v76
    %v125 = vmul.f32 %v57, %v77
    %v126 = vmul.f32 %v58, %v78
    %v127 = vmul.f32 %v59, %v79
    %v128 = vmul.f32 %v60, %v80
    %v129 = vmul.f32 %v61, %v81
    %v130 = vmul.f32 %v62, %v82
    %v131 = vmul.f32 %v63, %v83
    %v132 = vmul.f32 %v64, %v84
    %v133 = vadd.f32 %v101, %v102
    %v134 = vadd.f32 %v133, %v103
    %v135 = vadd.f32 %v134, %v104
    %v136 = vadd.f32 %v135, %v105
    %v137 = vadd.f32 %v136, %v106
    %v138 = vadd.f32 %v137, %v107
    %v139 = vadd.f32 %v138, %v108
    %v140 = vadd.f32 %v139, %v109
    %v141 = vadd.f32 %v140, %v110
    %v142 = vadd.f32 %v141, %v111
    %v143 = vadd.f32 %v142, %v112
    %v144 = vadd.f32 %v143, %v113
    %v145 = vadd.f32 %v144, %v114
    %v146 = vadd.f32 %v145, %v115
    %v147 = vadd.f32 %v146, %v116
    %148 = vadd.xlane.f32.xlu0 %v147
    %v149 = vpop.xlane.xlu0 %148
    %v150 = vadd.f32 %v117, %v118
    %v151 = vadd.f32 %v150, %v119
    %v152 = vadd.f32 %v151, %v120
    %v153 = vadd.f32 %v152, %v121
    %v154 = vadd.f32 %v153, %v122
    %v155 = vadd.f32 %v154, %v123
    %v156 = vadd.f32 %v155, %v124
    %v157 = vadd.f32 %v156, %v125
    %v158 = vadd.f32 %v157, %v126
    %v159 = vadd.f32 %v158, %v127
    %v160 = vadd.f32 %v159, %v128
    %v161 = vadd.f32 %v160, %v129
    %v162 = vadd.f32 %v161, %v130
    %v163 = vadd.f32 %v162, %v131
    %v164 = vadd.f32 %v163, %v132
    %165 = vadd.xlane.f32.xlu0 %v164
    %v166 = vpop.xlane.xlu0 %165
    %v169 = vlaneseq
    %v170 = vand.u32 %v169, 127
    %v171 = vperm.slane %v149, %v170
    %v172 = vperm.slane %v166, %v170
    %vm173 = vcmask 1041409
    %v174 = vsel %vm173, %v172, %v171
    %vm176 = vcmask 58368
    %v177 = vsel %vm176, %v174, -inf
    %178 = vmax.xlane.f32.xlu0 %v177
    %v179 = vpop.xlane.xlu0 %178
    %v181 = vperm.slane %v179, 0
    %v182 = vperm.slane %v179, 1
    %v185 = vsub.f32 %v149, %v181
    %v186 = vsub.f32 %v166, %v182
    %v187 = vmul.f32 %v185, 1.442695
    %v188 = vpow.pop %v187
    %v189 = vmul.f32 %v186, 1.442695
    %v190 = vpow.pop %v189
    %193 = vset.pattern.permute.xlu0 0
    %194 = vperm.xlu0 %193, %v188
    %v195 = vpop.permute.xlu0 %194
    %196 = vset.pattern.permute.xlu0 0
    %197 = vperm.xlu0 %196, %v190
    %v198 = vpop.permute.xlu0 %197
    %v199 = vperm.slane %v195, %v170
    %v200 = vperm.slane %v198, %v170
    %v201 = vsel %vm173, %v200, %v199
    %v203 = vsel %vm176, %v201, 0.0
    %204 = vadd.xlane.f32.xlu0 %v203
    %v205 = vpop.xlane.xlu0 %204
    %v206 = vrcp.pop %v205
    %v208 = vperm.slane %v206, 0
    %v209 = vperm.slane %v206, 1
    %v212 = vmul.f32 %v188, %v208
    %v213 = vmul.f32 %v190, %v209
    %215 = vset.pattern.permute.xlu0 0
    %216 = vperm.xlu0 %215, %v212
    %v217 = vpop.permute.xlu0 %216
    %220 = vset.pattern.permute.xlu0 0
    %221 = vperm.xlu0 %220, %v213
    %v222 = vpop.permute.xlu0 %221
    %v224 = vmul.f32 %v33, %v217
    %v225 = vmul.f32 %v34, %v217
    %v226 = vmul.f32 %v35, %v217
    %v227 = vmul.f32 %v36, %v217
    %v228 = vmul.f32 %v37, %v217
    %v229 = vmul.f32 %v38, %v217
    %v230 = vmul.f32 %v39, %v217
    %v231 = vmul.f32 %v40, %v217
    %v232 = vmul.f32 %v41, %v217
    %v233 = vmul.f32 %v42, %v217
    %v234 = vmul.f32 %v43, %v217
    %v235 = vmul.f32 %v44, %v217
    %v236 = vmul.f32 %v45, %v217
    %v237 = vmul.f32 %v46, %v217
    %v238 = vmul.f32 %v47, %v217
    %v239 = vmul.f32 %v48, %v217
    %v240 = vmul.f32 %v49, %v222
    %v241 = vmul.f32 %v50, %v222
    %v242 = vmul.f32 %v51, %v222
    %v243 = vmul.f32 %v52, %v222
    %v244 = vmul.f32 %v53, %v222
    %v245 = vmul.f32 %v54, %v222
    %v246 = vmul.f32 %v55, %v222
    %v247 = vmul.f32 %v56, %v222
    %v248 = vmul.f32 %v57, %v222
    %v249 = vmul.f32 %v58, %v222
    %v250 = vmul.f32 %v59, %v222
    %v251 = vmul.f32 %v60, %v222
    %v252 = vmul.f32 %v61, %v222
    %v253 = vmul.f32 %v62, %v222
    %v254 = vmul.f32 %v63, %v222
    %v255 = vmul.f32 %v64, %v222
    %v256 = vrot.slane %v224, 4
    %v257 = vadd.f32 %v224, %v256
    %v258 = vrot.slane %v257, 2
    %v259 = vadd.f32 %v257, %v258
    %v260 = vrot.slane %v259, 1
    %v261 = vadd.f32 %v259, %v260
    %v262 = vrot.slane %v225, 4
    %v263 = vadd.f32 %v225, %v262
    %v264 = vrot.slane %v263, 2
    %v265 = vadd.f32 %v263, %v264
    %v266 = vrot.slane %v265, 1
    %v267 = vadd.f32 %v265, %v266
    %v268 = vrot.slane %v226, 4
    %v269 = vadd.f32 %v226, %v268
    %v270 = vrot.slane %v269, 2
    %v271 = vadd.f32 %v269, %v270
    %v272 = vrot.slane %v271, 1
    %v273 = vadd.f32 %v271, %v272
    %v274 = vrot.slane %v227, 4
    %v275 = vadd.f32 %v227, %v274
    %v276 = vrot.slane %v275, 2
    %v277 = vadd.f32 %v275, %v276
    %v278 = vrot.slane %v277, 1
    %v279 = vadd.f32 %v277, %v278
    %v280 = vrot.slane %v228, 4
    %v281 = vadd.f32 %v228, %v280
    %v282 = vrot.slane %v281, 2
    %v283 = vadd.f32 %v281, %v282
    %v284 = vrot.slane %v283, 1
    %v285 = vadd.f32 %v283, %v284
    %v286 = vrot.slane %v229, 4
    %v287 = vadd.f32 %v229, %v286
    %v288 = vrot.slane %v287, 2
    %v289 = vadd.f32 %v287, %v288
    %v290 = vrot.slane %v289, 1
    %v291 = vadd.f32 %v289, %v290
    %v292 = vrot.slane %v230, 4
    %v293 = vadd.f32 %v230, %v292
    %v294 = vrot.slane %v293, 2
    %v295 = vadd.f32 %v293, %v294
    %v296 = vrot.slane %v295, 1
    %v297 = vadd.f32 %v295, %v296
    %v298 = vrot.slane %v231, 4
    %v299 = vadd.f32 %v231, %v298
    %v300 = vrot.slane %v299, 2
    %v301 = vadd.f32 %v299, %v300
    %v302 = vrot.slane %v301, 1
    %v303 = vadd.f32 %v301, %v302
    %v304 = vrot.slane %v232, 4
    %v305 = vadd.f32 %v232, %v304
    %v306 = vrot.slane %v305, 2
    %v307 = vadd.f32 %v305, %v306
    %v308 = vrot.slane %v307, 1
    %v309 = vadd.f32 %v307, %v308
    %v310 = vrot.slane %v233, 4
    %v311 = vadd.f32 %v233, %v310
    %v312 = vrot.slane %v311, 2
    %v313 = vadd.f32 %v311, %v312
    %v314 = vrot.slane %v313, 1
    %v315 = vadd.f32 %v313, %v314
    %v316 = vrot.slane %v234, 4
    %v317 = vadd.f32 %v234, %v316
    %v318 = vrot.slane %v317, 2
    %v319 = vadd.f32 %v317, %v318
    %v320 = vrot.slane %v319, 1
    %v321 = vadd.f32 %v319, %v320
    %v322 = vrot.slane %v235, 4
    %v323 = vadd.f32 %v235, %v322
    %v324 = vrot.slane %v323, 2
    %v325 = vadd.f32 %v323, %v324
    %v326 = vrot.slane %v325, 1
    %v327 = vadd.f32 %v325, %v326
    %v328 = vrot.slane %v236, 4
    %v329 = vadd.f32 %v236, %v328
    %v330 = vrot.slane %v329, 2
    %v331 = vadd.f32 %v329, %v330
    %v332 = vrot.slane %v331, 1
    %v333 = vadd.f32 %v331, %v332
    %v334 = vrot.slane %v237, 4
    %v335 = vadd.f32 %v237, %v334
    %v336 = vrot.slane %v335, 2
    %v337 = vadd.f32 %v335, %v336
    %v338 = vrot.slane %v337, 1
    %v339 = vadd.f32 %v337, %v338
    %v340 = vrot.slane %v238, 4
    %v341 = vadd.f32 %v238, %v340
    %v342 = vrot.slane %v341, 2
    %v343 = vadd.f32 %v341, %v342
    %v344 = vrot.slane %v343, 1
    %v345 = vadd.f32 %v343, %v344
    %v346 = vrot.slane %v239, 4
    %v347 = vadd.f32 %v239, %v346
    %v348 = vrot.slane %v347, 2
    %v349 = vadd.f32 %v347, %v348
    %v350 = vrot.slane %v349, 1
    %v351 = vadd.f32 %v349, %v350
    %v352 = vrot.slane %v240, 4
    %v353 = vadd.f32 %v240, %v352
    %v354 = vrot.slane %v353, 2
    %v355 = vadd.f32 %v353, %v354
    %v356 = vrot.slane %v355, 1
    %v357 = vadd.f32 %v355, %v356
    %v358 = vrot.slane %v241, 4
    %v359 = vadd.f32 %v241, %v358
    %v360 = vrot.slane %v359, 2
    %v361 = vadd.f32 %v359, %v360
    %v362 = vrot.slane %v361, 1
    %v363 = vadd.f32 %v361, %v362
    %v364 = vrot.slane %v242, 4
    %v365 = vadd.f32 %v242, %v364
    %v366 = vrot.slane %v365, 2
    %v367 = vadd.f32 %v365, %v366
    %v368 = vrot.slane %v367, 1
    %v369 = vadd.f32 %v367, %v368
    %v370 = vrot.slane %v243, 4
    %v371 = vadd.f32 %v243, %v370
    %v372 = vrot.slane %v371, 2
    %v373 = vadd.f32 %v371, %v372
    %v374 = vrot.slane %v373, 1
    %v375 = vadd.f32 %v373, %v374
    %v376 = vrot.slane %v244, 4
    %v377 = vadd.f32 %v244, %v376
    %v378 = vrot.slane %v377, 2
    %v379 = vadd.f32 %v377, %v378
    %v380 = vrot.slane %v379, 1
    %v381 = vadd.f32 %v379, %v380
    %v382 = vrot.slane %v245, 4
    %v383 = vadd.f32 %v245, %v382
    %v384 = vrot.slane %v383, 2
    %v385 = vadd.f32 %v383, %v384
    %v386 = vrot.slane %v385, 1
    %v387 = vadd.f32 %v385, %v386
    %v388 = vrot.slane %v246, 4
    %v389 = vadd.f32 %v246, %v388
    %v390 = vrot.slane %v389, 2
    %v391 = vadd.f32 %v389, %v390
    %v392 = vrot.slane %v391, 1
    %v393 = vadd.f32 %v391, %v392
    %v394 = vrot.slane %v247, 4
    %v395 = vadd.f32 %v247, %v394
    %v396 = vrot.slane %v395, 2
    %v397 = vadd.f32 %v395, %v396
    %v398 = vrot.slane %v397, 1
    %v399 = vadd.f32 %v397, %v398
    %v400 = vrot.slane %v248, 4
    %v401 = vadd.f32 %v248, %v400
    %v402 = vrot.slane %v401, 2
    %v403 = vadd.f32 %v401, %v402
    %v404 = vrot.slane %v403, 1
    %v405 = vadd.f32 %v403, %v404
    %v406 = vrot.slane %v249, 4
    %v407 = vadd.f32 %v249, %v406
    %v408 = vrot.slane %v407, 2
    %v409 = vadd.f32 %v407, %v408
    %v410 = vrot.slane %v409, 1
    %v411 = vadd.f32 %v409, %v410
    %v412 = vrot.slane %v250, 4
    %v413 = vadd.f32 %v250, %v412
    %v414 = vrot.slane %v413, 2
    %v415 = vadd.f32 %v413, %v414
    %v416 = vrot.slane %v415, 1
    %v417 = vadd.f32 %v415, %v416
    %v418 = vrot.slane %v251, 4
    %v419 = vadd.f32 %v251, %v418
    %v420 = vrot.slane %v419, 2
    %v421 = vadd.f32 %v419, %v420
    %v422 = vrot.slane %v421, 1
    %v423 = vadd.f32 %v421, %v422
    %v424 = vrot.slane %v252, 4
    %v425 = vadd.f32 %v252, %v424
    %v426 = vrot.slane %v425, 2
    %v427 = vadd.f32 %v425, %v426
    %v428 = vrot.slane %v427, 1
    %v429 = vadd.f32 %v427, %v428
    %v430 = vrot.slane %v253, 4
    %v431 = vadd.f32 %v253, %v430
    %v432 = vrot.slane %v431, 2
    %v433 = vadd.f32 %v431, %v432
    %v434 = vrot.slane %v433, 1
    %v435 = vadd.f32 %v433, %v434
    %v436 = vrot.slane %v254, 4
    %v437 = vadd.f32 %v254, %v436
    %v438 = vrot.slane %v437, 2
    %v439 = vadd.f32 %v437, %v438
    %v440 = vrot.slane %v439, 1
    %v441 = vadd.f32 %v439, %v440
    %v442 = vrot.slane %v255, 4
    %v443 = vadd.f32 %v255, %v442
    %v444 = vrot.slane %v443, 2
    %v445 = vadd.f32 %v443, %v444
    %v446 = vrot.slane %v445, 1
    %v447 = vadd.f32 %v445, %v446
    %v448 = vpack.c.bf16 %v261, %v261
    %v449 = vpack.c.bf16 %v267, %v267
    %v450 = vpack.c.bf16 %v273, %v273
    %v451 = vpack.c.bf16 %v279, %v279
    %v452 = vpack.c.bf16 %v285, %v285
    %v453 = vpack.c.bf16 %v291, %v291
    %v454 = vpack.c.bf16 %v297, %v297
    %v455 = vpack.c.bf16 %v303, %v303
    %v456 = vpack.c.bf16 %v309, %v309
    %v457 = vpack.c.bf16 %v315, %v315
    %v458 = vpack.c.bf16 %v321, %v321
    %v459 = vpack.c.bf16 %v327, %v327
    %v460 = vpack.c.bf16 %v333, %v333
    %v461 = vpack.c.bf16 %v339, %v339
    %v462 = vpack.c.bf16 %v345, %v345
    %v463 = vpack.c.bf16 %v351, %v351
    %v464 = vpack.c.bf16 %v357, %v357
    %v465 = vpack.c.bf16 %v363, %v363
    %v466 = vpack.c.bf16 %v369, %v369
    %v467 = vpack.c.bf16 %v375, %v375
    %v468 = vpack.c.bf16 %v381, %v381
    %v469 = vpack.c.bf16 %v387, %v387
    %v470 = vpack.c.bf16 %v393, %v393
    %v471 = vpack.c.bf16 %v399, %v399
    %v472 = vpack.c.bf16 %v405, %v405
    %v473 = vpack.c.bf16 %v411, %v411
    %v474 = vpack.c.bf16 %v417, %v417
    %v475 = vpack.c.bf16 %v423, %v423
    %v476 = vpack.c.bf16 %v429, %v429
    %v477 = vpack.c.bf16 %v435, %v435
    %v478 = vpack.c.bf16 %v441, %v441
    %v479 = vpack.c.bf16 %v447, %v447
    %v480 = vld [vmem:[%s2] sm:$0xff]
    %v481 = vld [vmem:[%s2 + $0x8] sm:$0xff]
    %v482 = vld [vmem:[%s2 + $0x10] sm:$0xff]
    %v483 = vld [vmem:[%s2 + $0x18] sm:$0xff]
    %v484 = vld [vmem:[%s2 + $0x20] sm:$0xff]
    %v485 = vld [vmem:[%s2 + $0x28] sm:$0xff]
    %v486 = vld [vmem:[%s2 + $0x30] sm:$0xff]
    %v487 = vld [vmem:[%s2 + $0x38] sm:$0xff]
    %v488 = vld [vmem:[%s2 + $0x40] sm:$0xff]
    %v489 = vld [vmem:[%s2 + $0x48] sm:$0xff]
    %v490 = vld [vmem:[%s2 + $0x50] sm:$0xff]
    %v491 = vld [vmem:[%s2 + $0x58] sm:$0xff]
    %v492 = vld [vmem:[%s2 + $0x60] sm:$0xff]
    %v493 = vld [vmem:[%s2 + $0x68] sm:$0xff]
    %v494 = vld [vmem:[%s2 + $0x70] sm:$0xff]
    %v495 = vld [vmem:[%s2 + $0x78] sm:$0xff]
    %v496 = vld [vmem:[%s2 + $0x80] sm:$0xff]
    %v497 = vld [vmem:[%s2 + $0x88] sm:$0xff]
    %v498 = vld [vmem:[%s2 + $0x90] sm:$0xff]
    %v499 = vld [vmem:[%s2 + $0x98] sm:$0xff]
    %v500 = vld [vmem:[%s2 + $0xa0] sm:$0xff]
    %v501 = vld [vmem:[%s2 + $0xa8] sm:$0xff]
    %v502 = vld [vmem:[%s2 + $0xb0] sm:$0xff]
    %v503 = vld [vmem:[%s2 + $0xb8] sm:$0xff]
    %v504 = vld [vmem:[%s2 + $0xc0] sm:$0xff]
    %v505 = vld [vmem:[%s2 + $0xc8] sm:$0xff]
    %v506 = vld [vmem:[%s2 + $0xd0] sm:$0xff]
    %v507 = vld [vmem:[%s2 + $0xd8] sm:$0xff]
    %v508 = vld [vmem:[%s2 + $0xe0] sm:$0xff]
    %v509 = vld [vmem:[%s2 + $0xe8] sm:$0xff]
    %v510 = vld [vmem:[%s2 + $0xf0] sm:$0xff]
    %v511 = vld [vmem:[%s2 + $0xf8] sm:$0xff]
    %v512 = vld [vmem:[%s2 + $0x100] sm:$0xff]
    %v513 = vld [vmem:[%s2 + $0x108] sm:$0xff]
    %v514 = vld [vmem:[%s2 + $0x110] sm:$0xff]
    %v515 = vld [vmem:[%s2 + $0x118] sm:$0xff]
    %v516 = vld [vmem:[%s2 + $0x120] sm:$0xff]
    %v517 = vld [vmem:[%s2 + $0x128] sm:$0xff]
    %v518 = vld [vmem:[%s2 + $0x130] sm:$0xff]
    %v519 = vld [vmem:[%s2 + $0x138] sm:$0xff]
    %v520 = vld [vmem:[%s2 + $0x140] sm:$0xff]
    %v521 = vld [vmem:[%s2 + $0x148] sm:$0xff]
    %v522 = vld [vmem:[%s2 + $0x150] sm:$0xff]
    %v523 = vld [vmem:[%s2 + $0x158] sm:$0xff]
    %v524 = vld [vmem:[%s2 + $0x160] sm:$0xff]
    %v525 = vld [vmem:[%s2 + $0x168] sm:$0xff]
    %v526 = vld [vmem:[%s2 + $0x170] sm:$0xff]
    %v527 = vld [vmem:[%s2 + $0x178] sm:$0xff]
    %v528 = vld [vmem:[%s2 + $0x180] sm:$0xff]
    %v529 = vld [vmem:[%s2 + $0x188] sm:$0xff]
    %v530 = vld [vmem:[%s2 + $0x190] sm:$0xff]
    %v531 = vld [vmem:[%s2 + $0x198] sm:$0xff]
    %v532 = vld [vmem:[%s2 + $0x1a0] sm:$0xff]
    %v533 = vld [vmem:[%s2 + $0x1a8] sm:$0xff]
    %v534 = vld [vmem:[%s2 + $0x1b0] sm:$0xff]
    %v535 = vld [vmem:[%s2 + $0x1b8] sm:$0xff]
    %v536 = vld [vmem:[%s2 + $0x1c0] sm:$0xff]
    %v537 = vld [vmem:[%s2 + $0x1c8] sm:$0xff]
    %v538 = vld [vmem:[%s2 + $0x1d0] sm:$0xff]
    %v539 = vld [vmem:[%s2 + $0x1d8] sm:$0xff]
    %v540 = vld [vmem:[%s2 + $0x1e0] sm:$0xff]
    %v541 = vld [vmem:[%s2 + $0x1e8] sm:$0xff]
    %v542 = vld [vmem:[%s2 + $0x1f0] sm:$0xff]
    %v543 = vld [vmem:[%s2 + $0x1f8] sm:$0xff]
    %v544 = vld [vmem:[%s2 + $0x200] sm:$0xff]
    %v545 = vld [vmem:[%s2 + $0x208] sm:$0xff]
    %v546 = vld [vmem:[%s2 + $0x210] sm:$0xff]
    %v547 = vld [vmem:[%s2 + $0x218] sm:$0xff]
    %v548 = vld [vmem:[%s2 + $0x220] sm:$0xff]
    %v549 = vld [vmem:[%s2 + $0x228] sm:$0xff]
    %v550 = vld [vmem:[%s2 + $0x230] sm:$0xff]
    %v551 = vld [vmem:[%s2 + $0x238] sm:$0xff]
    %v552 = vld [vmem:[%s2 + $0x240] sm:$0xff]
    %v553 = vld [vmem:[%s2 + $0x248] sm:$0xff]
    %v554 = vld [vmem:[%s2 + $0x250] sm:$0xff]
    %v555 = vld [vmem:[%s2 + $0x258] sm:$0xff]
    %v556 = vld [vmem:[%s2 + $0x260] sm:$0xff]
    %v557 = vld [vmem:[%s2 + $0x268] sm:$0xff]
    %v558 = vld [vmem:[%s2 + $0x270] sm:$0xff]
    %v559 = vld [vmem:[%s2 + $0x278] sm:$0xff]
    %v560 = vld [vmem:[%s2 + $0x280] sm:$0xff]
    %v561 = vld [vmem:[%s2 + $0x288] sm:$0xff]
    %v562 = vld [vmem:[%s2 + $0x290] sm:$0xff]
    %v563 = vld [vmem:[%s2 + $0x298] sm:$0xff]
    %v564 = vld [vmem:[%s2 + $0x2a0] sm:$0xff]
    %v565 = vld [vmem:[%s2 + $0x2a8] sm:$0xff]
    %v566 = vld [vmem:[%s2 + $0x2b0] sm:$0xff]
    %v567 = vld [vmem:[%s2 + $0x2b8] sm:$0xff]
    %v568 = vld [vmem:[%s2 + $0x2c0] sm:$0xff]
    %v569 = vld [vmem:[%s2 + $0x2c8] sm:$0xff]
    %v570 = vld [vmem:[%s2 + $0x2d0] sm:$0xff]
    %v571 = vld [vmem:[%s2 + $0x2d8] sm:$0xff]
    %v572 = vld [vmem:[%s2 + $0x2e0] sm:$0xff]
    %v573 = vld [vmem:[%s2 + $0x2e8] sm:$0xff]
    %v574 = vld [vmem:[%s2 + $0x2f0] sm:$0xff]
    %v575 = vld [vmem:[%s2 + $0x2f8] sm:$0xff]
    %v576 = vld [vmem:[%s2 + $0x300] sm:$0xff]
    %v577 = vld [vmem:[%s2 + $0x308] sm:$0xff]
    %v578 = vld [vmem:[%s2 + $0x310] sm:$0xff]
    %v579 = vld [vmem:[%s2 + $0x318] sm:$0xff]
    %v580 = vld [vmem:[%s2 + $0x320] sm:$0xff]
    %v581 = vld [vmem:[%s2 + $0x328] sm:$0xff]
    %v582 = vld [vmem:[%s2 + $0x330] sm:$0xff]
    %v583 = vld [vmem:[%s2 + $0x338] sm:$0xff]
    %v584 = vld [vmem:[%s2 + $0x340] sm:$0xff]
    %v585 = vld [vmem:[%s2 + $0x348] sm:$0xff]
    %v586 = vld [vmem:[%s2 + $0x350] sm:$0xff]
    %v587 = vld [vmem:[%s2 + $0x358] sm:$0xff]
    %v588 = vld [vmem:[%s2 + $0x360] sm:$0xff]
    %v589 = vld [vmem:[%s2 + $0x368] sm:$0xff]
    %v590 = vld [vmem:[%s2 + $0x370] sm:$0xff]
    %v591 = vld [vmem:[%s2 + $0x378] sm:$0xff]
    %v592 = vld [vmem:[%s2 + $0x380] sm:$0xff]
    %v593 = vld [vmem:[%s2 + $0x388] sm:$0xff]
    %v594 = vld [vmem:[%s2 + $0x390] sm:$0xff]
    %v595 = vld [vmem:[%s2 + $0x398] sm:$0xff]
    %v596 = vld [vmem:[%s2 + $0x3a0] sm:$0xff]
    %v597 = vld [vmem:[%s2 + $0x3a8] sm:$0xff]
    %v598 = vld [vmem:[%s2 + $0x3b0] sm:$0xff]
    %v599 = vld [vmem:[%s2 + $0x3b8] sm:$0xff]
    %v600 = vld [vmem:[%s2 + $0x3c0] sm:$0xff]
    %v601 = vld [vmem:[%s2 + $0x3c8] sm:$0xff]
    %v602 = vld [vmem:[%s2 + $0x3d0] sm:$0xff]
    %v603 = vld [vmem:[%s2 + $0x3d8] sm:$0xff]
    %v604 = vld [vmem:[%s2 + $0x3e0] sm:$0xff]
    %v605 = vld [vmem:[%s2 + $0x3e8] sm:$0xff]
    %v606 = vld [vmem:[%s2 + $0x3f0] sm:$0xff]
    %v607 = vld [vmem:[%s2 + $0x3f8] sm:$0xff]
    %v608 = vld [vmem:[%s2 + $0x400] sm:$0xff]
    %v609 = vld [vmem:[%s2 + $0x408] sm:$0xff]
    %v610 = vld [vmem:[%s2 + $0x410] sm:$0xff]
    %v611 = vld [vmem:[%s2 + $0x418] sm:$0xff]
    %v612 = vld [vmem:[%s2 + $0x420] sm:$0xff]
    %v613 = vld [vmem:[%s2 + $0x428] sm:$0xff]
    %v614 = vld [vmem:[%s2 + $0x430] sm:$0xff]
    %v615 = vld [vmem:[%s2 + $0x438] sm:$0xff]
    %v616 = vld [vmem:[%s2 + $0x440] sm:$0xff]
    %v617 = vld [vmem:[%s2 + $0x448] sm:$0xff]
    %v618 = vld [vmem:[%s2 + $0x450] sm:$0xff]
    %v619 = vld [vmem:[%s2 + $0x458] sm:$0xff]
    %v620 = vld [vmem:[%s2 + $0x460] sm:$0xff]
    %v621 = vld [vmem:[%s2 + $0x468] sm:$0xff]
    %v622 = vld [vmem:[%s2 + $0x470] sm:$0xff]
    %v623 = vld [vmem:[%s2 + $0x478] sm:$0xff]
    %v624 = vld [vmem:[%s2 + $0x480] sm:$0xff]
    %v625 = vld [vmem:[%s2 + $0x488] sm:$0xff]
    %v626 = vld [vmem:[%s2 + $0x490] sm:$0xff]
    %v627 = vld [vmem:[%s2 + $0x498] sm:$0xff]
    %v628 = vld [vmem:[%s2 + $0x4a0] sm:$0xff]
    %v629 = vld [vmem:[%s2 + $0x4a8] sm:$0xff]
    %v630 = vld [vmem:[%s2 + $0x4b0] sm:$0xff]
    %v631 = vld [vmem:[%s2 + $0x4b8] sm:$0xff]
    %v632 = vld [vmem:[%s2 + $0x4c0] sm:$0xff]
    %v633 = vld [vmem:[%s2 + $0x4c8] sm:$0xff]
    %v634 = vld [vmem:[%s2 + $0x4d0] sm:$0xff]
    %v635 = vld [vmem:[%s2 + $0x4d8] sm:$0xff]
    %v636 = vld [vmem:[%s2 + $0x4e0] sm:$0xff]
    %v637 = vld [vmem:[%s2 + $0x4e8] sm:$0xff]
    %v638 = vld [vmem:[%s2 + $0x4f0] sm:$0xff]
    %v639 = vld [vmem:[%s2 + $0x4f8] sm:$0xff]
    %v640 = vld [vmem:[%s2 + $0x500] sm:$0xff]
    %v641 = vld [vmem:[%s2 + $0x508] sm:$0xff]
    %v642 = vld [vmem:[%s2 + $0x510] sm:$0xff]
    %v643 = vld [vmem:[%s2 + $0x518] sm:$0xff]
    %v644 = vld [vmem:[%s2 + $0x520] sm:$0xff]
    %v645 = vld [vmem:[%s2 + $0x528] sm:$0xff]
    %v646 = vld [vmem:[%s2 + $0x530] sm:$0xff]
    %v647 = vld [vmem:[%s2 + $0x538] sm:$0xff]
    %v648 = vld [vmem:[%s2 + $0x540] sm:$0xff]
    %v649 = vld [vmem:[%s2 + $0x548] sm:$0xff]
    %v650 = vld [vmem:[%s2 + $0x550] sm:$0xff]
    %v651 = vld [vmem:[%s2 + $0x558] sm:$0xff]
    %v652 = vld [vmem:[%s2 + $0x560] sm:$0xff]
    %v653 = vld [vmem:[%s2 + $0x568] sm:$0xff]
    %v654 = vld [vmem:[%s2 + $0x570] sm:$0xff]
    %v655 = vld [vmem:[%s2 + $0x578] sm:$0xff]
    %v656 = vld [vmem:[%s2 + $0x580] sm:$0xff]
    %v657 = vld [vmem:[%s2 + $0x588] sm:$0xff]
    %v658 = vld [vmem:[%s2 + $0x590] sm:$0xff]
    %v659 = vld [vmem:[%s2 + $0x598] sm:$0xff]
    %v660 = vld [vmem:[%s2 + $0x5a0] sm:$0xff]
    %v661 = vld [vmem:[%s2 + $0x5a8] sm:$0xff]
    %v662 = vld [vmem:[%s2 + $0x5b0] sm:$0xff]
    %v663 = vld [vmem:[%s2 + $0x5b8] sm:$0xff]
    %v664 = vld [vmem:[%s2 + $0x5c0] sm:$0xff]
    %v665 = vld [vmem:[%s2 + $0x5c8] sm:$0xff]
    %v666 = vld [vmem:[%s2 + $0x5d0] sm:$0xff]
    %v667 = vld [vmem:[%s2 + $0x5d8] sm:$0xff]
    %v668 = vld [vmem:[%s2 + $0x5e0] sm:$0xff]
    %v669 = vld [vmem:[%s2 + $0x5e8] sm:$0xff]
    %v670 = vld [vmem:[%s2 + $0x5f0] sm:$0xff]
    %v671 = vld [vmem:[%s2 + $0x5f8] sm:$0xff]
    %v672 = vld [vmem:[%s2 + $0x600] sm:$0xff]
    %v673 = vld [vmem:[%s2 + $0x608] sm:$0xff]
    %v674 = vld [vmem:[%s2 + $0x610] sm:$0xff]
    %v675 = vld [vmem:[%s2 + $0x618] sm:$0xff]
    %v676 = vld [vmem:[%s2 + $0x620] sm:$0xff]
    %v677 = vld [vmem:[%s2 + $0x628] sm:$0xff]
    %v678 = vld [vmem:[%s2 + $0x630] sm:$0xff]
    %v679 = vld [vmem:[%s2 + $0x638] sm:$0xff]
    %v680 = vld [vmem:[%s2 + $0x640] sm:$0xff]
    %v681 = vld [vmem:[%s2 + $0x648] sm:$0xff]
    %v682 = vld [vmem:[%s2 + $0x650] sm:$0xff]
    %v683 = vld [vmem:[%s2 + $0x658] sm:$0xff]
    %v684 = vld [vmem:[%s2 + $0x660] sm:$0xff]
    %v685 = vld [vmem:[%s2 + $0x668] sm:$0xff]
    %v686 = vld [vmem:[%s2 + $0x670] sm:$0xff]
    %v687 = vld [vmem:[%s2 + $0x678] sm:$0xff]
    %v688 = vld [vmem:[%s2 + $0x680] sm:$0xff]
    %v689 = vld [vmem:[%s2 + $0x688] sm:$0xff]
    %v690 = vld [vmem:[%s2 + $0x690] sm:$0xff]
    %v691 = vld [vmem:[%s2 + $0x698] sm:$0xff]
    %v692 = vld [vmem:[%s2 + $0x6a0] sm:$0xff]
    %v693 = vld [vmem:[%s2 + $0x6a8] sm:$0xff]
    %v694 = vld [vmem:[%s2 + $0x6b0] sm:$0xff]
    %v695 = vld [vmem:[%s2 + $0x6b8] sm:$0xff]
    %v696 = vld [vmem:[%s2 + $0x6c0] sm:$0xff]
    %v697 = vld [vmem:[%s2 + $0x6c8] sm:$0xff]
    %v698 = vld [vmem:[%s2 + $0x6d0] sm:$0xff]
    %v699 = vld [vmem:[%s2 + $0x6d8] sm:$0xff]
    %v700 = vld [vmem:[%s2 + $0x6e0] sm:$0xff]
    %v701 = vld [vmem:[%s2 + $0x6e8] sm:$0xff]
    %v702 = vld [vmem:[%s2 + $0x6f0] sm:$0xff]
    %v703 = vld [vmem:[%s2 + $0x6f8] sm:$0xff]
    %v704 = vld [vmem:[%s2 + $0x700] sm:$0xff]
    %v705 = vld [vmem:[%s2 + $0x708] sm:$0xff]
    %v706 = vld [vmem:[%s2 + $0x710] sm:$0xff]
    %v707 = vld [vmem:[%s2 + $0x718] sm:$0xff]
    %v708 = vld [vmem:[%s2 + $0x720] sm:$0xff]
    %v709 = vld [vmem:[%s2 + $0x728] sm:$0xff]
    %v710 = vld [vmem:[%s2 + $0x730] sm:$0xff]
    %v711 = vld [vmem:[%s2 + $0x738] sm:$0xff]
    %v712 = vld [vmem:[%s2 + $0x740] sm:$0xff]
    %v713 = vld [vmem:[%s2 + $0x748] sm:$0xff]
    %v714 = vld [vmem:[%s2 + $0x750] sm:$0xff]
    %v715 = vld [vmem:[%s2 + $0x758] sm:$0xff]
    %v716 = vld [vmem:[%s2 + $0x760] sm:$0xff]
    %v717 = vld [vmem:[%s2 + $0x768] sm:$0xff]
    %v718 = vld [vmem:[%s2 + $0x770] sm:$0xff]
    %v719 = vld [vmem:[%s2 + $0x778] sm:$0xff]
    %v720 = vld [vmem:[%s2 + $0x780] sm:$0xff]
    %v721 = vld [vmem:[%s2 + $0x788] sm:$0xff]
    %v722 = vld [vmem:[%s2 + $0x790] sm:$0xff]
    %v723 = vld [vmem:[%s2 + $0x798] sm:$0xff]
    %v724 = vld [vmem:[%s2 + $0x7a0] sm:$0xff]
    %v725 = vld [vmem:[%s2 + $0x7a8] sm:$0xff]
    %v726 = vld [vmem:[%s2 + $0x7b0] sm:$0xff]
    %v727 = vld [vmem:[%s2 + $0x7b8] sm:$0xff]
    %v728 = vld [vmem:[%s2 + $0x7c0] sm:$0xff]
    %v729 = vld [vmem:[%s2 + $0x7c8] sm:$0xff]
    %v730 = vld [vmem:[%s2 + $0x7d0] sm:$0xff]
    %v731 = vld [vmem:[%s2 + $0x7d8] sm:$0xff]
    %v732 = vld [vmem:[%s2 + $0x7e0] sm:$0xff]
    %v733 = vld [vmem:[%s2 + $0x7e8] sm:$0xff]
    %v734 = vld [vmem:[%s2 + $0x7f0] sm:$0xff]
    %v735 = vld [vmem:[%s2 + $0x7f8] sm:$0xff]
    %v736 = vld [vmem:[%s2 + $0x800] sm:$0xff]
    %v737 = vld [vmem:[%s2 + $0x808] sm:$0xff]
    %v738 = vld [vmem:[%s2 + $0x810] sm:$0xff]
    %v739 = vld [vmem:[%s2 + $0x818] sm:$0xff]
    %v740 = vld [vmem:[%s2 + $0x820] sm:$0xff]
    %v741 = vld [vmem:[%s2 + $0x828] sm:$0xff]
    %v742 = vld [vmem:[%s2 + $0x830] sm:$0xff]
    %v743 = vld [vmem:[%s2 + $0x838] sm:$0xff]
    %v744 = vld [vmem:[%s2 + $0x840] sm:$0xff]
    %v745 = vld [vmem:[%s2 + $0x848] sm:$0xff]
    %v746 = vld [vmem:[%s2 + $0x850] sm:$0xff]
    %v747 = vld [vmem:[%s2 + $0x858] sm:$0xff]
    %v748 = vld [vmem:[%s2 + $0x860] sm:$0xff]
    %v749 = vld [vmem:[%s2 + $0x868] sm:$0xff]
    %v750 = vld [vmem:[%s2 + $0x870] sm:$0xff]
    %v751 = vld [vmem:[%s2 + $0x878] sm:$0xff]
    %v752 = vld [vmem:[%s2 + $0x880] sm:$0xff]
    %v753 = vld [vmem:[%s2 + $0x888] sm:$0xff]
    %v754 = vld [vmem:[%s2 + $0x890] sm:$0xff]
    %v755 = vld [vmem:[%s2 + $0x898] sm:$0xff]
    %v756 = vld [vmem:[%s2 + $0x8a0] sm:$0xff]
    %v757 = vld [vmem:[%s2 + $0x8a8] sm:$0xff]
    %v758 = vld [vmem:[%s2 + $0x8b0] sm:$0xff]
    %v759 = vld [vmem:[%s2 + $0x8b8] sm:$0xff]
    %v760 = vld [vmem:[%s2 + $0x8c0] sm:$0xff]
    %v761 = vld [vmem:[%s2 + $0x8c8] sm:$0xff]
    %v762 = vld [vmem:[%s2 + $0x8d0] sm:$0xff]
    %v763 = vld [vmem:[%s2 + $0x8d8] sm:$0xff]
    %v764 = vld [vmem:[%s2 + $0x8e0] sm:$0xff]
    %v765 = vld [vmem:[%s2 + $0x8e8] sm:$0xff]
    %v766 = vld [vmem:[%s2 + $0x8f0] sm:$0xff]
    %v767 = vld [vmem:[%s2 + $0x8f8] sm:$0xff]
    %v768 = vld [vmem:[%s2 + $0x900] sm:$0xff]
    %v769 = vld [vmem:[%s2 + $0x908] sm:$0xff]
    %v770 = vld [vmem:[%s2 + $0x910] sm:$0xff]
    %v771 = vld [vmem:[%s2 + $0x918] sm:$0xff]
    %v772 = vld [vmem:[%s2 + $0x920] sm:$0xff]
    %v773 = vld [vmem:[%s2 + $0x928] sm:$0xff]
    %v774 = vld [vmem:[%s2 + $0x930] sm:$0xff]
    %v775 = vld [vmem:[%s2 + $0x938] sm:$0xff]
    %v776 = vld [vmem:[%s2 + $0x940] sm:$0xff]
    %v777 = vld [vmem:[%s2 + $0x948] sm:$0xff]
    %v778 = vld [vmem:[%s2 + $0x950] sm:$0xff]
    %v779 = vld [vmem:[%s2 + $0x958] sm:$0xff]
    %v780 = vld [vmem:[%s2 + $0x960] sm:$0xff]
    %v781 = vld [vmem:[%s2 + $0x968] sm:$0xff]
    %v782 = vld [vmem:[%s2 + $0x970] sm:$0xff]
    %v783 = vld [vmem:[%s2 + $0x978] sm:$0xff]
    %v784 = vld [vmem:[%s2 + $0x980] sm:$0xff]
    %v785 = vld [vmem:[%s2 + $0x988] sm:$0xff]
    %v786 = vld [vmem:[%s2 + $0x990] sm:$0xff]
    %v787 = vld [vmem:[%s2 + $0x998] sm:$0xff]
    %v788 = vld [vmem:[%s2 + $0x9a0] sm:$0xff]
    %v789 = vld [vmem:[%s2 + $0x9a8] sm:$0xff]
    %v790 = vld [vmem:[%s2 + $0x9b0] sm:$0xff]
    %v791 = vld [vmem:[%s2 + $0x9b8] sm:$0xff]
    %v792 = vld [vmem:[%s2 + $0x9c0] sm:$0xff]
    %v793 = vld [vmem:[%s2 + $0x9c8] sm:$0xff]
    %v794 = vld [vmem:[%s2 + $0x9d0] sm:$0xff]
    %v795 = vld [vmem:[%s2 + $0x9d8] sm:$0xff]
    %v796 = vld [vmem:[%s2 + $0x9e0] sm:$0xff]
    %v797 = vld [vmem:[%s2 + $0x9e8] sm:$0xff]
    %v798 = vld [vmem:[%s2 + $0x9f0] sm:$0xff]
    %v799 = vld [vmem:[%s2 + $0x9f8] sm:$0xff]
    %v800 = vld [vmem:[%s2 + $0xa00] sm:$0xff]
    %v801 = vld [vmem:[%s2 + $0xa08] sm:$0xff]
    %v802 = vld [vmem:[%s2 + $0xa10] sm:$0xff]
    %v803 = vld [vmem:[%s2 + $0xa18] sm:$0xff]
    %v804 = vld [vmem:[%s2 + $0xa20] sm:$0xff]
    %v805 = vld [vmem:[%s2 + $0xa28] sm:$0xff]
    %v806 = vld [vmem:[%s2 + $0xa30] sm:$0xff]
    %v807 = vld [vmem:[%s2 + $0xa38] sm:$0xff]
    %v808 = vld [vmem:[%s2 + $0xa40] sm:$0xff]
    %v809 = vld [vmem:[%s2 + $0xa48] sm:$0xff]
    %v810 = vld [vmem:[%s2 + $0xa50] sm:$0xff]
    %v811 = vld [vmem:[%s2 + $0xa58] sm:$0xff]
    %v812 = vld [vmem:[%s2 + $0xa60] sm:$0xff]
    %v813 = vld [vmem:[%s2 + $0xa68] sm:$0xff]
    %v814 = vld [vmem:[%s2 + $0xa70] sm:$0xff]
    %v815 = vld [vmem:[%s2 + $0xa78] sm:$0xff]
    %v816 = vld [vmem:[%s2 + $0xa80] sm:$0xff]
    %v817 = vld [vmem:[%s2 + $0xa88] sm:$0xff]
    %v818 = vld [vmem:[%s2 + $0xa90] sm:$0xff]
    %v819 = vld [vmem:[%s2 + $0xa98] sm:$0xff]
    %v820 = vld [vmem:[%s2 + $0xaa0] sm:$0xff]
    %v821 = vld [vmem:[%s2 + $0xaa8] sm:$0xff]
    %v822 = vld [vmem:[%s2 + $0xab0] sm:$0xff]
    %v823 = vld [vmem:[%s2 + $0xab8] sm:$0xff]
    %v824 = vld [vmem:[%s2 + $0xac0] sm:$0xff]
    %v825 = vld [vmem:[%s2 + $0xac8] sm:$0xff]
    %v826 = vld [vmem:[%s2 + $0xad0] sm:$0xff]
    %v827 = vld [vmem:[%s2 + $0xad8] sm:$0xff]
    %v828 = vld [vmem:[%s2 + $0xae0] sm:$0xff]
    %v829 = vld [vmem:[%s2 + $0xae8] sm:$0xff]
    %v830 = vld [vmem:[%s2 + $0xaf0] sm:$0xff]
    %v831 = vld [vmem:[%s2 + $0xaf8] sm:$0xff]
    %v832 = vld [vmem:[%s2 + $0xb00] sm:$0xff]
    %v833 = vld [vmem:[%s2 + $0xb08] sm:$0xff]
    %v834 = vld [vmem:[%s2 + $0xb10] sm:$0xff]
    %v835 = vld [vmem:[%s2 + $0xb18] sm:$0xff]
    %v836 = vld [vmem:[%s2 + $0xb20] sm:$0xff]
    %v837 = vld [vmem:[%s2 + $0xb28] sm:$0xff]
    %v838 = vld [vmem:[%s2 + $0xb30] sm:$0xff]
    %v839 = vld [vmem:[%s2 + $0xb38] sm:$0xff]
    %v840 = vld [vmem:[%s2 + $0xb40] sm:$0xff]
    %v841 = vld [vmem:[%s2 + $0xb48] sm:$0xff]
    %v842 = vld [vmem:[%s2 + $0xb50] sm:$0xff]
    %v843 = vld [vmem:[%s2 + $0xb58] sm:$0xff]
    %v844 = vld [vmem:[%s2 + $0xb60] sm:$0xff]
    %v845 = vld [vmem:[%s2 + $0xb68] sm:$0xff]
    %v846 = vld [vmem:[%s2 + $0xb70] sm:$0xff]
    %v847 = vld [vmem:[%s2 + $0xb78] sm:$0xff]
    %v848 = vld [vmem:[%s2 + $0xb80] sm:$0xff]
    %v849 = vld [vmem:[%s2 + $0xb88] sm:$0xff]
    %v850 = vld [vmem:[%s2 + $0xb90] sm:$0xff]
    %v851 = vld [vmem:[%s2 + $0xb98] sm:$0xff]
    %v852 = vld [vmem:[%s2 + $0xba0] sm:$0xff]
    %v853 = vld [vmem:[%s2 + $0xba8] sm:$0xff]
    %v854 = vld [vmem:[%s2 + $0xbb0] sm:$0xff]
    %v855 = vld [vmem:[%s2 + $0xbb8] sm:$0xff]
    %v856 = vld [vmem:[%s2 + $0xbc0] sm:$0xff]
    %v857 = vld [vmem:[%s2 + $0xbc8] sm:$0xff]
    %v858 = vld [vmem:[%s2 + $0xbd0] sm:$0xff]
    %v859 = vld [vmem:[%s2 + $0xbd8] sm:$0xff]
    %v860 = vld [vmem:[%s2 + $0xbe0] sm:$0xff]
    %v861 = vld [vmem:[%s2 + $0xbe8] sm:$0xff]
    %v862 = vld [vmem:[%s2 + $0xbf0] sm:$0xff]
    %v863 = vld [vmem:[%s2 + $0xbf8] sm:$0xff]
    %v864 = vld [vmem:[%s2 + $0xc00] sm:$0xff]
    %v865 = vld [vmem:[%s2 + $0xc08] sm:$0xff]
    %v866 = vld [vmem:[%s2 + $0xc10] sm:$0xff]
    %v867 = vld [vmem:[%s2 + $0xc18] sm:$0xff]
    %v868 = vld [vmem:[%s2 + $0xc20] sm:$0xff]
    %v869 = vld [vmem:[%s2 + $0xc28] sm:$0xff]
    %v870 = vld [vmem:[%s2 + $0xc30] sm:$0xff]
    %v871 = vld [vmem:[%s2 + $0xc38] sm:$0xff]
    %v872 = vld [vmem:[%s2 + $0xc40] sm:$0xff]
    %v873 = vld [vmem:[%s2 + $0xc48] sm:$0xff]
    %v874 = vld [vmem:[%s2 + $0xc50] sm:$0xff]
    %v875 = vld [vmem:[%s2 + $0xc58] sm:$0xff]
    %v876 = vld [vmem:[%s2 + $0xc60] sm:$0xff]
    %v877 = vld [vmem:[%s2 + $0xc68] sm:$0xff]
    %v878 = vld [vmem:[%s2 + $0xc70] sm:$0xff]
    %v879 = vld [vmem:[%s2 + $0xc78] sm:$0xff]
    %v880 = vld [vmem:[%s2 + $0xc80] sm:$0xff]
    %v881 = vld [vmem:[%s2 + $0xc88] sm:$0xff]
    %v882 = vld [vmem:[%s2 + $0xc90] sm:$0xff]
    %v883 = vld [vmem:[%s2 + $0xc98] sm:$0xff]
    %v884 = vld [vmem:[%s2 + $0xca0] sm:$0xff]
    %v885 = vld [vmem:[%s2 + $0xca8] sm:$0xff]
    %v886 = vld [vmem:[%s2 + $0xcb0] sm:$0xff]
    %v887 = vld [vmem:[%s2 + $0xcb8] sm:$0xff]
    %v888 = vld [vmem:[%s2 + $0xcc0] sm:$0xff]
    %v889 = vld [vmem:[%s2 + $0xcc8] sm:$0xff]
    %v890 = vld [vmem:[%s2 + $0xcd0] sm:$0xff]
    %v891 = vld [vmem:[%s2 + $0xcd8] sm:$0xff]
    %v892 = vld [vmem:[%s2 + $0xce0] sm:$0xff]
    %v893 = vld [vmem:[%s2 + $0xce8] sm:$0xff]
    %v894 = vld [vmem:[%s2 + $0xcf0] sm:$0xff]
    %v895 = vld [vmem:[%s2 + $0xcf8] sm:$0xff]
    %v896 = vld [vmem:[%s2 + $0xd00] sm:$0xff]
    %v897 = vld [vmem:[%s2 + $0xd08] sm:$0xff]
    %v898 = vld [vmem:[%s2 + $0xd10] sm:$0xff]
    %v899 = vld [vmem:[%s2 + $0xd18] sm:$0xff]
    %v900 = vld [vmem:[%s2 + $0xd20] sm:$0xff]
    %v901 = vld [vmem:[%s2 + $0xd28] sm:$0xff]
    %v902 = vld [vmem:[%s2 + $0xd30] sm:$0xff]
    %v903 = vld [vmem:[%s2 + $0xd38] sm:$0xff]
    %v904 = vld [vmem:[%s2 + $0xd40] sm:$0xff]
    %v905 = vld [vmem:[%s2 + $0xd48] sm:$0xff]
    %v906 = vld [vmem:[%s2 + $0xd50] sm:$0xff]
    %v907 = vld [vmem:[%s2 + $0xd58] sm:$0xff]
    %v908 = vld [vmem:[%s2 + $0xd60] sm:$0xff]
    %v909 = vld [vmem:[%s2 + $0xd68] sm:$0xff]
    %v910 = vld [vmem:[%s2 + $0xd70] sm:$0xff]
    %v911 = vld [vmem:[%s2 + $0xd78] sm:$0xff]
    %v912 = vld [vmem:[%s2 + $0xd80] sm:$0xff]
    %v913 = vld [vmem:[%s2 + $0xd88] sm:$0xff]
    %v914 = vld [vmem:[%s2 + $0xd90] sm:$0xff]
    %v915 = vld [vmem:[%s2 + $0xd98] sm:$0xff]
    %v916 = vld [vmem:[%s2 + $0xda0] sm:$0xff]
    %v917 = vld [vmem:[%s2 + $0xda8] sm:$0xff]
    %v918 = vld [vmem:[%s2 + $0xdb0] sm:$0xff]
    %v919 = vld [vmem:[%s2 + $0xdb8] sm:$0xff]
    %v920 = vld [vmem:[%s2 + $0xdc0] sm:$0xff]
    %v921 = vld [vmem:[%s2 + $0xdc8] sm:$0xff]
    %v922 = vld [vmem:[%s2 + $0xdd0] sm:$0xff]
    %v923 = vld [vmem:[%s2 + $0xdd8] sm:$0xff]
    %v924 = vld [vmem:[%s2 + $0xde0] sm:$0xff]
    %v925 = vld [vmem:[%s2 + $0xde8] sm:$0xff]
    %v926 = vld [vmem:[%s2 + $0xdf0] sm:$0xff]
    %v927 = vld [vmem:[%s2 + $0xdf8] sm:$0xff]
    %v928 = vld [vmem:[%s2 + $0xe00] sm:$0xff]
    %v929 = vld [vmem:[%s2 + $0xe08] sm:$0xff]
    %v930 = vld [vmem:[%s2 + $0xe10] sm:$0xff]
    %v931 = vld [vmem:[%s2 + $0xe18] sm:$0xff]
    %v932 = vld [vmem:[%s2 + $0xe20] sm:$0xff]
    %v933 = vld [vmem:[%s2 + $0xe28] sm:$0xff]
    %v934 = vld [vmem:[%s2 + $0xe30] sm:$0xff]
    %v935 = vld [vmem:[%s2 + $0xe38] sm:$0xff]
    %v936 = vld [vmem:[%s2 + $0xe40] sm:$0xff]
    %v937 = vld [vmem:[%s2 + $0xe48] sm:$0xff]
    %v938 = vld [vmem:[%s2 + $0xe50] sm:$0xff]
    %v939 = vld [vmem:[%s2 + $0xe58] sm:$0xff]
    %v940 = vld [vmem:[%s2 + $0xe60] sm:$0xff]
    %v941 = vld [vmem:[%s2 + $0xe68] sm:$0xff]
    %v942 = vld [vmem:[%s2 + $0xe70] sm:$0xff]
    %v943 = vld [vmem:[%s2 + $0xe78] sm:$0xff]
    %v944 = vld [vmem:[%s2 + $0xe80] sm:$0xff]
    %v945 = vld [vmem:[%s2 + $0xe88] sm:$0xff]
    %v946 = vld [vmem:[%s2 + $0xe90] sm:$0xff]
    %v947 = vld [vmem:[%s2 + $0xe98] sm:$0xff]
    %v948 = vld [vmem:[%s2 + $0xea0] sm:$0xff]
    %v949 = vld [vmem:[%s2 + $0xea8] sm:$0xff]
    %v950 = vld [vmem:[%s2 + $0xeb0] sm:$0xff]
    %v951 = vld [vmem:[%s2 + $0xeb8] sm:$0xff]
    %v952 = vld [vmem:[%s2 + $0xec0] sm:$0xff]
    %v953 = vld [vmem:[%s2 + $0xec8] sm:$0xff]
    %v954 = vld [vmem:[%s2 + $0xed0] sm:$0xff]
    %v955 = vld [vmem:[%s2 + $0xed8] sm:$0xff]
    %v956 = vld [vmem:[%s2 + $0xee0] sm:$0xff]
    %v957 = vld [vmem:[%s2 + $0xee8] sm:$0xff]
    %v958 = vld [vmem:[%s2 + $0xef0] sm:$0xff]
    %v959 = vld [vmem:[%s2 + $0xef8] sm:$0xff]
    %v960 = vld [vmem:[%s2 + $0xf00] sm:$0xff]
    %v961 = vld [vmem:[%s2 + $0xf08] sm:$0xff]
    %v962 = vld [vmem:[%s2 + $0xf10] sm:$0xff]
    %v963 = vld [vmem:[%s2 + $0xf18] sm:$0xff]
    %v964 = vld [vmem:[%s2 + $0xf20] sm:$0xff]
    %v965 = vld [vmem:[%s2 + $0xf28] sm:$0xff]
    %v966 = vld [vmem:[%s2 + $0xf30] sm:$0xff]
    %v967 = vld [vmem:[%s2 + $0xf38] sm:$0xff]
    %v968 = vld [vmem:[%s2 + $0xf40] sm:$0xff]
    %v969 = vld [vmem:[%s2 + $0xf48] sm:$0xff]
    %v970 = vld [vmem:[%s2 + $0xf50] sm:$0xff]
    %v971 = vld [vmem:[%s2 + $0xf58] sm:$0xff]
    %v972 = vld [vmem:[%s2 + $0xf60] sm:$0xff]
    %v973 = vld [vmem:[%s2 + $0xf68] sm:$0xff]
    %v974 = vld [vmem:[%s2 + $0xf70] sm:$0xff]
    %v975 = vld [vmem:[%s2 + $0xf78] sm:$0xff]
    %v976 = vld [vmem:[%s2 + $0xf80] sm:$0xff]
    %v977 = vld [vmem:[%s2 + $0xf88] sm:$0xff]
    %v978 = vld [vmem:[%s2 + $0xf90] sm:$0xff]
    %v979 = vld [vmem:[%s2 + $0xf98] sm:$0xff]
    %v980 = vld [vmem:[%s2 + $0xfa0] sm:$0xff]
    %v981 = vld [vmem:[%s2 + $0xfa8] sm:$0xff]
    %v982 = vld [vmem:[%s2 + $0xfb0] sm:$0xff]
    %v983 = vld [vmem:[%s2 + $0xfb8] sm:$0xff]
    %v984 = vld [vmem:[%s2 + $0xfc0] sm:$0xff]
    %v985 = vld [vmem:[%s2 + $0xfc8] sm:$0xff]
    %v986 = vld [vmem:[%s2 + $0xfd0] sm:$0xff]
    %v987 = vld [vmem:[%s2 + $0xfd8] sm:$0xff]
    %v988 = vld [vmem:[%s2 + $0xfe0] sm:$0xff]
    %v989 = vld [vmem:[%s2 + $0xfe8] sm:$0xff]
    %v990 = vld [vmem:[%s2 + $0xff0] sm:$0xff]
    %v991 = vld [vmem:[%s2 + $0xff8] sm:$0xff]
    %v992 = vld [vmem:[%s3] sm:$0xf]
    %v994 = vperm.slane %v992, 0
    %v995 = vperm.slane %v992, 1
    %v996 = vperm.slane %v992, 2
    %v997 = vperm.slane %v992, 3
    %v1034 = vunpack.c.l.b16 %v448
    %v1035 = vunpack.c.l.b16 %v449
    %v1036 = vunpack.c.l.b16 %v450
    %v1037 = vunpack.c.l.b16 %v451
    %v1038 = vunpack.c.l.b16 %v452
    %v1039 = vunpack.c.l.b16 %v453
    %v1040 = vunpack.c.l.b16 %v454
    %v1041 = vunpack.c.l.b16 %v455
    %v1042 = vunpack.c.l.b16 %v456
    %v1043 = vunpack.c.l.b16 %v457
    %v1044 = vunpack.c.l.b16 %v458
    %v1045 = vunpack.c.l.b16 %v459
    %v1046 = vunpack.c.l.b16 %v460
    %v1047 = vunpack.c.l.b16 %v461
    %v1048 = vunpack.c.l.b16 %v462
    %v1049 = vunpack.c.l.b16 %v463
    %v1050 = vunpack.c.l.b16 %v464
    %v1051 = vunpack.c.l.b16 %v465
    %v1052 = vunpack.c.l.b16 %v466
    %v1053 = vunpack.c.l.b16 %v467
    %v1054 = vunpack.c.l.b16 %v468
    %v1055 = vunpack.c.l.b16 %v469
    %v1056 = vunpack.c.l.b16 %v470
    %v1057 = vunpack.c.l.b16 %v471
    %v1058 = vunpack.c.l.b16 %v472
    %v1059 = vunpack.c.l.b16 %v473
    %v1060 = vunpack.c.l.b16 %v474
    %v1061 = vunpack.c.l.b16 %v475
    %v1062 = vunpack.c.l.b16 %v476
    %v1063 = vunpack.c.l.b16 %v477
    %v1064 = vunpack.c.l.b16 %v478
    %v1065 = vunpack.c.l.b16 %v479
    %v1066 = vsel %vm173, %v1050, %v1034
    %v1067 = vsel %vm173, %v1051, %v1035
    %v1068 = vsel %vm173, %v1052, %v1036
    %v1069 = vsel %vm173, %v1053, %v1037
    %v1070 = vsel %vm173, %v1054, %v1038
    %v1071 = vsel %vm173, %v1055, %v1039
    %v1072 = vsel %vm173, %v1056, %v1040
    %v1073 = vsel %vm173, %v1057, %v1041
    %v1074 = vsel %vm173, %v1058, %v1042
    %v1075 = vsel %vm173, %v1059, %v1043
    %v1076 = vsel %vm173, %v1060, %v1044
    %v1077 = vsel %vm173, %v1061, %v1045
    %v1078 = vsel %vm173, %v1062, %v1046
    %v1079 = vsel %vm173, %v1063, %v1047
    %v1080 = vsel %vm173, %v1064, %v1048
    %v1081 = vsel %vm173, %v1065, %v1049
    %v1082 = vpack.c.b16 %v1066, %v1066
    %v1083 = vpack.c.b16 %v1067, %v1067
    %v1084 = vpack.c.b16 %v1068, %v1068
    %v1085 = vpack.c.b16 %v1069, %v1069
    %v1086 = vpack.c.b16 %v1070, %v1070
    %v1087 = vpack.c.b16 %v1071, %v1071
    %v1088 = vpack.c.b16 %v1072, %v1072
    %v1089 = vpack.c.b16 %v1073, %v1073
    %v1090 = vpack.c.b16 %v1074, %v1074
    %v1091 = vpack.c.b16 %v1075, %v1075
    %v1092 = vpack.c.b16 %v1076, %v1076
    %v1093 = vpack.c.b16 %v1077, %v1077
    %v1094 = vpack.c.b16 %v1078, %v1078
    %v1095 = vpack.c.b16 %v1079, %v1079
    %v1096 = vpack.c.b16 %v1080, %v1080
    %v1097 = vpack.c.b16 %v1081, %v1081
    %v1626 = vunpack.c.l.b16 %v480
    %v1627 = vunpack.c.h.b16 %v480
    %v1628 = vunpack.c.l.b16 %v481
    %v1629 = vunpack.c.h.b16 %v481
    %v1630 = vunpack.c.l.b16 %v482
    %v1631 = vunpack.c.h.b16 %v482
    %v1632 = vunpack.c.l.b16 %v483
    %v1633 = vunpack.c.h.b16 %v483
    %v1634 = vunpack.c.l.b16 %v484
    %v1635 = vunpack.c.h.b16 %v484
    %v1636 = vunpack.c.l.b16 %v485
    %v1637 = vunpack.c.h.b16 %v485
    %v1638 = vunpack.c.l.b16 %v486
    %v1639 = vunpack.c.h.b16 %v486
    %v1640 = vunpack.c.l.b16 %v487
    %v1641 = vunpack.c.h.b16 %v487
    %v1642 = vunpack.c.l.b16 %v488
    %v1643 = vunpack.c.h.b16 %v488
    %v1644 = vunpack.c.l.b16 %v489
    %v1645 = vunpack.c.h.b16 %v489
    %v1646 = vunpack.c.l.b16 %v490
    %v1647 = vunpack.c.h.b16 %v490
    %v1648 = vunpack.c.l.b16 %v491
    %v1649 = vunpack.c.h.b16 %v491
    %v1650 = vunpack.c.l.b16 %v492
    %v1651 = vunpack.c.h.b16 %v492
    %v1652 = vunpack.c.l.b16 %v493
    %v1653 = vunpack.c.h.b16 %v493
    %v1654 = vunpack.c.l.b16 %v494
    %v1655 = vunpack.c.h.b16 %v494
    %v1656 = vunpack.c.l.b16 %v495
    %v1657 = vunpack.c.h.b16 %v495
    %v1658 = vunpack.c.l.b16 %v496
    %v1659 = vunpack.c.h.b16 %v496
    %v1660 = vunpack.c.l.b16 %v497
    %v1661 = vunpack.c.h.b16 %v497
    %v1662 = vunpack.c.l.b16 %v498
    %v1663 = vunpack.c.h.b16 %v498
    %v1664 = vunpack.c.l.b16 %v499
    %v1665 = vunpack.c.h.b16 %v499
    %v1666 = vunpack.c.l.b16 %v500
    %v1667 = vunpack.c.h.b16 %v500
    %v1668 = vunpack.c.l.b16 %v501
    %v1669 = vunpack.c.h.b16 %v501
    %v1670 = vunpack.c.l.b16 %v502
    %v1671 = vunpack.c.h.b16 %v502
    %v1672 = vunpack.c.l.b16 %v503
    %v1673 = vunpack.c.h.b16 %v503
    %v1674 = vunpack.c.l.b16 %v504
    %v1675 = vunpack.c.h.b16 %v504
    %v1676 = vunpack.c.l.b16 %v505
    %v1677 = vunpack.c.h.b16 %v505
    %v1678 = vunpack.c.l.b16 %v506
    %v1679 = vunpack.c.h.b16 %v506
    %v1680 = vunpack.c.l.b16 %v507
    %v1681 = vunpack.c.h.b16 %v507
    %v1682 = vunpack.c.l.b16 %v508
    %v1683 = vunpack.c.h.b16 %v508
    %v1684 = vunpack.c.l.b16 %v509
    %v1685 = vunpack.c.h.b16 %v509
    %v1686 = vunpack.c.l.b16 %v510
    %v1687 = vunpack.c.h.b16 %v510
    %v1688 = vunpack.c.l.b16 %v511
    %v1689 = vunpack.c.h.b16 %v511
    %v1690 = vunpack.c.l.b16 %v512
    %v1691 = vunpack.c.h.b16 %v512
    %v1692 = vunpack.c.l.b16 %v513
    %v1693 = vunpack.c.h.b16 %v513
    %v1694 = vunpack.c.l.b16 %v514
    %v1695 = vunpack.c.h.b16 %v514
    %v1696 = vunpack.c.l.b16 %v515
    %v1697 = vunpack.c.h.b16 %v515
    %v1698 = vunpack.c.l.b16 %v516
    %v1699 = vunpack.c.h.b16 %v516
    %v1700 = vunpack.c.l.b16 %v517
    %v1701 = vunpack.c.h.b16 %v517
    %v1702 = vunpack.c.l.b16 %v518
    %v1703 = vunpack.c.h.b16 %v518
    %v1704 = vunpack.c.l.b16 %v519
    %v1705 = vunpack.c.h.b16 %v519
    %v1706 = vunpack.c.l.b16 %v520
    %v1707 = vunpack.c.h.b16 %v520
    %v1708 = vunpack.c.l.b16 %v521
    %v1709 = vunpack.c.h.b16 %v521
    %v1710 = vunpack.c.l.b16 %v522
    %v1711 = vunpack.c.h.b16 %v522
    %v1712 = vunpack.c.l.b16 %v523
    %v1713 = vunpack.c.h.b16 %v523
    %v1714 = vunpack.c.l.b16 %v524
    %v1715 = vunpack.c.h.b16 %v524
    %v1716 = vunpack.c.l.b16 %v525
    %v1717 = vunpack.c.h.b16 %v525
    %v1718 = vunpack.c.l.b16 %v526
    %v1719 = vunpack.c.h.b16 %v526
    %v1720 = vunpack.c.l.b16 %v527
    %v1721 = vunpack.c.h.b16 %v527
    %v1722 = vunpack.c.l.b16 %v528
    %v1723 = vunpack.c.h.b16 %v528
    %v1724 = vunpack.c.l.b16 %v529
    %v1725 = vunpack.c.h.b16 %v529
    %v1726 = vunpack.c.l.b16 %v530
    %v1727 = vunpack.c.h.b16 %v530
    %v1728 = vunpack.c.l.b16 %v531
    %v1729 = vunpack.c.h.b16 %v531
    %v1730 = vunpack.c.l.b16 %v532
    %v1731 = vunpack.c.h.b16 %v532
    %v1732 = vunpack.c.l.b16 %v533
    %v1733 = vunpack.c.h.b16 %v533
    %v1734 = vunpack.c.l.b16 %v534
    %v1735 = vunpack.c.h.b16 %v534
    %v1736 = vunpack.c.l.b16 %v535
    %v1737 = vunpack.c.h.b16 %v535
    %v1738 = vunpack.c.l.b16 %v536
    %v1739 = vunpack.c.h.b16 %v536
    %v1740 = vunpack.c.l.b16 %v537
    %v1741 = vunpack.c.h.b16 %v537
    %v1742 = vunpack.c.l.b16 %v538
    %v1743 = vunpack.c.h.b16 %v538
    %v1744 = vunpack.c.l.b16 %v539
    %v1745 = vunpack.c.h.b16 %v539
    %v1746 = vunpack.c.l.b16 %v540
    %v1747 = vunpack.c.h.b16 %v540
    %v1748 = vunpack.c.l.b16 %v541
    %v1749 = vunpack.c.h.b16 %v541
    %v1750 = vunpack.c.l.b16 %v542
    %v1751 = vunpack.c.h.b16 %v542
    %v1752 = vunpack.c.l.b16 %v543
    %v1753 = vunpack.c.h.b16 %v543
    %v1754 = vunpack.c.l.b16 %v544
    %v1755 = vunpack.c.h.b16 %v544
    %v1756 = vunpack.c.l.b16 %v545
    %v1757 = vunpack.c.h.b16 %v545
    %v1758 = vunpack.c.l.b16 %v546
    %v1759 = vunpack.c.h.b16 %v546
    %v1760 = vunpack.c.l.b16 %v547
    %v1761 = vunpack.c.h.b16 %v547
    %v1762 = vunpack.c.l.b16 %v548
    %v1763 = vunpack.c.h.b16 %v548
    %v1764 = vunpack.c.l.b16 %v549
    %v1765 = vunpack.c.h.b16 %v549
    %v1766 = vunpack.c.l.b16 %v550
    %v1767 = vunpack.c.h.b16 %v550
    %v1768 = vunpack.c.l.b16 %v551
    %v1769 = vunpack.c.h.b16 %v551
    %v1770 = vunpack.c.l.b16 %v552
    %v1771 = vunpack.c.h.b16 %v552
    %v1772 = vunpack.c.l.b16 %v553
    %v1773 = vunpack.c.h.b16 %v553
    %v1774 = vunpack.c.l.b16 %v554
    %v1775 = vunpack.c.h.b16 %v554
    %v1776 = vunpack.c.l.b16 %v555
    %v1777 = vunpack.c.h.b16 %v555
    %v1778 = vunpack.c.l.b16 %v556
    %v1779 = vunpack.c.h.b16 %v556
    %v1780 = vunpack.c.l.b16 %v557
    %v1781 = vunpack.c.h.b16 %v557
    %v1782 = vunpack.c.l.b16 %v558
    %v1783 = vunpack.c.h.b16 %v558
    %v1784 = vunpack.c.l.b16 %v559
    %v1785 = vunpack.c.h.b16 %v559
    %v1786 = vunpack.c.l.b16 %v560
    %v1787 = vunpack.c.h.b16 %v560
    %v1788 = vunpack.c.l.b16 %v561
    %v1789 = vunpack.c.h.b16 %v561
    %v1790 = vunpack.c.l.b16 %v562
    %v1791 = vunpack.c.h.b16 %v562
    %v1792 = vunpack.c.l.b16 %v563
    %v1793 = vunpack.c.h.b16 %v563
    %v1794 = vunpack.c.l.b16 %v564
    %v1795 = vunpack.c.h.b16 %v564
    %v1796 = vunpack.c.l.b16 %v565
    %v1797 = vunpack.c.h.b16 %v565
    %v1798 = vunpack.c.l.b16 %v566
    %v1799 = vunpack.c.h.b16 %v566
    %v1800 = vunpack.c.l.b16 %v567
    %v1801 = vunpack.c.h.b16 %v567
    %v1802 = vunpack.c.l.b16 %v568
    %v1803 = vunpack.c.h.b16 %v568
    %v1804 = vunpack.c.l.b16 %v569
    %v1805 = vunpack.c.h.b16 %v569
    %v1806 = vunpack.c.l.b16 %v570
    %v1807 = vunpack.c.h.b16 %v570
    %v1808 = vunpack.c.l.b16 %v571
    %v1809 = vunpack.c.h.b16 %v571
    %v1810 = vunpack.c.l.b16 %v572
    %v1811 = vunpack.c.h.b16 %v572
    %v1812 = vunpack.c.l.b16 %v573
    %v1813 = vunpack.c.h.b16 %v573
    %v1814 = vunpack.c.l.b16 %v574
    %v1815 = vunpack.c.h.b16 %v574
    %v1816 = vunpack.c.l.b16 %v575
    %v1817 = vunpack.c.h.b16 %v575
    %v1818 = vunpack.c.l.b16 %v576
    %v1819 = vunpack.c.h.b16 %v576
    %v1820 = vunpack.c.l.b16 %v577
    %v1821 = vunpack.c.h.b16 %v577
    %v1822 = vunpack.c.l.b16 %v578
    %v1823 = vunpack.c.h.b16 %v578
    %v1824 = vunpack.c.l.b16 %v579
    %v1825 = vunpack.c.h.b16 %v579
    %v1826 = vunpack.c.l.b16 %v580
    %v1827 = vunpack.c.h.b16 %v580
    %v1828 = vunpack.c.l.b16 %v581
    %v1829 = vunpack.c.h.b16 %v581
    %v1830 = vunpack.c.l.b16 %v582
    %v1831 = vunpack.c.h.b16 %v582
    %v1832 = vunpack.c.l.b16 %v583
    %v1833 = vunpack.c.h.b16 %v583
    %v1834 = vunpack.c.l.b16 %v584
    %v1835 = vunpack.c.h.b16 %v584
    %v1836 = vunpack.c.l.b16 %v585
    %v1837 = vunpack.c.h.b16 %v585
    %v1838 = vunpack.c.l.b16 %v586
    %v1839 = vunpack.c.h.b16 %v586
    %v1840 = vunpack.c.l.b16 %v587
    %v1841 = vunpack.c.h.b16 %v587
    %v1842 = vunpack.c.l.b16 %v588
    %v1843 = vunpack.c.h.b16 %v588
    %v1844 = vunpack.c.l.b16 %v589
    %v1845 = vunpack.c.h.b16 %v589
    %v1846 = vunpack.c.l.b16 %v590
    %v1847 = vunpack.c.h.b16 %v590
    %v1848 = vunpack.c.l.b16 %v591
    %v1849 = vunpack.c.h.b16 %v591
    %v1850 = vunpack.c.l.b16 %v592
    %v1851 = vunpack.c.h.b16 %v592
    %v1852 = vunpack.c.l.b16 %v593
    %v1853 = vunpack.c.h.b16 %v593
    %v1854 = vunpack.c.l.b16 %v594
    %v1855 = vunpack.c.h.b16 %v594
    %v1856 = vunpack.c.l.b16 %v595
    %v1857 = vunpack.c.h.b16 %v595
    %v1858 = vunpack.c.l.b16 %v596
    %v1859 = vunpack.c.h.b16 %v596
    %v1860 = vunpack.c.l.b16 %v597
    %v1861 = vunpack.c.h.b16 %v597
    %v1862 = vunpack.c.l.b16 %v598
    %v1863 = vunpack.c.h.b16 %v598
    %v1864 = vunpack.c.l.b16 %v599
    %v1865 = vunpack.c.h.b16 %v599
    %v1866 = vunpack.c.l.b16 %v600
    %v1867 = vunpack.c.h.b16 %v600
    %v1868 = vunpack.c.l.b16 %v601
    %v1869 = vunpack.c.h.b16 %v601
    %v1870 = vunpack.c.l.b16 %v602
    %v1871 = vunpack.c.h.b16 %v602
    %v1872 = vunpack.c.l.b16 %v603
    %v1873 = vunpack.c.h.b16 %v603
    %v1874 = vunpack.c.l.b16 %v604
    %v1875 = vunpack.c.h.b16 %v604
    %v1876 = vunpack.c.l.b16 %v605
    %v1877 = vunpack.c.h.b16 %v605
    %v1878 = vunpack.c.l.b16 %v606
    %v1879 = vunpack.c.h.b16 %v606
    %v1880 = vunpack.c.l.b16 %v607
    %v1881 = vunpack.c.h.b16 %v607
    %v1882 = vunpack.c.l.b16 %v608
    %v1883 = vunpack.c.h.b16 %v608
    %v1884 = vunpack.c.l.b16 %v609
    %v1885 = vunpack.c.h.b16 %v609
    %v1886 = vunpack.c.l.b16 %v610
    %v1887 = vunpack.c.h.b16 %v610
    %v1888 = vunpack.c.l.b16 %v611
    %v1889 = vunpack.c.h.b16 %v611
    %v1890 = vunpack.c.l.b16 %v612
    %v1891 = vunpack.c.h.b16 %v612
    %v1892 = vunpack.c.l.b16 %v613
    %v1893 = vunpack.c.h.b16 %v613
    %v1894 = vunpack.c.l.b16 %v614
    %v1895 = vunpack.c.h.b16 %v614
    %v1896 = vunpack.c.l.b16 %v615
    %v1897 = vunpack.c.h.b16 %v615
    %v1898 = vunpack.c.l.b16 %v616
    %v1899 = vunpack.c.h.b16 %v616
    %v1900 = vunpack.c.l.b16 %v617
    %v1901 = vunpack.c.h.b16 %v617
    %v1902 = vunpack.c.l.b16 %v618
    %v1903 = vunpack.c.h.b16 %v618
    %v1904 = vunpack.c.l.b16 %v619
    %v1905 = vunpack.c.h.b16 %v619
    %v1906 = vunpack.c.l.b16 %v620
    %v1907 = vunpack.c.h.b16 %v620
    %v1908 = vunpack.c.l.b16 %v621
    %v1909 = vunpack.c.h.b16 %v621
    %v1910 = vunpack.c.l.b16 %v622
    %v1911 = vunpack.c.h.b16 %v622
    %v1912 = vunpack.c.l.b16 %v623
    %v1913 = vunpack.c.h.b16 %v623
    %v1914 = vunpack.c.l.b16 %v624
    %v1915 = vunpack.c.h.b16 %v624
    %v1916 = vunpack.c.l.b16 %v625
    %v1917 = vunpack.c.h.b16 %v625
    %v1918 = vunpack.c.l.b16 %v626
    %v1919 = vunpack.c.h.b16 %v626
    %v1920 = vunpack.c.l.b16 %v627
    %v1921 = vunpack.c.h.b16 %v627
    %v1922 = vunpack.c.l.b16 %v628
    %v1923 = vunpack.c.h.b16 %v628
    %v1924 = vunpack.c.l.b16 %v629
    %v1925 = vunpack.c.h.b16 %v629
    %v1926 = vunpack.c.l.b16 %v630
    %v1927 = vunpack.c.h.b16 %v630
    %v1928 = vunpack.c.l.b16 %v631
    %v1929 = vunpack.c.h.b16 %v631
    %v1930 = vunpack.c.l.b16 %v632
    %v1931 = vunpack.c.h.b16 %v632
    %v1932 = vunpack.c.l.b16 %v633
    %v1933 = vunpack.c.h.b16 %v633
    %v1934 = vunpack.c.l.b16 %v634
    %v1935 = vunpack.c.h.b16 %v634
    %v1936 = vunpack.c.l.b16 %v635
    %v1937 = vunpack.c.h.b16 %v635
    %v1938 = vunpack.c.l.b16 %v636
    %v1939 = vunpack.c.h.b16 %v636
    %v1940 = vunpack.c.l.b16 %v637
    %v1941 = vunpack.c.h.b16 %v637
    %v1942 = vunpack.c.l.b16 %v638
    %v1943 = vunpack.c.h.b16 %v638
    %v1944 = vunpack.c.l.b16 %v639
    %v1945 = vunpack.c.h.b16 %v639
    %v1946 = vunpack.c.l.b16 %v640
    %v1947 = vunpack.c.h.b16 %v640
    %v1948 = vunpack.c.l.b16 %v641
    %v1949 = vunpack.c.h.b16 %v641
    %v1950 = vunpack.c.l.b16 %v642
    %v1951 = vunpack.c.h.b16 %v642
    %v1952 = vunpack.c.l.b16 %v643
    %v1953 = vunpack.c.h.b16 %v643
    %v1954 = vunpack.c.l.b16 %v644
    %v1955 = vunpack.c.h.b16 %v644
    %v1956 = vunpack.c.l.b16 %v645
    %v1957 = vunpack.c.h.b16 %v645
    %v1958 = vunpack.c.l.b16 %v646
    %v1959 = vunpack.c.h.b16 %v646
    %v1960 = vunpack.c.l.b16 %v647
    %v1961 = vunpack.c.h.b16 %v647
    %v1962 = vunpack.c.l.b16 %v648
    %v1963 = vunpack.c.h.b16 %v648
    %v1964 = vunpack.c.l.b16 %v649
    %v1965 = vunpack.c.h.b16 %v649
    %v1966 = vunpack.c.l.b16 %v650
    %v1967 = vunpack.c.h.b16 %v650
    %v1968 = vunpack.c.l.b16 %v651
    %v1969 = vunpack.c.h.b16 %v651
    %v1970 = vunpack.c.l.b16 %v652
    %v1971 = vunpack.c.h.b16 %v652
    %v1972 = vunpack.c.l.b16 %v653
    %v1973 = vunpack.c.h.b16 %v653
    %v1974 = vunpack.c.l.b16 %v654
    %v1975 = vunpack.c.h.b16 %v654
    %v1976 = vunpack.c.l.b16 %v655
    %v1977 = vunpack.c.h.b16 %v655
    %v1978 = vunpack.c.l.b16 %v656
    %v1979 = vunpack.c.h.b16 %v656
    %v1980 = vunpack.c.l.b16 %v657
    %v1981 = vunpack.c.h.b16 %v657
    %v1982 = vunpack.c.l.b16 %v658
    %v1983 = vunpack.c.h.b16 %v658
    %v1984 = vunpack.c.l.b16 %v659
    %v1985 = vunpack.c.h.b16 %v659
    %v1986 = vunpack.c.l.b16 %v660
    %v1987 = vunpack.c.h.b16 %v660
    %v1988 = vunpack.c.l.b16 %v661
    %v1989 = vunpack.c.h.b16 %v661
    %v1990 = vunpack.c.l.b16 %v662
    %v1991 = vunpack.c.h.b16 %v662
    %v1992 = vunpack.c.l.b16 %v663
    %v1993 = vunpack.c.h.b16 %v663
    %v1994 = vunpack.c.l.b16 %v664
    %v1995 = vunpack.c.h.b16 %v664
    %v1996 = vunpack.c.l.b16 %v665
    %v1997 = vunpack.c.h.b16 %v665
    %v1998 = vunpack.c.l.b16 %v666
    %v1999 = vunpack.c.h.b16 %v666
    %v2000 = vunpack.c.l.b16 %v667
    %v2001 = vunpack.c.h.b16 %v667
    %v2002 = vunpack.c.l.b16 %v668
    %v2003 = vunpack.c.h.b16 %v668
    %v2004 = vunpack.c.l.b16 %v669
    %v2005 = vunpack.c.h.b16 %v669
    %v2006 = vunpack.c.l.b16 %v670
    %v2007 = vunpack.c.h.b16 %v670
    %v2008 = vunpack.c.l.b16 %v671
    %v2009 = vunpack.c.h.b16 %v671
    %v2010 = vunpack.c.l.b16 %v672
    %v2011 = vunpack.c.h.b16 %v672
    %v2012 = vunpack.c.l.b16 %v673
    %v2013 = vunpack.c.h.b16 %v673
    %v2014 = vunpack.c.l.b16 %v674
    %v2015 = vunpack.c.h.b16 %v674
    %v2016 = vunpack.c.l.b16 %v675
    %v2017 = vunpack.c.h.b16 %v675
    %v2018 = vunpack.c.l.b16 %v676
    %v2019 = vunpack.c.h.b16 %v676
    %v2020 = vunpack.c.l.b16 %v677
    %v2021 = vunpack.c.h.b16 %v677
    %v2022 = vunpack.c.l.b16 %v678
    %v2023 = vunpack.c.h.b16 %v678
    %v2024 = vunpack.c.l.b16 %v679
    %v2025 = vunpack.c.h.b16 %v679
    %v2026 = vunpack.c.l.b16 %v680
    %v2027 = vunpack.c.h.b16 %v680
    %v2028 = vunpack.c.l.b16 %v681
    %v2029 = vunpack.c.h.b16 %v681
    %v2030 = vunpack.c.l.b16 %v682
    %v2031 = vunpack.c.h.b16 %v682
    %v2032 = vunpack.c.l.b16 %v683
    %v2033 = vunpack.c.h.b16 %v683
    %v2034 = vunpack.c.l.b16 %v684
    %v2035 = vunpack.c.h.b16 %v684
    %v2036 = vunpack.c.l.b16 %v685
    %v2037 = vunpack.c.h.b16 %v685
    %v2038 = vunpack.c.l.b16 %v686
    %v2039 = vunpack.c.h.b16 %v686
    %v2040 = vunpack.c.l.b16 %v687
    %v2041 = vunpack.c.h.b16 %v687
    %v2042 = vunpack.c.l.b16 %v688
    %v2043 = vunpack.c.h.b16 %v688
    %v2044 = vunpack.c.l.b16 %v689
    %v2045 = vunpack.c.h.b16 %v689
    %v2046 = vunpack.c.l.b16 %v690
    %v2047 = vunpack.c.h.b16 %v690
    %v2048 = vunpack.c.l.b16 %v691
    %v2049 = vunpack.c.h.b16 %v691
    %v2050 = vunpack.c.l.b16 %v692
    %v2051 = vunpack.c.h.b16 %v692
    %v2052 = vunpack.c.l.b16 %v693
    %v2053 = vunpack.c.h.b16 %v693
    %v2054 = vunpack.c.l.b16 %v694
    %v2055 = vunpack.c.h.b16 %v694
    %v2056 = vunpack.c.l.b16 %v695
    %v2057 = vunpack.c.h.b16 %v695
    %v2058 = vunpack.c.l.b16 %v696
    %v2059 = vunpack.c.h.b16 %v696
    %v2060 = vunpack.c.l.b16 %v697
    %v2061 = vunpack.c.h.b16 %v697
    %v2062 = vunpack.c.l.b16 %v698
    %v2063 = vunpack.c.h.b16 %v698
    %v2064 = vunpack.c.l.b16 %v699
    %v2065 = vunpack.c.h.b16 %v699
    %v2066 = vunpack.c.l.b16 %v700
    %v2067 = vunpack.c.h.b16 %v700
    %v2068 = vunpack.c.l.b16 %v701
    %v2069 = vunpack.c.h.b16 %v701
    %v2070 = vunpack.c.l.b16 %v702
    %v2071 = vunpack.c.h.b16 %v702
    %v2072 = vunpack.c.l.b16 %v703
    %v2073 = vunpack.c.h.b16 %v703
    %v2074 = vunpack.c.l.b16 %v704
    %v2075 = vunpack.c.h.b16 %v704
    %v2076 = vunpack.c.l.b16 %v705
    %v2077 = vunpack.c.h.b16 %v705
    %v2078 = vunpack.c.l.b16 %v706
    %v2079 = vunpack.c.h.b16 %v706
    %v2080 = vunpack.c.l.b16 %v707
    %v2081 = vunpack.c.h.b16 %v707
    %v2082 = vunpack.c.l.b16 %v708
    %v2083 = vunpack.c.h.b16 %v708
    %v2084 = vunpack.c.l.b16 %v709
    %v2085 = vunpack.c.h.b16 %v709
    %v2086 = vunpack.c.l.b16 %v710
    %v2087 = vunpack.c.h.b16 %v710
    %v2088 = vunpack.c.l.b16 %v711
    %v2089 = vunpack.c.h.b16 %v711
    %v2090 = vunpack.c.l.b16 %v712
    %v2091 = vunpack.c.h.b16 %v712
    %v2092 = vunpack.c.l.b16 %v713
    %v2093 = vunpack.c.h.b16 %v713
    %v2094 = vunpack.c.l.b16 %v714
    %v2095 = vunpack.c.h.b16 %v714
    %v2096 = vunpack.c.l.b16 %v715
    %v2097 = vunpack.c.h.b16 %v715
    %v2098 = vunpack.c.l.b16 %v716
    %v2099 = vunpack.c.h.b16 %v716
    %v2100 = vunpack.c.l.b16 %v717
    %v2101 = vunpack.c.h.b16 %v717
    %v2102 = vunpack.c.l.b16 %v718
    %v2103 = vunpack.c.h.b16 %v718
    %v2104 = vunpack.c.l.b16 %v719
    %v2105 = vunpack.c.h.b16 %v719
    %v2106 = vunpack.c.l.b16 %v720
    %v2107 = vunpack.c.h.b16 %v720
    %v2108 = vunpack.c.l.b16 %v721
    %v2109 = vunpack.c.h.b16 %v721
    %v2110 = vunpack.c.l.b16 %v722
    %v2111 = vunpack.c.h.b16 %v722
    %v2112 = vunpack.c.l.b16 %v723
    %v2113 = vunpack.c.h.b16 %v723
    %v2114 = vunpack.c.l.b16 %v724
    %v2115 = vunpack.c.h.b16 %v724
    %v2116 = vunpack.c.l.b16 %v725
    %v2117 = vunpack.c.h.b16 %v725
    %v2118 = vunpack.c.l.b16 %v726
    %v2119 = vunpack.c.h.b16 %v726
    %v2120 = vunpack.c.l.b16 %v727
    %v2121 = vunpack.c.h.b16 %v727
    %v2122 = vunpack.c.l.b16 %v728
    %v2123 = vunpack.c.h.b16 %v728
    %v2124 = vunpack.c.l.b16 %v729
    %v2125 = vunpack.c.h.b16 %v729
    %v2126 = vunpack.c.l.b16 %v730
    %v2127 = vunpack.c.h.b16 %v730
    %v2128 = vunpack.c.l.b16 %v731
    %v2129 = vunpack.c.h.b16 %v731
    %v2130 = vunpack.c.l.b16 %v732
    %v2131 = vunpack.c.h.b16 %v732
    %v2132 = vunpack.c.l.b16 %v733
    %v2133 = vunpack.c.h.b16 %v733
    %v2134 = vunpack.c.l.b16 %v734
    %v2135 = vunpack.c.h.b16 %v734
    %v2136 = vunpack.c.l.b16 %v735
    %v2137 = vunpack.c.h.b16 %v735
    %v2138 = vunpack.c.l.b16 %v736
    %v2139 = vunpack.c.h.b16 %v736
    %v2140 = vunpack.c.l.b16 %v737
    %v2141 = vunpack.c.h.b16 %v737
    %v2142 = vunpack.c.l.b16 %v738
    %v2143 = vunpack.c.h.b16 %v738
    %v2144 = vunpack.c.l.b16 %v739
    %v2145 = vunpack.c.h.b16 %v739
    %v2146 = vunpack.c.l.b16 %v740
    %v2147 = vunpack.c.h.b16 %v740
    %v2148 = vunpack.c.l.b16 %v741
    %v2149 = vunpack.c.h.b16 %v741
    %v2150 = vunpack.c.l.b16 %v742
    %v2151 = vunpack.c.h.b16 %v742
    %v2152 = vunpack.c.l.b16 %v743
    %v2153 = vunpack.c.h.b16 %v743
    %v2154 = vunpack.c.l.b16 %v744
    %v2155 = vunpack.c.h.b16 %v744
    %v2156 = vunpack.c.l.b16 %v745
    %v2157 = vunpack.c.h.b16 %v745
    %v2158 = vunpack.c.l.b16 %v746
    %v2159 = vunpack.c.h.b16 %v746
    %v2160 = vunpack.c.l.b16 %v747
    %v2161 = vunpack.c.h.b16 %v747
    %v2162 = vunpack.c.l.b16 %v748
    %v2163 = vunpack.c.h.b16 %v748
    %v2164 = vunpack.c.l.b16 %v749
    %v2165 = vunpack.c.h.b16 %v749
    %v2166 = vunpack.c.l.b16 %v750
    %v2167 = vunpack.c.h.b16 %v750
    %v2168 = vunpack.c.l.b16 %v751
    %v2169 = vunpack.c.h.b16 %v751
    %v2170 = vunpack.c.l.b16 %v752
    %v2171 = vunpack.c.h.b16 %v752
    %v2172 = vunpack.c.l.b16 %v753
    %v2173 = vunpack.c.h.b16 %v753
    %v2174 = vunpack.c.l.b16 %v754
    %v2175 = vunpack.c.h.b16 %v754
    %v2176 = vunpack.c.l.b16 %v755
    %v2177 = vunpack.c.h.b16 %v755
    %v2178 = vunpack.c.l.b16 %v756
    %v2179 = vunpack.c.h.b16 %v756
    %v2180 = vunpack.c.l.b16 %v757
    %v2181 = vunpack.c.h.b16 %v757
    %v2182 = vunpack.c.l.b16 %v758
    %v2183 = vunpack.c.h.b16 %v758
    %v2184 = vunpack.c.l.b16 %v759
    %v2185 = vunpack.c.h.b16 %v759
    %v2186 = vunpack.c.l.b16 %v760
    %v2187 = vunpack.c.h.b16 %v760
    %v2188 = vunpack.c.l.b16 %v761
    %v2189 = vunpack.c.h.b16 %v761
    %v2190 = vunpack.c.l.b16 %v762
    %v2191 = vunpack.c.h.b16 %v762
    %v2192 = vunpack.c.l.b16 %v763
    %v2193 = vunpack.c.h.b16 %v763
    %v2194 = vunpack.c.l.b16 %v764
    %v2195 = vunpack.c.h.b16 %v764
    %v2196 = vunpack.c.l.b16 %v765
    %v2197 = vunpack.c.h.b16 %v765
    %v2198 = vunpack.c.l.b16 %v766
    %v2199 = vunpack.c.h.b16 %v766
    %v2200 = vunpack.c.l.b16 %v767
    %v2201 = vunpack.c.h.b16 %v767
    %v2202 = vunpack.c.l.b16 %v768
    %v2203 = vunpack.c.h.b16 %v768
    %v2204 = vunpack.c.l.b16 %v769
    %v2205 = vunpack.c.h.b16 %v769
    %v2206 = vunpack.c.l.b16 %v770
    %v2207 = vunpack.c.h.b16 %v770
    %v2208 = vunpack.c.l.b16 %v771
    %v2209 = vunpack.c.h.b16 %v771
    %v2210 = vunpack.c.l.b16 %v772
    %v2211 = vunpack.c.h.b16 %v772
    %v2212 = vunpack.c.l.b16 %v773
    %v2213 = vunpack.c.h.b16 %v773
    %v2214 = vunpack.c.l.b16 %v774
    %v2215 = vunpack.c.h.b16 %v774
    %v2216 = vunpack.c.l.b16 %v775
    %v2217 = vunpack.c.h.b16 %v775
    %v2218 = vunpack.c.l.b16 %v776
    %v2219 = vunpack.c.h.b16 %v776
    %v2220 = vunpack.c.l.b16 %v777
    %v2221 = vunpack.c.h.b16 %v777
    %v2222 = vunpack.c.l.b16 %v778
    %v2223 = vunpack.c.h.b16 %v778
    %v2224 = vunpack.c.l.b16 %v779
    %v2225 = vunpack.c.h.b16 %v779
    %v2226 = vunpack.c.l.b16 %v780
    %v2227 = vunpack.c.h.b16 %v780
    %v2228 = vunpack.c.l.b16 %v781
    %v2229 = vunpack.c.h.b16 %v781
    %v2230 = vunpack.c.l.b16 %v782
    %v2231 = vunpack.c.h.b16 %v782
    %v2232 = vunpack.c.l.b16 %v783
    %v2233 = vunpack.c.h.b16 %v783
    %v2234 = vunpack.c.l.b16 %v784
    %v2235 = vunpack.c.h.b16 %v784
    %v2236 = vunpack.c.l.b16 %v785
    %v2237 = vunpack.c.h.b16 %v785
    %v2238 = vunpack.c.l.b16 %v786
    %v2239 = vunpack.c.h.b16 %v786
    %v2240 = vunpack.c.l.b16 %v787
    %v2241 = vunpack.c.h.b16 %v787
    %v2242 = vunpack.c.l.b16 %v788
    %v2243 = vunpack.c.h.b16 %v788
    %v2244 = vunpack.c.l.b16 %v789
    %v2245 = vunpack.c.h.b16 %v789
    %v2246 = vunpack.c.l.b16 %v790
    %v2247 = vunpack.c.h.b16 %v790
    %v2248 = vunpack.c.l.b16 %v791
    %v2249 = vunpack.c.h.b16 %v791
    %v2250 = vunpack.c.l.b16 %v792
    %v2251 = vunpack.c.h.b16 %v792
    %v2252 = vunpack.c.l.b16 %v793
    %v2253 = vunpack.c.h.b16 %v793
    %v2254 = vunpack.c.l.b16 %v794
    %v2255 = vunpack.c.h.b16 %v794
    %v2256 = vunpack.c.l.b16 %v795
    %v2257 = vunpack.c.h.b16 %v795
    %v2258 = vunpack.c.l.b16 %v796
    %v2259 = vunpack.c.h.b16 %v796
    %v2260 = vunpack.c.l.b16 %v797
    %v2261 = vunpack.c.h.b16 %v797
    %v2262 = vunpack.c.l.b16 %v798
    %v2263 = vunpack.c.h.b16 %v798
    %v2264 = vunpack.c.l.b16 %v799
    %v2265 = vunpack.c.h.b16 %v799
    %v2266 = vunpack.c.l.b16 %v800
    %v2267 = vunpack.c.h.b16 %v800
    %v2268 = vunpack.c.l.b16 %v801
    %v2269 = vunpack.c.h.b16 %v801
    %v2270 = vunpack.c.l.b16 %v802
    %v2271 = vunpack.c.h.b16 %v802
    %v2272 = vunpack.c.l.b16 %v803
    %v2273 = vunpack.c.h.b16 %v803
    %v2274 = vunpack.c.l.b16 %v804
    %v2275 = vunpack.c.h.b16 %v804
    %v2276 = vunpack.c.l.b16 %v805
    %v2277 = vunpack.c.h.b16 %v805
    %v2278 = vunpack.c.l.b16 %v806
    %v2279 = vunpack.c.h.b16 %v806
    %v2280 = vunpack.c.l.b16 %v807
    %v2281 = vunpack.c.h.b16 %v807
    %v2282 = vunpack.c.l.b16 %v808
    %v2283 = vunpack.c.h.b16 %v808
    %v2284 = vunpack.c.l.b16 %v809
    %v2285 = vunpack.c.h.b16 %v809
    %v2286 = vunpack.c.l.b16 %v810
    %v2287 = vunpack.c.h.b16 %v810
    %v2288 = vunpack.c.l.b16 %v811
    %v2289 = vunpack.c.h.b16 %v811
    %v2290 = vunpack.c.l.b16 %v812
    %v2291 = vunpack.c.h.b16 %v812
    %v2292 = vunpack.c.l.b16 %v813
    %v2293 = vunpack.c.h.b16 %v813
    %v2294 = vunpack.c.l.b16 %v814
    %v2295 = vunpack.c.h.b16 %v814
    %v2296 = vunpack.c.l.b16 %v815
    %v2297 = vunpack.c.h.b16 %v815
    %v2298 = vunpack.c.l.b16 %v816
    %v2299 = vunpack.c.h.b16 %v816
    %v2300 = vunpack.c.l.b16 %v817
    %v2301 = vunpack.c.h.b16 %v817
    %v2302 = vunpack.c.l.b16 %v818
    %v2303 = vunpack.c.h.b16 %v818
    %v2304 = vunpack.c.l.b16 %v819
    %v2305 = vunpack.c.h.b16 %v819
    %v2306 = vunpack.c.l.b16 %v820
    %v2307 = vunpack.c.h.b16 %v820
    %v2308 = vunpack.c.l.b16 %v821
    %v2309 = vunpack.c.h.b16 %v821
    %v2310 = vunpack.c.l.b16 %v822
    %v2311 = vunpack.c.h.b16 %v822
    %v2312 = vunpack.c.l.b16 %v823
    %v2313 = vunpack.c.h.b16 %v823
    %v2314 = vunpack.c.l.b16 %v824
    %v2315 = vunpack.c.h.b16 %v824
    %v2316 = vunpack.c.l.b16 %v825
    %v2317 = vunpack.c.h.b16 %v825
    %v2318 = vunpack.c.l.b16 %v826
    %v2319 = vunpack.c.h.b16 %v826
    %v2320 = vunpack.c.l.b16 %v827
    %v2321 = vunpack.c.h.b16 %v827
    %v2322 = vunpack.c.l.b16 %v828
    %v2323 = vunpack.c.h.b16 %v828
    %v2324 = vunpack.c.l.b16 %v829
    %v2325 = vunpack.c.h.b16 %v829
    %v2326 = vunpack.c.l.b16 %v830
    %v2327 = vunpack.c.h.b16 %v830
    %v2328 = vunpack.c.l.b16 %v831
    %v2329 = vunpack.c.h.b16 %v831
    %v2330 = vunpack.c.l.b16 %v832
    %v2331 = vunpack.c.h.b16 %v832
    %v2332 = vunpack.c.l.b16 %v833
    %v2333 = vunpack.c.h.b16 %v833
    %v2334 = vunpack.c.l.b16 %v834
    %v2335 = vunpack.c.h.b16 %v834
    %v2336 = vunpack.c.l.b16 %v835
    %v2337 = vunpack.c.h.b16 %v835
    %v2338 = vunpack.c.l.b16 %v836
    %v2339 = vunpack.c.h.b16 %v836
    %v2340 = vunpack.c.l.b16 %v837
    %v2341 = vunpack.c.h.b16 %v837
    %v2342 = vunpack.c.l.b16 %v838
    %v2343 = vunpack.c.h.b16 %v838
    %v2344 = vunpack.c.l.b16 %v839
    %v2345 = vunpack.c.h.b16 %v839
    %v2346 = vunpack.c.l.b16 %v840
    %v2347 = vunpack.c.h.b16 %v840
    %v2348 = vunpack.c.l.b16 %v841
    %v2349 = vunpack.c.h.b16 %v841
    %v2350 = vunpack.c.l.b16 %v842
    %v2351 = vunpack.c.h.b16 %v842
    %v2352 = vunpack.c.l.b16 %v843
    %v2353 = vunpack.c.h.b16 %v843
    %v2354 = vunpack.c.l.b16 %v844
    %v2355 = vunpack.c.h.b16 %v844
    %v2356 = vunpack.c.l.b16 %v845
    %v2357 = vunpack.c.h.b16 %v845
    %v2358 = vunpack.c.l.b16 %v846
    %v2359 = vunpack.c.h.b16 %v846
    %v2360 = vunpack.c.l.b16 %v847
    %v2361 = vunpack.c.h.b16 %v847
    %v2362 = vunpack.c.l.b16 %v848
    %v2363 = vunpack.c.h.b16 %v848
    %v2364 = vunpack.c.l.b16 %v849
    %v2365 = vunpack.c.h.b16 %v849
    %v2366 = vunpack.c.l.b16 %v850
    %v2367 = vunpack.c.h.b16 %v850
    %v2368 = vunpack.c.l.b16 %v851
    %v2369 = vunpack.c.h.b16 %v851
    %v2370 = vunpack.c.l.b16 %v852
    %v2371 = vunpack.c.h.b16 %v852
    %v2372 = vunpack.c.l.b16 %v853
    %v2373 = vunpack.c.h.b16 %v853
    %v2374 = vunpack.c.l.b16 %v854
    %v2375 = vunpack.c.h.b16 %v854
    %v2376 = vunpack.c.l.b16 %v855
    %v2377 = vunpack.c.h.b16 %v855
    %v2378 = vunpack.c.l.b16 %v856
    %v2379 = vunpack.c.h.b16 %v856
    %v2380 = vunpack.c.l.b16 %v857
    %v2381 = vunpack.c.h.b16 %v857
    %v2382 = vunpack.c.l.b16 %v858
    %v2383 = vunpack.c.h.b16 %v858
    %v2384 = vunpack.c.l.b16 %v859
    %v2385 = vunpack.c.h.b16 %v859
    %v2386 = vunpack.c.l.b16 %v860
    %v2387 = vunpack.c.h.b16 %v860
    %v2388 = vunpack.c.l.b16 %v861
    %v2389 = vunpack.c.h.b16 %v861
    %v2390 = vunpack.c.l.b16 %v862
    %v2391 = vunpack.c.h.b16 %v862
    %v2392 = vunpack.c.l.b16 %v863
    %v2393 = vunpack.c.h.b16 %v863
    %v2394 = vunpack.c.l.b16 %v864
    %v2395 = vunpack.c.h.b16 %v864
    %v2396 = vunpack.c.l.b16 %v865
    %v2397 = vunpack.c.h.b16 %v865
    %v2398 = vunpack.c.l.b16 %v866
    %v2399 = vunpack.c.h.b16 %v866
    %v2400 = vunpack.c.l.b16 %v867
    %v2401 = vunpack.c.h.b16 %v867
    %v2402 = vunpack.c.l.b16 %v868
    %v2403 = vunpack.c.h.b16 %v868
    %v2404 = vunpack.c.l.b16 %v869
    %v2405 = vunpack.c.h.b16 %v869
    %v2406 = vunpack.c.l.b16 %v870
    %v2407 = vunpack.c.h.b16 %v870
    %v2408 = vunpack.c.l.b16 %v871
    %v2409 = vunpack.c.h.b16 %v871
    %v2410 = vunpack.c.l.b16 %v872
    %v2411 = vunpack.c.h.b16 %v872
    %v2412 = vunpack.c.l.b16 %v873
    %v2413 = vunpack.c.h.b16 %v873
    %v2414 = vunpack.c.l.b16 %v874
    %v2415 = vunpack.c.h.b16 %v874
    %v2416 = vunpack.c.l.b16 %v875
    %v2417 = vunpack.c.h.b16 %v875
    %v2418 = vunpack.c.l.b16 %v876
    %v2419 = vunpack.c.h.b16 %v876
    %v2420 = vunpack.c.l.b16 %v877
    %v2421 = vunpack.c.h.b16 %v877
    %v2422 = vunpack.c.l.b16 %v878
    %v2423 = vunpack.c.h.b16 %v878
    %v2424 = vunpack.c.l.b16 %v879
    %v2425 = vunpack.c.h.b16 %v879
    %v2426 = vunpack.c.l.b16 %v880
    %v2427 = vunpack.c.h.b16 %v880
    %v2428 = vunpack.c.l.b16 %v881
    %v2429 = vunpack.c.h.b16 %v881
    %v2430 = vunpack.c.l.b16 %v882
    %v2431 = vunpack.c.h.b16 %v882
    %v2432 = vunpack.c.l.b16 %v883
    %v2433 = vunpack.c.h.b16 %v883
    %v2434 = vunpack.c.l.b16 %v884
    %v2435 = vunpack.c.h.b16 %v884
    %v2436 = vunpack.c.l.b16 %v885
    %v2437 = vunpack.c.h.b16 %v885
    %v2438 = vunpack.c.l.b16 %v886
    %v2439 = vunpack.c.h.b16 %v886
    %v2440 = vunpack.c.l.b16 %v887
    %v2441 = vunpack.c.h.b16 %v887
    %v2442 = vunpack.c.l.b16 %v888
    %v2443 = vunpack.c.h.b16 %v888
    %v2444 = vunpack.c.l.b16 %v889
    %v2445 = vunpack.c.h.b16 %v889
    %v2446 = vunpack.c.l.b16 %v890
    %v2447 = vunpack.c.h.b16 %v890
    %v2448 = vunpack.c.l.b16 %v891
    %v2449 = vunpack.c.h.b16 %v891
    %v2450 = vunpack.c.l.b16 %v892
    %v2451 = vunpack.c.h.b16 %v892
    %v2452 = vunpack.c.l.b16 %v893
    %v2453 = vunpack.c.h.b16 %v893
    %v2454 = vunpack.c.l.b16 %v894
    %v2455 = vunpack.c.h.b16 %v894
    %v2456 = vunpack.c.l.b16 %v895
    %v2457 = vunpack.c.h.b16 %v895
    %v2458 = vunpack.c.l.b16 %v896
    %v2459 = vunpack.c.h.b16 %v896
    %v2460 = vunpack.c.l.b16 %v897
    %v2461 = vunpack.c.h.b16 %v897
    %v2462 = vunpack.c.l.b16 %v898
    %v2463 = vunpack.c.h.b16 %v898
    %v2464 = vunpack.c.l.b16 %v899
    %v2465 = vunpack.c.h.b16 %v899
    %v2466 = vunpack.c.l.b16 %v900
    %v2467 = vunpack.c.h.b16 %v900
    %v2468 = vunpack.c.l.b16 %v901
    %v2469 = vunpack.c.h.b16 %v901
    %v2470 = vunpack.c.l.b16 %v902
    %v2471 = vunpack.c.h.b16 %v902
    %v2472 = vunpack.c.l.b16 %v903
    %v2473 = vunpack.c.h.b16 %v903
    %v2474 = vunpack.c.l.b16 %v904
    %v2475 = vunpack.c.h.b16 %v904
    %v2476 = vunpack.c.l.b16 %v905
    %v2477 = vunpack.c.h.b16 %v905
    %v2478 = vunpack.c.l.b16 %v906
    %v2479 = vunpack.c.h.b16 %v906
    %v2480 = vunpack.c.l.b16 %v907
    %v2481 = vunpack.c.h.b16 %v907
    %v2482 = vunpack.c.l.b16 %v908
    %v2483 = vunpack.c.h.b16 %v908
    %v2484 = vunpack.c.l.b16 %v909
    %v2485 = vunpack.c.h.b16 %v909
    %v2486 = vunpack.c.l.b16 %v910
    %v2487 = vunpack.c.h.b16 %v910
    %v2488 = vunpack.c.l.b16 %v911
    %v2489 = vunpack.c.h.b16 %v911
    %v2490 = vunpack.c.l.b16 %v912
    %v2491 = vunpack.c.h.b16 %v912
    %v2492 = vunpack.c.l.b16 %v913
    %v2493 = vunpack.c.h.b16 %v913
    %v2494 = vunpack.c.l.b16 %v914
    %v2495 = vunpack.c.h.b16 %v914
    %v2496 = vunpack.c.l.b16 %v915
    %v2497 = vunpack.c.h.b16 %v915
    %v2498 = vunpack.c.l.b16 %v916
    %v2499 = vunpack.c.h.b16 %v916
    %v2500 = vunpack.c.l.b16 %v917
    %v2501 = vunpack.c.h.b16 %v917
    %v2502 = vunpack.c.l.b16 %v918
    %v2503 = vunpack.c.h.b16 %v918
    %v2504 = vunpack.c.l.b16 %v919
    %v2505 = vunpack.c.h.b16 %v919
    %v2506 = vunpack.c.l.b16 %v920
    %v2507 = vunpack.c.h.b16 %v920
    %v2508 = vunpack.c.l.b16 %v921
    %v2509 = vunpack.c.h.b16 %v921
    %v2510 = vunpack.c.l.b16 %v922
    %v2511 = vunpack.c.h.b16 %v922
    %v2512 = vunpack.c.l.b16 %v923
    %v2513 = vunpack.c.h.b16 %v923
    %v2514 = vunpack.c.l.b16 %v924
    %v2515 = vunpack.c.h.b16 %v924
    %v2516 = vunpack.c.l.b16 %v925
    %v2517 = vunpack.c.h.b16 %v925
    %v2518 = vunpack.c.l.b16 %v926
    %v2519 = vunpack.c.h.b16 %v926
    %v2520 = vunpack.c.l.b16 %v927
    %v2521 = vunpack.c.h.b16 %v927
    %v2522 = vunpack.c.l.b16 %v928
    %v2523 = vunpack.c.h.b16 %v928
    %v2524 = vunpack.c.l.b16 %v929
    %v2525 = vunpack.c.h.b16 %v929
    %v2526 = vunpack.c.l.b16 %v930
    %v2527 = vunpack.c.h.b16 %v930
    %v2528 = vunpack.c.l.b16 %v931
    %v2529 = vunpack.c.h.b16 %v931
    %v2530 = vunpack.c.l.b16 %v932
    %v2531 = vunpack.c.h.b16 %v932
    %v2532 = vunpack.c.l.b16 %v933
    %v2533 = vunpack.c.h.b16 %v933
    %v2534 = vunpack.c.l.b16 %v934
    %v2535 = vunpack.c.h.b16 %v934
    %v2536 = vunpack.c.l.b16 %v935
    %v2537 = vunpack.c.h.b16 %v935
    %v2538 = vunpack.c.l.b16 %v936
    %v2539 = vunpack.c.h.b16 %v936
    %v2540 = vunpack.c.l.b16 %v937
    %v2541 = vunpack.c.h.b16 %v937
    %v2542 = vunpack.c.l.b16 %v938
    %v2543 = vunpack.c.h.b16 %v938
    %v2544 = vunpack.c.l.b16 %v939
    %v2545 = vunpack.c.h.b16 %v939
    %v2546 = vunpack.c.l.b16 %v940
    %v2547 = vunpack.c.h.b16 %v940
    %v2548 = vunpack.c.l.b16 %v941
    %v2549 = vunpack.c.h.b16 %v941
    %v2550 = vunpack.c.l.b16 %v942
    %v2551 = vunpack.c.h.b16 %v942
    %v2552 = vunpack.c.l.b16 %v943
    %v2553 = vunpack.c.h.b16 %v943
    %v2554 = vunpack.c.l.b16 %v944
    %v2555 = vunpack.c.h.b16 %v944
    %v2556 = vunpack.c.l.b16 %v945
    %v2557 = vunpack.c.h.b16 %v945
    %v2558 = vunpack.c.l.b16 %v946
    %v2559 = vunpack.c.h.b16 %v946
    %v2560 = vunpack.c.l.b16 %v947
    %v2561 = vunpack.c.h.b16 %v947
    %v2562 = vunpack.c.l.b16 %v948
    %v2563 = vunpack.c.h.b16 %v948
    %v2564 = vunpack.c.l.b16 %v949
    %v2565 = vunpack.c.h.b16 %v949
    %v2566 = vunpack.c.l.b16 %v950
    %v2567 = vunpack.c.h.b16 %v950
    %v2568 = vunpack.c.l.b16 %v951
    %v2569 = vunpack.c.h.b16 %v951
    %v2570 = vunpack.c.l.b16 %v952
    %v2571 = vunpack.c.h.b16 %v952
    %v2572 = vunpack.c.l.b16 %v953
    %v2573 = vunpack.c.h.b16 %v953
    %v2574 = vunpack.c.l.b16 %v954
    %v2575 = vunpack.c.h.b16 %v954
    %v2576 = vunpack.c.l.b16 %v955
    %v2577 = vunpack.c.h.b16 %v955
    %v2578 = vunpack.c.l.b16 %v956
    %v2579 = vunpack.c.h.b16 %v956
    %v2580 = vunpack.c.l.b16 %v957
    %v2581 = vunpack.c.h.b16 %v957
    %v2582 = vunpack.c.l.b16 %v958
    %v2583 = vunpack.c.h.b16 %v958
    %v2584 = vunpack.c.l.b16 %v959
    %v2585 = vunpack.c.h.b16 %v959
    %v2586 = vunpack.c.l.b16 %v960
    %v2587 = vunpack.c.h.b16 %v960
    %v2588 = vunpack.c.l.b16 %v961
    %v2589 = vunpack.c.h.b16 %v961
    %v2590 = vunpack.c.l.b16 %v962
    %v2591 = vunpack.c.h.b16 %v962
    %v2592 = vunpack.c.l.b16 %v963
    %v2593 = vunpack.c.h.b16 %v963
    %v2594 = vunpack.c.l.b16 %v964
    %v2595 = vunpack.c.h.b16 %v964
    %v2596 = vunpack.c.l.b16 %v965
    %v2597 = vunpack.c.h.b16 %v965
    %v2598 = vunpack.c.l.b16 %v966
    %v2599 = vunpack.c.h.b16 %v966
    %v2600 = vunpack.c.l.b16 %v967
    %v2601 = vunpack.c.h.b16 %v967
    %v2602 = vunpack.c.l.b16 %v968
    %v2603 = vunpack.c.h.b16 %v968
    %v2604 = vunpack.c.l.b16 %v969
    %v2605 = vunpack.c.h.b16 %v969
    %v2606 = vunpack.c.l.b16 %v970
    %v2607 = vunpack.c.h.b16 %v970
    %v2608 = vunpack.c.l.b16 %v971
    %v2609 = vunpack.c.h.b16 %v971
    %v2610 = vunpack.c.l.b16 %v972
    %v2611 = vunpack.c.h.b16 %v972
    %v2612 = vunpack.c.l.b16 %v973
    %v2613 = vunpack.c.h.b16 %v973
    %v2614 = vunpack.c.l.b16 %v974
    %v2615 = vunpack.c.h.b16 %v974
    %v2616 = vunpack.c.l.b16 %v975
    %v2617 = vunpack.c.h.b16 %v975
    %v2618 = vunpack.c.l.b16 %v976
    %v2619 = vunpack.c.h.b16 %v976
    %v2620 = vunpack.c.l.b16 %v977
    %v2621 = vunpack.c.h.b16 %v977
    %v2622 = vunpack.c.l.b16 %v978
    %v2623 = vunpack.c.h.b16 %v978
    %v2624 = vunpack.c.l.b16 %v979
    %v2625 = vunpack.c.h.b16 %v979
    %v2626 = vunpack.c.l.b16 %v980
    %v2627 = vunpack.c.h.b16 %v980
    %v2628 = vunpack.c.l.b16 %v981
    %v2629 = vunpack.c.h.b16 %v981
    %v2630 = vunpack.c.l.b16 %v982
    %v2631 = vunpack.c.h.b16 %v982
    %v2632 = vunpack.c.l.b16 %v983
    %v2633 = vunpack.c.h.b16 %v983
    %v2634 = vunpack.c.l.b16 %v984
    %v2635 = vunpack.c.h.b16 %v984
    %v2636 = vunpack.c.l.b16 %v985
    %v2637 = vunpack.c.h.b16 %v985
    %v2638 = vunpack.c.l.b16 %v986
    %v2639 = vunpack.c.h.b16 %v986
    %v2640 = vunpack.c.l.b16 %v987
    %v2641 = vunpack.c.h.b16 %v987
    %v2642 = vunpack.c.l.b16 %v988
    %v2643 = vunpack.c.h.b16 %v988
    %v2644 = vunpack.c.l.b16 %v989
    %v2645 = vunpack.c.h.b16 %v989
    %v2646 = vunpack.c.l.b16 %v990
    %v2647 = vunpack.c.h.b16 %v990
    %v2648 = vunpack.c.l.b16 %v991
    %v2649 = vunpack.c.h.b16 %v991
    %v2650 = vpack.c.b16 %v1630, %v1626
    %v2651 = vpack.c.b16 %v1631, %v1627
    %v2652 = vpack.c.b16 %v1632, %v1628
    %v2653 = vpack.c.b16 %v1633, %v1629
    %v2654 = vpack.c.b16 %v1638, %v1634
    %v2655 = vpack.c.b16 %v1639, %v1635
    %v2656 = vpack.c.b16 %v1640, %v1636
    %v2657 = vpack.c.b16 %v1641, %v1637
    %v2658 = vpack.c.b16 %v1646, %v1642
    %v2659 = vpack.c.b16 %v1647, %v1643
    %v2660 = vpack.c.b16 %v1648, %v1644
    %v2661 = vpack.c.b16 %v1649, %v1645
    %v2662 = vpack.c.b16 %v1654, %v1650
    %v2663 = vpack.c.b16 %v1655, %v1651
    %v2664 = vpack.c.b16 %v1656, %v1652
    %v2665 = vpack.c.b16 %v1657, %v1653
    %v2666 = vpack.c.b16 %v1662, %v1658
    %v2667 = vpack.c.b16 %v1663, %v1659
    %v2668 = vpack.c.b16 %v1664, %v1660
    %v2669 = vpack.c.b16 %v1665, %v1661
    %v2670 = vpack.c.b16 %v1670, %v1666
    %v2671 = vpack.c.b16 %v1671, %v1667
    %v2672 = vpack.c.b16 %v1672, %v1668
    %v2673 = vpack.c.b16 %v1673, %v1669
    %v2674 = vpack.c.b16 %v1678, %v1674
    %v2675 = vpack.c.b16 %v1679, %v1675
    %v2676 = vpack.c.b16 %v1680, %v1676
    %v2677 = vpack.c.b16 %v1681, %v1677
    %v2678 = vpack.c.b16 %v1686, %v1682
    %v2679 = vpack.c.b16 %v1687, %v1683
    %v2680 = vpack.c.b16 %v1688, %v1684
    %v2681 = vpack.c.b16 %v1689, %v1685
    %v2682 = vpack.c.b16 %v1694, %v1690
    %v2683 = vpack.c.b16 %v1695, %v1691
    %v2684 = vpack.c.b16 %v1696, %v1692
    %v2685 = vpack.c.b16 %v1697, %v1693
    %v2686 = vpack.c.b16 %v1702, %v1698
    %v2687 = vpack.c.b16 %v1703, %v1699
    %v2688 = vpack.c.b16 %v1704, %v1700
    %v2689 = vpack.c.b16 %v1705, %v1701
    %v2690 = vpack.c.b16 %v1710, %v1706
    %v2691 = vpack.c.b16 %v1711, %v1707
    %v2692 = vpack.c.b16 %v1712, %v1708
    %v2693 = vpack.c.b16 %v1713, %v1709
    %v2694 = vpack.c.b16 %v1718, %v1714
    %v2695 = vpack.c.b16 %v1719, %v1715
    %v2696 = vpack.c.b16 %v1720, %v1716
    %v2697 = vpack.c.b16 %v1721, %v1717
    %v2698 = vpack.c.b16 %v1726, %v1722
    %v2699 = vpack.c.b16 %v1727, %v1723
    %v2700 = vpack.c.b16 %v1728, %v1724
    %v2701 = vpack.c.b16 %v1729, %v1725
    %v2702 = vpack.c.b16 %v1734, %v1730
    %v2703 = vpack.c.b16 %v1735, %v1731
    %v2704 = vpack.c.b16 %v1736, %v1732
    %v2705 = vpack.c.b16 %v1737, %v1733
    %v2706 = vpack.c.b16 %v1742, %v1738
    %v2707 = vpack.c.b16 %v1743, %v1739
    %v2708 = vpack.c.b16 %v1744, %v1740
    %v2709 = vpack.c.b16 %v1745, %v1741
    %v2710 = vpack.c.b16 %v1750, %v1746
    %v2711 = vpack.c.b16 %v1751, %v1747
    %v2712 = vpack.c.b16 %v1752, %v1748
    %v2713 = vpack.c.b16 %v1753, %v1749
    %v2714 = vpack.c.b16 %v1758, %v1754
    %v2715 = vpack.c.b16 %v1759, %v1755
    %v2716 = vpack.c.b16 %v1760, %v1756
    %v2717 = vpack.c.b16 %v1761, %v1757
    %v2718 = vpack.c.b16 %v1766, %v1762
    %v2719 = vpack.c.b16 %v1767, %v1763
    %v2720 = vpack.c.b16 %v1768, %v1764
    %v2721 = vpack.c.b16 %v1769, %v1765
    %v2722 = vpack.c.b16 %v1774, %v1770
    %v2723 = vpack.c.b16 %v1775, %v1771
    %v2724 = vpack.c.b16 %v1776, %v1772
    %v2725 = vpack.c.b16 %v1777, %v1773
    %v2726 = vpack.c.b16 %v1782, %v1778
    %v2727 = vpack.c.b16 %v1783, %v1779
    %v2728 = vpack.c.b16 %v1784, %v1780
    %v2729 = vpack.c.b16 %v1785, %v1781
    %v2730 = vpack.c.b16 %v1790, %v1786
    %v2731 = vpack.c.b16 %v1791, %v1787
    %v2732 = vpack.c.b16 %v1792, %v1788
    %v2733 = vpack.c.b16 %v1793, %v1789
    %v2734 = vpack.c.b16 %v1798, %v1794
    %v2735 = vpack.c.b16 %v1799, %v1795
    %v2736 = vpack.c.b16 %v1800, %v1796
    %v2737 = vpack.c.b16 %v1801, %v1797
    %v2738 = vpack.c.b16 %v1806, %v1802
    %v2739 = vpack.c.b16 %v1807, %v1803
    %v2740 = vpack.c.b16 %v1808, %v1804
    %v2741 = vpack.c.b16 %v1809, %v1805
    %v2742 = vpack.c.b16 %v1814, %v1810
    %v2743 = vpack.c.b16 %v1815, %v1811
    %v2744 = vpack.c.b16 %v1816, %v1812
    %v2745 = vpack.c.b16 %v1817, %v1813
    %v2746 = vpack.c.b16 %v1822, %v1818
    %v2747 = vpack.c.b16 %v1823, %v1819
    %v2748 = vpack.c.b16 %v1824, %v1820
    %v2749 = vpack.c.b16 %v1825, %v1821
    %v2750 = vpack.c.b16 %v1830, %v1826
    %v2751 = vpack.c.b16 %v1831, %v1827
    %v2752 = vpack.c.b16 %v1832, %v1828
    %v2753 = vpack.c.b16 %v1833, %v1829
    %v2754 = vpack.c.b16 %v1838, %v1834
    %v2755 = vpack.c.b16 %v1839, %v1835
    %v2756 = vpack.c.b16 %v1840, %v1836
    %v2757 = vpack.c.b16 %v1841, %v1837
    %v2758 = vpack.c.b16 %v1846, %v1842
    %v2759 = vpack.c.b16 %v1847, %v1843
    %v2760 = vpack.c.b16 %v1848, %v1844
    %v2761 = vpack.c.b16 %v1849, %v1845
    %v2762 = vpack.c.b16 %v1854, %v1850
    %v2763 = vpack.c.b16 %v1855, %v1851
    %v2764 = vpack.c.b16 %v1856, %v1852
    %v2765 = vpack.c.b16 %v1857, %v1853
    %v2766 = vpack.c.b16 %v1862, %v1858
    %v2767 = vpack.c.b16 %v1863, %v1859
    %v2768 = vpack.c.b16 %v1864, %v1860
    %v2769 = vpack.c.b16 %v1865, %v1861
    %v2770 = vpack.c.b16 %v1870, %v1866
    %v2771 = vpack.c.b16 %v1871, %v1867
    %v2772 = vpack.c.b16 %v1872, %v1868
    %v2773 = vpack.c.b16 %v1873, %v1869
    %v2774 = vpack.c.b16 %v1878, %v1874
    %v2775 = vpack.c.b16 %v1879, %v1875
    %v2776 = vpack.c.b16 %v1880, %v1876
    %v2777 = vpack.c.b16 %v1881, %v1877
    %v2778 = vpack.c.b16 %v1886, %v1882
    %v2779 = vpack.c.b16 %v1887, %v1883
    %v2780 = vpack.c.b16 %v1888, %v1884
    %v2781 = vpack.c.b16 %v1889, %v1885
    %v2782 = vpack.c.b16 %v1894, %v1890
    %v2783 = vpack.c.b16 %v1895, %v1891
    %v2784 = vpack.c.b16 %v1896, %v1892
    %v2785 = vpack.c.b16 %v1897, %v1893
    %v2786 = vpack.c.b16 %v1902, %v1898
    %v2787 = vpack.c.b16 %v1903, %v1899
    %v2788 = vpack.c.b16 %v1904, %v1900
    %v2789 = vpack.c.b16 %v1905, %v1901
    %v2790 = vpack.c.b16 %v1910, %v1906
    %v2791 = vpack.c.b16 %v1911, %v1907
    %v2792 = vpack.c.b16 %v1912, %v1908
    %v2793 = vpack.c.b16 %v1913, %v1909
    %v2794 = vpack.c.b16 %v1918, %v1914
    %v2795 = vpack.c.b16 %v1919, %v1915
    %v2796 = vpack.c.b16 %v1920, %v1916
    %v2797 = vpack.c.b16 %v1921, %v1917
    %v2798 = vpack.c.b16 %v1926, %v1922
    %v2799 = vpack.c.b16 %v1927, %v1923
    %v2800 = vpack.c.b16 %v1928, %v1924
    %v2801 = vpack.c.b16 %v1929, %v1925
    %v2802 = vpack.c.b16 %v1934, %v1930
    %v2803 = vpack.c.b16 %v1935, %v1931
    %v2804 = vpack.c.b16 %v1936, %v1932
    %v2805 = vpack.c.b16 %v1937, %v1933
    %v2806 = vpack.c.b16 %v1942, %v1938
    %v2807 = vpack.c.b16 %v1943, %v1939
    %v2808 = vpack.c.b16 %v1944, %v1940
    %v2809 = vpack.c.b16 %v1945, %v1941
    %v2810 = vpack.c.b16 %v1950, %v1946
    %v2811 = vpack.c.b16 %v1951, %v1947
    %v2812 = vpack.c.b16 %v1952, %v1948
    %v2813 = vpack.c.b16 %v1953, %v1949
    %v2814 = vpack.c.b16 %v1958, %v1954
    %v2815 = vpack.c.b16 %v1959, %v1955
    %v2816 = vpack.c.b16 %v1960, %v1956
    %v2817 = vpack.c.b16 %v1961, %v1957
    %v2818 = vpack.c.b16 %v1966, %v1962
    %v2819 = vpack.c.b16 %v1967, %v1963
    %v2820 = vpack.c.b16 %v1968, %v1964
    %v2821 = vpack.c.b16 %v1969, %v1965
    %v2822 = vpack.c.b16 %v1974, %v1970
    %v2823 = vpack.c.b16 %v1975, %v1971
    %v2824 = vpack.c.b16 %v1976, %v1972
    %v2825 = vpack.c.b16 %v1977, %v1973
    %v2826 = vpack.c.b16 %v1982, %v1978
    %v2827 = vpack.c.b16 %v1983, %v1979
    %v2828 = vpack.c.b16 %v1984, %v1980
    %v2829 = vpack.c.b16 %v1985, %v1981
    %v2830 = vpack.c.b16 %v1990, %v1986
    %v2831 = vpack.c.b16 %v1991, %v1987
    %v2832 = vpack.c.b16 %v1992, %v1988
    %v2833 = vpack.c.b16 %v1993, %v1989
    %v2834 = vpack.c.b16 %v1998, %v1994
    %v2835 = vpack.c.b16 %v1999, %v1995
    %v2836 = vpack.c.b16 %v2000, %v1996
    %v2837 = vpack.c.b16 %v2001, %v1997
    %v2838 = vpack.c.b16 %v2006, %v2002
    %v2839 = vpack.c.b16 %v2007, %v2003
    %v2840 = vpack.c.b16 %v2008, %v2004
    %v2841 = vpack.c.b16 %v2009, %v2005
    %v2842 = vpack.c.b16 %v2014, %v2010
    %v2843 = vpack.c.b16 %v2015, %v2011
    %v2844 = vpack.c.b16 %v2016, %v2012
    %v2845 = vpack.c.b16 %v2017, %v2013
    %v2846 = vpack.c.b16 %v2022, %v2018
    %v2847 = vpack.c.b16 %v2023, %v2019
    %v2848 = vpack.c.b16 %v2024, %v2020
    %v2849 = vpack.c.b16 %v2025, %v2021
    %v2850 = vpack.c.b16 %v2030, %v2026
    %v2851 = vpack.c.b16 %v2031, %v2027
    %v2852 = vpack.c.b16 %v2032, %v2028
    %v2853 = vpack.c.b16 %v2033, %v2029
    %v2854 = vpack.c.b16 %v2038, %v2034
    %v2855 = vpack.c.b16 %v2039, %v2035
    %v2856 = vpack.c.b16 %v2040, %v2036
    %v2857 = vpack.c.b16 %v2041, %v2037
    %v2858 = vpack.c.b16 %v2046, %v2042
    %v2859 = vpack.c.b16 %v2047, %v2043
    %v2860 = vpack.c.b16 %v2048, %v2044
    %v2861 = vpack.c.b16 %v2049, %v2045
    %v2862 = vpack.c.b16 %v2054, %v2050
    %v2863 = vpack.c.b16 %v2055, %v2051
    %v2864 = vpack.c.b16 %v2056, %v2052
    %v2865 = vpack.c.b16 %v2057, %v2053
    %v2866 = vpack.c.b16 %v2062, %v2058
    %v2867 = vpack.c.b16 %v2063, %v2059
    %v2868 = vpack.c.b16 %v2064, %v2060
    %v2869 = vpack.c.b16 %v2065, %v2061
    %v2870 = vpack.c.b16 %v2070, %v2066
    %v2871 = vpack.c.b16 %v2071, %v2067
    %v2872 = vpack.c.b16 %v2072, %v2068
    %v2873 = vpack.c.b16 %v2073, %v2069
    %v2874 = vpack.c.b16 %v2078, %v2074
    %v2875 = vpack.c.b16 %v2079, %v2075
    %v2876 = vpack.c.b16 %v2080, %v2076
    %v2877 = vpack.c.b16 %v2081, %v2077
    %v2878 = vpack.c.b16 %v2086, %v2082
    %v2879 = vpack.c.b16 %v2087, %v2083
    %v2880 = vpack.c.b16 %v2088, %v2084
    %v2881 = vpack.c.b16 %v2089, %v2085
    %v2882 = vpack.c.b16 %v2094, %v2090
    %v2883 = vpack.c.b16 %v2095, %v2091
    %v2884 = vpack.c.b16 %v2096, %v2092
    %v2885 = vpack.c.b16 %v2097, %v2093
    %v2886 = vpack.c.b16 %v2102, %v2098
    %v2887 = vpack.c.b16 %v2103, %v2099
    %v2888 = vpack.c.b16 %v2104, %v2100
    %v2889 = vpack.c.b16 %v2105, %v2101
    %v2890 = vpack.c.b16 %v2110, %v2106
    %v2891 = vpack.c.b16 %v2111, %v2107
    %v2892 = vpack.c.b16 %v2112, %v2108
    %v2893 = vpack.c.b16 %v2113, %v2109
    %v2894 = vpack.c.b16 %v2118, %v2114
    %v2895 = vpack.c.b16 %v2119, %v2115
    %v2896 = vpack.c.b16 %v2120, %v2116
    %v2897 = vpack.c.b16 %v2121, %v2117
    %v2898 = vpack.c.b16 %v2126, %v2122
    %v2899 = vpack.c.b16 %v2127, %v2123
    %v2900 = vpack.c.b16 %v2128, %v2124
    %v2901 = vpack.c.b16 %v2129, %v2125
    %v2902 = vpack.c.b16 %v2134, %v2130
    %v2903 = vpack.c.b16 %v2135, %v2131
    %v2904 = vpack.c.b16 %v2136, %v2132
    %v2905 = vpack.c.b16 %v2137, %v2133
    %v2906 = vpack.c.b16 %v2142, %v2138
    %v2907 = vpack.c.b16 %v2143, %v2139
    %v2908 = vpack.c.b16 %v2144, %v2140
    %v2909 = vpack.c.b16 %v2145, %v2141
    %v2910 = vpack.c.b16 %v2150, %v2146
    %v2911 = vpack.c.b16 %v2151, %v2147
    %v2912 = vpack.c.b16 %v2152, %v2148
    %v2913 = vpack.c.b16 %v2153, %v2149
    %v2914 = vpack.c.b16 %v2158, %v2154
    %v2915 = vpack.c.b16 %v2159, %v2155
    %v2916 = vpack.c.b16 %v2160, %v2156
    %v2917 = vpack.c.b16 %v2161, %v2157
    %v2918 = vpack.c.b16 %v2166, %v2162
    %v2919 = vpack.c.b16 %v2167, %v2163
    %v2920 = vpack.c.b16 %v2168, %v2164
    %v2921 = vpack.c.b16 %v2169, %v2165
    %v2922 = vpack.c.b16 %v2174, %v2170
    %v2923 = vpack.c.b16 %v2175, %v2171
    %v2924 = vpack.c.b16 %v2176, %v2172
    %v2925 = vpack.c.b16 %v2177, %v2173
    %v2926 = vpack.c.b16 %v2182, %v2178
    %v2927 = vpack.c.b16 %v2183, %v2179
    %v2928 = vpack.c.b16 %v2184, %v2180
    %v2929 = vpack.c.b16 %v2185, %v2181
    %v2930 = vpack.c.b16 %v2190, %v2186
    %v2931 = vpack.c.b16 %v2191, %v2187
    %v2932 = vpack.c.b16 %v2192, %v2188
    %v2933 = vpack.c.b16 %v2193, %v2189
    %v2934 = vpack.c.b16 %v2198, %v2194
    %v2935 = vpack.c.b16 %v2199, %v2195
    %v2936 = vpack.c.b16 %v2200, %v2196
    %v2937 = vpack.c.b16 %v2201, %v2197
    %v2938 = vpack.c.b16 %v2206, %v2202
    %v2939 = vpack.c.b16 %v2207, %v2203
    %v2940 = vpack.c.b16 %v2208, %v2204
    %v2941 = vpack.c.b16 %v2209, %v2205
    %v2942 = vpack.c.b16 %v2214, %v2210
    %v2943 = vpack.c.b16 %v2215, %v2211
    %v2944 = vpack.c.b16 %v2216, %v2212
    %v2945 = vpack.c.b16 %v2217, %v2213
    %v2946 = vpack.c.b16 %v2222, %v2218
    %v2947 = vpack.c.b16 %v2223, %v2219
    %v2948 = vpack.c.b16 %v2224, %v2220
    %v2949 = vpack.c.b16 %v2225, %v2221
    %v2950 = vpack.c.b16 %v2230, %v2226
    %v2951 = vpack.c.b16 %v2231, %v2227
    %v2952 = vpack.c.b16 %v2232, %v2228
    %v2953 = vpack.c.b16 %v2233, %v2229
    %v2954 = vpack.c.b16 %v2238, %v2234
    %v2955 = vpack.c.b16 %v2239, %v2235
    %v2956 = vpack.c.b16 %v2240, %v2236
    %v2957 = vpack.c.b16 %v2241, %v2237
    %v2958 = vpack.c.b16 %v2246, %v2242
    %v2959 = vpack.c.b16 %v2247, %v2243
    %v2960 = vpack.c.b16 %v2248, %v2244
    %v2961 = vpack.c.b16 %v2249, %v2245
    %v2962 = vpack.c.b16 %v2254, %v2250
    %v2963 = vpack.c.b16 %v2255, %v2251
    %v2964 = vpack.c.b16 %v2256, %v2252
    %v2965 = vpack.c.b16 %v2257, %v2253
    %v2966 = vpack.c.b16 %v2262, %v2258
    %v2967 = vpack.c.b16 %v2263, %v2259
    %v2968 = vpack.c.b16 %v2264, %v2260
    %v2969 = vpack.c.b16 %v2265, %v2261
    %v2970 = vpack.c.b16 %v2270, %v2266
    %v2971 = vpack.c.b16 %v2271, %v2267
    %v2972 = vpack.c.b16 %v2272, %v2268
    %v2973 = vpack.c.b16 %v2273, %v2269
    %v2974 = vpack.c.b16 %v2278, %v2274
    %v2975 = vpack.c.b16 %v2279, %v2275
    %v2976 = vpack.c.b16 %v2280, %v2276
    %v2977 = vpack.c.b16 %v2281, %v2277
    %v2978 = vpack.c.b16 %v2286, %v2282
    %v2979 = vpack.c.b16 %v2287, %v2283
    %v2980 = vpack.c.b16 %v2288, %v2284
    %v2981 = vpack.c.b16 %v2289, %v2285
    %v2982 = vpack.c.b16 %v2294, %v2290
    %v2983 = vpack.c.b16 %v2295, %v2291
    %v2984 = vpack.c.b16 %v2296, %v2292
    %v2985 = vpack.c.b16 %v2297, %v2293
    %v2986 = vpack.c.b16 %v2302, %v2298
    %v2987 = vpack.c.b16 %v2303, %v2299
    %v2988 = vpack.c.b16 %v2304, %v2300
    %v2989 = vpack.c.b16 %v2305, %v2301
    %v2990 = vpack.c.b16 %v2310, %v2306
    %v2991 = vpack.c.b16 %v2311, %v2307
    %v2992 = vpack.c.b16 %v2312, %v2308
    %v2993 = vpack.c.b16 %v2313, %v2309
    %v2994 = vpack.c.b16 %v2318, %v2314
    %v2995 = vpack.c.b16 %v2319, %v2315
    %v2996 = vpack.c.b16 %v2320, %v2316
    %v2997 = vpack.c.b16 %v2321, %v2317
    %v2998 = vpack.c.b16 %v2326, %v2322
    %v2999 = vpack.c.b16 %v2327, %v2323
    %v3000 = vpack.c.b16 %v2328, %v2324
    %v3001 = vpack.c.b16 %v2329, %v2325
    %v3002 = vpack.c.b16 %v2334, %v2330
    %v3003 = vpack.c.b16 %v2335, %v2331
    %v3004 = vpack.c.b16 %v2336, %v2332
    %v3005 = vpack.c.b16 %v2337, %v2333
    %v3006 = vpack.c.b16 %v2342, %v2338
    %v3007 = vpack.c.b16 %v2343, %v2339
    %v3008 = vpack.c.b16 %v2344, %v2340
    %v3009 = vpack.c.b16 %v2345, %v2341
    %v3010 = vpack.c.b16 %v2350, %v2346
    %v3011 = vpack.c.b16 %v2351, %v2347
    %v3012 = vpack.c.b16 %v2352, %v2348
    %v3013 = vpack.c.b16 %v2353, %v2349
    %v3014 = vpack.c.b16 %v2358, %v2354
    %v3015 = vpack.c.b16 %v2359, %v2355
    %v3016 = vpack.c.b16 %v2360, %v2356
    %v3017 = vpack.c.b16 %v2361, %v2357
    %v3018 = vpack.c.b16 %v2366, %v2362
    %v3019 = vpack.c.b16 %v2367, %v2363
    %v3020 = vpack.c.b16 %v2368, %v2364
    %v3021 = vpack.c.b16 %v2369, %v2365
    %v3022 = vpack.c.b16 %v2374, %v2370
    %v3023 = vpack.c.b16 %v2375, %v2371
    %v3024 = vpack.c.b16 %v2376, %v2372
    %v3025 = vpack.c.b16 %v2377, %v2373
    %v3026 = vpack.c.b16 %v2382, %v2378
    %v3027 = vpack.c.b16 %v2383, %v2379
    %v3028 = vpack.c.b16 %v2384, %v2380
    %v3029 = vpack.c.b16 %v2385, %v2381
    %v3030 = vpack.c.b16 %v2390, %v2386
    %v3031 = vpack.c.b16 %v2391, %v2387
    %v3032 = vpack.c.b16 %v2392, %v2388
    %v3033 = vpack.c.b16 %v2393, %v2389
    %v3034 = vpack.c.b16 %v2398, %v2394
    %v3035 = vpack.c.b16 %v2399, %v2395
    %v3036 = vpack.c.b16 %v2400, %v2396
    %v3037 = vpack.c.b16 %v2401, %v2397
    %v3038 = vpack.c.b16 %v2406, %v2402
    %v3039 = vpack.c.b16 %v2407, %v2403
    %v3040 = vpack.c.b16 %v2408, %v2404
    %v3041 = vpack.c.b16 %v2409, %v2405
    %v3042 = vpack.c.b16 %v2414, %v2410
    %v3043 = vpack.c.b16 %v2415, %v2411
    %v3044 = vpack.c.b16 %v2416, %v2412
    %v3045 = vpack.c.b16 %v2417, %v2413
    %v3046 = vpack.c.b16 %v2422, %v2418
    %v3047 = vpack.c.b16 %v2423, %v2419
    %v3048 = vpack.c.b16 %v2424, %v2420
    %v3049 = vpack.c.b16 %v2425, %v2421
    %v3050 = vpack.c.b16 %v2430, %v2426
    %v3051 = vpack.c.b16 %v2431, %v2427
    %v3052 = vpack.c.b16 %v2432, %v2428
    %v3053 = vpack.c.b16 %v2433, %v2429
    %v3054 = vpack.c.b16 %v2438, %v2434
    %v3055 = vpack.c.b16 %v2439, %v2435
    %v3056 = vpack.c.b16 %v2440, %v2436
    %v3057 = vpack.c.b16 %v2441, %v2437
    %v3058 = vpack.c.b16 %v2446, %v2442
    %v3059 = vpack.c.b16 %v2447, %v2443
    %v3060 = vpack.c.b16 %v2448, %v2444
    %v3061 = vpack.c.b16 %v2449, %v2445
    %v3062 = vpack.c.b16 %v2454, %v2450
    %v3063 = vpack.c.b16 %v2455, %v2451
    %v3064 = vpack.c.b16 %v2456, %v2452
    %v3065 = vpack.c.b16 %v2457, %v2453
    %v3066 = vpack.c.b16 %v2462, %v2458
    %v3067 = vpack.c.b16 %v2463, %v2459
    %v3068 = vpack.c.b16 %v2464, %v2460
    %v3069 = vpack.c.b16 %v2465, %v2461
    %v3070 = vpack.c.b16 %v2470, %v2466
    %v3071 = vpack.c.b16 %v2471, %v2467
    %v3072 = vpack.c.b16 %v2472, %v2468
    %v3073 = vpack.c.b16 %v2473, %v2469
    %v3074 = vpack.c.b16 %v2478, %v2474
    %v3075 = vpack.c.b16 %v2479, %v2475
    %v3076 = vpack.c.b16 %v2480, %v2476
    %v3077 = vpack.c.b16 %v2481, %v2477
    %v3078 = vpack.c.b16 %v2486, %v2482
    %v3079 = vpack.c.b16 %v2487, %v2483
    %v3080 = vpack.c.b16 %v2488, %v2484
    %v3081 = vpack.c.b16 %v2489, %v2485
    %v3082 = vpack.c.b16 %v2494, %v2490
    %v3083 = vpack.c.b16 %v2495, %v2491
    %v3084 = vpack.c.b16 %v2496, %v2492
    %v3085 = vpack.c.b16 %v2497, %v2493
    %v3086 = vpack.c.b16 %v2502, %v2498
    %v3087 = vpack.c.b16 %v2503, %v2499
    %v3088 = vpack.c.b16 %v2504, %v2500
    %v3089 = vpack.c.b16 %v2505, %v2501
    %v3090 = vpack.c.b16 %v2510, %v2506
    %v3091 = vpack.c.b16 %v2511, %v2507
    %v3092 = vpack.c.b16 %v2512, %v2508
    %v3093 = vpack.c.b16 %v2513, %v2509
    %v3094 = vpack.c.b16 %v2518, %v2514
    %v3095 = vpack.c.b16 %v2519, %v2515
    %v3096 = vpack.c.b16 %v2520, %v2516
    %v3097 = vpack.c.b16 %v2521, %v2517
    %v3098 = vpack.c.b16 %v2526, %v2522
    %v3099 = vpack.c.b16 %v2527, %v2523
    %v3100 = vpack.c.b16 %v2528, %v2524
    %v3101 = vpack.c.b16 %v2529, %v2525
    %v3102 = vpack.c.b16 %v2534, %v2530
    %v3103 = vpack.c.b16 %v2535, %v2531
    %v3104 = vpack.c.b16 %v2536, %v2532
    %v3105 = vpack.c.b16 %v2537, %v2533
    %v3106 = vpack.c.b16 %v2542, %v2538
    %v3107 = vpack.c.b16 %v2543, %v2539
    %v3108 = vpack.c.b16 %v2544, %v2540
    %v3109 = vpack.c.b16 %v2545, %v2541
    %v3110 = vpack.c.b16 %v2550, %v2546
    %v3111 = vpack.c.b16 %v2551, %v2547
    %v3112 = vpack.c.b16 %v2552, %v2548
    %v3113 = vpack.c.b16 %v2553, %v2549
    %v3114 = vpack.c.b16 %v2558, %v2554
    %v3115 = vpack.c.b16 %v2559, %v2555
    %v3116 = vpack.c.b16 %v2560, %v2556
    %v3117 = vpack.c.b16 %v2561, %v2557
    %v3118 = vpack.c.b16 %v2566, %v2562
    %v3119 = vpack.c.b16 %v2567, %v2563
    %v3120 = vpack.c.b16 %v2568, %v2564
    %v3121 = vpack.c.b16 %v2569, %v2565
    %v3122 = vpack.c.b16 %v2574, %v2570
    %v3123 = vpack.c.b16 %v2575, %v2571
    %v3124 = vpack.c.b16 %v2576, %v2572
    %v3125 = vpack.c.b16 %v2577, %v2573
    %v3126 = vpack.c.b16 %v2582, %v2578
    %v3127 = vpack.c.b16 %v2583, %v2579
    %v3128 = vpack.c.b16 %v2584, %v2580
    %v3129 = vpack.c.b16 %v2585, %v2581
    %v3130 = vpack.c.b16 %v2590, %v2586
    %v3131 = vpack.c.b16 %v2591, %v2587
    %v3132 = vpack.c.b16 %v2592, %v2588
    %v3133 = vpack.c.b16 %v2593, %v2589
    %v3134 = vpack.c.b16 %v2598, %v2594
    %v3135 = vpack.c.b16 %v2599, %v2595
    %v3136 = vpack.c.b16 %v2600, %v2596
    %v3137 = vpack.c.b16 %v2601, %v2597
    %v3138 = vpack.c.b16 %v2606, %v2602
    %v3139 = vpack.c.b16 %v2607, %v2603
    %v3140 = vpack.c.b16 %v2608, %v2604
    %v3141 = vpack.c.b16 %v2609, %v2605
    %v3142 = vpack.c.b16 %v2614, %v2610
    %v3143 = vpack.c.b16 %v2615, %v2611
    %v3144 = vpack.c.b16 %v2616, %v2612
    %v3145 = vpack.c.b16 %v2617, %v2613
    %v3146 = vpack.c.b16 %v2622, %v2618
    %v3147 = vpack.c.b16 %v2623, %v2619
    %v3148 = vpack.c.b16 %v2624, %v2620
    %v3149 = vpack.c.b16 %v2625, %v2621
    %v3150 = vpack.c.b16 %v2630, %v2626
    %v3151 = vpack.c.b16 %v2631, %v2627
    %v3152 = vpack.c.b16 %v2632, %v2628
    %v3153 = vpack.c.b16 %v2633, %v2629
    %v3154 = vpack.c.b16 %v2638, %v2634
    %v3155 = vpack.c.b16 %v2639, %v2635
    %v3156 = vpack.c.b16 %v2640, %v2636
    %v3157 = vpack.c.b16 %v2641, %v2637
    %v3158 = vpack.c.b16 %v2646, %v2642
    %v3159 = vpack.c.b16 %v2647, %v2643
    %v3160 = vpack.c.b16 %v2648, %v2644
    %v3161 = vpack.c.b16 %v2649, %v2645
    %3674 = vmatpush.bf16.msra.mxu0 %v2678
    %3675 = vmatpush.bf16.msra.mxu0 %v2674
    %3676 = vmatpush.bf16.msra.mxu0 %v2670
    %3677 = vmatpush.bf16.msra.mxu0 %v2666
    %3678 = vmatpush.bf16.msra.mxu0 %v2662
    %3679 = vmatpush.bf16.msra.mxu0 %v2658
    %3680 = vmatpush.bf16.msra.mxu0 %v2654
    %3681 = vmatpush.bf16.msra.mxu0 %v2650
    %3682 = vmatmul.bf16.gmra.mxu0 %v1082
    %v3683 = vpop.f32.mrf.mxu0
    %v3684 = vadd.f32 %v994, %v3683
    %v3685 = vpop.f32.mrf.mxu0
    %3686 = vdwg.mxu0
    %3687 = vmatpush.bf16.msra.mxu0 %v2710
    %3688 = vmatpush.bf16.msra.mxu0 %v2706
    %3689 = vmatpush.bf16.msra.mxu0 %v2702
    %3690 = vmatpush.bf16.msra.mxu0 %v2698
    %3691 = vmatpush.bf16.msra.mxu0 %v2694
    %3692 = vmatpush.bf16.msra.mxu0 %v2690
    %3693 = vmatpush.bf16.msra.mxu0 %v2686
    %3694 = vmatpush.bf16.msra.mxu0 %v2682
    %3695 = vmatmul.bf16.gmra.mxu0 %v1083
    %v3696 = vpop.f32.mrf.mxu0
    %v3697 = vadd.f32 %v3684, %v3696
    %v3698 = vpop.f32.mrf.mxu0
    %3699 = vdwg.mxu0
    %3700 = vmatpush.bf16.msra.mxu0 %v2742
    %3701 = vmatpush.bf16.msra.mxu0 %v2738
    %3702 = vmatpush.bf16.msra.mxu0 %v2734
    %3703 = vmatpush.bf16.msra.mxu0 %v2730
    %3704 = vmatpush.bf16.msra.mxu0 %v2726
    %3705 = vmatpush.bf16.msra.mxu0 %v2722
    %3706 = vmatpush.bf16.msra.mxu0 %v2718
    %3707 = vmatpush.bf16.msra.mxu0 %v2714
    %3708 = vmatmul.bf16.gmra.mxu0 %v1084
    %v3709 = vpop.f32.mrf.mxu0
    %v3710 = vadd.f32 %v3697, %v3709
    %v3711 = vpop.f32.mrf.mxu0
    %3712 = vdwg.mxu0
    %3713 = vmatpush.bf16.msra.mxu0 %v2774
    %3714 = vmatpush.bf16.msra.mxu0 %v2770
    %3715 = vmatpush.bf16.msra.mxu0 %v2766
    %3716 = vmatpush.bf16.msra.mxu0 %v2762
    %3717 = vmatpush.bf16.msra.mxu0 %v2758
    %3718 = vmatpush.bf16.msra.mxu0 %v2754
    %3719 = vmatpush.bf16.msra.mxu0 %v2750
    %3720 = vmatpush.bf16.msra.mxu0 %v2746
    %3721 = vmatmul.bf16.gmra.mxu0 %v1085
    %v3722 = vpop.f32.mrf.mxu0
    %v3723 = vadd.f32 %v3710, %v3722
    %v3724 = vpop.f32.mrf.mxu0
    %3725 = vdwg.mxu0
    %3726 = vmatpush.bf16.msra.mxu0 %v2806
    %3727 = vmatpush.bf16.msra.mxu0 %v2802
    %3728 = vmatpush.bf16.msra.mxu0 %v2798
    %3729 = vmatpush.bf16.msra.mxu0 %v2794
    %3730 = vmatpush.bf16.msra.mxu0 %v2790
    %3731 = vmatpush.bf16.msra.mxu0 %v2786
    %3732 = vmatpush.bf16.msra.mxu0 %v2782
    %3733 = vmatpush.bf16.msra.mxu0 %v2778
    %3734 = vmatmul.bf16.gmra.mxu0 %v1086
    %v3735 = vpop.f32.mrf.mxu0
    %v3736 = vadd.f32 %v3723, %v3735
    %v3737 = vpop.f32.mrf.mxu0
    %3738 = vdwg.mxu0
    %3739 = vmatpush.bf16.msra.mxu0 %v2838
    %3740 = vmatpush.bf16.msra.mxu0 %v2834
    %3741 = vmatpush.bf16.msra.mxu0 %v2830
    %3742 = vmatpush.bf16.msra.mxu0 %v2826
    %3743 = vmatpush.bf16.msra.mxu0 %v2822
    %3744 = vmatpush.bf16.msra.mxu0 %v2818
    %3745 = vmatpush.bf16.msra.mxu0 %v2814
    %3746 = vmatpush.bf16.msra.mxu0 %v2810
    %3747 = vmatmul.bf16.gmra.mxu0 %v1087
    %v3748 = vpop.f32.mrf.mxu0
    %v3749 = vadd.f32 %v3736, %v3748
    %v3750 = vpop.f32.mrf.mxu0
    %3751 = vdwg.mxu0
    %3752 = vmatpush.bf16.msra.mxu0 %v2870
    %3753 = vmatpush.bf16.msra.mxu0 %v2866
    %3754 = vmatpush.bf16.msra.mxu0 %v2862
    %3755 = vmatpush.bf16.msra.mxu0 %v2858
    %3756 = vmatpush.bf16.msra.mxu0 %v2854
    %3757 = vmatpush.bf16.msra.mxu0 %v2850
    %3758 = vmatpush.bf16.msra.mxu0 %v2846
    %3759 = vmatpush.bf16.msra.mxu0 %v2842
    %3760 = vmatmul.bf16.gmra.mxu0 %v1088
    %v3761 = vpop.f32.mrf.mxu0
    %v3762 = vadd.f32 %v3749, %v3761
    %v3763 = vpop.f32.mrf.mxu0
    %3764 = vdwg.mxu0
    %3765 = vmatpush.bf16.msra.mxu0 %v2902
    %3766 = vmatpush.bf16.msra.mxu0 %v2898
    %3767 = vmatpush.bf16.msra.mxu0 %v2894
    %3768 = vmatpush.bf16.msra.mxu0 %v2890
    %3769 = vmatpush.bf16.msra.mxu0 %v2886
    %3770 = vmatpush.bf16.msra.mxu0 %v2882
    %3771 = vmatpush.bf16.msra.mxu0 %v2878
    %3772 = vmatpush.bf16.msra.mxu0 %v2874
    %3773 = vmatmul.bf16.gmra.mxu0 %v1089
    %v3774 = vpop.f32.mrf.mxu0
    %v3775 = vadd.f32 %v3762, %v3774
    %v3776 = vpop.f32.mrf.mxu0
    %3777 = vdwg.mxu0
    %3778 = vmatpush.bf16.msra.mxu0 %v2934
    %3779 = vmatpush.bf16.msra.mxu0 %v2930
    %3780 = vmatpush.bf16.msra.mxu0 %v2926
    %3781 = vmatpush.bf16.msra.mxu0 %v2922
    %3782 = vmatpush.bf16.msra.mxu0 %v2918
    %3783 = vmatpush.bf16.msra.mxu0 %v2914
    %3784 = vmatpush.bf16.msra.mxu0 %v2910
    %3785 = vmatpush.bf16.msra.mxu0 %v2906
    %3786 = vmatmul.bf16.gmra.mxu0 %v1090
    %v3787 = vpop.f32.mrf.mxu0
    %v3788 = vadd.f32 %v3775, %v3787
    %v3789 = vpop.f32.mrf.mxu0
    %3790 = vdwg.mxu0
    %3791 = vmatpush.bf16.msra.mxu0 %v2966
    %3792 = vmatpush.bf16.msra.mxu0 %v2962
    %3793 = vmatpush.bf16.msra.mxu0 %v2958
    %3794 = vmatpush.bf16.msra.mxu0 %v2954
    %3795 = vmatpush.bf16.msra.mxu0 %v2950
    %3796 = vmatpush.bf16.msra.mxu0 %v2946
    %3797 = vmatpush.bf16.msra.mxu0 %v2942
    %3798 = vmatpush.bf16.msra.mxu0 %v2938
    %3799 = vmatmul.bf16.gmra.mxu0 %v1091
    %v3800 = vpop.f32.mrf.mxu0
    %v3801 = vadd.f32 %v3788, %v3800
    %v3802 = vpop.f32.mrf.mxu0
    %3803 = vdwg.mxu0
    %3804 = vmatpush.bf16.msra.mxu0 %v2998
    %3805 = vmatpush.bf16.msra.mxu0 %v2994
    %3806 = vmatpush.bf16.msra.mxu0 %v2990
    %3807 = vmatpush.bf16.msra.mxu0 %v2986
    %3808 = vmatpush.bf16.msra.mxu0 %v2982
    %3809 = vmatpush.bf16.msra.mxu0 %v2978
    %3810 = vmatpush.bf16.msra.mxu0 %v2974
    %3811 = vmatpush.bf16.msra.mxu0 %v2970
    %3812 = vmatmul.bf16.gmra.mxu0 %v1092
    %v3813 = vpop.f32.mrf.mxu0
    %v3814 = vadd.f32 %v3801, %v3813
    %v3815 = vpop.f32.mrf.mxu0
    %3816 = vdwg.mxu0
    %3817 = vmatpush.bf16.msra.mxu0 %v3030
    %3818 = vmatpush.bf16.msra.mxu0 %v3026
    %3819 = vmatpush.bf16.msra.mxu0 %v3022
    %3820 = vmatpush.bf16.msra.mxu0 %v3018
    %3821 = vmatpush.bf16.msra.mxu0 %v3014
    %3822 = vmatpush.bf16.msra.mxu0 %v3010
    %3823 = vmatpush.bf16.msra.mxu0 %v3006
    %3824 = vmatpush.bf16.msra.mxu0 %v3002
    %3825 = vmatmul.bf16.gmra.mxu0 %v1093
    %v3826 = vpop.f32.mrf.mxu0
    %v3827 = vadd.f32 %v3814, %v3826
    %v3828 = vpop.f32.mrf.mxu0
    %3829 = vdwg.mxu0
    %3830 = vmatpush.bf16.msra.mxu0 %v3062
    %3831 = vmatpush.bf16.msra.mxu0 %v3058
    %3832 = vmatpush.bf16.msra.mxu0 %v3054
    %3833 = vmatpush.bf16.msra.mxu0 %v3050
    %3834 = vmatpush.bf16.msra.mxu0 %v3046
    %3835 = vmatpush.bf16.msra.mxu0 %v3042
    %3836 = vmatpush.bf16.msra.mxu0 %v3038
    %3837 = vmatpush.bf16.msra.mxu0 %v3034
    %3838 = vmatmul.bf16.gmra.mxu0 %v1094
    %v3839 = vpop.f32.mrf.mxu0
    %v3840 = vadd.f32 %v3827, %v3839
    %v3841 = vpop.f32.mrf.mxu0
    %3842 = vdwg.mxu0
    %3843 = vmatpush.bf16.msra.mxu0 %v3094
    %3844 = vmatpush.bf16.msra.mxu0 %v3090
    %3845 = vmatpush.bf16.msra.mxu0 %v3086
    %3846 = vmatpush.bf16.msra.mxu0 %v3082
    %3847 = vmatpush.bf16.msra.mxu0 %v3078
    %3848 = vmatpush.bf16.msra.mxu0 %v3074
    %3849 = vmatpush.bf16.msra.mxu0 %v3070
    %3850 = vmatpush.bf16.msra.mxu0 %v3066
    %3851 = vmatmul.bf16.gmra.mxu0 %v1095
    %v3852 = vpop.f32.mrf.mxu0
    %v3853 = vadd.f32 %v3840, %v3852
    %v3854 = vpop.f32.mrf.mxu0
    %3855 = vdwg.mxu0
    %3856 = vmatpush.bf16.msra.mxu0 %v3126
    %3857 = vmatpush.bf16.msra.mxu0 %v3122
    %3858 = vmatpush.bf16.msra.mxu0 %v3118
    %3859 = vmatpush.bf16.msra.mxu0 %v3114
    %3860 = vmatpush.bf16.msra.mxu0 %v3110
    %3861 = vmatpush.bf16.msra.mxu0 %v3106
    %3862 = vmatpush.bf16.msra.mxu0 %v3102
    %3863 = vmatpush.bf16.msra.mxu0 %v3098
    %3864 = vmatmul.bf16.gmra.mxu0 %v1096
    %v3865 = vpop.f32.mrf.mxu0
    %v3866 = vadd.f32 %v3853, %v3865
    %v3867 = vpop.f32.mrf.mxu0
    %3868 = vdwg.mxu0
    %3869 = vmatpush.bf16.msra.mxu0 %v3158
    %3870 = vmatpush.bf16.msra.mxu0 %v3154
    %3871 = vmatpush.bf16.msra.mxu0 %v3150
    %3872 = vmatpush.bf16.msra.mxu0 %v3146
    %3873 = vmatpush.bf16.msra.mxu0 %v3142
    %3874 = vmatpush.bf16.msra.mxu0 %v3138
    %3875 = vmatpush.bf16.msra.mxu0 %v3134
    %3876 = vmatpush.bf16.msra.mxu0 %v3130
    %3877 = vmatmul.bf16.gmra.mxu0 %v1097
    %v3878 = vpop.f32.mrf.mxu0
    %v3879 = vadd.f32 %v3866, %v3878
    %v3880 = vpop.f32.mrf.mxu0
    %3881 = vdwg.mxu0
    %3882 = vmatpush.bf16.msra.mxu0 %v2679
    %3883 = vmatpush.bf16.msra.mxu0 %v2675
    %3884 = vmatpush.bf16.msra.mxu0 %v2671
    %3885 = vmatpush.bf16.msra.mxu0 %v2667
    %3886 = vmatpush.bf16.msra.mxu0 %v2663
    %3887 = vmatpush.bf16.msra.mxu0 %v2659
    %3888 = vmatpush.bf16.msra.mxu0 %v2655
    %3889 = vmatpush.bf16.msra.mxu0 %v2651
    %3890 = vmatmul.bf16.gmra.mxu0 %v1082
    %v3891 = vpop.f32.mrf.mxu0
    %v3892 = vadd.f32 %v995, %v3891
    %v3893 = vpop.f32.mrf.mxu0
    %3894 = vdwg.mxu0
    %3895 = vmatpush.bf16.msra.mxu0 %v2711
    %3896 = vmatpush.bf16.msra.mxu0 %v2707
    %3897 = vmatpush.bf16.msra.mxu0 %v2703
    %3898 = vmatpush.bf16.msra.mxu0 %v2699
    %3899 = vmatpush.bf16.msra.mxu0 %v2695
    %3900 = vmatpush.bf16.msra.mxu0 %v2691
    %3901 = vmatpush.bf16.msra.mxu0 %v2687
    %3902 = vmatpush.bf16.msra.mxu0 %v2683
    %3903 = vmatmul.bf16.gmra.mxu0 %v1083
    %v3904 = vpop.f32.mrf.mxu0
    %v3905 = vadd.f32 %v3892, %v3904
    %v3906 = vpop.f32.mrf.mxu0
    %3907 = vdwg.mxu0
    %3908 = vmatpush.bf16.msra.mxu0 %v2743
    %3909 = vmatpush.bf16.msra.mxu0 %v2739
    %3910 = vmatpush.bf16.msra.mxu0 %v2735
    %3911 = vmatpush.bf16.msra.mxu0 %v2731
    %3912 = vmatpush.bf16.msra.mxu0 %v2727
    %3913 = vmatpush.bf16.msra.mxu0 %v2723
    %3914 = vmatpush.bf16.msra.mxu0 %v2719
    %3915 = vmatpush.bf16.msra.mxu0 %v2715
    %3916 = vmatmul.bf16.gmra.mxu0 %v1084
    %v3917 = vpop.f32.mrf.mxu0
    %v3918 = vadd.f32 %v3905, %v3917
    %v3919 = vpop.f32.mrf.mxu0
    %3920 = vdwg.mxu0
    %3921 = vmatpush.bf16.msra.mxu0 %v2775
    %3922 = vmatpush.bf16.msra.mxu0 %v2771
    %3923 = vmatpush.bf16.msra.mxu0 %v2767
    %3924 = vmatpush.bf16.msra.mxu0 %v2763
    %3925 = vmatpush.bf16.msra.mxu0 %v2759
    %3926 = vmatpush.bf16.msra.mxu0 %v2755
    %3927 = vmatpush.bf16.msra.mxu0 %v2751
    %3928 = vmatpush.bf16.msra.mxu0 %v2747
    %3929 = vmatmul.bf16.gmra.mxu0 %v1085
    %v3930 = vpop.f32.mrf.mxu0
    %v3931 = vadd.f32 %v3918, %v3930
    %v3932 = vpop.f32.mrf.mxu0
    %3933 = vdwg.mxu0
    %3934 = vmatpush.bf16.msra.mxu0 %v2807
    %3935 = vmatpush.bf16.msra.mxu0 %v2803
    %3936 = vmatpush.bf16.msra.mxu0 %v2799
    %3937 = vmatpush.bf16.msra.mxu0 %v2795
    %3938 = vmatpush.bf16.msra.mxu0 %v2791
    %3939 = vmatpush.bf16.msra.mxu0 %v2787
    %3940 = vmatpush.bf16.msra.mxu0 %v2783
    %3941 = vmatpush.bf16.msra.mxu0 %v2779
    %3942 = vmatmul.bf16.gmra.mxu0 %v1086
    %v3943 = vpop.f32.mrf.mxu0
    %v3944 = vadd.f32 %v3931, %v3943
    %v3945 = vpop.f32.mrf.mxu0
    %3946 = vdwg.mxu0
    %3947 = vmatpush.bf16.msra.mxu0 %v2839
    %3948 = vmatpush.bf16.msra.mxu0 %v2835
    %3949 = vmatpush.bf16.msra.mxu0 %v2831
    %3950 = vmatpush.bf16.msra.mxu0 %v2827
    %3951 = vmatpush.bf16.msra.mxu0 %v2823
    %3952 = vmatpush.bf16.msra.mxu0 %v2819
    %3953 = vmatpush.bf16.msra.mxu0 %v2815
    %3954 = vmatpush.bf16.msra.mxu0 %v2811
    %3955 = vmatmul.bf16.gmra.mxu0 %v1087
    %v3956 = vpop.f32.mrf.mxu0
    %v3957 = vadd.f32 %v3944, %v3956
    %v3958 = vpop.f32.mrf.mxu0
    %3959 = vdwg.mxu0
    %3960 = vmatpush.bf16.msra.mxu0 %v2871
    %3961 = vmatpush.bf16.msra.mxu0 %v2867
    %3962 = vmatpush.bf16.msra.mxu0 %v2863
    %3963 = vmatpush.bf16.msra.mxu0 %v2859
    %3964 = vmatpush.bf16.msra.mxu0 %v2855
    %3965 = vmatpush.bf16.msra.mxu0 %v2851
    %3966 = vmatpush.bf16.msra.mxu0 %v2847
    %3967 = vmatpush.bf16.msra.mxu0 %v2843
    %3968 = vmatmul.bf16.gmra.mxu0 %v1088
    %v3969 = vpop.f32.mrf.mxu0
    %v3970 = vadd.f32 %v3957, %v3969
    %v3971 = vpop.f32.mrf.mxu0
    %3972 = vdwg.mxu0
    %3973 = vmatpush.bf16.msra.mxu0 %v2903
    %3974 = vmatpush.bf16.msra.mxu0 %v2899
    %3975 = vmatpush.bf16.msra.mxu0 %v2895
    %3976 = vmatpush.bf16.msra.mxu0 %v2891
    %3977 = vmatpush.bf16.msra.mxu0 %v2887
    %3978 = vmatpush.bf16.msra.mxu0 %v2883
    %3979 = vmatpush.bf16.msra.mxu0 %v2879
    %3980 = vmatpush.bf16.msra.mxu0 %v2875
    %3981 = vmatmul.bf16.gmra.mxu0 %v1089
    %v3982 = vpop.f32.mrf.mxu0
    %v3983 = vadd.f32 %v3970, %v3982
    %v3984 = vpop.f32.mrf.mxu0
    %3985 = vdwg.mxu0
    %3986 = vmatpush.bf16.msra.mxu0 %v2935
    %3987 = vmatpush.bf16.msra.mxu0 %v2931
    %3988 = vmatpush.bf16.msra.mxu0 %v2927
    %3989 = vmatpush.bf16.msra.mxu0 %v2923
    %3990 = vmatpush.bf16.msra.mxu0 %v2919
    %3991 = vmatpush.bf16.msra.mxu0 %v2915
    %3992 = vmatpush.bf16.msra.mxu0 %v2911
    %3993 = vmatpush.bf16.msra.mxu0 %v2907
    %3994 = vmatmul.bf16.gmra.mxu0 %v1090
    %v3995 = vpop.f32.mrf.mxu0
    %v3996 = vadd.f32 %v3983, %v3995
    %v3997 = vpop.f32.mrf.mxu0
    %3998 = vdwg.mxu0
    %3999 = vmatpush.bf16.msra.mxu0 %v2967
    %4000 = vmatpush.bf16.msra.mxu0 %v2963
    %4001 = vmatpush.bf16.msra.mxu0 %v2959
    %4002 = vmatpush.bf16.msra.mxu0 %v2955
    %4003 = vmatpush.bf16.msra.mxu0 %v2951
    %4004 = vmatpush.bf16.msra.mxu0 %v2947
    %4005 = vmatpush.bf16.msra.mxu0 %v2943
    %4006 = vmatpush.bf16.msra.mxu0 %v2939
    %4007 = vmatmul.bf16.gmra.mxu0 %v1091
    %v4008 = vpop.f32.mrf.mxu0
    %v4009 = vadd.f32 %v3996, %v4008
    %v4010 = vpop.f32.mrf.mxu0
    %4011 = vdwg.mxu0
    %4012 = vmatpush.bf16.msra.mxu0 %v2999
    %4013 = vmatpush.bf16.msra.mxu0 %v2995
    %4014 = vmatpush.bf16.msra.mxu0 %v2991
    %4015 = vmatpush.bf16.msra.mxu0 %v2987
    %4016 = vmatpush.bf16.msra.mxu0 %v2983
    %4017 = vmatpush.bf16.msra.mxu0 %v2979
    %4018 = vmatpush.bf16.msra.mxu0 %v2975
    %4019 = vmatpush.bf16.msra.mxu0 %v2971
    %4020 = vmatmul.bf16.gmra.mxu0 %v1092
    %v4021 = vpop.f32.mrf.mxu0
    %v4022 = vadd.f32 %v4009, %v4021
    %v4023 = vpop.f32.mrf.mxu0
    %4024 = vdwg.mxu0
    %4025 = vmatpush.bf16.msra.mxu0 %v3031
    %4026 = vmatpush.bf16.msra.mxu0 %v3027
    %4027 = vmatpush.bf16.msra.mxu0 %v3023
    %4028 = vmatpush.bf16.msra.mxu0 %v3019
    %4029 = vmatpush.bf16.msra.mxu0 %v3015
    %4030 = vmatpush.bf16.msra.mxu0 %v3011
    %4031 = vmatpush.bf16.msra.mxu0 %v3007
    %4032 = vmatpush.bf16.msra.mxu0 %v3003
    %4033 = vmatmul.bf16.gmra.mxu0 %v1093
    %v4034 = vpop.f32.mrf.mxu0
    %v4035 = vadd.f32 %v4022, %v4034
    %v4036 = vpop.f32.mrf.mxu0
    %4037 = vdwg.mxu0
    %4038 = vmatpush.bf16.msra.mxu0 %v3063
    %4039 = vmatpush.bf16.msra.mxu0 %v3059
    %4040 = vmatpush.bf16.msra.mxu0 %v3055
    %4041 = vmatpush.bf16.msra.mxu0 %v3051
    %4042 = vmatpush.bf16.msra.mxu0 %v3047
    %4043 = vmatpush.bf16.msra.mxu0 %v3043
    %4044 = vmatpush.bf16.msra.mxu0 %v3039
    %4045 = vmatpush.bf16.msra.mxu0 %v3035
    %4046 = vmatmul.bf16.gmra.mxu0 %v1094
    %v4047 = vpop.f32.mrf.mxu0
    %v4048 = vadd.f32 %v4035, %v4047
    %v4049 = vpop.f32.mrf.mxu0
    %4050 = vdwg.mxu0
    %4051 = vmatpush.bf16.msra.mxu0 %v3095
    %4052 = vmatpush.bf16.msra.mxu0 %v3091
    %4053 = vmatpush.bf16.msra.mxu0 %v3087
    %4054 = vmatpush.bf16.msra.mxu0 %v3083
    %4055 = vmatpush.bf16.msra.mxu0 %v3079
    %4056 = vmatpush.bf16.msra.mxu0 %v3075
    %4057 = vmatpush.bf16.msra.mxu0 %v3071
    %4058 = vmatpush.bf16.msra.mxu0 %v3067
    %4059 = vmatmul.bf16.gmra.mxu0 %v1095
    %v4060 = vpop.f32.mrf.mxu0
    %v4061 = vadd.f32 %v4048, %v4060
    %v4062 = vpop.f32.mrf.mxu0
    %4063 = vdwg.mxu0
    %4064 = vmatpush.bf16.msra.mxu0 %v3127
    %4065 = vmatpush.bf16.msra.mxu0 %v3123
    %4066 = vmatpush.bf16.msra.mxu0 %v3119
    %4067 = vmatpush.bf16.msra.mxu0 %v3115
    %4068 = vmatpush.bf16.msra.mxu0 %v3111
    %4069 = vmatpush.bf16.msra.mxu0 %v3107
    %4070 = vmatpush.bf16.msra.mxu0 %v3103
    %4071 = vmatpush.bf16.msra.mxu0 %v3099
    %4072 = vmatmul.bf16.gmra.mxu0 %v1096
    %v4073 = vpop.f32.mrf.mxu0
    %v4074 = vadd.f32 %v4061, %v4073
    %v4075 = vpop.f32.mrf.mxu0
    %4076 = vdwg.mxu0
    %4077 = vmatpush.bf16.msra.mxu0 %v3159
    %4078 = vmatpush.bf16.msra.mxu0 %v3155
    %4079 = vmatpush.bf16.msra.mxu0 %v3151
    %4080 = vmatpush.bf16.msra.mxu0 %v3147
    %4081 = vmatpush.bf16.msra.mxu0 %v3143
    %4082 = vmatpush.bf16.msra.mxu0 %v3139
    %4083 = vmatpush.bf16.msra.mxu0 %v3135
    %4084 = vmatpush.bf16.msra.mxu0 %v3131
    %4085 = vmatmul.bf16.gmra.mxu0 %v1097
    %v4086 = vpop.f32.mrf.mxu0
    %v4087 = vadd.f32 %v4074, %v4086
    %v4088 = vpop.f32.mrf.mxu0
    %4089 = vdwg.mxu0
    %4090 = vmatpush.bf16.msra.mxu0 %v2680
    %4091 = vmatpush.bf16.msra.mxu0 %v2676
    %4092 = vmatpush.bf16.msra.mxu0 %v2672
    %4093 = vmatpush.bf16.msra.mxu0 %v2668
    %4094 = vmatpush.bf16.msra.mxu0 %v2664
    %4095 = vmatpush.bf16.msra.mxu0 %v2660
    %4096 = vmatpush.bf16.msra.mxu0 %v2656
    %4097 = vmatpush.bf16.msra.mxu0 %v2652
    %4098 = vmatmul.bf16.gmra.mxu0 %v1082
    %v4099 = vpop.f32.mrf.mxu0
    %v4100 = vadd.f32 %v996, %v4099
    %v4101 = vpop.f32.mrf.mxu0
    %4102 = vdwg.mxu0
    %4103 = vmatpush.bf16.msra.mxu0 %v2712
    %4104 = vmatpush.bf16.msra.mxu0 %v2708
    %4105 = vmatpush.bf16.msra.mxu0 %v2704
    %4106 = vmatpush.bf16.msra.mxu0 %v2700
    %4107 = vmatpush.bf16.msra.mxu0 %v2696
    %4108 = vmatpush.bf16.msra.mxu0 %v2692
    %4109 = vmatpush.bf16.msra.mxu0 %v2688
    %4110 = vmatpush.bf16.msra.mxu0 %v2684
    %4111 = vmatmul.bf16.gmra.mxu0 %v1083
    %v4112 = vpop.f32.mrf.mxu0
    %v4113 = vadd.f32 %v4100, %v4112
    %v4114 = vpop.f32.mrf.mxu0
    %4115 = vdwg.mxu0
    %4116 = vmatpush.bf16.msra.mxu0 %v2744
    %4117 = vmatpush.bf16.msra.mxu0 %v2740
    %4118 = vmatpush.bf16.msra.mxu0 %v2736
    %4119 = vmatpush.bf16.msra.mxu0 %v2732
    %4120 = vmatpush.bf16.msra.mxu0 %v2728
    %4121 = vmatpush.bf16.msra.mxu0 %v2724
    %4122 = vmatpush.bf16.msra.mxu0 %v2720
    %4123 = vmatpush.bf16.msra.mxu0 %v2716
    %4124 = vmatmul.bf16.gmra.mxu0 %v1084
    %v4125 = vpop.f32.mrf.mxu0
    %v4126 = vadd.f32 %v4113, %v4125
    %v4127 = vpop.f32.mrf.mxu0
    %4128 = vdwg.mxu0
    %4129 = vmatpush.bf16.msra.mxu0 %v2776
    %4130 = vmatpush.bf16.msra.mxu0 %v2772
    %4131 = vmatpush.bf16.msra.mxu0 %v2768
    %4132 = vmatpush.bf16.msra.mxu0 %v2764
    %4133 = vmatpush.bf16.msra.mxu0 %v2760
    %4134 = vmatpush.bf16.msra.mxu0 %v2756
    %4135 = vmatpush.bf16.msra.mxu0 %v2752
    %4136 = vmatpush.bf16.msra.mxu0 %v2748
    %4137 = vmatmul.bf16.gmra.mxu0 %v1085
    %v4138 = vpop.f32.mrf.mxu0
    %v4139 = vadd.f32 %v4126, %v4138
    %v4140 = vpop.f32.mrf.mxu0
    %4141 = vdwg.mxu0
    %4142 = vmatpush.bf16.msra.mxu0 %v2808
    %4143 = vmatpush.bf16.msra.mxu0 %v2804
    %4144 = vmatpush.bf16.msra.mxu0 %v2800
    %4145 = vmatpush.bf16.msra.mxu0 %v2796
    %4146 = vmatpush.bf16.msra.mxu0 %v2792
    %4147 = vmatpush.bf16.msra.mxu0 %v2788
    %4148 = vmatpush.bf16.msra.mxu0 %v2784
    %4149 = vmatpush.bf16.msra.mxu0 %v2780
    %4150 = vmatmul.bf16.gmra.mxu0 %v1086
    %v4151 = vpop.f32.mrf.mxu0
    %v4152 = vadd.f32 %v4139, %v4151
    %v4153 = vpop.f32.mrf.mxu0
    %4154 = vdwg.mxu0
    %4155 = vmatpush.bf16.msra.mxu0 %v2840
    %4156 = vmatpush.bf16.msra.mxu0 %v2836
    %4157 = vmatpush.bf16.msra.mxu0 %v2832
    %4158 = vmatpush.bf16.msra.mxu0 %v2828
    %4159 = vmatpush.bf16.msra.mxu0 %v2824
    %4160 = vmatpush.bf16.msra.mxu0 %v2820
    %4161 = vmatpush.bf16.msra.mxu0 %v2816
    %4162 = vmatpush.bf16.msra.mxu0 %v2812
    %4163 = vmatmul.bf16.gmra.mxu0 %v1087
    %v4164 = vpop.f32.mrf.mxu0
    %v4165 = vadd.f32 %v4152, %v4164
    %v4166 = vpop.f32.mrf.mxu0
    %4167 = vdwg.mxu0
    %4168 = vmatpush.bf16.msra.mxu0 %v2872
    %4169 = vmatpush.bf16.msra.mxu0 %v2868
    %4170 = vmatpush.bf16.msra.mxu0 %v2864
    %4171 = vmatpush.bf16.msra.mxu0 %v2860
    %4172 = vmatpush.bf16.msra.mxu0 %v2856
    %4173 = vmatpush.bf16.msra.mxu0 %v2852
    %4174 = vmatpush.bf16.msra.mxu0 %v2848
    %4175 = vmatpush.bf16.msra.mxu0 %v2844
    %4176 = vmatmul.bf16.gmra.mxu0 %v1088
    %v4177 = vpop.f32.mrf.mxu0
    %v4178 = vadd.f32 %v4165, %v4177
    %v4179 = vpop.f32.mrf.mxu0
    %4180 = vdwg.mxu0
    %4181 = vmatpush.bf16.msra.mxu0 %v2904
    %4182 = vmatpush.bf16.msra.mxu0 %v2900
    %4183 = vmatpush.bf16.msra.mxu0 %v2896
    %4184 = vmatpush.bf16.msra.mxu0 %v2892
    %4185 = vmatpush.bf16.msra.mxu0 %v2888
    %4186 = vmatpush.bf16.msra.mxu0 %v2884
    %4187 = vmatpush.bf16.msra.mxu0 %v2880
    %4188 = vmatpush.bf16.msra.mxu0 %v2876
    %4189 = vmatmul.bf16.gmra.mxu0 %v1089
    %v4190 = vpop.f32.mrf.mxu0
    %v4191 = vadd.f32 %v4178, %v4190
    %v4192 = vpop.f32.mrf.mxu0
    %4193 = vdwg.mxu0
    %4194 = vmatpush.bf16.msra.mxu0 %v2936
    %4195 = vmatpush.bf16.msra.mxu0 %v2932
    %4196 = vmatpush.bf16.msra.mxu0 %v2928
    %4197 = vmatpush.bf16.msra.mxu0 %v2924
    %4198 = vmatpush.bf16.msra.mxu0 %v2920
    %4199 = vmatpush.bf16.msra.mxu0 %v2916
    %4200 = vmatpush.bf16.msra.mxu0 %v2912
    %4201 = vmatpush.bf16.msra.mxu0 %v2908
    %4202 = vmatmul.bf16.gmra.mxu0 %v1090
    %v4203 = vpop.f32.mrf.mxu0
    %v4204 = vadd.f32 %v4191, %v4203
    %v4205 = vpop.f32.mrf.mxu0
    %4206 = vdwg.mxu0
    %4207 = vmatpush.bf16.msra.mxu0 %v2968
    %4208 = vmatpush.bf16.msra.mxu0 %v2964
    %4209 = vmatpush.bf16.msra.mxu0 %v2960
    %4210 = vmatpush.bf16.msra.mxu0 %v2956
    %4211 = vmatpush.bf16.msra.mxu0 %v2952
    %4212 = vmatpush.bf16.msra.mxu0 %v2948
    %4213 = vmatpush.bf16.msra.mxu0 %v2944
    %4214 = vmatpush.bf16.msra.mxu0 %v2940
    %4215 = vmatmul.bf16.gmra.mxu0 %v1091
    %v4216 = vpop.f32.mrf.mxu0
    %v4217 = vadd.f32 %v4204, %v4216
    %v4218 = vpop.f32.mrf.mxu0
    %4219 = vdwg.mxu0
    %4220 = vmatpush.bf16.msra.mxu0 %v3000
    %4221 = vmatpush.bf16.msra.mxu0 %v2996
    %4222 = vmatpush.bf16.msra.mxu0 %v2992
    %4223 = vmatpush.bf16.msra.mxu0 %v2988
    %4224 = vmatpush.bf16.msra.mxu0 %v2984
    %4225 = vmatpush.bf16.msra.mxu0 %v2980
    %4226 = vmatpush.bf16.msra.mxu0 %v2976
    %4227 = vmatpush.bf16.msra.mxu0 %v2972
    %4228 = vmatmul.bf16.gmra.mxu0 %v1092
    %v4229 = vpop.f32.mrf.mxu0
    %v4230 = vadd.f32 %v4217, %v4229
    %v4231 = vpop.f32.mrf.mxu0
    %4232 = vdwg.mxu0
    %4233 = vmatpush.bf16.msra.mxu0 %v3032
    %4234 = vmatpush.bf16.msra.mxu0 %v3028
    %4235 = vmatpush.bf16.msra.mxu0 %v3024
    %4236 = vmatpush.bf16.msra.mxu0 %v3020
    %4237 = vmatpush.bf16.msra.mxu0 %v3016
    %4238 = vmatpush.bf16.msra.mxu0 %v3012
    %4239 = vmatpush.bf16.msra.mxu0 %v3008
    %4240 = vmatpush.bf16.msra.mxu0 %v3004
    %4241 = vmatmul.bf16.gmra.mxu0 %v1093
    %v4242 = vpop.f32.mrf.mxu0
    %v4243 = vadd.f32 %v4230, %v4242
    %v4244 = vpop.f32.mrf.mxu0
    %4245 = vdwg.mxu0
    %4246 = vmatpush.bf16.msra.mxu0 %v3064
    %4247 = vmatpush.bf16.msra.mxu0 %v3060
    %4248 = vmatpush.bf16.msra.mxu0 %v3056
    %4249 = vmatpush.bf16.msra.mxu0 %v3052
    %4250 = vmatpush.bf16.msra.mxu0 %v3048
    %4251 = vmatpush.bf16.msra.mxu0 %v3044
    %4252 = vmatpush.bf16.msra.mxu0 %v3040
    %4253 = vmatpush.bf16.msra.mxu0 %v3036
    %4254 = vmatmul.bf16.gmra.mxu0 %v1094
    %v4255 = vpop.f32.mrf.mxu0
    %v4256 = vadd.f32 %v4243, %v4255
    %v4257 = vpop.f32.mrf.mxu0
    %4258 = vdwg.mxu0
    %4259 = vmatpush.bf16.msra.mxu0 %v3096
    %4260 = vmatpush.bf16.msra.mxu0 %v3092
    %4261 = vmatpush.bf16.msra.mxu0 %v3088
    %4262 = vmatpush.bf16.msra.mxu0 %v3084
    %4263 = vmatpush.bf16.msra.mxu0 %v3080
    %4264 = vmatpush.bf16.msra.mxu0 %v3076
    %4265 = vmatpush.bf16.msra.mxu0 %v3072
    %4266 = vmatpush.bf16.msra.mxu0 %v3068
    %4267 = vmatmul.bf16.gmra.mxu0 %v1095
    %v4268 = vpop.f32.mrf.mxu0
    %v4269 = vadd.f32 %v4256, %v4268
    %v4270 = vpop.f32.mrf.mxu0
    %4271 = vdwg.mxu0
    %4272 = vmatpush.bf16.msra.mxu0 %v3128
    %4273 = vmatpush.bf16.msra.mxu0 %v3124
    %4274 = vmatpush.bf16.msra.mxu0 %v3120
    %4275 = vmatpush.bf16.msra.mxu0 %v3116
    %4276 = vmatpush.bf16.msra.mxu0 %v3112
    %4277 = vmatpush.bf16.msra.mxu0 %v3108
    %4278 = vmatpush.bf16.msra.mxu0 %v3104
    %4279 = vmatpush.bf16.msra.mxu0 %v3100
    %4280 = vmatmul.bf16.gmra.mxu0 %v1096
    %v4281 = vpop.f32.mrf.mxu0
    %v4282 = vadd.f32 %v4269, %v4281
    %v4283 = vpop.f32.mrf.mxu0
    %4284 = vdwg.mxu0
    %4285 = vmatpush.bf16.msra.mxu0 %v3160
    %4286 = vmatpush.bf16.msra.mxu0 %v3156
    %4287 = vmatpush.bf16.msra.mxu0 %v3152
    %4288 = vmatpush.bf16.msra.mxu0 %v3148
    %4289 = vmatpush.bf16.msra.mxu0 %v3144
    %4290 = vmatpush.bf16.msra.mxu0 %v3140
    %4291 = vmatpush.bf16.msra.mxu0 %v3136
    %4292 = vmatpush.bf16.msra.mxu0 %v3132
    %4293 = vmatmul.bf16.gmra.mxu0 %v1097
    %v4294 = vpop.f32.mrf.mxu0
    %v4295 = vadd.f32 %v4282, %v4294
    %v4296 = vpop.f32.mrf.mxu0
    %4297 = vdwg.mxu0
    %4298 = vmatpush.bf16.msra.mxu0 %v2681
    %4299 = vmatpush.bf16.msra.mxu0 %v2677
    %4300 = vmatpush.bf16.msra.mxu0 %v2673
    %4301 = vmatpush.bf16.msra.mxu0 %v2669
    %4302 = vmatpush.bf16.msra.mxu0 %v2665
    %4303 = vmatpush.bf16.msra.mxu0 %v2661
    %4304 = vmatpush.bf16.msra.mxu0 %v2657
    %4305 = vmatpush.bf16.msra.mxu0 %v2653
    %4306 = vmatmul.bf16.gmra.mxu0 %v1082
    %v4307 = vpop.f32.mrf.mxu0
    %v4308 = vadd.f32 %v997, %v4307
    %v4309 = vpop.f32.mrf.mxu0
    %4310 = vdwg.mxu0
    %4311 = vmatpush.bf16.msra.mxu0 %v2713
    %4312 = vmatpush.bf16.msra.mxu0 %v2709
    %4313 = vmatpush.bf16.msra.mxu0 %v2705
    %4314 = vmatpush.bf16.msra.mxu0 %v2701
    %4315 = vmatpush.bf16.msra.mxu0 %v2697
    %4316 = vmatpush.bf16.msra.mxu0 %v2693
    %4317 = vmatpush.bf16.msra.mxu0 %v2689
    %4318 = vmatpush.bf16.msra.mxu0 %v2685
    %4319 = vmatmul.bf16.gmra.mxu0 %v1083
    %v4320 = vpop.f32.mrf.mxu0
    %v4321 = vadd.f32 %v4308, %v4320
    %v4322 = vpop.f32.mrf.mxu0
    %4323 = vdwg.mxu0
    %4324 = vmatpush.bf16.msra.mxu0 %v2745
    %4325 = vmatpush.bf16.msra.mxu0 %v2741
    %4326 = vmatpush.bf16.msra.mxu0 %v2737
    %4327 = vmatpush.bf16.msra.mxu0 %v2733
    %4328 = vmatpush.bf16.msra.mxu0 %v2729
    %4329 = vmatpush.bf16.msra.mxu0 %v2725
    %4330 = vmatpush.bf16.msra.mxu0 %v2721
    %4331 = vmatpush.bf16.msra.mxu0 %v2717
    %4332 = vmatmul.bf16.gmra.mxu0 %v1084
    %v4333 = vpop.f32.mrf.mxu0
    %v4334 = vadd.f32 %v4321, %v4333
    %v4335 = vpop.f32.mrf.mxu0
    %4336 = vdwg.mxu0
    %4337 = vmatpush.bf16.msra.mxu0 %v2777
    %4338 = vmatpush.bf16.msra.mxu0 %v2773
    %4339 = vmatpush.bf16.msra.mxu0 %v2769
    %4340 = vmatpush.bf16.msra.mxu0 %v2765
    %4341 = vmatpush.bf16.msra.mxu0 %v2761
    %4342 = vmatpush.bf16.msra.mxu0 %v2757
    %4343 = vmatpush.bf16.msra.mxu0 %v2753
    %4344 = vmatpush.bf16.msra.mxu0 %v2749
    %4345 = vmatmul.bf16.gmra.mxu0 %v1085
    %v4346 = vpop.f32.mrf.mxu0
    %v4347 = vadd.f32 %v4334, %v4346
    %v4348 = vpop.f32.mrf.mxu0
    %4349 = vdwg.mxu0
    %4350 = vmatpush.bf16.msra.mxu0 %v2809
    %4351 = vmatpush.bf16.msra.mxu0 %v2805
    %4352 = vmatpush.bf16.msra.mxu0 %v2801
    %4353 = vmatpush.bf16.msra.mxu0 %v2797
    %4354 = vmatpush.bf16.msra.mxu0 %v2793
    %4355 = vmatpush.bf16.msra.mxu0 %v2789
    %4356 = vmatpush.bf16.msra.mxu0 %v2785
    %4357 = vmatpush.bf16.msra.mxu0 %v2781
    %4358 = vmatmul.bf16.gmra.mxu0 %v1086
    %v4359 = vpop.f32.mrf.mxu0
    %v4360 = vadd.f32 %v4347, %v4359
    %v4361 = vpop.f32.mrf.mxu0
    %4362 = vdwg.mxu0
    %4363 = vmatpush.bf16.msra.mxu0 %v2841
    %4364 = vmatpush.bf16.msra.mxu0 %v2837
    %4365 = vmatpush.bf16.msra.mxu0 %v2833
    %4366 = vmatpush.bf16.msra.mxu0 %v2829
    %4367 = vmatpush.bf16.msra.mxu0 %v2825
    %4368 = vmatpush.bf16.msra.mxu0 %v2821
    %4369 = vmatpush.bf16.msra.mxu0 %v2817
    %4370 = vmatpush.bf16.msra.mxu0 %v2813
    %4371 = vmatmul.bf16.gmra.mxu0 %v1087
    %v4372 = vpop.f32.mrf.mxu0
    %v4373 = vadd.f32 %v4360, %v4372
    %v4374 = vpop.f32.mrf.mxu0
    %4375 = vdwg.mxu0
    %4376 = vmatpush.bf16.msra.mxu0 %v2873
    %4377 = vmatpush.bf16.msra.mxu0 %v2869
    %4378 = vmatpush.bf16.msra.mxu0 %v2865
    %4379 = vmatpush.bf16.msra.mxu0 %v2861
    %4380 = vmatpush.bf16.msra.mxu0 %v2857
    %4381 = vmatpush.bf16.msra.mxu0 %v2853
    %4382 = vmatpush.bf16.msra.mxu0 %v2849
    %4383 = vmatpush.bf16.msra.mxu0 %v2845
    %4384 = vmatmul.bf16.gmra.mxu0 %v1088
    %v4385 = vpop.f32.mrf.mxu0
    %v4386 = vadd.f32 %v4373, %v4385
    %v4387 = vpop.f32.mrf.mxu0
    %4388 = vdwg.mxu0
    %4389 = vmatpush.bf16.msra.mxu0 %v2905
    %4390 = vmatpush.bf16.msra.mxu0 %v2901
    %4391 = vmatpush.bf16.msra.mxu0 %v2897
    %4392 = vmatpush.bf16.msra.mxu0 %v2893
    %4393 = vmatpush.bf16.msra.mxu0 %v2889
    %4394 = vmatpush.bf16.msra.mxu0 %v2885
    %4395 = vmatpush.bf16.msra.mxu0 %v2881
    %4396 = vmatpush.bf16.msra.mxu0 %v2877
    %4397 = vmatmul.bf16.gmra.mxu0 %v1089
    %v4398 = vpop.f32.mrf.mxu0
    %v4399 = vadd.f32 %v4386, %v4398
    %v4400 = vpop.f32.mrf.mxu0
    %4401 = vdwg.mxu0
    %4402 = vmatpush.bf16.msra.mxu0 %v2937
    %4403 = vmatpush.bf16.msra.mxu0 %v2933
    %4404 = vmatpush.bf16.msra.mxu0 %v2929
    %4405 = vmatpush.bf16.msra.mxu0 %v2925
    %4406 = vmatpush.bf16.msra.mxu0 %v2921
    %4407 = vmatpush.bf16.msra.mxu0 %v2917
    %4408 = vmatpush.bf16.msra.mxu0 %v2913
    %4409 = vmatpush.bf16.msra.mxu0 %v2909
    %4410 = vmatmul.bf16.gmra.mxu0 %v1090
    %v4411 = vpop.f32.mrf.mxu0
    %v4412 = vadd.f32 %v4399, %v4411
    %v4413 = vpop.f32.mrf.mxu0
    %4414 = vdwg.mxu0
    %4415 = vmatpush.bf16.msra.mxu0 %v2969
    %4416 = vmatpush.bf16.msra.mxu0 %v2965
    %4417 = vmatpush.bf16.msra.mxu0 %v2961
    %4418 = vmatpush.bf16.msra.mxu0 %v2957
    %4419 = vmatpush.bf16.msra.mxu0 %v2953
    %4420 = vmatpush.bf16.msra.mxu0 %v2949
    %4421 = vmatpush.bf16.msra.mxu0 %v2945
    %4422 = vmatpush.bf16.msra.mxu0 %v2941
    %4423 = vmatmul.bf16.gmra.mxu0 %v1091
    %v4424 = vpop.f32.mrf.mxu0
    %v4425 = vadd.f32 %v4412, %v4424
    %v4426 = vpop.f32.mrf.mxu0
    %4427 = vdwg.mxu0
    %4428 = vmatpush.bf16.msra.mxu0 %v3001
    %4429 = vmatpush.bf16.msra.mxu0 %v2997
    %4430 = vmatpush.bf16.msra.mxu0 %v2993
    %4431 = vmatpush.bf16.msra.mxu0 %v2989
    %4432 = vmatpush.bf16.msra.mxu0 %v2985
    %4433 = vmatpush.bf16.msra.mxu0 %v2981
    %4434 = vmatpush.bf16.msra.mxu0 %v2977
    %4435 = vmatpush.bf16.msra.mxu0 %v2973
    %4436 = vmatmul.bf16.gmra.mxu0 %v1092
    %v4437 = vpop.f32.mrf.mxu0
    %v4438 = vadd.f32 %v4425, %v4437
    %v4439 = vpop.f32.mrf.mxu0
    %4440 = vdwg.mxu0
    %4441 = vmatpush.bf16.msra.mxu0 %v3033
    %4442 = vmatpush.bf16.msra.mxu0 %v3029
    %4443 = vmatpush.bf16.msra.mxu0 %v3025
    %4444 = vmatpush.bf16.msra.mxu0 %v3021
    %4445 = vmatpush.bf16.msra.mxu0 %v3017
    %4446 = vmatpush.bf16.msra.mxu0 %v3013
    %4447 = vmatpush.bf16.msra.mxu0 %v3009
    %4448 = vmatpush.bf16.msra.mxu0 %v3005
    %4449 = vmatmul.bf16.gmra.mxu0 %v1093
    %v4450 = vpop.f32.mrf.mxu0
    %v4451 = vadd.f32 %v4438, %v4450
    %v4452 = vpop.f32.mrf.mxu0
    %4453 = vdwg.mxu0
    %4454 = vmatpush.bf16.msra.mxu0 %v3065
    %4455 = vmatpush.bf16.msra.mxu0 %v3061
    %4456 = vmatpush.bf16.msra.mxu0 %v3057
    %4457 = vmatpush.bf16.msra.mxu0 %v3053
    %4458 = vmatpush.bf16.msra.mxu0 %v3049
    %4459 = vmatpush.bf16.msra.mxu0 %v3045
    %4460 = vmatpush.bf16.msra.mxu0 %v3041
    %4461 = vmatpush.bf16.msra.mxu0 %v3037
    %4462 = vmatmul.bf16.gmra.mxu0 %v1094
    %v4463 = vpop.f32.mrf.mxu0
    %v4464 = vadd.f32 %v4451, %v4463
    %v4465 = vpop.f32.mrf.mxu0
    %4466 = vdwg.mxu0
    %4467 = vmatpush.bf16.msra.mxu0 %v3097
    %4468 = vmatpush.bf16.msra.mxu0 %v3093
    %4469 = vmatpush.bf16.msra.mxu0 %v3089
    %4470 = vmatpush.bf16.msra.mxu0 %v3085
    %4471 = vmatpush.bf16.msra.mxu0 %v3081
    %4472 = vmatpush.bf16.msra.mxu0 %v3077
    %4473 = vmatpush.bf16.msra.mxu0 %v3073
    %4474 = vmatpush.bf16.msra.mxu0 %v3069
    %4475 = vmatmul.bf16.gmra.mxu0 %v1095
    %v4476 = vpop.f32.mrf.mxu0
    %v4477 = vadd.f32 %v4464, %v4476
    %v4478 = vpop.f32.mrf.mxu0
    %4479 = vdwg.mxu0
    %4480 = vmatpush.bf16.msra.mxu0 %v3129
    %4481 = vmatpush.bf16.msra.mxu0 %v3125
    %4482 = vmatpush.bf16.msra.mxu0 %v3121
    %4483 = vmatpush.bf16.msra.mxu0 %v3117
    %4484 = vmatpush.bf16.msra.mxu0 %v3113
    %4485 = vmatpush.bf16.msra.mxu0 %v3109
    %4486 = vmatpush.bf16.msra.mxu0 %v3105
    %4487 = vmatpush.bf16.msra.mxu0 %v3101
    %4488 = vmatmul.bf16.gmra.mxu0 %v1096
    %v4489 = vpop.f32.mrf.mxu0
    %v4490 = vadd.f32 %v4477, %v4489
    %v4491 = vpop.f32.mrf.mxu0
    %4492 = vdwg.mxu0
    %4493 = vmatpush.bf16.msra.mxu0 %v3161
    %4494 = vmatpush.bf16.msra.mxu0 %v3157
    %4495 = vmatpush.bf16.msra.mxu0 %v3153
    %4496 = vmatpush.bf16.msra.mxu0 %v3149
    %4497 = vmatpush.bf16.msra.mxu0 %v3145
    %4498 = vmatpush.bf16.msra.mxu0 %v3141
    %4499 = vmatpush.bf16.msra.mxu0 %v3137
    %4500 = vmatpush.bf16.msra.mxu0 %v3133
    %4501 = vmatmul.bf16.gmra.mxu0 %v1097
    %v4502 = vpop.f32.mrf.mxu0
    %v4503 = vadd.f32 %v4490, %v4502
    %v4504 = vpop.f32.mrf.mxu0
    %4505 = vdwg.mxu0
    %v4506 = vpack.c.bf16 %v3879, %v3879
    %v4507 = vpack.c.bf16 %v4087, %v4087
    %v4508 = vpack.c.bf16 %v4295, %v4295
    %v4509 = vpack.c.bf16 %v4503, %v4503
    %v4510 = vld [vmem:[%s4] sm:$0xff]
    %v4511 = vld [vmem:[%s4 + $0x8] sm:$0xff]
    %v4512 = vld [vmem:[%s4 + $0x10] sm:$0xff]
    %v4513 = vld [vmem:[%s4 + $0x18] sm:$0xff]
    %v4514 = vld [vmem:[%s4 + $0x20] sm:$0xff]
    %v4515 = vld [vmem:[%s4 + $0x28] sm:$0xff]
    %v4516 = vld [vmem:[%s4 + $0x30] sm:$0xff]
    %v4517 = vld [vmem:[%s4 + $0x38] sm:$0xff]
    %v4518 = vld [vmem:[%s4 + $0x40] sm:$0xff]
    %v4519 = vld [vmem:[%s4 + $0x48] sm:$0xff]
    %v4520 = vld [vmem:[%s4 + $0x50] sm:$0xff]
    %v4521 = vld [vmem:[%s4 + $0x58] sm:$0xff]
    %v4522 = vld [vmem:[%s4 + $0x60] sm:$0xff]
    %v4523 = vld [vmem:[%s4 + $0x68] sm:$0xff]
    %v4524 = vld [vmem:[%s4 + $0x70] sm:$0xff]
    %v4525 = vld [vmem:[%s4 + $0x78] sm:$0xff]
    %v4526 = vld [vmem:[%s4 + $0x80] sm:$0xff]
    %v4527 = vld [vmem:[%s4 + $0x88] sm:$0xff]
    %v4528 = vld [vmem:[%s4 + $0x90] sm:$0xff]
    %v4529 = vld [vmem:[%s4 + $0x98] sm:$0xff]
    %v4530 = vld [vmem:[%s4 + $0xa0] sm:$0xff]
    %v4531 = vld [vmem:[%s4 + $0xa8] sm:$0xff]
    %v4532 = vld [vmem:[%s4 + $0xb0] sm:$0xff]
    %v4533 = vld [vmem:[%s4 + $0xb8] sm:$0xff]
    %v4534 = vld [vmem:[%s4 + $0xc0] sm:$0xff]
    %v4535 = vld [vmem:[%s4 + $0xc8] sm:$0xff]
    %v4536 = vld [vmem:[%s4 + $0xd0] sm:$0xff]
    %v4537 = vld [vmem:[%s4 + $0xd8] sm:$0xff]
    %v4538 = vld [vmem:[%s4 + $0xe0] sm:$0xff]
    %v4539 = vld [vmem:[%s4 + $0xe8] sm:$0xff]
    %v4540 = vld [vmem:[%s4 + $0xf0] sm:$0xff]
    %v4541 = vld [vmem:[%s4 + $0xf8] sm:$0xff]
    %v4542 = vld [vmem:[%s4 + $0x100] sm:$0xff]
    %v4543 = vld [vmem:[%s4 + $0x108] sm:$0xff]
    %v4544 = vld [vmem:[%s4 + $0x110] sm:$0xff]
    %v4545 = vld [vmem:[%s4 + $0x118] sm:$0xff]
    %v4546 = vld [vmem:[%s4 + $0x120] sm:$0xff]
    %v4547 = vld [vmem:[%s4 + $0x128] sm:$0xff]
    %v4548 = vld [vmem:[%s4 + $0x130] sm:$0xff]
    %v4549 = vld [vmem:[%s4 + $0x138] sm:$0xff]
    %v4550 = vld [vmem:[%s4 + $0x140] sm:$0xff]
    %v4551 = vld [vmem:[%s4 + $0x148] sm:$0xff]
    %v4552 = vld [vmem:[%s4 + $0x150] sm:$0xff]
    %v4553 = vld [vmem:[%s4 + $0x158] sm:$0xff]
    %v4554 = vld [vmem:[%s4 + $0x160] sm:$0xff]
    %v4555 = vld [vmem:[%s4 + $0x168] sm:$0xff]
    %v4556 = vld [vmem:[%s4 + $0x170] sm:$0xff]
    %v4557 = vld [vmem:[%s4 + $0x178] sm:$0xff]
    %v4558 = vld [vmem:[%s4 + $0x180] sm:$0xff]
    %v4559 = vld [vmem:[%s4 + $0x188] sm:$0xff]
    %v4560 = vld [vmem:[%s4 + $0x190] sm:$0xff]
    %v4561 = vld [vmem:[%s4 + $0x198] sm:$0xff]
    %v4562 = vld [vmem:[%s4 + $0x1a0] sm:$0xff]
    %v4563 = vld [vmem:[%s4 + $0x1a8] sm:$0xff]
    %v4564 = vld [vmem:[%s4 + $0x1b0] sm:$0xff]
    %v4565 = vld [vmem:[%s4 + $0x1b8] sm:$0xff]
    %v4566 = vld [vmem:[%s4 + $0x1c0] sm:$0xff]
    %v4567 = vld [vmem:[%s4 + $0x1c8] sm:$0xff]
    %v4568 = vld [vmem:[%s4 + $0x1d0] sm:$0xff]
    %v4569 = vld [vmem:[%s4 + $0x1d8] sm:$0xff]
    %v4570 = vld [vmem:[%s4 + $0x1e0] sm:$0xff]
    %v4571 = vld [vmem:[%s4 + $0x1e8] sm:$0xff]
    %v4572 = vld [vmem:[%s4 + $0x1f0] sm:$0xff]
    %v4573 = vld [vmem:[%s4 + $0x1f8] sm:$0xff]
    %v4574 = vld [vmem:[%s4 + $0x200] sm:$0xff]
    %v4575 = vld [vmem:[%s4 + $0x208] sm:$0xff]
    %v4576 = vld [vmem:[%s4 + $0x210] sm:$0xff]
    %v4577 = vld [vmem:[%s4 + $0x218] sm:$0xff]
    %v4578 = vld [vmem:[%s4 + $0x220] sm:$0xff]
    %v4579 = vld [vmem:[%s4 + $0x228] sm:$0xff]
    %v4580 = vld [vmem:[%s4 + $0x230] sm:$0xff]
    %v4581 = vld [vmem:[%s4 + $0x238] sm:$0xff]
    %v4582 = vld [vmem:[%s4 + $0x240] sm:$0xff]
    %v4583 = vld [vmem:[%s4 + $0x248] sm:$0xff]
    %v4584 = vld [vmem:[%s4 + $0x250] sm:$0xff]
    %v4585 = vld [vmem:[%s4 + $0x258] sm:$0xff]
    %v4586 = vld [vmem:[%s4 + $0x260] sm:$0xff]
    %v4587 = vld [vmem:[%s4 + $0x268] sm:$0xff]
    %v4588 = vld [vmem:[%s4 + $0x270] sm:$0xff]
    %v4589 = vld [vmem:[%s4 + $0x278] sm:$0xff]
    %v4590 = vld [vmem:[%s4 + $0x280] sm:$0xff]
    %v4591 = vld [vmem:[%s4 + $0x288] sm:$0xff]
    %v4592 = vld [vmem:[%s4 + $0x290] sm:$0xff]
    %v4593 = vld [vmem:[%s4 + $0x298] sm:$0xff]
    %v4594 = vld [vmem:[%s4 + $0x2a0] sm:$0xff]
    %v4595 = vld [vmem:[%s4 + $0x2a8] sm:$0xff]
    %v4596 = vld [vmem:[%s4 + $0x2b0] sm:$0xff]
    %v4597 = vld [vmem:[%s4 + $0x2b8] sm:$0xff]
    %v4598 = vld [vmem:[%s4 + $0x2c0] sm:$0xff]
    %v4599 = vld [vmem:[%s4 + $0x2c8] sm:$0xff]
    %v4600 = vld [vmem:[%s4 + $0x2d0] sm:$0xff]
    %v4601 = vld [vmem:[%s4 + $0x2d8] sm:$0xff]
    %v4602 = vld [vmem:[%s4 + $0x2e0] sm:$0xff]
    %v4603 = vld [vmem:[%s4 + $0x2e8] sm:$0xff]
    %v4604 = vld [vmem:[%s4 + $0x2f0] sm:$0xff]
    %v4605 = vld [vmem:[%s4 + $0x2f8] sm:$0xff]
    %v4606 = vld [vmem:[%s4 + $0x300] sm:$0xff]
    %v4607 = vld [vmem:[%s4 + $0x308] sm:$0xff]
    %v4608 = vld [vmem:[%s4 + $0x310] sm:$0xff]
    %v4609 = vld [vmem:[%s4 + $0x318] sm:$0xff]
    %v4610 = vld [vmem:[%s4 + $0x320] sm:$0xff]
    %v4611 = vld [vmem:[%s4 + $0x328] sm:$0xff]
    %v4612 = vld [vmem:[%s4 + $0x330] sm:$0xff]
    %v4613 = vld [vmem:[%s4 + $0x338] sm:$0xff]
    %v4614 = vld [vmem:[%s4 + $0x340] sm:$0xff]
    %v4615 = vld [vmem:[%s4 + $0x348] sm:$0xff]
    %v4616 = vld [vmem:[%s4 + $0x350] sm:$0xff]
    %v4617 = vld [vmem:[%s4 + $0x358] sm:$0xff]
    %v4618 = vld [vmem:[%s4 + $0x360] sm:$0xff]
    %v4619 = vld [vmem:[%s4 + $0x368] sm:$0xff]
    %v4620 = vld [vmem:[%s4 + $0x370] sm:$0xff]
    %v4621 = vld [vmem:[%s4 + $0x378] sm:$0xff]
    %v4622 = vld [vmem:[%s4 + $0x380] sm:$0xff]
    %v4623 = vld [vmem:[%s4 + $0x388] sm:$0xff]
    %v4624 = vld [vmem:[%s4 + $0x390] sm:$0xff]
    %v4625 = vld [vmem:[%s4 + $0x398] sm:$0xff]
    %v4626 = vld [vmem:[%s4 + $0x3a0] sm:$0xff]
    %v4627 = vld [vmem:[%s4 + $0x3a8] sm:$0xff]
    %v4628 = vld [vmem:[%s4 + $0x3b0] sm:$0xff]
    %v4629 = vld [vmem:[%s4 + $0x3b8] sm:$0xff]
    %v4630 = vld [vmem:[%s4 + $0x3c0] sm:$0xff]
    %v4631 = vld [vmem:[%s4 + $0x3c8] sm:$0xff]
    %v4632 = vld [vmem:[%s4 + $0x3d0] sm:$0xff]
    %v4633 = vld [vmem:[%s4 + $0x3d8] sm:$0xff]
    %v4634 = vld [vmem:[%s4 + $0x3e0] sm:$0xff]
    %v4635 = vld [vmem:[%s4 + $0x3e8] sm:$0xff]
    %v4636 = vld [vmem:[%s4 + $0x3f0] sm:$0xff]
    %v4637 = vld [vmem:[%s4 + $0x3f8] sm:$0xff]
    %v4638 = vld [vmem:[%s4 + $0x400] sm:$0xff]
    %v4639 = vld [vmem:[%s4 + $0x408] sm:$0xff]
    %v4640 = vld [vmem:[%s4 + $0x410] sm:$0xff]
    %v4641 = vld [vmem:[%s4 + $0x418] sm:$0xff]
    %v4642 = vld [vmem:[%s4 + $0x420] sm:$0xff]
    %v4643 = vld [vmem:[%s4 + $0x428] sm:$0xff]
    %v4644 = vld [vmem:[%s4 + $0x430] sm:$0xff]
    %v4645 = vld [vmem:[%s4 + $0x438] sm:$0xff]
    %v4646 = vld [vmem:[%s4 + $0x440] sm:$0xff]
    %v4647 = vld [vmem:[%s4 + $0x448] sm:$0xff]
    %v4648 = vld [vmem:[%s4 + $0x450] sm:$0xff]
    %v4649 = vld [vmem:[%s4 + $0x458] sm:$0xff]
    %v4650 = vld [vmem:[%s4 + $0x460] sm:$0xff]
    %v4651 = vld [vmem:[%s4 + $0x468] sm:$0xff]
    %v4652 = vld [vmem:[%s4 + $0x470] sm:$0xff]
    %v4653 = vld [vmem:[%s4 + $0x478] sm:$0xff]
    %v4654 = vld [vmem:[%s4 + $0x480] sm:$0xff]
    %v4655 = vld [vmem:[%s4 + $0x488] sm:$0xff]
    %v4656 = vld [vmem:[%s4 + $0x490] sm:$0xff]
    %v4657 = vld [vmem:[%s4 + $0x498] sm:$0xff]
    %v4658 = vld [vmem:[%s4 + $0x4a0] sm:$0xff]
    %v4659 = vld [vmem:[%s4 + $0x4a8] sm:$0xff]
    %v4660 = vld [vmem:[%s4 + $0x4b0] sm:$0xff]
    %v4661 = vld [vmem:[%s4 + $0x4b8] sm:$0xff]
    %v4662 = vld [vmem:[%s4 + $0x4c0] sm:$0xff]
    %v4663 = vld [vmem:[%s4 + $0x4c8] sm:$0xff]
    %v4664 = vld [vmem:[%s4 + $0x4d0] sm:$0xff]
    %v4665 = vld [vmem:[%s4 + $0x4d8] sm:$0xff]
    %v4666 = vld [vmem:[%s4 + $0x4e0] sm:$0xff]
    %v4667 = vld [vmem:[%s4 + $0x4e8] sm:$0xff]
    %v4668 = vld [vmem:[%s4 + $0x4f0] sm:$0xff]
    %v4669 = vld [vmem:[%s4 + $0x4f8] sm:$0xff]
    %v4670 = vld [vmem:[%s4 + $0x500] sm:$0xff]
    %v4671 = vld [vmem:[%s4 + $0x508] sm:$0xff]
    %v4672 = vld [vmem:[%s4 + $0x510] sm:$0xff]
    %v4673 = vld [vmem:[%s4 + $0x518] sm:$0xff]
    %v4674 = vld [vmem:[%s4 + $0x520] sm:$0xff]
    %v4675 = vld [vmem:[%s4 + $0x528] sm:$0xff]
    %v4676 = vld [vmem:[%s4 + $0x530] sm:$0xff]
    %v4677 = vld [vmem:[%s4 + $0x538] sm:$0xff]
    %v4678 = vld [vmem:[%s4 + $0x540] sm:$0xff]
    %v4679 = vld [vmem:[%s4 + $0x548] sm:$0xff]
    %v4680 = vld [vmem:[%s4 + $0x550] sm:$0xff]
    %v4681 = vld [vmem:[%s4 + $0x558] sm:$0xff]
    %v4682 = vld [vmem:[%s4 + $0x560] sm:$0xff]
    %v4683 = vld [vmem:[%s4 + $0x568] sm:$0xff]
    %v4684 = vld [vmem:[%s4 + $0x570] sm:$0xff]
    %v4685 = vld [vmem:[%s4 + $0x578] sm:$0xff]
    %v4686 = vld [vmem:[%s4 + $0x580] sm:$0xff]
    %v4687 = vld [vmem:[%s4 + $0x588] sm:$0xff]
    %v4688 = vld [vmem:[%s4 + $0x590] sm:$0xff]
    %v4689 = vld [vmem:[%s4 + $0x598] sm:$0xff]
    %v4690 = vld [vmem:[%s4 + $0x5a0] sm:$0xff]
    %v4691 = vld [vmem:[%s4 + $0x5a8] sm:$0xff]
    %v4692 = vld [vmem:[%s4 + $0x5b0] sm:$0xff]
    %v4693 = vld [vmem:[%s4 + $0x5b8] sm:$0xff]
    %v4694 = vld [vmem:[%s4 + $0x5c0] sm:$0xff]
    %v4695 = vld [vmem:[%s4 + $0x5c8] sm:$0xff]
    %v4696 = vld [vmem:[%s4 + $0x5d0] sm:$0xff]
    %v4697 = vld [vmem:[%s4 + $0x5d8] sm:$0xff]
    %v4698 = vld [vmem:[%s4 + $0x5e0] sm:$0xff]
    %v4699 = vld [vmem:[%s4 + $0x5e8] sm:$0xff]
    %v4700 = vld [vmem:[%s4 + $0x5f0] sm:$0xff]
    %v4701 = vld [vmem:[%s4 + $0x5f8] sm:$0xff]
    %v4702 = vld [vmem:[%s4 + $0x600] sm:$0xff]
    %v4703 = vld [vmem:[%s4 + $0x608] sm:$0xff]
    %v4704 = vld [vmem:[%s4 + $0x610] sm:$0xff]
    %v4705 = vld [vmem:[%s4 + $0x618] sm:$0xff]
    %v4706 = vld [vmem:[%s4 + $0x620] sm:$0xff]
    %v4707 = vld [vmem:[%s4 + $0x628] sm:$0xff]
    %v4708 = vld [vmem:[%s4 + $0x630] sm:$0xff]
    %v4709 = vld [vmem:[%s4 + $0x638] sm:$0xff]
    %v4710 = vld [vmem:[%s4 + $0x640] sm:$0xff]
    %v4711 = vld [vmem:[%s4 + $0x648] sm:$0xff]
    %v4712 = vld [vmem:[%s4 + $0x650] sm:$0xff]
    %v4713 = vld [vmem:[%s4 + $0x658] sm:$0xff]
    %v4714 = vld [vmem:[%s4 + $0x660] sm:$0xff]
    %v4715 = vld [vmem:[%s4 + $0x668] sm:$0xff]
    %v4716 = vld [vmem:[%s4 + $0x670] sm:$0xff]
    %v4717 = vld [vmem:[%s4 + $0x678] sm:$0xff]
    %v4718 = vld [vmem:[%s4 + $0x680] sm:$0xff]
    %v4719 = vld [vmem:[%s4 + $0x688] sm:$0xff]
    %v4720 = vld [vmem:[%s4 + $0x690] sm:$0xff]
    %v4721 = vld [vmem:[%s4 + $0x698] sm:$0xff]
    %v4722 = vld [vmem:[%s4 + $0x6a0] sm:$0xff]
    %v4723 = vld [vmem:[%s4 + $0x6a8] sm:$0xff]
    %v4724 = vld [vmem:[%s4 + $0x6b0] sm:$0xff]
    %v4725 = vld [vmem:[%s4 + $0x6b8] sm:$0xff]
    %v4726 = vld [vmem:[%s4 + $0x6c0] sm:$0xff]
    %v4727 = vld [vmem:[%s4 + $0x6c8] sm:$0xff]
    %v4728 = vld [vmem:[%s4 + $0x6d0] sm:$0xff]
    %v4729 = vld [vmem:[%s4 + $0x6d8] sm:$0xff]
    %v4730 = vld [vmem:[%s4 + $0x6e0] sm:$0xff]
    %v4731 = vld [vmem:[%s4 + $0x6e8] sm:$0xff]
    %v4732 = vld [vmem:[%s4 + $0x6f0] sm:$0xff]
    %v4733 = vld [vmem:[%s4 + $0x6f8] sm:$0xff]
    %v4734 = vld [vmem:[%s4 + $0x700] sm:$0xff]
    %v4735 = vld [vmem:[%s4 + $0x708] sm:$0xff]
    %v4736 = vld [vmem:[%s4 + $0x710] sm:$0xff]
    %v4737 = vld [vmem:[%s4 + $0x718] sm:$0xff]
    %v4738 = vld [vmem:[%s4 + $0x720] sm:$0xff]
    %v4739 = vld [vmem:[%s4 + $0x728] sm:$0xff]
    %v4740 = vld [vmem:[%s4 + $0x730] sm:$0xff]
    %v4741 = vld [vmem:[%s4 + $0x738] sm:$0xff]
    %v4742 = vld [vmem:[%s4 + $0x740] sm:$0xff]
    %v4743 = vld [vmem:[%s4 + $0x748] sm:$0xff]
    %v4744 = vld [vmem:[%s4 + $0x750] sm:$0xff]
    %v4745 = vld [vmem:[%s4 + $0x758] sm:$0xff]
    %v4746 = vld [vmem:[%s4 + $0x760] sm:$0xff]
    %v4747 = vld [vmem:[%s4 + $0x768] sm:$0xff]
    %v4748 = vld [vmem:[%s4 + $0x770] sm:$0xff]
    %v4749 = vld [vmem:[%s4 + $0x778] sm:$0xff]
    %v4750 = vld [vmem:[%s4 + $0x780] sm:$0xff]
    %v4751 = vld [vmem:[%s4 + $0x788] sm:$0xff]
    %v4752 = vld [vmem:[%s4 + $0x790] sm:$0xff]
    %v4753 = vld [vmem:[%s4 + $0x798] sm:$0xff]
    %v4754 = vld [vmem:[%s4 + $0x7a0] sm:$0xff]
    %v4755 = vld [vmem:[%s4 + $0x7a8] sm:$0xff]
    %v4756 = vld [vmem:[%s4 + $0x7b0] sm:$0xff]
    %v4757 = vld [vmem:[%s4 + $0x7b8] sm:$0xff]
    %v4758 = vld [vmem:[%s4 + $0x7c0] sm:$0xff]
    %v4759 = vld [vmem:[%s4 + $0x7c8] sm:$0xff]
    %v4760 = vld [vmem:[%s4 + $0x7d0] sm:$0xff]
    %v4761 = vld [vmem:[%s4 + $0x7d8] sm:$0xff]
    %v4762 = vld [vmem:[%s4 + $0x7e0] sm:$0xff]
    %v4763 = vld [vmem:[%s4 + $0x7e8] sm:$0xff]
    %v4764 = vld [vmem:[%s4 + $0x7f0] sm:$0xff]
    %v4765 = vld [vmem:[%s4 + $0x7f8] sm:$0xff]
    %v4766 = vld [vmem:[%s5] sm:$0xff]
    %v4768 = vperm.slane %v4766, 0
    %v4769 = vperm.slane %v4766, 1
    %v4770 = vperm.slane %v4766, 2
    %v4771 = vperm.slane %v4766, 3
    %v4772 = vperm.slane %v4766, 4
    %v4773 = vperm.slane %v4766, 5
    %v4774 = vperm.slane %v4766, 6
    %v4775 = vperm.slane %v4766, 7
    %v5040 = vunpack.c.l.b16 %v4510
    %v5041 = vunpack.c.h.b16 %v4510
    %v5042 = vunpack.c.l.b16 %v4511
    %v5043 = vunpack.c.h.b16 %v4511
    %v5044 = vunpack.c.l.b16 %v4512
    %v5045 = vunpack.c.h.b16 %v4512
    %v5046 = vunpack.c.l.b16 %v4513
    %v5047 = vunpack.c.h.b16 %v4513
    %v5048 = vunpack.c.l.b16 %v4514
    %v5049 = vunpack.c.h.b16 %v4514
    %v5050 = vunpack.c.l.b16 %v4515
    %v5051 = vunpack.c.h.b16 %v4515
    %v5052 = vunpack.c.l.b16 %v4516
    %v5053 = vunpack.c.h.b16 %v4516
    %v5054 = vunpack.c.l.b16 %v4517
    %v5055 = vunpack.c.h.b16 %v4517
    %v5056 = vunpack.c.l.b16 %v4518
    %v5057 = vunpack.c.h.b16 %v4518
    %v5058 = vunpack.c.l.b16 %v4519
    %v5059 = vunpack.c.h.b16 %v4519
    %v5060 = vunpack.c.l.b16 %v4520
    %v5061 = vunpack.c.h.b16 %v4520
    %v5062 = vunpack.c.l.b16 %v4521
    %v5063 = vunpack.c.h.b16 %v4521
    %v5064 = vunpack.c.l.b16 %v4522
    %v5065 = vunpack.c.h.b16 %v4522
    %v5066 = vunpack.c.l.b16 %v4523
    %v5067 = vunpack.c.h.b16 %v4523
    %v5068 = vunpack.c.l.b16 %v4524
    %v5069 = vunpack.c.h.b16 %v4524
    %v5070 = vunpack.c.l.b16 %v4525
    %v5071 = vunpack.c.h.b16 %v4525
    %v5072 = vunpack.c.l.b16 %v4526
    %v5073 = vunpack.c.h.b16 %v4526
    %v5074 = vunpack.c.l.b16 %v4527
    %v5075 = vunpack.c.h.b16 %v4527
    %v5076 = vunpack.c.l.b16 %v4528
    %v5077 = vunpack.c.h.b16 %v4528
    %v5078 = vunpack.c.l.b16 %v4529
    %v5079 = vunpack.c.h.b16 %v4529
    %v5080 = vunpack.c.l.b16 %v4530
    %v5081 = vunpack.c.h.b16 %v4530
    %v5082 = vunpack.c.l.b16 %v4531
    %v5083 = vunpack.c.h.b16 %v4531
    %v5084 = vunpack.c.l.b16 %v4532
    %v5085 = vunpack.c.h.b16 %v4532
    %v5086 = vunpack.c.l.b16 %v4533
    %v5087 = vunpack.c.h.b16 %v4533
    %v5088 = vunpack.c.l.b16 %v4534
    %v5089 = vunpack.c.h.b16 %v4534
    %v5090 = vunpack.c.l.b16 %v4535
    %v5091 = vunpack.c.h.b16 %v4535
    %v5092 = vunpack.c.l.b16 %v4536
    %v5093 = vunpack.c.h.b16 %v4536
    %v5094 = vunpack.c.l.b16 %v4537
    %v5095 = vunpack.c.h.b16 %v4537
    %v5096 = vunpack.c.l.b16 %v4538
    %v5097 = vunpack.c.h.b16 %v4538
    %v5098 = vunpack.c.l.b16 %v4539
    %v5099 = vunpack.c.h.b16 %v4539
    %v5100 = vunpack.c.l.b16 %v4540
    %v5101 = vunpack.c.h.b16 %v4540
    %v5102 = vunpack.c.l.b16 %v4541
    %v5103 = vunpack.c.h.b16 %v4541
    %v5104 = vunpack.c.l.b16 %v4542
    %v5105 = vunpack.c.h.b16 %v4542
    %v5106 = vunpack.c.l.b16 %v4543
    %v5107 = vunpack.c.h.b16 %v4543
    %v5108 = vunpack.c.l.b16 %v4544
    %v5109 = vunpack.c.h.b16 %v4544
    %v5110 = vunpack.c.l.b16 %v4545
    %v5111 = vunpack.c.h.b16 %v4545
    %v5112 = vunpack.c.l.b16 %v4546
    %v5113 = vunpack.c.h.b16 %v4546
    %v5114 = vunpack.c.l.b16 %v4547
    %v5115 = vunpack.c.h.b16 %v4547
    %v5116 = vunpack.c.l.b16 %v4548
    %v5117 = vunpack.c.h.b16 %v4548
    %v5118 = vunpack.c.l.b16 %v4549
    %v5119 = vunpack.c.h.b16 %v4549
    %v5120 = vunpack.c.l.b16 %v4550
    %v5121 = vunpack.c.h.b16 %v4550
    %v5122 = vunpack.c.l.b16 %v4551
    %v5123 = vunpack.c.h.b16 %v4551
    %v5124 = vunpack.c.l.b16 %v4552
    %v5125 = vunpack.c.h.b16 %v4552
    %v5126 = vunpack.c.l.b16 %v4553
    %v5127 = vunpack.c.h.b16 %v4553
    %v5128 = vunpack.c.l.b16 %v4554
    %v5129 = vunpack.c.h.b16 %v4554
    %v5130 = vunpack.c.l.b16 %v4555
    %v5131 = vunpack.c.h.b16 %v4555
    %v5132 = vunpack.c.l.b16 %v4556
    %v5133 = vunpack.c.h.b16 %v4556
    %v5134 = vunpack.c.l.b16 %v4557
    %v5135 = vunpack.c.h.b16 %v4557
    %v5136 = vunpack.c.l.b16 %v4558
    %v5137 = vunpack.c.h.b16 %v4558
    %v5138 = vunpack.c.l.b16 %v4559
    %v5139 = vunpack.c.h.b16 %v4559
    %v5140 = vunpack.c.l.b16 %v4560
    %v5141 = vunpack.c.h.b16 %v4560
    %v5142 = vunpack.c.l.b16 %v4561
    %v5143 = vunpack.c.h.b16 %v4561
    %v5144 = vunpack.c.l.b16 %v4562
    %v5145 = vunpack.c.h.b16 %v4562
    %v5146 = vunpack.c.l.b16 %v4563
    %v5147 = vunpack.c.h.b16 %v4563
    %v5148 = vunpack.c.l.b16 %v4564
    %v5149 = vunpack.c.h.b16 %v4564
    %v5150 = vunpack.c.l.b16 %v4565
    %v5151 = vunpack.c.h.b16 %v4565
    %v5152 = vunpack.c.l.b16 %v4566
    %v5153 = vunpack.c.h.b16 %v4566
    %v5154 = vunpack.c.l.b16 %v4567
    %v5155 = vunpack.c.h.b16 %v4567
    %v5156 = vunpack.c.l.b16 %v4568
    %v5157 = vunpack.c.h.b16 %v4568
    %v5158 = vunpack.c.l.b16 %v4569
    %v5159 = vunpack.c.h.b16 %v4569
    %v5160 = vunpack.c.l.b16 %v4570
    %v5161 = vunpack.c.h.b16 %v4570
    %v5162 = vunpack.c.l.b16 %v4571
    %v5163 = vunpack.c.h.b16 %v4571
    %v5164 = vunpack.c.l.b16 %v4572
    %v5165 = vunpack.c.h.b16 %v4572
    %v5166 = vunpack.c.l.b16 %v4573
    %v5167 = vunpack.c.h.b16 %v4573
    %v5168 = vunpack.c.l.b16 %v4574
    %v5169 = vunpack.c.h.b16 %v4574
    %v5170 = vunpack.c.l.b16 %v4575
    %v5171 = vunpack.c.h.b16 %v4575
    %v5172 = vunpack.c.l.b16 %v4576
    %v5173 = vunpack.c.h.b16 %v4576
    %v5174 = vunpack.c.l.b16 %v4577
    %v5175 = vunpack.c.h.b16 %v4577
    %v5176 = vunpack.c.l.b16 %v4578
    %v5177 = vunpack.c.h.b16 %v4578
    %v5178 = vunpack.c.l.b16 %v4579
    %v5179 = vunpack.c.h.b16 %v4579
    %v5180 = vunpack.c.l.b16 %v4580
    %v5181 = vunpack.c.h.b16 %v4580
    %v5182 = vunpack.c.l.b16 %v4581
    %v5183 = vunpack.c.h.b16 %v4581
    %v5184 = vunpack.c.l.b16 %v4582
    %v5185 = vunpack.c.h.b16 %v4582
    %v5186 = vunpack.c.l.b16 %v4583
    %v5187 = vunpack.c.h.b16 %v4583
    %v5188 = vunpack.c.l.b16 %v4584
    %v5189 = vunpack.c.h.b16 %v4584
    %v5190 = vunpack.c.l.b16 %v4585
    %v5191 = vunpack.c.h.b16 %v4585
    %v5192 = vunpack.c.l.b16 %v4586
    %v5193 = vunpack.c.h.b16 %v4586
    %v5194 = vunpack.c.l.b16 %v4587
    %v5195 = vunpack.c.h.b16 %v4587
    %v5196 = vunpack.c.l.b16 %v4588
    %v5197 = vunpack.c.h.b16 %v4588
    %v5198 = vunpack.c.l.b16 %v4589
    %v5199 = vunpack.c.h.b16 %v4589
    %v5200 = vunpack.c.l.b16 %v4590
    %v5201 = vunpack.c.h.b16 %v4590
    %v5202 = vunpack.c.l.b16 %v4591
    %v5203 = vunpack.c.h.b16 %v4591
    %v5204 = vunpack.c.l.b16 %v4592
    %v5205 = vunpack.c.h.b16 %v4592
    %v5206 = vunpack.c.l.b16 %v4593
    %v5207 = vunpack.c.h.b16 %v4593
    %v5208 = vunpack.c.l.b16 %v4594
    %v5209 = vunpack.c.h.b16 %v4594
    %v5210 = vunpack.c.l.b16 %v4595
    %v5211 = vunpack.c.h.b16 %v4595
    %v5212 = vunpack.c.l.b16 %v4596
    %v5213 = vunpack.c.h.b16 %v4596
    %v5214 = vunpack.c.l.b16 %v4597
    %v5215 = vunpack.c.h.b16 %v4597
    %v5216 = vunpack.c.l.b16 %v4598
    %v5217 = vunpack.c.h.b16 %v4598
    %v5218 = vunpack.c.l.b16 %v4599
    %v5219 = vunpack.c.h.b16 %v4599
    %v5220 = vunpack.c.l.b16 %v4600
    %v5221 = vunpack.c.h.b16 %v4600
    %v5222 = vunpack.c.l.b16 %v4601
    %v5223 = vunpack.c.h.b16 %v4601
    %v5224 = vunpack.c.l.b16 %v4602
    %v5225 = vunpack.c.h.b16 %v4602
    %v5226 = vunpack.c.l.b16 %v4603
    %v5227 = vunpack.c.h.b16 %v4603
    %v5228 = vunpack.c.l.b16 %v4604
    %v5229 = vunpack.c.h.b16 %v4604
    %v5230 = vunpack.c.l.b16 %v4605
    %v5231 = vunpack.c.h.b16 %v4605
    %v5232 = vunpack.c.l.b16 %v4606
    %v5233 = vunpack.c.h.b16 %v4606
    %v5234 = vunpack.c.l.b16 %v4607
    %v5235 = vunpack.c.h.b16 %v4607
    %v5236 = vunpack.c.l.b16 %v4608
    %v5237 = vunpack.c.h.b16 %v4608
    %v5238 = vunpack.c.l.b16 %v4609
    %v5239 = vunpack.c.h.b16 %v4609
    %v5240 = vunpack.c.l.b16 %v4610
    %v5241 = vunpack.c.h.b16 %v4610
    %v5242 = vunpack.c.l.b16 %v4611
    %v5243 = vunpack.c.h.b16 %v4611
    %v5244 = vunpack.c.l.b16 %v4612
    %v5245 = vunpack.c.h.b16 %v4612
    %v5246 = vunpack.c.l.b16 %v4613
    %v5247 = vunpack.c.h.b16 %v4613
    %v5248 = vunpack.c.l.b16 %v4614
    %v5249 = vunpack.c.h.b16 %v4614
    %v5250 = vunpack.c.l.b16 %v4615
    %v5251 = vunpack.c.h.b16 %v4615
    %v5252 = vunpack.c.l.b16 %v4616
    %v5253 = vunpack.c.h.b16 %v4616
    %v5254 = vunpack.c.l.b16 %v4617
    %v5255 = vunpack.c.h.b16 %v4617
    %v5256 = vunpack.c.l.b16 %v4618
    %v5257 = vunpack.c.h.b16 %v4618
    %v5258 = vunpack.c.l.b16 %v4619
    %v5259 = vunpack.c.h.b16 %v4619
    %v5260 = vunpack.c.l.b16 %v4620
    %v5261 = vunpack.c.h.b16 %v4620
    %v5262 = vunpack.c.l.b16 %v4621
    %v5263 = vunpack.c.h.b16 %v4621
    %v5264 = vunpack.c.l.b16 %v4622
    %v5265 = vunpack.c.h.b16 %v4622
    %v5266 = vunpack.c.l.b16 %v4623
    %v5267 = vunpack.c.h.b16 %v4623
    %v5268 = vunpack.c.l.b16 %v4624
    %v5269 = vunpack.c.h.b16 %v4624
    %v5270 = vunpack.c.l.b16 %v4625
    %v5271 = vunpack.c.h.b16 %v4625
    %v5272 = vunpack.c.l.b16 %v4626
    %v5273 = vunpack.c.h.b16 %v4626
    %v5274 = vunpack.c.l.b16 %v4627
    %v5275 = vunpack.c.h.b16 %v4627
    %v5276 = vunpack.c.l.b16 %v4628
    %v5277 = vunpack.c.h.b16 %v4628
    %v5278 = vunpack.c.l.b16 %v4629
    %v5279 = vunpack.c.h.b16 %v4629
    %v5280 = vunpack.c.l.b16 %v4630
    %v5281 = vunpack.c.h.b16 %v4630
    %v5282 = vunpack.c.l.b16 %v4631
    %v5283 = vunpack.c.h.b16 %v4631
    %v5284 = vunpack.c.l.b16 %v4632
    %v5285 = vunpack.c.h.b16 %v4632
    %v5286 = vunpack.c.l.b16 %v4633
    %v5287 = vunpack.c.h.b16 %v4633
    %v5288 = vunpack.c.l.b16 %v4634
    %v5289 = vunpack.c.h.b16 %v4634
    %v5290 = vunpack.c.l.b16 %v4635
    %v5291 = vunpack.c.h.b16 %v4635
    %v5292 = vunpack.c.l.b16 %v4636
    %v5293 = vunpack.c.h.b16 %v4636
    %v5294 = vunpack.c.l.b16 %v4637
    %v5295 = vunpack.c.h.b16 %v4637
    %v5296 = vunpack.c.l.b16 %v4638
    %v5297 = vunpack.c.h.b16 %v4638
    %v5298 = vunpack.c.l.b16 %v4639
    %v5299 = vunpack.c.h.b16 %v4639
    %v5300 = vunpack.c.l.b16 %v4640
    %v5301 = vunpack.c.h.b16 %v4640
    %v5302 = vunpack.c.l.b16 %v4641
    %v5303 = vunpack.c.h.b16 %v4641
    %v5304 = vunpack.c.l.b16 %v4642
    %v5305 = vunpack.c.h.b16 %v4642
    %v5306 = vunpack.c.l.b16 %v4643
    %v5307 = vunpack.c.h.b16 %v4643
    %v5308 = vunpack.c.l.b16 %v4644
    %v5309 = vunpack.c.h.b16 %v4644
    %v5310 = vunpack.c.l.b16 %v4645
    %v5311 = vunpack.c.h.b16 %v4645
    %v5312 = vunpack.c.l.b16 %v4646
    %v5313 = vunpack.c.h.b16 %v4646
    %v5314 = vunpack.c.l.b16 %v4647
    %v5315 = vunpack.c.h.b16 %v4647
    %v5316 = vunpack.c.l.b16 %v4648
    %v5317 = vunpack.c.h.b16 %v4648
    %v5318 = vunpack.c.l.b16 %v4649
    %v5319 = vunpack.c.h.b16 %v4649
    %v5320 = vunpack.c.l.b16 %v4650
    %v5321 = vunpack.c.h.b16 %v4650
    %v5322 = vunpack.c.l.b16 %v4651
    %v5323 = vunpack.c.h.b16 %v4651
    %v5324 = vunpack.c.l.b16 %v4652
    %v5325 = vunpack.c.h.b16 %v4652
    %v5326 = vunpack.c.l.b16 %v4653
    %v5327 = vunpack.c.h.b16 %v4653
    %v5328 = vunpack.c.l.b16 %v4654
    %v5329 = vunpack.c.h.b16 %v4654
    %v5330 = vunpack.c.l.b16 %v4655
    %v5331 = vunpack.c.h.b16 %v4655
    %v5332 = vunpack.c.l.b16 %v4656
    %v5333 = vunpack.c.h.b16 %v4656
    %v5334 = vunpack.c.l.b16 %v4657
    %v5335 = vunpack.c.h.b16 %v4657
    %v5336 = vunpack.c.l.b16 %v4658
    %v5337 = vunpack.c.h.b16 %v4658
    %v5338 = vunpack.c.l.b16 %v4659
    %v5339 = vunpack.c.h.b16 %v4659
    %v5340 = vunpack.c.l.b16 %v4660
    %v5341 = vunpack.c.h.b16 %v4660
    %v5342 = vunpack.c.l.b16 %v4661
    %v5343 = vunpack.c.h.b16 %v4661
    %v5344 = vunpack.c.l.b16 %v4662
    %v5345 = vunpack.c.h.b16 %v4662
    %v5346 = vunpack.c.l.b16 %v4663
    %v5347 = vunpack.c.h.b16 %v4663
    %v5348 = vunpack.c.l.b16 %v4664
    %v5349 = vunpack.c.h.b16 %v4664
    %v5350 = vunpack.c.l.b16 %v4665
    %v5351 = vunpack.c.h.b16 %v4665
    %v5352 = vunpack.c.l.b16 %v4666
    %v5353 = vunpack.c.h.b16 %v4666
    %v5354 = vunpack.c.l.b16 %v4667
    %v5355 = vunpack.c.h.b16 %v4667
    %v5356 = vunpack.c.l.b16 %v4668
    %v5357 = vunpack.c.h.b16 %v4668
    %v5358 = vunpack.c.l.b16 %v4669
    %v5359 = vunpack.c.h.b16 %v4669
    %v5360 = vunpack.c.l.b16 %v4670
    %v5361 = vunpack.c.h.b16 %v4670
    %v5362 = vunpack.c.l.b16 %v4671
    %v5363 = vunpack.c.h.b16 %v4671
    %v5364 = vunpack.c.l.b16 %v4672
    %v5365 = vunpack.c.h.b16 %v4672
    %v5366 = vunpack.c.l.b16 %v4673
    %v5367 = vunpack.c.h.b16 %v4673
    %v5368 = vunpack.c.l.b16 %v4674
    %v5369 = vunpack.c.h.b16 %v4674
    %v5370 = vunpack.c.l.b16 %v4675
    %v5371 = vunpack.c.h.b16 %v4675
    %v5372 = vunpack.c.l.b16 %v4676
    %v5373 = vunpack.c.h.b16 %v4676
    %v5374 = vunpack.c.l.b16 %v4677
    %v5375 = vunpack.c.h.b16 %v4677
    %v5376 = vunpack.c.l.b16 %v4678
    %v5377 = vunpack.c.h.b16 %v4678
    %v5378 = vunpack.c.l.b16 %v4679
    %v5379 = vunpack.c.h.b16 %v4679
    %v5380 = vunpack.c.l.b16 %v4680
    %v5381 = vunpack.c.h.b16 %v4680
    %v5382 = vunpack.c.l.b16 %v4681
    %v5383 = vunpack.c.h.b16 %v4681
    %v5384 = vunpack.c.l.b16 %v4682
    %v5385 = vunpack.c.h.b16 %v4682
    %v5386 = vunpack.c.l.b16 %v4683
    %v5387 = vunpack.c.h.b16 %v4683
    %v5388 = vunpack.c.l.b16 %v4684
    %v5389 = vunpack.c.h.b16 %v4684
    %v5390 = vunpack.c.l.b16 %v4685
    %v5391 = vunpack.c.h.b16 %v4685
    %v5392 = vunpack.c.l.b16 %v4686
    %v5393 = vunpack.c.h.b16 %v4686
    %v5394 = vunpack.c.l.b16 %v4687
    %v5395 = vunpack.c.h.b16 %v4687
    %v5396 = vunpack.c.l.b16 %v4688
    %v5397 = vunpack.c.h.b16 %v4688
    %v5398 = vunpack.c.l.b16 %v4689
    %v5399 = vunpack.c.h.b16 %v4689
    %v5400 = vunpack.c.l.b16 %v4690
    %v5401 = vunpack.c.h.b16 %v4690
    %v5402 = vunpack.c.l.b16 %v4691
    %v5403 = vunpack.c.h.b16 %v4691
    %v5404 = vunpack.c.l.b16 %v4692
    %v5405 = vunpack.c.h.b16 %v4692
    %v5406 = vunpack.c.l.b16 %v4693
    %v5407 = vunpack.c.h.b16 %v4693
    %v5408 = vunpack.c.l.b16 %v4694
    %v5409 = vunpack.c.h.b16 %v4694
    %v5410 = vunpack.c.l.b16 %v4695
    %v5411 = vunpack.c.h.b16 %v4695
    %v5412 = vunpack.c.l.b16 %v4696
    %v5413 = vunpack.c.h.b16 %v4696
    %v5414 = vunpack.c.l.b16 %v4697
    %v5415 = vunpack.c.h.b16 %v4697
    %v5416 = vunpack.c.l.b16 %v4698
    %v5417 = vunpack.c.h.b16 %v4698
    %v5418 = vunpack.c.l.b16 %v4699
    %v5419 = vunpack.c.h.b16 %v4699
    %v5420 = vunpack.c.l.b16 %v4700
    %v5421 = vunpack.c.h.b16 %v4700
    %v5422 = vunpack.c.l.b16 %v4701
    %v5423 = vunpack.c.h.b16 %v4701
    %v5424 = vunpack.c.l.b16 %v4702
    %v5425 = vunpack.c.h.b16 %v4702
    %v5426 = vunpack.c.l.b16 %v4703
    %v5427 = vunpack.c.h.b16 %v4703
    %v5428 = vunpack.c.l.b16 %v4704
    %v5429 = vunpack.c.h.b16 %v4704
    %v5430 = vunpack.c.l.b16 %v4705
    %v5431 = vunpack.c.h.b16 %v4705
    %v5432 = vunpack.c.l.b16 %v4706
    %v5433 = vunpack.c.h.b16 %v4706
    %v5434 = vunpack.c.l.b16 %v4707
    %v5435 = vunpack.c.h.b16 %v4707
    %v5436 = vunpack.c.l.b16 %v4708
    %v5437 = vunpack.c.h.b16 %v4708
    %v5438 = vunpack.c.l.b16 %v4709
    %v5439 = vunpack.c.h.b16 %v4709
    %v5440 = vunpack.c.l.b16 %v4710
    %v5441 = vunpack.c.h.b16 %v4710
    %v5442 = vunpack.c.l.b16 %v4711
    %v5443 = vunpack.c.h.b16 %v4711
    %v5444 = vunpack.c.l.b16 %v4712
    %v5445 = vunpack.c.h.b16 %v4712
    %v5446 = vunpack.c.l.b16 %v4713
    %v5447 = vunpack.c.h.b16 %v4713
    %v5448 = vunpack.c.l.b16 %v4714
    %v5449 = vunpack.c.h.b16 %v4714
    %v5450 = vunpack.c.l.b16 %v4715
    %v5451 = vunpack.c.h.b16 %v4715
    %v5452 = vunpack.c.l.b16 %v4716
    %v5453 = vunpack.c.h.b16 %v4716
    %v5454 = vunpack.c.l.b16 %v4717
    %v5455 = vunpack.c.h.b16 %v4717
    %v5456 = vunpack.c.l.b16 %v4718
    %v5457 = vunpack.c.h.b16 %v4718
    %v5458 = vunpack.c.l.b16 %v4719
    %v5459 = vunpack.c.h.b16 %v4719
    %v5460 = vunpack.c.l.b16 %v4720
    %v5461 = vunpack.c.h.b16 %v4720
    %v5462 = vunpack.c.l.b16 %v4721
    %v5463 = vunpack.c.h.b16 %v4721
    %v5464 = vunpack.c.l.b16 %v4722
    %v5465 = vunpack.c.h.b16 %v4722
    %v5466 = vunpack.c.l.b16 %v4723
    %v5467 = vunpack.c.h.b16 %v4723
    %v5468 = vunpack.c.l.b16 %v4724
    %v5469 = vunpack.c.h.b16 %v4724
    %v5470 = vunpack.c.l.b16 %v4725
    %v5471 = vunpack.c.h.b16 %v4725
    %v5472 = vunpack.c.l.b16 %v4726
    %v5473 = vunpack.c.h.b16 %v4726
    %v5474 = vunpack.c.l.b16 %v4727
    %v5475 = vunpack.c.h.b16 %v4727
    %v5476 = vunpack.c.l.b16 %v4728
    %v5477 = vunpack.c.h.b16 %v4728
    %v5478 = vunpack.c.l.b16 %v4729
    %v5479 = vunpack.c.h.b16 %v4729
    %v5480 = vunpack.c.l.b16 %v4730
    %v5481 = vunpack.c.h.b16 %v4730
    %v5482 = vunpack.c.l.b16 %v4731
    %v5483 = vunpack.c.h.b16 %v4731
    %v5484 = vunpack.c.l.b16 %v4732
    %v5485 = vunpack.c.h.b16 %v4732
    %v5486 = vunpack.c.l.b16 %v4733
    %v5487 = vunpack.c.h.b16 %v4733
    %v5488 = vunpack.c.l.b16 %v4734
    %v5489 = vunpack.c.h.b16 %v4734
    %v5490 = vunpack.c.l.b16 %v4735
    %v5491 = vunpack.c.h.b16 %v4735
    %v5492 = vunpack.c.l.b16 %v4736
    %v5493 = vunpack.c.h.b16 %v4736
    %v5494 = vunpack.c.l.b16 %v4737
    %v5495 = vunpack.c.h.b16 %v4737
    %v5496 = vunpack.c.l.b16 %v4738
    %v5497 = vunpack.c.h.b16 %v4738
    %v5498 = vunpack.c.l.b16 %v4739
    %v5499 = vunpack.c.h.b16 %v4739
    %v5500 = vunpack.c.l.b16 %v4740
    %v5501 = vunpack.c.h.b16 %v4740
    %v5502 = vunpack.c.l.b16 %v4741
    %v5503 = vunpack.c.h.b16 %v4741
    %v5504 = vunpack.c.l.b16 %v4742
    %v5505 = vunpack.c.h.b16 %v4742
    %v5506 = vunpack.c.l.b16 %v4743
    %v5507 = vunpack.c.h.b16 %v4743
    %v5508 = vunpack.c.l.b16 %v4744
    %v5509 = vunpack.c.h.b16 %v4744
    %v5510 = vunpack.c.l.b16 %v4745
    %v5511 = vunpack.c.h.b16 %v4745
    %v5512 = vunpack.c.l.b16 %v4746
    %v5513 = vunpack.c.h.b16 %v4746
    %v5514 = vunpack.c.l.b16 %v4747
    %v5515 = vunpack.c.h.b16 %v4747
    %v5516 = vunpack.c.l.b16 %v4748
    %v5517 = vunpack.c.h.b16 %v4748
    %v5518 = vunpack.c.l.b16 %v4749
    %v5519 = vunpack.c.h.b16 %v4749
    %v5520 = vunpack.c.l.b16 %v4750
    %v5521 = vunpack.c.h.b16 %v4750
    %v5522 = vunpack.c.l.b16 %v4751
    %v5523 = vunpack.c.h.b16 %v4751
    %v5524 = vunpack.c.l.b16 %v4752
    %v5525 = vunpack.c.h.b16 %v4752
    %v5526 = vunpack.c.l.b16 %v4753
    %v5527 = vunpack.c.h.b16 %v4753
    %v5528 = vunpack.c.l.b16 %v4754
    %v5529 = vunpack.c.h.b16 %v4754
    %v5530 = vunpack.c.l.b16 %v4755
    %v5531 = vunpack.c.h.b16 %v4755
    %v5532 = vunpack.c.l.b16 %v4756
    %v5533 = vunpack.c.h.b16 %v4756
    %v5534 = vunpack.c.l.b16 %v4757
    %v5535 = vunpack.c.h.b16 %v4757
    %v5536 = vunpack.c.l.b16 %v4758
    %v5537 = vunpack.c.h.b16 %v4758
    %v5538 = vunpack.c.l.b16 %v4759
    %v5539 = vunpack.c.h.b16 %v4759
    %v5540 = vunpack.c.l.b16 %v4760
    %v5541 = vunpack.c.h.b16 %v4760
    %v5542 = vunpack.c.l.b16 %v4761
    %v5543 = vunpack.c.h.b16 %v4761
    %v5544 = vunpack.c.l.b16 %v4762
    %v5545 = vunpack.c.h.b16 %v4762
    %v5546 = vunpack.c.l.b16 %v4763
    %v5547 = vunpack.c.h.b16 %v4763
    %v5548 = vunpack.c.l.b16 %v4764
    %v5549 = vunpack.c.h.b16 %v4764
    %v5550 = vunpack.c.l.b16 %v4765
    %v5551 = vunpack.c.h.b16 %v4765
    %v5552 = vpack.c.b16 %v5048, %v5040
    %v5553 = vpack.c.b16 %v5049, %v5041
    %v5554 = vpack.c.b16 %v5050, %v5042
    %v5555 = vpack.c.b16 %v5051, %v5043
    %v5556 = vpack.c.b16 %v5052, %v5044
    %v5557 = vpack.c.b16 %v5053, %v5045
    %v5558 = vpack.c.b16 %v5054, %v5046
    %v5559 = vpack.c.b16 %v5055, %v5047
    %v5560 = vpack.c.b16 %v5064, %v5056
    %v5561 = vpack.c.b16 %v5065, %v5057
    %v5562 = vpack.c.b16 %v5066, %v5058
    %v5563 = vpack.c.b16 %v5067, %v5059
    %v5564 = vpack.c.b16 %v5068, %v5060
    %v5565 = vpack.c.b16 %v5069, %v5061
    %v5566 = vpack.c.b16 %v5070, %v5062
    %v5567 = vpack.c.b16 %v5071, %v5063
    %v5568 = vpack.c.b16 %v5080, %v5072
    %v5569 = vpack.c.b16 %v5081, %v5073
    %v5570 = vpack.c.b16 %v5082, %v5074
    %v5571 = vpack.c.b16 %v5083, %v5075
    %v5572 = vpack.c.b16 %v5084, %v5076
    %v5573 = vpack.c.b16 %v5085, %v5077
    %v5574 = vpack.c.b16 %v5086, %v5078
    %v5575 = vpack.c.b16 %v5087, %v5079
    %v5576 = vpack.c.b16 %v5096, %v5088
    %v5577 = vpack.c.b16 %v5097, %v5089
    %v5578 = vpack.c.b16 %v5098, %v5090
    %v5579 = vpack.c.b16 %v5099, %v5091
    %v5580 = vpack.c.b16 %v5100, %v5092
    %v5581 = vpack.c.b16 %v5101, %v5093
    %v5582 = vpack.c.b16 %v5102, %v5094
    %v5583 = vpack.c.b16 %v5103, %v5095
    %v5584 = vpack.c.b16 %v5112, %v5104
    %v5585 = vpack.c.b16 %v5113, %v5105
    %v5586 = vpack.c.b16 %v5114, %v5106
    %v5587 = vpack.c.b16 %v5115, %v5107
    %v5588 = vpack.c.b16 %v5116, %v5108
    %v5589 = vpack.c.b16 %v5117, %v5109
    %v5590 = vpack.c.b16 %v5118, %v5110
    %v5591 = vpack.c.b16 %v5119, %v5111
    %v5592 = vpack.c.b16 %v5128, %v5120
    %v5593 = vpack.c.b16 %v5129, %v5121
    %v5594 = vpack.c.b16 %v5130, %v5122
    %v5595 = vpack.c.b16 %v5131, %v5123
    %v5596 = vpack.c.b16 %v5132, %v5124
    %v5597 = vpack.c.b16 %v5133, %v5125
    %v5598 = vpack.c.b16 %v5134, %v5126
    %v5599 = vpack.c.b16 %v5135, %v5127
    %v5600 = vpack.c.b16 %v5144, %v5136
    %v5601 = vpack.c.b16 %v5145, %v5137
    %v5602 = vpack.c.b16 %v5146, %v5138
    %v5603 = vpack.c.b16 %v5147, %v5139
    %v5604 = vpack.c.b16 %v5148, %v5140
    %v5605 = vpack.c.b16 %v5149, %v5141
    %v5606 = vpack.c.b16 %v5150, %v5142
    %v5607 = vpack.c.b16 %v5151, %v5143
    %v5608 = vpack.c.b16 %v5160, %v5152
    %v5609 = vpack.c.b16 %v5161, %v5153
    %v5610 = vpack.c.b16 %v5162, %v5154
    %v5611 = vpack.c.b16 %v5163, %v5155
    %v5612 = vpack.c.b16 %v5164, %v5156
    %v5613 = vpack.c.b16 %v5165, %v5157
    %v5614 = vpack.c.b16 %v5166, %v5158
    %v5615 = vpack.c.b16 %v5167, %v5159
    %v5616 = vpack.c.b16 %v5176, %v5168
    %v5617 = vpack.c.b16 %v5177, %v5169
    %v5618 = vpack.c.b16 %v5178, %v5170
    %v5619 = vpack.c.b16 %v5179, %v5171
    %v5620 = vpack.c.b16 %v5180, %v5172
    %v5621 = vpack.c.b16 %v5181, %v5173
    %v5622 = vpack.c.b16 %v5182, %v5174
    %v5623 = vpack.c.b16 %v5183, %v5175
    %v5624 = vpack.c.b16 %v5192, %v5184
    %v5625 = vpack.c.b16 %v5193, %v5185
    %v5626 = vpack.c.b16 %v5194, %v5186
    %v5627 = vpack.c.b16 %v5195, %v5187
    %v5628 = vpack.c.b16 %v5196, %v5188
    %v5629 = vpack.c.b16 %v5197, %v5189
    %v5630 = vpack.c.b16 %v5198, %v5190
    %v5631 = vpack.c.b16 %v5199, %v5191
    %v5632 = vpack.c.b16 %v5208, %v5200
    %v5633 = vpack.c.b16 %v5209, %v5201
    %v5634 = vpack.c.b16 %v5210, %v5202
    %v5635 = vpack.c.b16 %v5211, %v5203
    %v5636 = vpack.c.b16 %v5212, %v5204
    %v5637 = vpack.c.b16 %v5213, %v5205
    %v5638 = vpack.c.b16 %v5214, %v5206
    %v5639 = vpack.c.b16 %v5215, %v5207
    %v5640 = vpack.c.b16 %v5224, %v5216
    %v5641 = vpack.c.b16 %v5225, %v5217
    %v5642 = vpack.c.b16 %v5226, %v5218
    %v5643 = vpack.c.b16 %v5227, %v5219
    %v5644 = vpack.c.b16 %v5228, %v5220
    %v5645 = vpack.c.b16 %v5229, %v5221
    %v5646 = vpack.c.b16 %v5230, %v5222
    %v5647 = vpack.c.b16 %v5231, %v5223
    %v5648 = vpack.c.b16 %v5240, %v5232
    %v5649 = vpack.c.b16 %v5241, %v5233
    %v5650 = vpack.c.b16 %v5242, %v5234
    %v5651 = vpack.c.b16 %v5243, %v5235
    %v5652 = vpack.c.b16 %v5244, %v5236
    %v5653 = vpack.c.b16 %v5245, %v5237
    %v5654 = vpack.c.b16 %v5246, %v5238
    %v5655 = vpack.c.b16 %v5247, %v5239
    %v5656 = vpack.c.b16 %v5256, %v5248
    %v5657 = vpack.c.b16 %v5257, %v5249
    %v5658 = vpack.c.b16 %v5258, %v5250
    %v5659 = vpack.c.b16 %v5259, %v5251
    %v5660 = vpack.c.b16 %v5260, %v5252
    %v5661 = vpack.c.b16 %v5261, %v5253
    %v5662 = vpack.c.b16 %v5262, %v5254
    %v5663 = vpack.c.b16 %v5263, %v5255
    %v5664 = vpack.c.b16 %v5272, %v5264
    %v5665 = vpack.c.b16 %v5273, %v5265
    %v5666 = vpack.c.b16 %v5274, %v5266
    %v5667 = vpack.c.b16 %v5275, %v5267
    %v5668 = vpack.c.b16 %v5276, %v5268
    %v5669 = vpack.c.b16 %v5277, %v5269
    %v5670 = vpack.c.b16 %v5278, %v5270
    %v5671 = vpack.c.b16 %v5279, %v5271
    %v5672 = vpack.c.b16 %v5288, %v5280
    %v5673 = vpack.c.b16 %v5289, %v5281
    %v5674 = vpack.c.b16 %v5290, %v5282
    %v5675 = vpack.c.b16 %v5291, %v5283
    %v5676 = vpack.c.b16 %v5292, %v5284
    %v5677 = vpack.c.b16 %v5293, %v5285
    %v5678 = vpack.c.b16 %v5294, %v5286
    %v5679 = vpack.c.b16 %v5295, %v5287
    %v5680 = vpack.c.b16 %v5304, %v5296
    %v5681 = vpack.c.b16 %v5305, %v5297
    %v5682 = vpack.c.b16 %v5306, %v5298
    %v5683 = vpack.c.b16 %v5307, %v5299
    %v5684 = vpack.c.b16 %v5308, %v5300
    %v5685 = vpack.c.b16 %v5309, %v5301
    %v5686 = vpack.c.b16 %v5310, %v5302
    %v5687 = vpack.c.b16 %v5311, %v5303
    %v5688 = vpack.c.b16 %v5320, %v5312
    %v5689 = vpack.c.b16 %v5321, %v5313
    %v5690 = vpack.c.b16 %v5322, %v5314
    %v5691 = vpack.c.b16 %v5323, %v5315
    %v5692 = vpack.c.b16 %v5324, %v5316
    %v5693 = vpack.c.b16 %v5325, %v5317
    %v5694 = vpack.c.b16 %v5326, %v5318
    %v5695 = vpack.c.b16 %v5327, %v5319
    %v5696 = vpack.c.b16 %v5336, %v5328
    %v5697 = vpack.c.b16 %v5337, %v5329
    %v5698 = vpack.c.b16 %v5338, %v5330
    %v5699 = vpack.c.b16 %v5339, %v5331
    %v5700 = vpack.c.b16 %v5340, %v5332
    %v5701 = vpack.c.b16 %v5341, %v5333
    %v5702 = vpack.c.b16 %v5342, %v5334
    %v5703 = vpack.c.b16 %v5343, %v5335
    %v5704 = vpack.c.b16 %v5352, %v5344
    %v5705 = vpack.c.b16 %v5353, %v5345
    %v5706 = vpack.c.b16 %v5354, %v5346
    %v5707 = vpack.c.b16 %v5355, %v5347
    %v5708 = vpack.c.b16 %v5356, %v5348
    %v5709 = vpack.c.b16 %v5357, %v5349
    %v5710 = vpack.c.b16 %v5358, %v5350
    %v5711 = vpack.c.b16 %v5359, %v5351
    %v5712 = vpack.c.b16 %v5368, %v5360
    %v5713 = vpack.c.b16 %v5369, %v5361
    %v5714 = vpack.c.b16 %v5370, %v5362
    %v5715 = vpack.c.b16 %v5371, %v5363
    %v5716 = vpack.c.b16 %v5372, %v5364
    %v5717 = vpack.c.b16 %v5373, %v5365
    %v5718 = vpack.c.b16 %v5374, %v5366
    %v5719 = vpack.c.b16 %v5375, %v5367
    %v5720 = vpack.c.b16 %v5384, %v5376
    %v5721 = vpack.c.b16 %v5385, %v5377
    %v5722 = vpack.c.b16 %v5386, %v5378
    %v5723 = vpack.c.b16 %v5387, %v5379
    %v5724 = vpack.c.b16 %v5388, %v5380
    %v5725 = vpack.c.b16 %v5389, %v5381
    %v5726 = vpack.c.b16 %v5390, %v5382
    %v5727 = vpack.c.b16 %v5391, %v5383
    %v5728 = vpack.c.b16 %v5400, %v5392
    %v5729 = vpack.c.b16 %v5401, %v5393
    %v5730 = vpack.c.b16 %v5402, %v5394
    %v5731 = vpack.c.b16 %v5403, %v5395
    %v5732 = vpack.c.b16 %v5404, %v5396
    %v5733 = vpack.c.b16 %v5405, %v5397
    %v5734 = vpack.c.b16 %v5406, %v5398
    %v5735 = vpack.c.b16 %v5407, %v5399
    %v5736 = vpack.c.b16 %v5416, %v5408
    %v5737 = vpack.c.b16 %v5417, %v5409
    %v5738 = vpack.c.b16 %v5418, %v5410
    %v5739 = vpack.c.b16 %v5419, %v5411
    %v5740 = vpack.c.b16 %v5420, %v5412
    %v5741 = vpack.c.b16 %v5421, %v5413
    %v5742 = vpack.c.b16 %v5422, %v5414
    %v5743 = vpack.c.b16 %v5423, %v5415
    %v5744 = vpack.c.b16 %v5432, %v5424
    %v5745 = vpack.c.b16 %v5433, %v5425
    %v5746 = vpack.c.b16 %v5434, %v5426
    %v5747 = vpack.c.b16 %v5435, %v5427
    %v5748 = vpack.c.b16 %v5436, %v5428
    %v5749 = vpack.c.b16 %v5437, %v5429
    %v5750 = vpack.c.b16 %v5438, %v5430
    %v5751 = vpack.c.b16 %v5439, %v5431
    %v5752 = vpack.c.b16 %v5448, %v5440
    %v5753 = vpack.c.b16 %v5449, %v5441
    %v5754 = vpack.c.b16 %v5450, %v5442
    %v5755 = vpack.c.b16 %v5451, %v5443
    %v5756 = vpack.c.b16 %v5452, %v5444
    %v5757 = vpack.c.b16 %v5453, %v5445
    %v5758 = vpack.c.b16 %v5454, %v5446
    %v5759 = vpack.c.b16 %v5455, %v5447
    %v5760 = vpack.c.b16 %v5464, %v5456
    %v5761 = vpack.c.b16 %v5465, %v5457
    %v5762 = vpack.c.b16 %v5466, %v5458
    %v5763 = vpack.c.b16 %v5467, %v5459
    %v5764 = vpack.c.b16 %v5468, %v5460
    %v5765 = vpack.c.b16 %v5469, %v5461
    %v5766 = vpack.c.b16 %v5470, %v5462
    %v5767 = vpack.c.b16 %v5471, %v5463
    %v5768 = vpack.c.b16 %v5480, %v5472
    %v5769 = vpack.c.b16 %v5481, %v5473
    %v5770 = vpack.c.b16 %v5482, %v5474
    %v5771 = vpack.c.b16 %v5483, %v5475
    %v5772 = vpack.c.b16 %v5484, %v5476
    %v5773 = vpack.c.b16 %v5485, %v5477
    %v5774 = vpack.c.b16 %v5486, %v5478
    %v5775 = vpack.c.b16 %v5487, %v5479
    %v5776 = vpack.c.b16 %v5496, %v5488
    %v5777 = vpack.c.b16 %v5497, %v5489
    %v5778 = vpack.c.b16 %v5498, %v5490
    %v5779 = vpack.c.b16 %v5499, %v5491
    %v5780 = vpack.c.b16 %v5500, %v5492
    %v5781 = vpack.c.b16 %v5501, %v5493
    %v5782 = vpack.c.b16 %v5502, %v5494
    %v5783 = vpack.c.b16 %v5503, %v5495
    %v5784 = vpack.c.b16 %v5512, %v5504
    %v5785 = vpack.c.b16 %v5513, %v5505
    %v5786 = vpack.c.b16 %v5514, %v5506
    %v5787 = vpack.c.b16 %v5515, %v5507
    %v5788 = vpack.c.b16 %v5516, %v5508
    %v5789 = vpack.c.b16 %v5517, %v5509
    %v5790 = vpack.c.b16 %v5518, %v5510
    %v5791 = vpack.c.b16 %v5519, %v5511
    %v5792 = vpack.c.b16 %v5528, %v5520
    %v5793 = vpack.c.b16 %v5529, %v5521
    %v5794 = vpack.c.b16 %v5530, %v5522
    %v5795 = vpack.c.b16 %v5531, %v5523
    %v5796 = vpack.c.b16 %v5532, %v5524
    %v5797 = vpack.c.b16 %v5533, %v5525
    %v5798 = vpack.c.b16 %v5534, %v5526
    %v5799 = vpack.c.b16 %v5535, %v5527
    %v5800 = vpack.c.b16 %v5544, %v5536
    %v5801 = vpack.c.b16 %v5545, %v5537
    %v5802 = vpack.c.b16 %v5546, %v5538
    %v5803 = vpack.c.b16 %v5547, %v5539
    %v5804 = vpack.c.b16 %v5548, %v5540
    %v5805 = vpack.c.b16 %v5549, %v5541
    %v5806 = vpack.c.b16 %v5550, %v5542
    %v5807 = vpack.c.b16 %v5551, %v5543
    %6064 = vmatpush.bf16.msra.mxu0 %v5608
    %6065 = vmatpush.bf16.msra.mxu0 %v5600
    %6066 = vmatpush.bf16.msra.mxu0 %v5592
    %6067 = vmatpush.bf16.msra.mxu0 %v5584
    %6068 = vmatpush.bf16.msra.mxu0 %v5576
    %6069 = vmatpush.bf16.msra.mxu0 %v5568
    %6070 = vmatpush.bf16.msra.mxu0 %v5560
    %6071 = vmatpush.bf16.msra.mxu0 %v5552
    %6072 = vmatmul.bf16.gmra.mxu0 %v4506
    %v6073 = vpop.f32.mrf.mxu0
    %v6074 = vadd.f32 %v4768, %v6073
    %v6075 = vpop.f32.mrf.mxu0
    %6076 = vdwg.mxu0
    %6077 = vmatpush.bf16.msra.mxu0 %v5672
    %6078 = vmatpush.bf16.msra.mxu0 %v5664
    %6079 = vmatpush.bf16.msra.mxu0 %v5656
    %6080 = vmatpush.bf16.msra.mxu0 %v5648
    %6081 = vmatpush.bf16.msra.mxu0 %v5640
    %6082 = vmatpush.bf16.msra.mxu0 %v5632
    %6083 = vmatpush.bf16.msra.mxu0 %v5624
    %6084 = vmatpush.bf16.msra.mxu0 %v5616
    %6085 = vmatmul.bf16.gmra.mxu0 %v4507
    %v6086 = vpop.f32.mrf.mxu0
    %v6087 = vadd.f32 %v6074, %v6086
    %v6088 = vpop.f32.mrf.mxu0
    %6089 = vdwg.mxu0
    %6090 = vmatpush.bf16.msra.mxu0 %v5736
    %6091 = vmatpush.bf16.msra.mxu0 %v5728
    %6092 = vmatpush.bf16.msra.mxu0 %v5720
    %6093 = vmatpush.bf16.msra.mxu0 %v5712
    %6094 = vmatpush.bf16.msra.mxu0 %v5704
    %6095 = vmatpush.bf16.msra.mxu0 %v5696
    %6096 = vmatpush.bf16.msra.mxu0 %v5688
    %6097 = vmatpush.bf16.msra.mxu0 %v5680
    %6098 = vmatmul.bf16.gmra.mxu0 %v4508
    %v6099 = vpop.f32.mrf.mxu0
    %v6100 = vadd.f32 %v6087, %v6099
    %v6101 = vpop.f32.mrf.mxu0
    %6102 = vdwg.mxu0
    %6103 = vmatpush.bf16.msra.mxu0 %v5800
    %6104 = vmatpush.bf16.msra.mxu0 %v5792
    %6105 = vmatpush.bf16.msra.mxu0 %v5784
    %6106 = vmatpush.bf16.msra.mxu0 %v5776
    %6107 = vmatpush.bf16.msra.mxu0 %v5768
    %6108 = vmatpush.bf16.msra.mxu0 %v5760
    %6109 = vmatpush.bf16.msra.mxu0 %v5752
    %6110 = vmatpush.bf16.msra.mxu0 %v5744
    %6111 = vmatmul.bf16.gmra.mxu0 %v4509
    %v6112 = vpop.f32.mrf.mxu0
    %v6113 = vadd.f32 %v6100, %v6112
    %v6114 = vpop.f32.mrf.mxu0
    %6115 = vdwg.mxu0
    %6116 = vmatpush.bf16.msra.mxu0 %v5609
    %6117 = vmatpush.bf16.msra.mxu0 %v5601
    %6118 = vmatpush.bf16.msra.mxu0 %v5593
    %6119 = vmatpush.bf16.msra.mxu0 %v5585
    %6120 = vmatpush.bf16.msra.mxu0 %v5577
    %6121 = vmatpush.bf16.msra.mxu0 %v5569
    %6122 = vmatpush.bf16.msra.mxu0 %v5561
    %6123 = vmatpush.bf16.msra.mxu0 %v5553
    %6124 = vmatmul.bf16.gmra.mxu0 %v4506
    %v6125 = vpop.f32.mrf.mxu0
    %v6126 = vadd.f32 %v4769, %v6125
    %v6127 = vpop.f32.mrf.mxu0
    %6128 = vdwg.mxu0
    %6129 = vmatpush.bf16.msra.mxu0 %v5673
    %6130 = vmatpush.bf16.msra.mxu0 %v5665
    %6131 = vmatpush.bf16.msra.mxu0 %v5657
    %6132 = vmatpush.bf16.msra.mxu0 %v5649
    %6133 = vmatpush.bf16.msra.mxu0 %v5641
    %6134 = vmatpush.bf16.msra.mxu0 %v5633
    %6135 = vmatpush.bf16.msra.mxu0 %v5625
    %6136 = vmatpush.bf16.msra.mxu0 %v5617
    %6137 = vmatmul.bf16.gmra.mxu0 %v4507
    %v6138 = vpop.f32.mrf.mxu0
    %v6139 = vadd.f32 %v6126, %v6138
    %v6140 = vpop.f32.mrf.mxu0
    %6141 = vdwg.mxu0
    %6142 = vmatpush.bf16.msra.mxu0 %v5737
    %6143 = vmatpush.bf16.msra.mxu0 %v5729
    %6144 = vmatpush.bf16.msra.mxu0 %v5721
    %6145 = vmatpush.bf16.msra.mxu0 %v5713
    %6146 = vmatpush.bf16.msra.mxu0 %v5705
    %6147 = vmatpush.bf16.msra.mxu0 %v5697
    %6148 = vmatpush.bf16.msra.mxu0 %v5689
    %6149 = vmatpush.bf16.msra.mxu0 %v5681
    %6150 = vmatmul.bf16.gmra.mxu0 %v4508
    %v6151 = vpop.f32.mrf.mxu0
    %v6152 = vadd.f32 %v6139, %v6151
    %v6153 = vpop.f32.mrf.mxu0
    %6154 = vdwg.mxu0
    %6155 = vmatpush.bf16.msra.mxu0 %v5801
    %6156 = vmatpush.bf16.msra.mxu0 %v5793
    %6157 = vmatpush.bf16.msra.mxu0 %v5785
    %6158 = vmatpush.bf16.msra.mxu0 %v5777
    %6159 = vmatpush.bf16.msra.mxu0 %v5769
    %6160 = vmatpush.bf16.msra.mxu0 %v5761
    %6161 = vmatpush.bf16.msra.mxu0 %v5753
    %6162 = vmatpush.bf16.msra.mxu0 %v5745
    %6163 = vmatmul.bf16.gmra.mxu0 %v4509
    %v6164 = vpop.f32.mrf.mxu0
    %v6165 = vadd.f32 %v6152, %v6164
    %v6166 = vpop.f32.mrf.mxu0
    %6167 = vdwg.mxu0
    %6168 = vmatpush.bf16.msra.mxu0 %v5610
    %6169 = vmatpush.bf16.msra.mxu0 %v5602
    %6170 = vmatpush.bf16.msra.mxu0 %v5594
    %6171 = vmatpush.bf16.msra.mxu0 %v5586
    %6172 = vmatpush.bf16.msra.mxu0 %v5578
    %6173 = vmatpush.bf16.msra.mxu0 %v5570
    %6174 = vmatpush.bf16.msra.mxu0 %v5562
    %6175 = vmatpush.bf16.msra.mxu0 %v5554
    %6176 = vmatmul.bf16.gmra.mxu0 %v4506
    %v6177 = vpop.f32.mrf.mxu0
    %v6178 = vadd.f32 %v4770, %v6177
    %v6179 = vpop.f32.mrf.mxu0
    %6180 = vdwg.mxu0
    %6181 = vmatpush.bf16.msra.mxu0 %v5674
    %6182 = vmatpush.bf16.msra.mxu0 %v5666
    %6183 = vmatpush.bf16.msra.mxu0 %v5658
    %6184 = vmatpush.bf16.msra.mxu0 %v5650
    %6185 = vmatpush.bf16.msra.mxu0 %v5642
    %6186 = vmatpush.bf16.msra.mxu0 %v5634
    %6187 = vmatpush.bf16.msra.mxu0 %v5626
    %6188 = vmatpush.bf16.msra.mxu0 %v5618
    %6189 = vmatmul.bf16.gmra.mxu0 %v4507
    %v6190 = vpop.f32.mrf.mxu0
    %v6191 = vadd.f32 %v6178, %v6190
    %v6192 = vpop.f32.mrf.mxu0
    %6193 = vdwg.mxu0
    %6194 = vmatpush.bf16.msra.mxu0 %v5738
    %6195 = vmatpush.bf16.msra.mxu0 %v5730
    %6196 = vmatpush.bf16.msra.mxu0 %v5722
    %6197 = vmatpush.bf16.msra.mxu0 %v5714
    %6198 = vmatpush.bf16.msra.mxu0 %v5706
    %6199 = vmatpush.bf16.msra.mxu0 %v5698
    %6200 = vmatpush.bf16.msra.mxu0 %v5690
    %6201 = vmatpush.bf16.msra.mxu0 %v5682
    %6202 = vmatmul.bf16.gmra.mxu0 %v4508
    %v6203 = vpop.f32.mrf.mxu0
    %v6204 = vadd.f32 %v6191, %v6203
    %v6205 = vpop.f32.mrf.mxu0
    %6206 = vdwg.mxu0
    %6207 = vmatpush.bf16.msra.mxu0 %v5802
    %6208 = vmatpush.bf16.msra.mxu0 %v5794
    %6209 = vmatpush.bf16.msra.mxu0 %v5786
    %6210 = vmatpush.bf16.msra.mxu0 %v5778
    %6211 = vmatpush.bf16.msra.mxu0 %v5770
    %6212 = vmatpush.bf16.msra.mxu0 %v5762
    %6213 = vmatpush.bf16.msra.mxu0 %v5754
    %6214 = vmatpush.bf16.msra.mxu0 %v5746
    %6215 = vmatmul.bf16.gmra.mxu0 %v4509
    %v6216 = vpop.f32.mrf.mxu0
    %v6217 = vadd.f32 %v6204, %v6216
    %v6218 = vpop.f32.mrf.mxu0
    %6219 = vdwg.mxu0
    %6220 = vmatpush.bf16.msra.mxu0 %v5611
    %6221 = vmatpush.bf16.msra.mxu0 %v5603
    %6222 = vmatpush.bf16.msra.mxu0 %v5595
    %6223 = vmatpush.bf16.msra.mxu0 %v5587
    %6224 = vmatpush.bf16.msra.mxu0 %v5579
    %6225 = vmatpush.bf16.msra.mxu0 %v5571
    %6226 = vmatpush.bf16.msra.mxu0 %v5563
    %6227 = vmatpush.bf16.msra.mxu0 %v5555
    %6228 = vmatmul.bf16.gmra.mxu0 %v4506
    %v6229 = vpop.f32.mrf.mxu0
    %v6230 = vadd.f32 %v4771, %v6229
    %v6231 = vpop.f32.mrf.mxu0
    %6232 = vdwg.mxu0
    %6233 = vmatpush.bf16.msra.mxu0 %v5675
    %6234 = vmatpush.bf16.msra.mxu0 %v5667
    %6235 = vmatpush.bf16.msra.mxu0 %v5659
    %6236 = vmatpush.bf16.msra.mxu0 %v5651
    %6237 = vmatpush.bf16.msra.mxu0 %v5643
    %6238 = vmatpush.bf16.msra.mxu0 %v5635
    %6239 = vmatpush.bf16.msra.mxu0 %v5627
    %6240 = vmatpush.bf16.msra.mxu0 %v5619
    %6241 = vmatmul.bf16.gmra.mxu0 %v4507
    %v6242 = vpop.f32.mrf.mxu0
    %v6243 = vadd.f32 %v6230, %v6242
    %v6244 = vpop.f32.mrf.mxu0
    %6245 = vdwg.mxu0
    %6246 = vmatpush.bf16.msra.mxu0 %v5739
    %6247 = vmatpush.bf16.msra.mxu0 %v5731
    %6248 = vmatpush.bf16.msra.mxu0 %v5723
    %6249 = vmatpush.bf16.msra.mxu0 %v5715
    %6250 = vmatpush.bf16.msra.mxu0 %v5707
    %6251 = vmatpush.bf16.msra.mxu0 %v5699
    %6252 = vmatpush.bf16.msra.mxu0 %v5691
    %6253 = vmatpush.bf16.msra.mxu0 %v5683
    %6254 = vmatmul.bf16.gmra.mxu0 %v4508
    %v6255 = vpop.f32.mrf.mxu0
    %v6256 = vadd.f32 %v6243, %v6255
    %v6257 = vpop.f32.mrf.mxu0
    %6258 = vdwg.mxu0
    %6259 = vmatpush.bf16.msra.mxu0 %v5803
    %6260 = vmatpush.bf16.msra.mxu0 %v5795
    %6261 = vmatpush.bf16.msra.mxu0 %v5787
    %6262 = vmatpush.bf16.msra.mxu0 %v5779
    %6263 = vmatpush.bf16.msra.mxu0 %v5771
    %6264 = vmatpush.bf16.msra.mxu0 %v5763
    %6265 = vmatpush.bf16.msra.mxu0 %v5755
    %6266 = vmatpush.bf16.msra.mxu0 %v5747
    %6267 = vmatmul.bf16.gmra.mxu0 %v4509
    %v6268 = vpop.f32.mrf.mxu0
    %v6269 = vadd.f32 %v6256, %v6268
    %v6270 = vpop.f32.mrf.mxu0
    %6271 = vdwg.mxu0
    %6272 = vmatpush.bf16.msra.mxu0 %v5612
    %6273 = vmatpush.bf16.msra.mxu0 %v5604
    %6274 = vmatpush.bf16.msra.mxu0 %v5596
    %6275 = vmatpush.bf16.msra.mxu0 %v5588
    %6276 = vmatpush.bf16.msra.mxu0 %v5580
    %6277 = vmatpush.bf16.msra.mxu0 %v5572
    %6278 = vmatpush.bf16.msra.mxu0 %v5564
    %6279 = vmatpush.bf16.msra.mxu0 %v5556
    %6280 = vmatmul.bf16.gmra.mxu0 %v4506
    %v6281 = vpop.f32.mrf.mxu0
    %v6282 = vadd.f32 %v4772, %v6281
    %v6283 = vpop.f32.mrf.mxu0
    %6284 = vdwg.mxu0
    %6285 = vmatpush.bf16.msra.mxu0 %v5676
    %6286 = vmatpush.bf16.msra.mxu0 %v5668
    %6287 = vmatpush.bf16.msra.mxu0 %v5660
    %6288 = vmatpush.bf16.msra.mxu0 %v5652
    %6289 = vmatpush.bf16.msra.mxu0 %v5644
    %6290 = vmatpush.bf16.msra.mxu0 %v5636
    %6291 = vmatpush.bf16.msra.mxu0 %v5628
    %6292 = vmatpush.bf16.msra.mxu0 %v5620
    %6293 = vmatmul.bf16.gmra.mxu0 %v4507
    %v6294 = vpop.f32.mrf.mxu0
    %v6295 = vadd.f32 %v6282, %v6294
    %v6296 = vpop.f32.mrf.mxu0
    %6297 = vdwg.mxu0
    %6298 = vmatpush.bf16.msra.mxu0 %v5740
    %6299 = vmatpush.bf16.msra.mxu0 %v5732
    %6300 = vmatpush.bf16.msra.mxu0 %v5724
    %6301 = vmatpush.bf16.msra.mxu0 %v5716
    %6302 = vmatpush.bf16.msra.mxu0 %v5708
    %6303 = vmatpush.bf16.msra.mxu0 %v5700
    %6304 = vmatpush.bf16.msra.mxu0 %v5692
    %6305 = vmatpush.bf16.msra.mxu0 %v5684
    %6306 = vmatmul.bf16.gmra.mxu0 %v4508
    %v6307 = vpop.f32.mrf.mxu0
    %v6308 = vadd.f32 %v6295, %v6307
    %v6309 = vpop.f32.mrf.mxu0
    %6310 = vdwg.mxu0
    %6311 = vmatpush.bf16.msra.mxu0 %v5804
    %6312 = vmatpush.bf16.msra.mxu0 %v5796
    %6313 = vmatpush.bf16.msra.mxu0 %v5788
    %6314 = vmatpush.bf16.msra.mxu0 %v5780
    %6315 = vmatpush.bf16.msra.mxu0 %v5772
    %6316 = vmatpush.bf16.msra.mxu0 %v5764
    %6317 = vmatpush.bf16.msra.mxu0 %v5756
    %6318 = vmatpush.bf16.msra.mxu0 %v5748
    %6319 = vmatmul.bf16.gmra.mxu0 %v4509
    %v6320 = vpop.f32.mrf.mxu0
    %v6321 = vadd.f32 %v6308, %v6320
    %v6322 = vpop.f32.mrf.mxu0
    %6323 = vdwg.mxu0
    %6324 = vmatpush.bf16.msra.mxu0 %v5613
    %6325 = vmatpush.bf16.msra.mxu0 %v5605
    %6326 = vmatpush.bf16.msra.mxu0 %v5597
    %6327 = vmatpush.bf16.msra.mxu0 %v5589
    %6328 = vmatpush.bf16.msra.mxu0 %v5581
    %6329 = vmatpush.bf16.msra.mxu0 %v5573
    %6330 = vmatpush.bf16.msra.mxu0 %v5565
    %6331 = vmatpush.bf16.msra.mxu0 %v5557
    %6332 = vmatmul.bf16.gmra.mxu0 %v4506
    %v6333 = vpop.f32.mrf.mxu0
    %v6334 = vadd.f32 %v4773, %v6333
    %v6335 = vpop.f32.mrf.mxu0
    %6336 = vdwg.mxu0
    %6337 = vmatpush.bf16.msra.mxu0 %v5677
    %6338 = vmatpush.bf16.msra.mxu0 %v5669
    %6339 = vmatpush.bf16.msra.mxu0 %v5661
    %6340 = vmatpush.bf16.msra.mxu0 %v5653
    %6341 = vmatpush.bf16.msra.mxu0 %v5645
    %6342 = vmatpush.bf16.msra.mxu0 %v5637
    %6343 = vmatpush.bf16.msra.mxu0 %v5629
    %6344 = vmatpush.bf16.msra.mxu0 %v5621
    %6345 = vmatmul.bf16.gmra.mxu0 %v4507
    %v6346 = vpop.f32.mrf.mxu0
    %v6347 = vadd.f32 %v6334, %v6346
    %v6348 = vpop.f32.mrf.mxu0
    %6349 = vdwg.mxu0
    %6350 = vmatpush.bf16.msra.mxu0 %v5741
    %6351 = vmatpush.bf16.msra.mxu0 %v5733
    %6352 = vmatpush.bf16.msra.mxu0 %v5725
    %6353 = vmatpush.bf16.msra.mxu0 %v5717
    %6354 = vmatpush.bf16.msra.mxu0 %v5709
    %6355 = vmatpush.bf16.msra.mxu0 %v5701
    %6356 = vmatpush.bf16.msra.mxu0 %v5693
    %6357 = vmatpush.bf16.msra.mxu0 %v5685
    %6358 = vmatmul.bf16.gmra.mxu0 %v4508
    %v6359 = vpop.f32.mrf.mxu0
    %v6360 = vadd.f32 %v6347, %v6359
    %v6361 = vpop.f32.mrf.mxu0
    %6362 = vdwg.mxu0
    %6363 = vmatpush.bf16.msra.mxu0 %v5805
    %6364 = vmatpush.bf16.msra.mxu0 %v5797
    %6365 = vmatpush.bf16.msra.mxu0 %v5789
    %6366 = vmatpush.bf16.msra.mxu0 %v5781
    %6367 = vmatpush.bf16.msra.mxu0 %v5773
    %6368 = vmatpush.bf16.msra.mxu0 %v5765
    %6369 = vmatpush.bf16.msra.mxu0 %v5757
    %6370 = vmatpush.bf16.msra.mxu0 %v5749
    %6371 = vmatmul.bf16.gmra.mxu0 %v4509
    %v6372 = vpop.f32.mrf.mxu0
    %v6373 = vadd.f32 %v6360, %v6372
    %v6374 = vpop.f32.mrf.mxu0
    %6375 = vdwg.mxu0
    %6376 = vmatpush.bf16.msra.mxu0 %v5614
    %6377 = vmatpush.bf16.msra.mxu0 %v5606
    %6378 = vmatpush.bf16.msra.mxu0 %v5598
    %6379 = vmatpush.bf16.msra.mxu0 %v5590
    %6380 = vmatpush.bf16.msra.mxu0 %v5582
    %6381 = vmatpush.bf16.msra.mxu0 %v5574
    %6382 = vmatpush.bf16.msra.mxu0 %v5566
    %6383 = vmatpush.bf16.msra.mxu0 %v5558
    %6384 = vmatmul.bf16.gmra.mxu0 %v4506
    %v6385 = vpop.f32.mrf.mxu0
    %v6386 = vadd.f32 %v4774, %v6385
    %v6387 = vpop.f32.mrf.mxu0
    %6388 = vdwg.mxu0
    %6389 = vmatpush.bf16.msra.mxu0 %v5678
    %6390 = vmatpush.bf16.msra.mxu0 %v5670
    %6391 = vmatpush.bf16.msra.mxu0 %v5662
    %6392 = vmatpush.bf16.msra.mxu0 %v5654
    %6393 = vmatpush.bf16.msra.mxu0 %v5646
    %6394 = vmatpush.bf16.msra.mxu0 %v5638
    %6395 = vmatpush.bf16.msra.mxu0 %v5630
    %6396 = vmatpush.bf16.msra.mxu0 %v5622
    %6397 = vmatmul.bf16.gmra.mxu0 %v4507
    %v6398 = vpop.f32.mrf.mxu0
    %v6399 = vadd.f32 %v6386, %v6398
    %v6400 = vpop.f32.mrf.mxu0
    %6401 = vdwg.mxu0
    %6402 = vmatpush.bf16.msra.mxu0 %v5742
    %6403 = vmatpush.bf16.msra.mxu0 %v5734
    %6404 = vmatpush.bf16.msra.mxu0 %v5726
    %6405 = vmatpush.bf16.msra.mxu0 %v5718
    %6406 = vmatpush.bf16.msra.mxu0 %v5710
    %6407 = vmatpush.bf16.msra.mxu0 %v5702
    %6408 = vmatpush.bf16.msra.mxu0 %v5694
    %6409 = vmatpush.bf16.msra.mxu0 %v5686
    %6410 = vmatmul.bf16.gmra.mxu0 %v4508
    %v6411 = vpop.f32.mrf.mxu0
    %v6412 = vadd.f32 %v6399, %v6411
    %v6413 = vpop.f32.mrf.mxu0
    %6414 = vdwg.mxu0
    %6415 = vmatpush.bf16.msra.mxu0 %v5806
    %6416 = vmatpush.bf16.msra.mxu0 %v5798
    %6417 = vmatpush.bf16.msra.mxu0 %v5790
    %6418 = vmatpush.bf16.msra.mxu0 %v5782
    %6419 = vmatpush.bf16.msra.mxu0 %v5774
    %6420 = vmatpush.bf16.msra.mxu0 %v5766
    %6421 = vmatpush.bf16.msra.mxu0 %v5758
    %6422 = vmatpush.bf16.msra.mxu0 %v5750
    %6423 = vmatmul.bf16.gmra.mxu0 %v4509
    %v6424 = vpop.f32.mrf.mxu0
    %v6425 = vadd.f32 %v6412, %v6424
    %v6426 = vpop.f32.mrf.mxu0
    %6427 = vdwg.mxu0
    %6428 = vmatpush.bf16.msra.mxu0 %v5615
    %6429 = vmatpush.bf16.msra.mxu0 %v5607
    %6430 = vmatpush.bf16.msra.mxu0 %v5599
    %6431 = vmatpush.bf16.msra.mxu0 %v5591
    %6432 = vmatpush.bf16.msra.mxu0 %v5583
    %6433 = vmatpush.bf16.msra.mxu0 %v5575
    %6434 = vmatpush.bf16.msra.mxu0 %v5567
    %6435 = vmatpush.bf16.msra.mxu0 %v5559
    %6436 = vmatmul.bf16.gmra.mxu0 %v4506
    %v6437 = vpop.f32.mrf.mxu0
    %v6438 = vadd.f32 %v4775, %v6437
    %v6439 = vpop.f32.mrf.mxu0
    %6440 = vdwg.mxu0
    %6441 = vmatpush.bf16.msra.mxu0 %v5679
    %6442 = vmatpush.bf16.msra.mxu0 %v5671
    %6443 = vmatpush.bf16.msra.mxu0 %v5663
    %6444 = vmatpush.bf16.msra.mxu0 %v5655
    %6445 = vmatpush.bf16.msra.mxu0 %v5647
    %6446 = vmatpush.bf16.msra.mxu0 %v5639
    %6447 = vmatpush.bf16.msra.mxu0 %v5631
    %6448 = vmatpush.bf16.msra.mxu0 %v5623
    %6449 = vmatmul.bf16.gmra.mxu0 %v4507
    %v6450 = vpop.f32.mrf.mxu0
    %v6451 = vadd.f32 %v6438, %v6450
    %v6452 = vpop.f32.mrf.mxu0
    %6453 = vdwg.mxu0
    %6454 = vmatpush.bf16.msra.mxu0 %v5743
    %6455 = vmatpush.bf16.msra.mxu0 %v5735
    %6456 = vmatpush.bf16.msra.mxu0 %v5727
    %6457 = vmatpush.bf16.msra.mxu0 %v5719
    %6458 = vmatpush.bf16.msra.mxu0 %v5711
    %6459 = vmatpush.bf16.msra.mxu0 %v5703
    %6460 = vmatpush.bf16.msra.mxu0 %v5695
    %6461 = vmatpush.bf16.msra.mxu0 %v5687
    %6462 = vmatmul.bf16.gmra.mxu0 %v4508
    %v6463 = vpop.f32.mrf.mxu0
    %v6464 = vadd.f32 %v6451, %v6463
    %v6465 = vpop.f32.mrf.mxu0
    %6466 = vdwg.mxu0
    %6467 = vmatpush.bf16.msra.mxu0 %v5807
    %6468 = vmatpush.bf16.msra.mxu0 %v5799
    %6469 = vmatpush.bf16.msra.mxu0 %v5791
    %6470 = vmatpush.bf16.msra.mxu0 %v5783
    %6471 = vmatpush.bf16.msra.mxu0 %v5775
    %6472 = vmatpush.bf16.msra.mxu0 %v5767
    %6473 = vmatpush.bf16.msra.mxu0 %v5759
    %6474 = vmatpush.bf16.msra.mxu0 %v5751
    %6475 = vmatmul.bf16.gmra.mxu0 %v4509
    %v6476 = vpop.f32.mrf.mxu0
    %v6477 = vadd.f32 %v6464, %v6476
    %v6478 = vpop.f32.mrf.mxu0
    %6479 = vdwg.mxu0
    %vm6480 = vcmask 1041408
    %v6481 = vsel %vm6480, %v6113, 0.0
    %v6482 = vsel %vm6480, %v6165, 0.0
    %v6483 = vadd.f32 %v6481, %v6482
    %v6484 = vsel %vm6480, %v6217, 0.0
    %v6485 = vadd.f32 %v6483, %v6484
    %v6486 = vsel %vm6480, %v6269, 0.0
    %v6487 = vadd.f32 %v6485, %v6486
    %v6488 = vsel %vm6480, %v6321, 0.0
    %v6489 = vadd.f32 %v6487, %v6488
    %v6490 = vsel %vm6480, %v6373, 0.0
    %v6491 = vadd.f32 %v6489, %v6490
    %v6492 = vsel %vm6480, %v6425, 0.0
    %v6493 = vadd.f32 %v6491, %v6492
    %v6494 = vsel %vm6480, %v6477, 0.0
    %v6495 = vadd.f32 %v6493, %v6494
    %6496 = vadd.xlane.f32.xlu0 %v6495
    %v6497 = vpop.xlane.xlu0 %6496
    %v6498 = vrcp.pop 1024.0
    %v6499 = vmul.f32 1024.0, %v6498
    %v6500 = vsub.f32 1.0, %v6499
    %v6501 = vmul.f32 %v6498, %v6500
    %v6502 = vadd.f32 %v6498, %v6501
    %vm6503 = vweird.f32 %v6498
    %v6504 = vsel %vm6503, %v6498, %v6502
    %v6505 = vmul.f32 %v6497, %v6504
    %v6506 = vsub.f32 %v6113, %v6505
    %v6507 = vsub.f32 %v6165, %v6505
    %v6508 = vsub.f32 %v6217, %v6505
    %v6509 = vsub.f32 %v6269, %v6505
    %v6510 = vsub.f32 %v6321, %v6505
    %v6511 = vsub.f32 %v6373, %v6505
    %v6512 = vsub.f32 %v6425, %v6505
    %v6513 = vsub.f32 %v6477, %v6505
    %v6514 = vmul.f32 %v6506, %v6506
    %v6515 = vmul.f32 %v6507, %v6507
    %v6516 = vmul.f32 %v6508, %v6508
    %v6517 = vmul.f32 %v6509, %v6509
    %v6518 = vmul.f32 %v6510, %v6510
    %v6519 = vmul.f32 %v6511, %v6511
    %v6520 = vmul.f32 %v6512, %v6512
    %v6521 = vmul.f32 %v6513, %v6513
    %v6522 = vsel %vm6480, %v6514, 0.0
    %v6523 = vsel %vm6480, %v6515, 0.0
    %v6524 = vadd.f32 %v6522, %v6523
    %v6525 = vsel %vm6480, %v6516, 0.0
    %v6526 = vadd.f32 %v6524, %v6525
    %v6527 = vsel %vm6480, %v6517, 0.0
    %v6528 = vadd.f32 %v6526, %v6527
    %v6529 = vsel %vm6480, %v6518, 0.0
    %v6530 = vadd.f32 %v6528, %v6529
    %v6531 = vsel %vm6480, %v6519, 0.0
    %v6532 = vadd.f32 %v6530, %v6531
    %v6533 = vsel %vm6480, %v6520, 0.0
    %v6534 = vadd.f32 %v6532, %v6533
    %v6535 = vsel %vm6480, %v6521, 0.0
    %v6536 = vadd.f32 %v6534, %v6535
    %6537 = vadd.xlane.f32.xlu0 %v6536
    %v6538 = vpop.xlane.xlu0 %6537
    %v6539 = vmul.f32 %v6538, %v6504
    %v6540 = vadd.f32 %v6539, 1e-05
    %v6541 = vrsqrt.pop %v6540
    %v6542 = vmul.f32 %v6541, %v6540
    %v6543 = vmul.f32 %v6542, %v6541
    %v6544 = vmul.f32 0.5, %v6543
    %v6545 = vsub.f32 1.5, %v6544
    %v6546 = vmul.f32 %v6541, %v6545
    %vm6547 = vweird.f32 %v6540
    %vm6548 = vweird.f32 %v6541
    %vm6549 = vmor %vm6547, %vm6548
    %v6550 = vsel %vm6549, %v6541, %v6546
    %v6551 = vmul.f32 %v6506, %v6550
    %v6552 = vmul.f32 %v6507, %v6550
    %v6553 = vmul.f32 %v6508, %v6550
    %v6554 = vmul.f32 %v6509, %v6550
    %v6555 = vmul.f32 %v6510, %v6550
    %v6556 = vmul.f32 %v6511, %v6550
    %v6557 = vmul.f32 %v6512, %v6550
    %v6558 = vmul.f32 %v6513, %v6550
    %v6559 = vld [vmem:[%s6] sm:$0xff]
    %v6561 = vperm.slane %v6559, 0
    %v6562 = vperm.slane %v6559, 1
    %v6563 = vperm.slane %v6559, 2
    %v6564 = vperm.slane %v6559, 3
    %v6565 = vperm.slane %v6559, 4
    %v6566 = vperm.slane %v6559, 5
    %v6567 = vperm.slane %v6559, 6
    %v6568 = vperm.slane %v6559, 7
    %v6577 = vmul.f32 %v6551, %v6561
    %v6578 = vmul.f32 %v6552, %v6562
    %v6579 = vmul.f32 %v6553, %v6563
    %v6580 = vmul.f32 %v6554, %v6564
    %v6581 = vmul.f32 %v6555, %v6565
    %v6582 = vmul.f32 %v6556, %v6566
    %v6583 = vmul.f32 %v6557, %v6567
    %v6584 = vmul.f32 %v6558, %v6568
    %v6585 = vld [vmem:[%s7] sm:$0xff]
    %v6587 = vperm.slane %v6585, 0
    %v6588 = vperm.slane %v6585, 1
    %v6589 = vperm.slane %v6585, 2
    %v6590 = vperm.slane %v6585, 3
    %v6591 = vperm.slane %v6585, 4
    %v6592 = vperm.slane %v6585, 5
    %v6593 = vperm.slane %v6585, 6
    %v6594 = vperm.slane %v6585, 7
    %v6603 = vadd.f32 %v6577, %v6587
    %v6604 = vadd.f32 %v6578, %v6588
    %v6605 = vadd.f32 %v6579, %v6589
    %v6606 = vadd.f32 %v6580, %v6590
    %v6607 = vadd.f32 %v6581, %v6591
    %v6608 = vadd.f32 %v6582, %v6592
    %v6609 = vadd.f32 %v6583, %v6593
    %v6610 = vadd.f32 %v6584, %v6594
    %vm6611 = vcmp.ge.f32.partialorder %v6603, 0.0
    %vm6612 = vcmp.ge.f32.partialorder %v6604, 0.0
    %vm6613 = vcmp.ge.f32.partialorder %v6605, 0.0
    %vm6614 = vcmp.ge.f32.partialorder %v6606, 0.0
    %vm6615 = vcmp.ge.f32.partialorder %v6607, 0.0
    %vm6616 = vcmp.ge.f32.partialorder %v6608, 0.0
    %vm6617 = vcmp.ge.f32.partialorder %v6609, 0.0
    %vm6618 = vcmp.ge.f32.partialorder %v6610, 0.0
    %v6619 = vmul.f32 %v6603, 0.01
    %v6620 = vmul.f32 %v6604, 0.01
    %v6621 = vmul.f32 %v6605, 0.01
    %v6622 = vmul.f32 %v6606, 0.01
    %v6623 = vmul.f32 %v6607, 0.01
    %v6624 = vmul.f32 %v6608, 0.01
    %v6625 = vmul.f32 %v6609, 0.01
    %v6626 = vmul.f32 %v6610, 0.01
    %v6627 = vsel %vm6611, %v6603, %v6619
    %v6628 = vsel %vm6612, %v6604, %v6620
    %v6629 = vsel %vm6613, %v6605, %v6621
    %v6630 = vsel %vm6614, %v6606, %v6622
    %v6631 = vsel %vm6615, %v6607, %v6623
    %v6632 = vsel %vm6616, %v6608, %v6624
    %v6633 = vsel %vm6617, %v6609, %v6625
    %v6634 = vsel %vm6618, %v6610, %v6626
    %v6635 = vld [vmem:[%s8] sm:$0xff]
    %v6636 = vld [vmem:[%s8 + $0x8] sm:$0xff]
    %v6637 = vld [vmem:[%s8 + $0x10] sm:$0xff]
    %v6638 = vld [vmem:[%s8 + $0x18] sm:$0xff]
    %v6639 = vld [vmem:[%s8 + $0x20] sm:$0xff]
    %v6640 = vld [vmem:[%s8 + $0x28] sm:$0xff]
    %v6641 = vld [vmem:[%s8 + $0x30] sm:$0xff]
    %v6642 = vld [vmem:[%s8 + $0x38] sm:$0xff]
    %v6643 = vld [vmem:[%s8 + $0x40] sm:$0xff]
    %v6644 = vld [vmem:[%s8 + $0x48] sm:$0xff]
    %v6645 = vld [vmem:[%s8 + $0x50] sm:$0xff]
    %v6646 = vld [vmem:[%s8 + $0x58] sm:$0xff]
    %v6647 = vld [vmem:[%s8 + $0x60] sm:$0xff]
    %v6648 = vld [vmem:[%s8 + $0x68] sm:$0xff]
    %v6649 = vld [vmem:[%s8 + $0x70] sm:$0xff]
    %v6650 = vld [vmem:[%s8 + $0x78] sm:$0xff]
    %v6651 = vld [vmem:[%s8 + $0x80] sm:$0xff]
    %v6652 = vld [vmem:[%s8 + $0x88] sm:$0xff]
    %v6653 = vld [vmem:[%s8 + $0x90] sm:$0xff]
    %v6654 = vld [vmem:[%s8 + $0x98] sm:$0xff]
    %v6655 = vld [vmem:[%s8 + $0xa0] sm:$0xff]
    %v6656 = vld [vmem:[%s8 + $0xa8] sm:$0xff]
    %v6657 = vld [vmem:[%s8 + $0xb0] sm:$0xff]
    %v6658 = vld [vmem:[%s8 + $0xb8] sm:$0xff]
    %v6659 = vld [vmem:[%s8 + $0xc0] sm:$0xff]
    %v6660 = vld [vmem:[%s8 + $0xc8] sm:$0xff]
    %v6661 = vld [vmem:[%s8 + $0xd0] sm:$0xff]
    %v6662 = vld [vmem:[%s8 + $0xd8] sm:$0xff]
    %v6663 = vld [vmem:[%s8 + $0xe0] sm:$0xff]
    %v6664 = vld [vmem:[%s8 + $0xe8] sm:$0xff]
    %v6665 = vld [vmem:[%s8 + $0xf0] sm:$0xff]
    %v6666 = vld [vmem:[%s8 + $0xf8] sm:$0xff]
    %v6667 = vld [vmem:[%s8 + $0x100] sm:$0xff]
    %v6668 = vld [vmem:[%s8 + $0x108] sm:$0xff]
    %v6669 = vld [vmem:[%s8 + $0x110] sm:$0xff]
    %v6670 = vld [vmem:[%s8 + $0x118] sm:$0xff]
    %v6671 = vld [vmem:[%s8 + $0x120] sm:$0xff]
    %v6672 = vld [vmem:[%s8 + $0x128] sm:$0xff]
    %v6673 = vld [vmem:[%s8 + $0x130] sm:$0xff]
    %v6674 = vld [vmem:[%s8 + $0x138] sm:$0xff]
    %v6675 = vld [vmem:[%s8 + $0x140] sm:$0xff]
    %v6676 = vld [vmem:[%s8 + $0x148] sm:$0xff]
    %v6677 = vld [vmem:[%s8 + $0x150] sm:$0xff]
    %v6678 = vld [vmem:[%s8 + $0x158] sm:$0xff]
    %v6679 = vld [vmem:[%s8 + $0x160] sm:$0xff]
    %v6680 = vld [vmem:[%s8 + $0x168] sm:$0xff]
    %v6681 = vld [vmem:[%s8 + $0x170] sm:$0xff]
    %v6682 = vld [vmem:[%s8 + $0x178] sm:$0xff]
    %v6683 = vld [vmem:[%s8 + $0x180] sm:$0xff]
    %v6684 = vld [vmem:[%s8 + $0x188] sm:$0xff]
    %v6685 = vld [vmem:[%s8 + $0x190] sm:$0xff]
    %v6686 = vld [vmem:[%s8 + $0x198] sm:$0xff]
    %v6687 = vld [vmem:[%s8 + $0x1a0] sm:$0xff]
    %v6688 = vld [vmem:[%s8 + $0x1a8] sm:$0xff]
    %v6689 = vld [vmem:[%s8 + $0x1b0] sm:$0xff]
    %v6690 = vld [vmem:[%s8 + $0x1b8] sm:$0xff]
    %v6691 = vld [vmem:[%s8 + $0x1c0] sm:$0xff]
    %v6692 = vld [vmem:[%s8 + $0x1c8] sm:$0xff]
    %v6693 = vld [vmem:[%s8 + $0x1d0] sm:$0xff]
    %v6694 = vld [vmem:[%s8 + $0x1d8] sm:$0xff]
    %v6695 = vld [vmem:[%s8 + $0x1e0] sm:$0xff]
    %v6696 = vld [vmem:[%s8 + $0x1e8] sm:$0xff]
    %v6697 = vld [vmem:[%s8 + $0x1f0] sm:$0xff]
    %v6698 = vld [vmem:[%s8 + $0x1f8] sm:$0xff]
    %v6699 = vld [vmem:[%s8 + $0x200] sm:$0xff]
    %v6700 = vld [vmem:[%s8 + $0x208] sm:$0xff]
    %v6701 = vld [vmem:[%s8 + $0x210] sm:$0xff]
    %v6702 = vld [vmem:[%s8 + $0x218] sm:$0xff]
    %v6703 = vld [vmem:[%s8 + $0x220] sm:$0xff]
    %v6704 = vld [vmem:[%s8 + $0x228] sm:$0xff]
    %v6705 = vld [vmem:[%s8 + $0x230] sm:$0xff]
    %v6706 = vld [vmem:[%s8 + $0x238] sm:$0xff]
    %v6707 = vld [vmem:[%s8 + $0x240] sm:$0xff]
    %v6708 = vld [vmem:[%s8 + $0x248] sm:$0xff]
    %v6709 = vld [vmem:[%s8 + $0x250] sm:$0xff]
    %v6710 = vld [vmem:[%s8 + $0x258] sm:$0xff]
    %v6711 = vld [vmem:[%s8 + $0x260] sm:$0xff]
    %v6712 = vld [vmem:[%s8 + $0x268] sm:$0xff]
    %v6713 = vld [vmem:[%s8 + $0x270] sm:$0xff]
    %v6714 = vld [vmem:[%s8 + $0x278] sm:$0xff]
    %v6715 = vld [vmem:[%s8 + $0x280] sm:$0xff]
    %v6716 = vld [vmem:[%s8 + $0x288] sm:$0xff]
    %v6717 = vld [vmem:[%s8 + $0x290] sm:$0xff]
    %v6718 = vld [vmem:[%s8 + $0x298] sm:$0xff]
    %v6719 = vld [vmem:[%s8 + $0x2a0] sm:$0xff]
    %v6720 = vld [vmem:[%s8 + $0x2a8] sm:$0xff]
    %v6721 = vld [vmem:[%s8 + $0x2b0] sm:$0xff]
    %v6722 = vld [vmem:[%s8 + $0x2b8] sm:$0xff]
    %v6723 = vld [vmem:[%s8 + $0x2c0] sm:$0xff]
    %v6724 = vld [vmem:[%s8 + $0x2c8] sm:$0xff]
    %v6725 = vld [vmem:[%s8 + $0x2d0] sm:$0xff]
    %v6726 = vld [vmem:[%s8 + $0x2d8] sm:$0xff]
    %v6727 = vld [vmem:[%s8 + $0x2e0] sm:$0xff]
    %v6728 = vld [vmem:[%s8 + $0x2e8] sm:$0xff]
    %v6729 = vld [vmem:[%s8 + $0x2f0] sm:$0xff]
    %v6730 = vld [vmem:[%s8 + $0x2f8] sm:$0xff]
    %v6731 = vld [vmem:[%s8 + $0x300] sm:$0xff]
    %v6732 = vld [vmem:[%s8 + $0x308] sm:$0xff]
    %v6733 = vld [vmem:[%s8 + $0x310] sm:$0xff]
    %v6734 = vld [vmem:[%s8 + $0x318] sm:$0xff]
    %v6735 = vld [vmem:[%s8 + $0x320] sm:$0xff]
    %v6736 = vld [vmem:[%s8 + $0x328] sm:$0xff]
    %v6737 = vld [vmem:[%s8 + $0x330] sm:$0xff]
    %v6738 = vld [vmem:[%s8 + $0x338] sm:$0xff]
    %v6739 = vld [vmem:[%s8 + $0x340] sm:$0xff]
    %v6740 = vld [vmem:[%s8 + $0x348] sm:$0xff]
    %v6741 = vld [vmem:[%s8 + $0x350] sm:$0xff]
    %v6742 = vld [vmem:[%s8 + $0x358] sm:$0xff]
    %v6743 = vld [vmem:[%s8 + $0x360] sm:$0xff]
    %v6744 = vld [vmem:[%s8 + $0x368] sm:$0xff]
    %v6745 = vld [vmem:[%s8 + $0x370] sm:$0xff]
    %v6746 = vld [vmem:[%s8 + $0x378] sm:$0xff]
    %v6747 = vld [vmem:[%s8 + $0x380] sm:$0xff]
    %v6748 = vld [vmem:[%s8 + $0x388] sm:$0xff]
    %v6749 = vld [vmem:[%s8 + $0x390] sm:$0xff]
    %v6750 = vld [vmem:[%s8 + $0x398] sm:$0xff]
    %v6751 = vld [vmem:[%s8 + $0x3a0] sm:$0xff]
    %v6752 = vld [vmem:[%s8 + $0x3a8] sm:$0xff]
    %v6753 = vld [vmem:[%s8 + $0x3b0] sm:$0xff]
    %v6754 = vld [vmem:[%s8 + $0x3b8] sm:$0xff]
    %v6755 = vld [vmem:[%s8 + $0x3c0] sm:$0xff]
    %v6756 = vld [vmem:[%s8 + $0x3c8] sm:$0xff]
    %v6757 = vld [vmem:[%s8 + $0x3d0] sm:$0xff]
    %v6758 = vld [vmem:[%s8 + $0x3d8] sm:$0xff]
    %v6759 = vld [vmem:[%s8 + $0x3e0] sm:$0xff]
    %v6760 = vld [vmem:[%s8 + $0x3e8] sm:$0xff]
    %v6761 = vld [vmem:[%s8 + $0x3f0] sm:$0xff]
    %v6762 = vld [vmem:[%s8 + $0x3f8] sm:$0xff]
    %6763 = vmatpush.msra.mxu0 %v6650
    %6764 = vmatpush.msra.mxu0 %v6649
    %6765 = vmatpush.msra.mxu0 %v6648
    %6766 = vmatpush.msra.mxu0 %v6647
    %6767 = vmatpush.msra.mxu0 %v6646
    %6768 = vmatpush.msra.mxu0 %v6645
    %6769 = vmatpush.msra.mxu0 %v6644
    %6770 = vmatpush.msra.mxu0 %v6643
    %6771 = vmatpush.msra.mxu0 %v6642
    %6772 = vmatpush.msra.mxu0 %v6641
    %6773 = vmatpush.msra.mxu0 %v6640
    %6774 = vmatpush.msra.mxu0 %v6639
    %6775 = vmatpush.msra.mxu0 %v6638
    %6776 = vmatpush.msra.mxu0 %v6637
    %6777 = vmatpush.msra.mxu0 %v6636
    %6778 = vmatpush.msra.mxu0 %v6635
    %6779 = vmatmul.f32.gmra.mxu0 %v6627
    %v6780 = vpop.f32.mrf.mxu0
    %v6781 = vadd.f32 0.0, %v6780
    %6782 = vdwg.mxu0
    %6783 = vmatpush.msra.mxu0 %v6666
    %6784 = vmatpush.msra.mxu0 %v6665
    %6785 = vmatpush.msra.mxu0 %v6664
    %6786 = vmatpush.msra.mxu0 %v6663
    %6787 = vmatpush.msra.mxu0 %v6662
    %6788 = vmatpush.msra.mxu0 %v6661
    %6789 = vmatpush.msra.mxu0 %v6660
    %6790 = vmatpush.msra.mxu0 %v6659
    %6791 = vmatpush.msra.mxu0 %v6658
    %6792 = vmatpush.msra.mxu0 %v6657
    %6793 = vmatpush.msra.mxu0 %v6656
    %6794 = vmatpush.msra.mxu0 %v6655
    %6795 = vmatpush.msra.mxu0 %v6654
    %6796 = vmatpush.msra.mxu0 %v6653
    %6797 = vmatpush.msra.mxu0 %v6652
    %6798 = vmatpush.msra.mxu0 %v6651
    %6799 = vmatmul.f32.gmra.mxu0 %v6628
    %v6800 = vpop.f32.mrf.mxu0
    %v6801 = vadd.f32 %v6781, %v6800
    %6802 = vdwg.mxu0
    %6803 = vmatpush.msra.mxu0 %v6682
    %6804 = vmatpush.msra.mxu0 %v6681
    %6805 = vmatpush.msra.mxu0 %v6680
    %6806 = vmatpush.msra.mxu0 %v6679
    %6807 = vmatpush.msra.mxu0 %v6678
    %6808 = vmatpush.msra.mxu0 %v6677
    %6809 = vmatpush.msra.mxu0 %v6676
    %6810 = vmatpush.msra.mxu0 %v6675
    %6811 = vmatpush.msra.mxu0 %v6674
    %6812 = vmatpush.msra.mxu0 %v6673
    %6813 = vmatpush.msra.mxu0 %v6672
    %6814 = vmatpush.msra.mxu0 %v6671
    %6815 = vmatpush.msra.mxu0 %v6670
    %6816 = vmatpush.msra.mxu0 %v6669
    %6817 = vmatpush.msra.mxu0 %v6668
    %6818 = vmatpush.msra.mxu0 %v6667
    %6819 = vmatmul.f32.gmra.mxu0 %v6629
    %v6820 = vpop.f32.mrf.mxu0
    %v6821 = vadd.f32 %v6801, %v6820
    %6822 = vdwg.mxu0
    %6823 = vmatpush.msra.mxu0 %v6698
    %6824 = vmatpush.msra.mxu0 %v6697
    %6825 = vmatpush.msra.mxu0 %v6696
    %6826 = vmatpush.msra.mxu0 %v6695
    %6827 = vmatpush.msra.mxu0 %v6694
    %6828 = vmatpush.msra.mxu0 %v6693
    %6829 = vmatpush.msra.mxu0 %v6692
    %6830 = vmatpush.msra.mxu0 %v6691
    %6831 = vmatpush.msra.mxu0 %v6690
    %6832 = vmatpush.msra.mxu0 %v6689
    %6833 = vmatpush.msra.mxu0 %v6688
    %6834 = vmatpush.msra.mxu0 %v6687
    %6835 = vmatpush.msra.mxu0 %v6686
    %6836 = vmatpush.msra.mxu0 %v6685
    %6837 = vmatpush.msra.mxu0 %v6684
    %6838 = vmatpush.msra.mxu0 %v6683
    %6839 = vmatmul.f32.gmra.mxu0 %v6630
    %v6840 = vpop.f32.mrf.mxu0
    %v6841 = vadd.f32 %v6821, %v6840
    %6842 = vdwg.mxu0
    %6843 = vmatpush.msra.mxu0 %v6714
    %6844 = vmatpush.msra.mxu0 %v6713
    %6845 = vmatpush.msra.mxu0 %v6712
    %6846 = vmatpush.msra.mxu0 %v6711
    %6847 = vmatpush.msra.mxu0 %v6710
    %6848 = vmatpush.msra.mxu0 %v6709
    %6849 = vmatpush.msra.mxu0 %v6708
    %6850 = vmatpush.msra.mxu0 %v6707
    %6851 = vmatpush.msra.mxu0 %v6706
    %6852 = vmatpush.msra.mxu0 %v6705
    %6853 = vmatpush.msra.mxu0 %v6704
    %6854 = vmatpush.msra.mxu0 %v6703
    %6855 = vmatpush.msra.mxu0 %v6702
    %6856 = vmatpush.msra.mxu0 %v6701
    %6857 = vmatpush.msra.mxu0 %v6700
    %6858 = vmatpush.msra.mxu0 %v6699
    %6859 = vmatmul.f32.gmra.mxu0 %v6631
    %v6860 = vpop.f32.mrf.mxu0
    %v6861 = vadd.f32 %v6841, %v6860
    %6862 = vdwg.mxu0
    %6863 = vmatpush.msra.mxu0 %v6730
    %6864 = vmatpush.msra.mxu0 %v6729
    %6865 = vmatpush.msra.mxu0 %v6728
    %6866 = vmatpush.msra.mxu0 %v6727
    %6867 = vmatpush.msra.mxu0 %v6726
    %6868 = vmatpush.msra.mxu0 %v6725
    %6869 = vmatpush.msra.mxu0 %v6724
    %6870 = vmatpush.msra.mxu0 %v6723
    %6871 = vmatpush.msra.mxu0 %v6722
    %6872 = vmatpush.msra.mxu0 %v6721
    %6873 = vmatpush.msra.mxu0 %v6720
    %6874 = vmatpush.msra.mxu0 %v6719
    %6875 = vmatpush.msra.mxu0 %v6718
    %6876 = vmatpush.msra.mxu0 %v6717
    %6877 = vmatpush.msra.mxu0 %v6716
    %6878 = vmatpush.msra.mxu0 %v6715
    %6879 = vmatmul.f32.gmra.mxu0 %v6632
    %v6880 = vpop.f32.mrf.mxu0
    %v6881 = vadd.f32 %v6861, %v6880
    %6882 = vdwg.mxu0
    %6883 = vmatpush.msra.mxu0 %v6746
    %6884 = vmatpush.msra.mxu0 %v6745
    %6885 = vmatpush.msra.mxu0 %v6744
    %6886 = vmatpush.msra.mxu0 %v6743
    %6887 = vmatpush.msra.mxu0 %v6742
    %6888 = vmatpush.msra.mxu0 %v6741
    %6889 = vmatpush.msra.mxu0 %v6740
    %6890 = vmatpush.msra.mxu0 %v6739
    %6891 = vmatpush.msra.mxu0 %v6738
    %6892 = vmatpush.msra.mxu0 %v6737
    %6893 = vmatpush.msra.mxu0 %v6736
    %6894 = vmatpush.msra.mxu0 %v6735
    %6895 = vmatpush.msra.mxu0 %v6734
    %6896 = vmatpush.msra.mxu0 %v6733
    %6897 = vmatpush.msra.mxu0 %v6732
    %6898 = vmatpush.msra.mxu0 %v6731
    %6899 = vmatmul.f32.gmra.mxu0 %v6633
    %v6900 = vpop.f32.mrf.mxu0
    %v6901 = vadd.f32 %v6881, %v6900
    %6902 = vdwg.mxu0
    %6903 = vmatpush.msra.mxu0 %v6762
    %6904 = vmatpush.msra.mxu0 %v6761
    %6905 = vmatpush.msra.mxu0 %v6760
    %6906 = vmatpush.msra.mxu0 %v6759
    %6907 = vmatpush.msra.mxu0 %v6758
    %6908 = vmatpush.msra.mxu0 %v6757
    %6909 = vmatpush.msra.mxu0 %v6756
    %6910 = vmatpush.msra.mxu0 %v6755
    %6911 = vmatpush.msra.mxu0 %v6754
    %6912 = vmatpush.msra.mxu0 %v6753
    %6913 = vmatpush.msra.mxu0 %v6752
    %6914 = vmatpush.msra.mxu0 %v6751
    %6915 = vmatpush.msra.mxu0 %v6750
    %6916 = vmatpush.msra.mxu0 %v6749
    %6917 = vmatpush.msra.mxu0 %v6748
    %6918 = vmatpush.msra.mxu0 %v6747
    %6919 = vmatmul.f32.gmra.mxu0 %v6634
    %v6920 = vpop.f32.mrf.mxu0
    %v6921 = vadd.f32 %v6901, %v6920
    %6922 = vdwg.mxu0
    %vm6923 = vcmask 9216
    %6924 = vst.msk [vmem:[#allocation2] sm:$0x3] %vm6923, %v6921
    // Predicated region
    $region38: #{two_stream_net_forward.5} parent=1 // pred_check
      _
    $region39: #{two_stream_net_forward.5} parent=1 // pred_check_branch
      %6926 = sbr.rel (0) target = $region41
    $region40: #{two_stream_net_forward.5} parent=1 // pred_region
      %6928 = vsyncadd [#allocation3], 0
      %s6930 = sshll.u32 [#allocation2], 4
      %s6931 = int_to_ptr.vmem [resolvable:$true] %s6930
      %s6932 = sshll.u32 %s9, 4
      %s6933 = int_to_ptr.hbm [resolvable:$true] %s6932
      %6935 = dma.vmem_to_hbm [thread:$0]  %s6931, 32, %s6933, [#allocation3]
    $region41: #{two_stream_net_forward.5} parent=1 // pred_fallthru
      _
    // Predicated region
    $region42: #{two_stream_net_forward.5} parent=1 // pred_check
      _
    $region43: #{two_stream_net_forward.5} parent=1 // pred_check_branch
      %6937 = sbr.rel (0) target = $region45
    $region44: #{two_stream_net_forward.5} parent=1 // pred_region
      %6939 = dma.done [#allocation3], 32
    $region45: #{two_stream_net_forward.5} parent=1 // pred_fallthru
      _
    %6940 = vsyncpa [#allocation3], 1

</llo_original>
